<compile_context>
chip_gen: v5e
topology: v5e:2x2
jax: 0.10.0
libtpu: 0.0.40
codegen_flags: <defaults>
</compile_context>

<pallas_src>
import functools
import math

import jax
import jax.numpy as jnp
from jax.experimental import pallas as pl
from jax.experimental.pallas import tpu as pltpu


# ----------------------------------------------------------------------------
# Tiling helpers (performance feedback: large VMEM-budgeted row tiles, cdiv grid
# + padding, never "one giant block", and >=2 grid steps for v7x's 2 TCs).
# ----------------------------------------------------------------------------
_SUBLANE = 8
_ROW_TILE_CAP = 1024                      # past ~512-1024 the HBM pipeline is saturated
_VMEM_BUDGET_BYTES = 8 * 1024 * 1024      # conservative vs. v5e/v6e/v7x scoped-VMEM defaults


def _round_up(x, m):
    return ((x + m - 1) // m) * m


def _pick_row_tile(m, bytes_per_row):
    """Largest multiple of 8 rows whose working set fits the VMEM budget."""
    vmem_rows = (_VMEM_BUDGET_BYTES // max(1, bytes_per_row)) // _SUBLANE * _SUBLANE
    vmem_rows = max(_SUBLANE, vmem_rows)
    # Aim for at least 2 grid steps so both v7x TensorCores (and the software
    # pipeline) get work even at small problem sizes.
    half = _round_up(pl.cdiv(m, 2), _SUBLANE)
    return max(_SUBLANE, min(_ROW_TILE_CAP, vmem_rows, half))


def _layer_norm(h, g, b, eps=1e-5):
    mean = jnp.mean(h, axis=-1, keepdims=True)
    c = h - mean
    var = jnp.mean(c * c, axis=-1, keepdims=True)
    return c * jax.lax.rsqrt(var + eps) * g + b


# ----------------------------------------------------------------------------
# Pallas kernels
# ----------------------------------------------------------------------------
def _qkv_kernel(x_ref, wq_ref, bq_ref, wk_ref, bk_ref, wv_ref, bv_ref,
                q_ref, k_ref, v_ref):
    xb = x_ref[...].astype(jnp.bfloat16)          # bf16 MXU operands, f32 accumulate
    q_ref[...] = jnp.dot(xb, wq_ref[...], preferred_element_type=jnp.float32) + bq_ref[...]
    k_ref[...] = jnp.dot(xb, wk_ref[...], preferred_element_type=jnp.float32) + bk_ref[...]
    v_ref[...] = jnp.dot(xb, wv_ref[...], preferred_element_type=jnp.float32) + bv_ref[...]


def _linear_kernel(x_ref, w_ref, b_ref, o_ref):
    o_ref[...] = (jnp.dot(x_ref[...].astype(jnp.bfloat16), w_ref[...],
                          preferred_element_type=jnp.float32) + b_ref[...])


def _make_attn_core_kernel(num_heads):
    def kernel(q_ref, k_ref, v_ref, mask_ref, o_ref):
        q = q_ref[...]                              # (tr, S, D) f32
        k = k_ref[...]
        v = v_ref[...]
        tr, S, D = q.shape
        dh = D // num_heads
        scale = 1.0 / math.sqrt(dh)
        # key-padding mask -> additive bias on the key axis, (tr, 1, S)
        bias = jnp.where(mask_ref[...] > 0.5, 0.0, -1e9)
        outs = []
        for h in range(num_heads):                  # heads are few & static
            sl = slice(h * dh, (h + 1) * dh)
            s = jnp.einsum('rqd,rkd->rqk',
                           q[:, :, sl].astype(jnp.bfloat16),
                           k[:, :, sl].astype(jnp.bfloat16),
                           preferred_element_type=jnp.float32) * scale + bias
            s = s - jnp.max(s, axis=-1, keepdims=True)
            p = jnp.exp(s)
            p = p / jnp.sum(p, axis=-1, keepdims=True)
            outs.append(jnp.einsum('rqk,rkd->rqd',
                                   p.astype(jnp.bfloat16),
                                   v[:, :, sl].astype(jnp.bfloat16),
                                   preferred_element_type=jnp.float32))
        o_ref[...] = jnp.concatenate(outs, axis=-1)  # single lane-dense store
    return kernel


def _block_ffn_kernel(x_ref, a_ref, g1_ref, b1n_ref, w1_ref, b1_ref,
                      w2_ref, b2_ref, g2_ref, b2n_ref, o_ref):
    h = _layer_norm(x_ref[...] + a_ref[...], g1_ref[...], b1n_ref[...])
    f = jnp.dot(h.astype(jnp.bfloat16), w1_ref[...],
                preferred_element_type=jnp.float32) + b1_ref[...]
    f = jnp.maximum(f, 0.0)
    f = jnp.dot(f.astype(jnp.bfloat16), w2_ref[...],
                preferred_element_type=jnp.float32) + b2_ref[...]
    o_ref[...] = _layer_norm(h + f, g2_ref[...], b2n_ref[...])


# ----------------------------------------------------------------------------
# pallas_call wrappers
# ----------------------------------------------------------------------------
_PARALLEL = pltpu.CompilerParams(dimension_semantics=("parallel",))


def _qkv_proj_pallas(x2, p):
    M, D = x2.shape
    tm = _pick_row_tile(M, 4 * 12 * D)
    M_pad = _round_up(M, tm)
    if M_pad != M:
        x2 = jnp.pad(x2, ((0, M_pad - M), (0, 0)))
    wspec = pl.BlockSpec((D, D), lambda i: (0, 0))
    bspec = pl.BlockSpec((1, D), lambda i: (0, 0))
    rspec = pl.BlockSpec((tm, D), lambda i: (i, 0))
    q, k, v = pl.pallas_call(
        _qkv_kernel,
        out_shape=[jax.ShapeDtypeStruct((M_pad, D), jnp.float32)] * 3,
        grid_spec=pltpu.PrefetchScalarGridSpec(
            num_scalar_prefetch=0,
            grid=(M_pad // tm,),
            in_specs=[rspec, wspec, bspec, wspec, bspec, wspec, bspec],
            out_specs=[rspec, rspec, rspec],
        ),
        compiler_params=_PARALLEL,
    )(x2, p['wq'], p['bq'], p['wk'], p['bk'], p['wv'], p['bv'])
    return q[:M], k[:M], v[:M]


def _linear_pallas(x2, w, b):
    M, Din = x2.shape
    Dout = w.shape[1]
    tm = _pick_row_tile(M, 4 * (3 * Din + 3 * Dout))
    M_pad = _round_up(M, tm)
    if M_pad != M:
        x2 = jnp.pad(x2, ((0, M_pad - M), (0, 0)))
    out = pl.pallas_call(
        _linear_kernel,
        out_shape=jax.ShapeDtypeStruct((M_pad, Dout), jnp.float32),
        grid_spec=pltpu.PrefetchScalarGridSpec(
            num_scalar_prefetch=0,
            grid=(M_pad // tm,),
            in_specs=[pl.BlockSpec((tm, Din), lambda i: (i, 0)),
                      pl.BlockSpec((Din, Dout), lambda i: (0, 0)),
                      pl.BlockSpec((1, Dout), lambda i: (0, 0))],
            out_specs=pl.BlockSpec((tm, Dout), lambda i: (i, 0)),
        ),
        compiler_params=_PARALLEL,
    )(x2, w, b)
    return out[:M]


def _attn_core_pallas(q, k, v, mask, num_heads):
    R, S, D = q.shape
    tr = _pick_row_tile(R, 4 * (10 * S * D + num_heads * S * S))
    R_pad = _round_up(R, tr)
    mask3 = mask.reshape(R, 1, S).astype(jnp.float32)
    if R_pad != R:
        pad = ((0, R_pad - R), (0, 0), (0, 0))
        q = jnp.pad(q, pad)
        k = jnp.pad(k, pad)
        v = jnp.pad(v, pad)
        mask3 = jnp.pad(mask3, pad, constant_values=1.0)
    tile = pl.BlockSpec((tr, S, D), lambda i: (i, 0, 0))
    out = pl.pallas_call(
        _make_attn_core_kernel(num_heads),
        out_shape=jax.ShapeDtypeStruct((R_pad, S, D), jnp.float32),
        grid_spec=pltpu.PrefetchScalarGridSpec(
            num_scalar_prefetch=0,
            grid=(R_pad // tr,),
            in_specs=[tile, tile, tile,
                      pl.BlockSpec((tr, 1, S), lambda i: (i, 0, 0))],
            out_specs=tile,
        ),
        compiler_params=_PARALLEL,
    )(q, k, v, mask3)
    return out[:R]


def mha_pallas(x, mask, p, num_heads):
    """Bare multi-head self-attention. x: [R, S, D], mask: [R, S] (1=keep)."""
    R, S, D = x.shape
    q, k, v = _qkv_proj_pallas(x.reshape(R * S, D), p)
    ctx = _attn_core_pallas(q.reshape(R, S, D), k.reshape(R, S, D),
                            v.reshape(R, S, D), mask, num_heads)
    o = _linear_pallas(ctx.reshape(R * S, D), p['wo'], p['bo'])
    return o.reshape(R, S, D)


def block_ffn_pallas(x, attn, layer):
    """Encoder-block tail: LN(x+attn) -> ReLU FFN -> LN(residual)."""
    R, S, D = x.shape
    FF = layer['w1'].shape[1]
    M = R * S
    x2 = x.reshape(M, D)
    a2 = attn.reshape(M, D)
    tm = _pick_row_tile(M, 4 * (8 * D + 2 * FF))
    M_pad = _round_up(M, tm)
    if M_pad != M:
        x2 = jnp.pad(x2, ((0, M_pad - M), (0, 0)))
        a2 = jnp.pad(a2, ((0, M_pad - M), (0, 0)))
    dvec = pl.BlockSpec((1, D), lambda i: (0, 0))
    rspec = pl.BlockSpec((tm, D), lambda i: (i, 0))
    out = pl.pallas_call(
        _block_ffn_kernel,
        out_shape=jax.ShapeDtypeStruct((M_pad, D), jnp.float32),
        grid_spec=pltpu.PrefetchScalarGridSpec(
            num_scalar_prefetch=0,
            grid=(M_pad // tm,),
            in_specs=[rspec, rspec, dvec, dvec,
                      pl.BlockSpec((D, FF), lambda i: (0, 0)),
                      pl.BlockSpec((1, FF), lambda i: (0, 0)),
                      pl.BlockSpec((FF, D), lambda i: (0, 0)),
                      dvec, dvec, dvec],
            out_specs=rspec,
        ),
        compiler_params=_PARALLEL,
    )(x2, a2, layer['ln1_g'], layer['ln1_b'], layer['w1'], layer['b1'],
      layer['w2'], layer['b2'], layer['ln2_g'], layer['ln2_b'])
    return out[:M].reshape(R, S, D)


# ----------------------------------------------------------------------------
# Pure-JAX references of the same math (same bf16 operand / f32 accum policy)
# ----------------------------------------------------------------------------
def _mha_ref(x, mask, p, num_heads):
    R, S, D = x.shape
    dh = D // num_heads
    xb = x.reshape(R * S, D).astype(jnp.bfloat16)

    def proj(w, b):
        return (jnp.dot(xb, w, preferred_element_type=jnp.float32) + b).reshape(R, S, D)

    q, k, v = proj(p['wq'], p['bq']), proj(p['wk'], p['bk']), proj(p['wv'], p['bv'])
    bias = jnp.where(mask.reshape(R, 1, S) > 0.5, 0.0, -1e9)
    scale = 1.0 / math.sqrt(dh)
    outs = []
    for h in range(num_heads):
        sl = slice(h * dh, (h + 1) * dh)
        s = jnp.einsum('rqd,rkd->rqk', q[:, :, sl].astype(jnp.bfloat16),
                       k[:, :, sl].astype(jnp.bfloat16),
                       preferred_element_type=jnp.float32) * scale + bias
        s = s - jnp.max(s, axis=-1, keepdims=True)
        pw = jnp.exp(s)
        pw = pw / jnp.sum(pw, axis=-1, keepdims=True)
        outs.append(jnp.einsum('rqk,rkd->rqd', pw.astype(jnp.bfloat16),
                               v[:, :, sl].astype(jnp.bfloat16),
                               preferred_element_type=jnp.float32))
    ctx = jnp.concatenate(outs, axis=-1).reshape(R * S, D)
    o = jnp.dot(ctx.astype(jnp.bfloat16), p['wo'],
                preferred_element_type=jnp.float32) + p['bo']
    return o.reshape(R, S, D)


def _block_ffn_ref(x, attn, layer):
    R, S, D = x.shape
    h = _layer_norm((x + attn).reshape(R * S, D), layer['ln1_g'], layer['ln1_b'])
    f = jnp.dot(h.astype(jnp.bfloat16), layer['w1'],
                preferred_element_type=jnp.float32) + layer['b1']
    f = jnp.maximum(f, 0.0)
    f = jnp.dot(f.astype(jnp.bfloat16), layer['w2'],
                preferred_element_type=jnp.float32) + layer['b2']
    return _layer_norm(h + f, layer['ln2_g'], layer['ln2_b']).reshape(R, S, D)


# ----------------------------------------------------------------------------
# Shared glue (embedding, PE, reshapes/transposes/masks exactly as in forward())
# ----------------------------------------------------------------------------
def _sinusoidal_pe(n, d):
    pos = jnp.arange(n, dtype=jnp.float32)[:, None]
    idx = jnp.arange(d // 2, dtype=jnp.float32)[None, :]
    ang = pos / jnp.power(10000.0, 2.0 * idx / d)
    return jnp.concatenate([jnp.sin(ang), jnp.cos(ang)], axis=-1)


def _forward(params, msa_feature, msa_mask, num_heads, mha_fn, block_fn):
    bs, n_msa, n_token = msa_feature.shape
    D = params['embed'].shape[1]

    # --- MSATransformer encoder over tokens (per MSA row) --------------------
    x = params['embed'][msa_feature].reshape(bs * n_msa, n_token, D)
    x = x + _sinusoidal_pe(n_token, D)[None, :, :]
    enc_mask = jnp.ones((bs * n_msa, n_token), jnp.float32)   # forward() passes no mask here
    for layer in params['layers']:
        attn = mha_fn(x, enc_mask, layer['attn'], num_heads)
        x = block_fn(x, attn, layer)

    # --- column attention over the MSA axis ----------------------------------
    x = jnp.transpose(x.reshape(bs, n_msa, n_token, D), (0, 2, 1, 3))
    x = x.reshape(bs * n_token, n_msa, D)
    if msa_mask is None:
        col_mask = jnp.ones((bs * n_token, n_msa), jnp.float32)
        row_mask = jnp.ones((bs * n_msa, n_token), jnp.float32)
    else:
        m = msa_mask.astype(jnp.float32)
        col_mask = jnp.transpose(m, (0, 2, 1)).reshape(bs * n_token, n_msa)
        row_mask = m.reshape(bs * n_msa, n_token)
    x = mha_fn(x, col_mask, params['col_attn'], num_heads)

    # --- row attention over the token axis ------------------------------------
    x = jnp.transpose(x.reshape(bs, n_token, n_msa, D), (0, 2, 1, 3))
    x = x.reshape(bs * n_msa, n_token, D)
    x = mha_fn(x, row_mask, params['row_attn'], num_heads)

    return x.reshape(bs, n_msa, n_token, D)


@functools.partial(jax.jit, static_argnames=("num_heads",))
def msa_embedder_forward(params, msa_feature, msa_mask, *, num_heads):
    return _forward(params, msa_feature, msa_mask, num_heads,
                    mha_fn=mha_pallas, block_fn=block_ffn_pallas)


def msa_embedder_reference(params, msa_feature, msa_mask, *, num_heads):
    return _forward(params, msa_feature, msa_mask, num_heads,
                    mha_fn=_mha_ref, block_fn=_block_ffn_ref)


# ----------------------------------------------------------------------------
# Deterministic parameter init (nn.Linear / nn.LayerNorm-style shapes).
# Matmul weights stored in bf16 (halves DMA bytes; f32 accumulation on MXU).
# ----------------------------------------------------------------------------
def _uniform(key, shape, bound, dtype=jnp.float32):
    return jax.random.uniform(key, shape, jnp.float32, -bound, bound).astype(dtype)


def _init_linear(key, din, dout):
    kw, kb = jax.random.split(key)
    bound = 1.0 / math.sqrt(din)
    return _uniform(kw, (din, dout), bound, jnp.bfloat16), _uniform(kb, (1, dout), bound)


def _init_mha(key, d):
    kq, kk, kv, ko = jax.random.split(key, 4)
    wq, bq = _init_linear(kq, d, d)
    wk, bk = _init_linear(kk, d, d)
    wv, bv = _init_linear(kv, d, d)
    wo, bo = _init_linear(ko, d, d)
    return dict(wq=wq, bq=bq, wk=wk, bk=bk, wv=wv, bv=bv, wo=wo, bo=bo)


def _init_encoder_layer(key, d, ff):
    ka, k1, k2 = jax.random.split(key, 3)
    w1, b1 = _init_linear(k1, d, ff)
    w2, b2 = _init_linear(k2, ff, d)
    return dict(attn=_init_mha(ka, d),
                ln1_g=jnp.ones((1, d), jnp.float32), ln1_b=jnp.zeros((1, d), jnp.float32),
                w1=w1, b1=b1, w2=w2, b2=b2,
                ln2_g=jnp.ones((1, d), jnp.float32), ln2_b=jnp.zeros((1, d), jnp.float32))


def init_msa_embedder(key, vocab, d, ff, n_layers):
    ke, kl, kc, kr = jax.random.split(key, 4)
    layers = [_init_encoder_layer(k, d, ff) for k in jax.random.split(kl, n_layers)]
    return dict(embed=jax.random.normal(ke, (vocab, d), jnp.float32) * 0.02,
                layers=layers,
                col_attn=_init_mha(kc, d),
                row_attn=_init_mha(kr, d))


# ----------------------------------------------------------------------------
# Test driver
# ----------------------------------------------------------------------------
if __name__ == "__main__":
    # Small config consistent with the module: msa_embed_size=32, msa_heads=4,
    # msa_hidden_size=64, msa_layers=2, num_msa_vocab=24.
    BS, N_MSA, N_TOKEN = 2, 4, 16
    D, HEADS, FF, LAYERS, VOCAB = 32, 4, 64, 2, 24

    root = jax.random.PRNGKey(0)
    kp, kt, km = jax.random.split(root, 3)
    params = init_msa_embedder(kp, VOCAB, D, FF, LAYERS)

    msa_feature = jax.random.randint(kt, (BS, N_MSA, N_TOKEN), 0, VOCAB, dtype=jnp.int32)
    msa_mask = (jax.random.uniform(km, (BS, N_MSA, N_TOKEN)) > 0.15).astype(jnp.float32)

    out = msa_embedder_forward(params, msa_feature, msa_mask, num_heads=HEADS)
    jax.block_until_ready(out)
    assert out.shape == (BS, N_MSA, N_TOKEN, D)
    assert bool(jnp.all(jnp.isfinite(out)))

    ref = msa_embedder_reference(params, msa_feature, msa_mask, num_heads=HEADS)
    err = float(jnp.max(jnp.abs(out - ref)))
    assert jnp.allclose(out, ref, atol=1e-2, rtol=1e-2), f"max abs err {err}"

    print("KERNEL_OK")
</pallas_src>

<mosaic_0001>
module attributes {stable_mosaic.version = 11 : i64} {
  func.func @_qkv_kernel(%arg0: i32, %arg1: memref<64x32xf32, #tpu.memory_space<vmem>>, %arg2: memref<32x32xbf16, #tpu.memory_space<vmem>>, %arg3: memref<1x32xf32, #tpu.memory_space<vmem>>, %arg4: memref<32x32xbf16, #tpu.memory_space<vmem>>, %arg5: memref<1x32xf32, #tpu.memory_space<vmem>>, %arg6: memref<32x32xbf16, #tpu.memory_space<vmem>>, %arg7: memref<1x32xf32, #tpu.memory_space<vmem>>, %arg8: memref<64x32xf32, #tpu.memory_space<vmem>>, %arg9: memref<64x32xf32, #tpu.memory_space<vmem>>, %arg10: memref<64x32xf32, #tpu.memory_space<vmem>>) attributes {dimension_semantics = [#tpu.dimension_semantics<parallel>], iteration_bounds = array<i64: 2>, scalar_prefetch = 0 : i64, scratch_operands = 0 : i64, tpu.core_type = #tpu.core_type<tc>, window_params = [{transform_indices = @transform_0, window_bounds = array<i64: 64, 32>}, {pipeline_mode = #tpu.pipeline_mode<synchronous>, transform_indices = @transform_1, window_bounds = array<i64: 32, 32>}, {pipeline_mode = #tpu.pipeline_mode<synchronous>, transform_indices = @transform_2, window_bounds = array<i64: 1, 32>}, {pipeline_mode = #tpu.pipeline_mode<synchronous>, transform_indices = @transform_3, window_bounds = array<i64: 32, 32>}, {pipeline_mode = #tpu.pipeline_mode<synchronous>, transform_indices = @transform_4, window_bounds = array<i64: 1, 32>}, {pipeline_mode = #tpu.pipeline_mode<synchronous>, transform_indices = @transform_5, window_bounds = array<i64: 32, 32>}, {pipeline_mode = #tpu.pipeline_mode<synchronous>, transform_indices = @transform_6, window_bounds = array<i64: 1, 32>}, {transform_indices = @transform_7, window_bounds = array<i64: 64, 32>}, {transform_indices = @transform_8, window_bounds = array<i64: 64, 32>}, {transform_indices = @transform_9, window_bounds = array<i64: 64, 32>}]} {
    %c0 = arith.constant 0 : index
    %c0_0 = arith.constant 0 : index
    %0 = vector.load %arg1[%c0, %c0_0] : memref<64x32xf32, #tpu.memory_space<vmem>>, vector<64x32xf32>
    %1 = arith.truncf %0 : vector<64x32xf32> to vector<64x32xbf16>
    %c0_1 = arith.constant 0 : index
    %c0_2 = arith.constant 0 : index
    %2 = vector.load %arg2[%c0_1, %c0_2] : memref<32x32xbf16, #tpu.memory_space<vmem>>, vector<32x32xbf16>
    %cst = arith.constant dense<0.000000e+00> : vector<64x32xf32>
    %3 = tpu.matmul %1, %2, %cst {dimension_numbers = #tpu.dot_dimension_numbers<[1], [0], [0], [1], [0, 0, 1, 1], [], []>} : vector<64x32xbf16>, vector<32x32xbf16>, vector<64x32xf32> -> vector<64x32xf32>
    %c0_3 = arith.constant 0 : index
    %c0_4 = arith.constant 0 : index
    %4 = vector.load %arg3[%c0_3, %c0_4] : memref<1x32xf32, #tpu.memory_space<vmem>>, vector<1x32xf32>
    %5 = vector.broadcast %4 : vector<1x32xf32> to vector<64x32xf32>
    %6 = arith.addf %3, %5 : vector<64x32xf32>
    %c0_5 = arith.constant 0 : index
    %c0_6 = arith.constant 0 : index
    %7 = vector.load %arg8[%c0_5, %c0_6] : memref<64x32xf32, #tpu.memory_space<vmem>>, vector<64x32xf32>
    tpu.vector_store %arg8[%c0_5, %c0_6], %6 {strides = array<i32>} : memref<64x32xf32, #tpu.memory_space<vmem>>, vector<64x32xf32>,
    %c0_7 = arith.constant 0 : index
    %c0_8 = arith.constant 0 : index
    %8 = vector.load %arg4[%c0_7, %c0_8] : memref<32x32xbf16, #tpu.memory_space<vmem>>, vector<32x32xbf16>
    %cst_9 = arith.constant dense<0.000000e+00> : vector<64x32xf32>
    %9 = tpu.matmul %1, %8, %cst_9 {dimension_numbers = #tpu.dot_dimension_numbers<[1], [0], [0], [1], [0, 0, 1, 1], [], []>} : vector<64x32xbf16>, vector<32x32xbf16>, vector<64x32xf32> -> vector<64x32xf32>
    %c0_10 = arith.constant 0 : index
    %c0_11 = arith.constant 0 : index
    %10 = vector.load %arg5[%c0_10, %c0_11] : memref<1x32xf32, #tpu.memory_space<vmem>>, vector<1x32xf32>
    %11 = vector.broadcast %10 : vector<1x32xf32> to vector<64x32xf32>
    %12 = arith.addf %9, %11 : vector<64x32xf32>
    %c0_12 = arith.constant 0 : index
    %c0_13 = arith.constant 0 : index
    %13 = vector.load %arg9[%c0_12, %c0_13] : memref<64x32xf32, #tpu.memory_space<vmem>>, vector<64x32xf32>
    tpu.vector_store %arg9[%c0_12, %c0_13], %12 {strides = array<i32>} : memref<64x32xf32, #tpu.memory_space<vmem>>, vector<64x32xf32>,
    %c0_14 = arith.constant 0 : index
    %c0_15 = arith.constant 0 : index
    %14 = vector.load %arg6[%c0_14, %c0_15] : memref<32x32xbf16, #tpu.memory_space<vmem>>, vector<32x32xbf16>
    %cst_16 = arith.constant dense<0.000000e+00> : vector<64x32xf32>
    %15 = tpu.matmul %1, %14, %cst_16 {dimension_numbers = #tpu.dot_dimension_numbers<[1], [0], [0], [1], [0, 0, 1, 1], [], []>} : vector<64x32xbf16>, vector<32x32xbf16>, vector<64x32xf32> -> vector<64x32xf32>
    %c0_17 = arith.constant 0 : index
    %c0_18 = arith.constant 0 : index
    %16 = vector.load %arg7[%c0_17, %c0_18] : memref<1x32xf32, #tpu.memory_space<vmem>>, vector<1x32xf32>
    %17 = vector.broadcast %16 : vector<1x32xf32> to vector<64x32xf32>
    %18 = arith.addf %15, %17 : vector<64x32xf32>
    %c0_19 = arith.constant 0 : index
    %c0_20 = arith.constant 0 : index
    %19 = vector.load %arg10[%c0_19, %c0_20] : memref<64x32xf32, #tpu.memory_space<vmem>>, vector<64x32xf32>
    tpu.vector_store %arg10[%c0_19, %c0_20], %18 {strides = array<i32>} : memref<64x32xf32, #tpu.memory_space<vmem>>, vector<64x32xf32>,
    return
  }
  func.func @transform_0(%arg0: i32) -> (i32, i32) {
    %c0_i32 = arith.constant 0 : i32
    %c0_i32_0 = arith.constant 0 : i32
    return %arg0, %c0_i32 : i32, i32
  }
  func.func @transform_1(%arg0: i32) -> (i32, i32) {
    %c0_i32 = arith.constant 0 : i32
    %c0_i32_0 = arith.constant 0 : i32
    %c0_i32_1 = arith.constant 0 : i32
    return %c0_i32, %c0_i32_0 : i32, i32
  }
  func.func @transform_2(%arg0: i32) -> (i32, i32) {
    %c0_i32 = arith.constant 0 : i32
    %c0_i32_0 = arith.constant 0 : i32
    %c0_i32_1 = arith.constant 0 : i32
    return %c0_i32, %c0_i32_0 : i32, i32
  }
  func.func @transform_3(%arg0: i32) -> (i32, i32) {
    %c0_i32 = arith.constant 0 : i32
    %c0_i32_0 = arith.constant 0 : i32
    %c0_i32_1 = arith.constant 0 : i32
    return %c0_i32, %c0_i32_0 : i32, i32
  }
  func.func @transform_4(%arg0: i32) -> (i32, i32) {
    %c0_i32 = arith.constant 0 : i32
    %c0_i32_0 = arith.constant 0 : i32
    %c0_i32_1 = arith.constant 0 : i32
    return %c0_i32, %c0_i32_0 : i32, i32
  }
  func.func @transform_5(%arg0: i32) -> (i32, i32) {
    %c0_i32 = arith.constant 0 : i32
    %c0_i32_0 = arith.constant 0 : i32
    %c0_i32_1 = arith.constant 0 : i32
    return %c0_i32, %c0_i32_0 : i32, i32
  }
  func.func @transform_6(%arg0: i32) -> (i32, i32) {
    %c0_i32 = arith.constant 0 : i32
    %c0_i32_0 = arith.constant 0 : i32
    %c0_i32_1 = arith.constant 0 : i32
    return %c0_i32, %c0_i32_0 : i32, i32
  }
  func.func @transform_7(%arg0: i32) -> (i32, i32) {
    %c0_i32 = arith.constant 0 : i32
    %c0_i32_0 = arith.constant 0 : i32
    return %arg0, %c0_i32 : i32, i32
  }
  func.func @transform_8(%arg0: i32) -> (i32, i32) {
    %c0_i32 = arith.constant 0 : i32
    %c0_i32_0 = arith.constant 0 : i32
    return %arg0, %c0_i32 : i32, i32
  }
  func.func @transform_9(%arg0: i32) -> (i32, i32) {
    %c0_i32 = arith.constant 0 : i32
    %c0_i32_0 = arith.constant 0 : i32
    return %arg0, %c0_i32 : i32, i32
  }
}

module attributes {stable_mosaic.version = 11 : i64} {
  func.func @_linear_kernel(%arg0: i32, %arg1: memref<64x32xf32, #tpu.memory_space<vmem>>, %arg2: memref<32x32xbf16, #tpu.memory_space<vmem>>, %arg3: memref<1x32xf32, #tpu.memory_space<vmem>>, %arg4: memref<64x32xf32, #tpu.memory_space<vmem>>) attributes {dimension_semantics = [#tpu.dimension_semantics<parallel>], iteration_bounds = array<i64: 2>, scalar_prefetch = 0 : i64, scratch_operands = 0 : i64, tpu.core_type = #tpu.core_type<tc>, window_params = [{transform_indices = @transform_0, window_bounds = array<i64: 64, 32>}, {pipeline_mode = #tpu.pipeline_mode<synchronous>, transform_indices = @transform_1, window_bounds = array<i64: 32, 32>}, {pipeline_mode = #tpu.pipeline_mode<synchronous>, transform_indices = @transform_2, window_bounds = array<i64: 1, 32>}, {transform_indices = @transform_3, window_bounds = array<i64: 64, 32>}]} {
    %c0 = arith.constant 0 : index
    %c0_0 = arith.constant 0 : index
    %0 = vector.load %arg1[%c0, %c0_0] : memref<64x32xf32, #tpu.memory_space<vmem>>, vector<64x32xf32>
    %1 = arith.truncf %0 : vector<64x32xf32> to vector<64x32xbf16>
    %c0_1 = arith.constant 0 : index
    %c0_2 = arith.constant 0 : index
    %2 = vector.load %arg2[%c0_1, %c0_2] : memref<32x32xbf16, #tpu.memory_space<vmem>>, vector<32x32xbf16>
    %cst = arith.constant dense<0.000000e+00> : vector<64x32xf32>
    %3 = tpu.matmul %1, %2, %cst {dimension_numbers = #tpu.dot_dimension_numbers<[1], [0], [0], [1], [0, 0, 1, 1], [], []>} : vector<64x32xbf16>, vector<32x32xbf16>, vector<64x32xf32> -> vector<64x32xf32>
    %c0_3 = arith.constant 0 : index
    %c0_4 = arith.constant 0 : index
    %4 = vector.load %arg3[%c0_3, %c0_4] : memref<1x32xf32, #tpu.memory_space<vmem>>, vector<1x32xf32>
    %5 = vector.broadcast %4 : vector<1x32xf32> to vector<64x32xf32>
    %6 = arith.addf %3, %5 : vector<64x32xf32>
    %c0_5 = arith.constant 0 : index
    %c0_6 = arith.constant 0 : index
    %7 = vector.load %arg4[%c0_5, %c0_6] : memref<64x32xf32, #tpu.memory_space<vmem>>, vector<64x32xf32>
    tpu.vector_store %arg4[%c0_5, %c0_6], %6 {strides = array<i32>} : memref<64x32xf32, #tpu.memory_space<vmem>>, vector<64x32xf32>,
    return
  }
  func.func @transform_0(%arg0: i32) -> (i32, i32) {
    %c0_i32 = arith.constant 0 : i32
    %c0_i32_0 = arith.constant 0 : i32
    return %arg0, %c0_i32 : i32, i32
  }
  func.func @transform_1(%arg0: i32) -> (i32, i32) {
    %c0_i32 = arith.constant 0 : i32
    %c0_i32_0 = arith.constant 0 : i32
    %c0_i32_1 = arith.constant 0 : i32
    return %c0_i32, %c0_i32_0 : i32, i32
  }
  func.func @transform_2(%arg0: i32) -> (i32, i32) {
    %c0_i32 = arith.constant 0 : i32
    %c0_i32_0 = arith.constant 0 : i32
    %c0_i32_1 = arith.constant 0 : i32
    return %c0_i32, %c0_i32_0 : i32, i32
  }
  func.func @transform_3(%arg0: i32) -> (i32, i32) {
    %c0_i32 = arith.constant 0 : i32
    %c0_i32_0 = arith.constant 0 : i32
    return %arg0, %c0_i32 : i32, i32
  }
}

module attributes {stable_mosaic.version = 11 : i64} {
  func.func @kernel(%arg0: i32, %arg1: memref<8x16x32xf32, #tpu.memory_space<vmem>>, %arg2: memref<8x16x32xf32, #tpu.memory_space<vmem>>, %arg3: memref<8x16x32xf32, #tpu.memory_space<vmem>>, %arg4: memref<8x1x16xf32, #tpu.memory_space<vmem>>, %arg5: memref<8x16x32xf32, #tpu.memory_space<vmem>>) attributes {dimension_semantics = [#tpu.dimension_semantics<parallel>], iteration_bounds = array<i64: 1>, scalar_prefetch = 0 : i64, scratch_operands = 0 : i64, tpu.core_type = #tpu.core_type<tc>, window_params = [{transform_indices = @transform_0, window_bounds = array<i64: 8, 16, 32>}, {transform_indices = @transform_1, window_bounds = array<i64: 8, 16, 32>}, {transform_indices = @transform_2, window_bounds = array<i64: 8, 16, 32>}, {transform_indices = @transform_3, window_bounds = array<i64: 8, 1, 16>}, {transform_indices = @transform_4, window_bounds = array<i64: 8, 16, 32>}]} {
    %c0 = arith.constant 0 : index
    %c0_0 = arith.constant 0 : index
    %c0_1 = arith.constant 0 : index
    %0 = vector.load %arg1[%c0, %c0_0, %c0_1] : memref<8x16x32xf32, #tpu.memory_space<vmem>>, vector<8x16x32xf32>
    %c0_2 = arith.constant 0 : index
    %c0_3 = arith.constant 0 : index
    %c0_4 = arith.constant 0 : index
    %1 = vector.load %arg2[%c0_2, %c0_3, %c0_4] : memref<8x16x32xf32, #tpu.memory_space<vmem>>, vector<8x16x32xf32>
    %c0_5 = arith.constant 0 : index
    %c0_6 = arith.constant 0 : index
    %c0_7 = arith.constant 0 : index
    %2 = vector.load %arg3[%c0_5, %c0_6, %c0_7] : memref<8x16x32xf32, #tpu.memory_space<vmem>>, vector<8x16x32xf32>
    %c0_8 = arith.constant 0 : index
    %c0_9 = arith.constant 0 : index
    %c0_10 = arith.constant 0 : index
    %3 = vector.load %arg4[%c0_8, %c0_9, %c0_10] : memref<8x1x16xf32, #tpu.memory_space<vmem>>, vector<8x1x16xf32>
    %cst = arith.constant 5.000000e-01 : f32
    %4 = vector.broadcast %cst : f32 to vector<8x1x16xf32>
    %5 = arith.cmpf ogt, %3, %4 : vector<8x1x16xf32>
    %cst_11 = arith.constant 0.000000e+00 : f32
    %cst_12 = arith.constant -1.000000e+09 : f32
    %6 = vector.broadcast %cst_11 : f32 to vector<8x1x16xf32>
    %7 = vector.broadcast %cst_12 : f32 to vector<8x1x16xf32>
    %8 = arith.select %5, %6, %7 : vector<8x1x16xi1>, vector<8x1x16xf32>
    %9 = vector.extract_strided_slice %0 {offsets = [0, 0, 0], sizes = [8, 16, 8], strides = [1, 1, 1]} : vector<8x16x32xf32> to vector<8x16x8xf32>
    %10 = arith.truncf %9 : vector<8x16x8xf32> to vector<8x16x8xbf16>
    %11 = vector.extract_strided_slice %1 {offsets = [0, 0, 0], sizes = [8, 16, 8], strides = [1, 1, 1]} : vector<8x16x32xf32> to vector<8x16x8xf32>
    %12 = arith.truncf %11 : vector<8x16x8xf32> to vector<8x16x8xbf16>
    "tpu.trace_start"() <{level = 10 : i32, message = "rqd,rkd->rqk"}> : () -> ()
    %cst_13 = arith.constant dense<0.000000e+00> : vector<8x16x16xf32>
    %13 = tpu.matmul %10, %12, %cst_13 {dimension_numbers = #tpu.dot_dimension_numbers<[2], [2], [1], [1], [0, 0, 0, 1, 1, 1], [0], [0]>} : vector<8x16x8xbf16>, vector<8x16x8xbf16>, vector<8x16x16xf32> -> vector<8x16x16xf32>
    "tpu.trace_stop"() : () -> ()
    %cst_14 = arith.constant 0.353553385 : f32
    %14 = vector.broadcast %cst_14 : f32 to vector<8x16x16xf32>
    %15 = arith.mulf %13, %14 : vector<8x16x16xf32>
    %16 = vector.broadcast %8 : vector<8x1x16xf32> to vector<8x16x16xf32>
    %17 = arith.addf %15, %16 : vector<8x16x16xf32>
    %cst_15 = arith.constant dense<0xFF800000> : vector<8x16xf32>
    %18 = vector.multi_reduction <maximumf>, %17, %cst_15 [2] : vector<8x16x16xf32> to vector<8x16xf32>
    %19 = vector.shape_cast %18 : vector<8x16xf32> to vector<8x16x1xf32>
    %20 = vector.broadcast %19 : vector<8x16x1xf32> to vector<8x16x16xf32>
    %21 = arith.subf %17, %20 : vector<8x16x16xf32>
    %22 = math.exp %21 : vector<8x16x16xf32>
    %cst_16 = arith.constant dense<0.000000e+00> : vector<8x16xf32>
    %23 = vector.multi_reduction <add>, %22, %cst_16 [2] : vector<8x16x16xf32> to vector<8x16xf32>
    %24 = vector.shape_cast %23 : vector<8x16xf32> to vector<8x16x1xf32>
    %25 = vector.broadcast %24 : vector<8x16x1xf32> to vector<8x16x16xf32>
    %26 = arith.divf %22, %25 : vector<8x16x16xf32>
    %27 = arith.truncf %26 : vector<8x16x16xf32> to vector<8x16x16xbf16>
    %28 = vector.extract_strided_slice %2 {offsets = [0, 0, 0], sizes = [8, 16, 8], strides = [1, 1, 1]} : vector<8x16x32xf32> to vector<8x16x8xf32>
    %29 = arith.truncf %28 : vector<8x16x8xf32> to vector<8x16x8xbf16>
    "tpu.trace_start"() <{level = 10 : i32, message = "rqk,rkd->rqd"}> : () -> ()
    %cst_17 = arith.constant dense<0.000000e+00> : vector<8x16x8xf32>
    %30 = tpu.matmul %27, %29, %cst_17 {dimension_numbers = #tpu.dot_dimension_numbers<[2], [1], [1], [2], [0, 0, 0, 1, 1, 2], [0], [0]>} : vector<8x16x16xbf16>, vector<8x16x8xbf16>, vector<8x16x8xf32> -> vector<8x16x8xf32>
    "tpu.trace_stop"() : () -> ()
    %31 = vector.extract_strided_slice %0 {offsets = [0, 0, 8], sizes = [8, 16, 8], strides = [1, 1, 1]} : vector<8x16x32xf32> to vector<8x16x8xf32>
    %32 = arith.truncf %31 : vector<8x16x8xf32> to vector<8x16x8xbf16>
    %33 = vector.extract_strided_slice %1 {offsets = [0, 0, 8], sizes = [8, 16, 8], strides = [1, 1, 1]} : vector<8x16x32xf32> to vector<8x16x8xf32>
    %34 = arith.truncf %33 : vector<8x16x8xf32> to vector<8x16x8xbf16>
    "tpu.trace_start"() <{level = 10 : i32, message = "rqd,rkd->rqk"}> : () -> ()
    %cst_18 = arith.constant dense<0.000000e+00> : vector<8x16x16xf32>
    %35 = tpu.matmul %32, %34, %cst_18 {dimension_numbers = #tpu.dot_dimension_numbers<[2], [2], [1], [1], [0, 0, 0, 1, 1, 1], [0], [0]>} : vector<8x16x8xbf16>, vector<8x16x8xbf16>, vector<8x16x16xf32> -> vector<8x16x16xf32>
    "tpu.trace_stop"() : () -> ()
    %cst_19 = arith.constant 0.353553385 : f32
    %36 = vector.broadcast %cst_19 : f32 to vector<8x16x16xf32>
    %37 = arith.mulf %35, %36 : vector<8x16x16xf32>
    %38 = vector.broadcast %8 : vector<8x1x16xf32> to vector<8x16x16xf32>
    %39 = arith.addf %37, %38 : vector<8x16x16xf32>
    %cst_20 = arith.constant dense<0xFF800000> : vector<8x16xf32>
    %40 = vector.multi_reduction <maximumf>, %39, %cst_20 [2] : vector<8x16x16xf32> to vector<8x16xf32>
    %41 = vector.shape_cast %40 : vector<8x16xf32> to vector<8x16x1xf32>
    %42 = vector.broadcast %41 : vector<8x16x1xf32> to vector<8x16x16xf32>
    %43 = arith.subf %39, %42 : vector<8x16x16xf32>
    %44 = math.exp %43 : vector<8x16x16xf32>
    %cst_21 = arith.constant dense<0.000000e+00> : vector<8x16xf32>
    %45 = vector.multi_reduction <add>, %44, %cst_21 [2] : vector<8x16x16xf32> to vector<8x16xf32>
    %46 = vector.shape_cast %45 : vector<8x16xf32> to vector<8x16x1xf32>
    %47 = vector.broadcast %46 : vector<8x16x1xf32> to vector<8x16x16xf32>
    %48 = arith.divf %44, %47 : vector<8x16x16xf32>
    %49 = arith.truncf %48 : vector<8x16x16xf32> to vector<8x16x16xbf16>
    %50 = vector.extract_strided_slice %2 {offsets = [0, 0, 8], sizes = [8, 16, 8], strides = [1, 1, 1]} : vector<8x16x32xf32> to vector<8x16x8xf32>
    %51 = arith.truncf %50 : vector<8x16x8xf32> to vector<8x16x8xbf16>
    "tpu.trace_start"() <{level = 10 : i32, message = "rqk,rkd->rqd"}> : () -> ()
    %cst_22 = arith.constant dense<0.000000e+00> : vector<8x16x8xf32>
    %52 = tpu.matmul %49, %51, %cst_22 {dimension_numbers = #tpu.dot_dimension_numbers<[2], [1], [1], [2], [0, 0, 0, 1, 1, 2], [0], [0]>} : vector<8x16x16xbf16>, vector<8x16x8xbf16>, vector<8x16x8xf32> -> vector<8x16x8xf32>
    "tpu.trace_stop"() : () -> ()
    %53 = vector.extract_strided_slice %0 {offsets = [0, 0, 16], sizes = [8, 16, 8], strides = [1, 1, 1]} : vector<8x16x32xf32> to vector<8x16x8xf32>
    %54 = arith.truncf %53 : vector<8x16x8xf32> to vector<8x16x8xbf16>
    %55 = vector.extract_strided_slice %1 {offsets = [0, 0, 16], sizes = [8, 16, 8], strides = [1, 1, 1]} : vector<8x16x32xf32> to vector<8x16x8xf32>
    %56 = arith.truncf %55 : vector<8x16x8xf32> to vector<8x16x8xbf16>
    "tpu.trace_start"() <{level = 10 : i32, message = "rqd,rkd->rqk"}> : () -> ()
    %cst_23 = arith.constant dense<0.000000e+00> : vector<8x16x16xf32>
    %57 = tpu.matmul %54, %56, %cst_23 {dimension_numbers = #tpu.dot_dimension_numbers<[2], [2], [1], [1], [0, 0, 0, 1, 1, 1], [0], [0]>} : vector<8x16x8xbf16>, vector<8x16x8xbf16>, vector<8x16x16xf32> -> vector<8x16x16xf32>
    "tpu.trace_stop"() : () -> ()
    %cst_24 = arith.constant 0.353553385 : f32
    %58 = vector.broadcast %cst_24 : f32 to vector<8x16x16xf32>
    %59 = arith.mulf %57, %58 : vector<8x16x16xf32>
    %60 = vector.broadcast %8 : vector<8x1x16xf32> to vector<8x16x16xf32>
    %61 = arith.addf %59, %60 : vector<8x16x16xf32>
    %cst_25 = arith.constant dense<0xFF800000> : vector<8x16xf32>
    %62 = vector.multi_reduction <maximumf>, %61, %cst_25 [2] : vector<8x16x16xf32> to vector<8x16xf32>
    %63 = vector.shape_cast %62 : vector<8x16xf32> to vector<8x16x1xf32>
    %64 = vector.broadcast %63 : vector<8x16x1xf32> to vector<8x16x16xf32>
    %65 = arith.subf %61, %64 : vector<8x16x16xf32>
    %66 = math.exp %65 : vector<8x16x16xf32>
    %cst_26 = arith.constant dense<0.000000e+00> : vector<8x16xf32>
    %67 = vector.multi_reduction <add>, %66, %cst_26 [2] : vector<8x16x16xf32> to vector<8x16xf32>
    %68 = vector.shape_cast %67 : vector<8x16xf32> to vector<8x16x1xf32>
    %69 = vector.broadcast %68 : vector<8x16x1xf32> to vector<8x16x16xf32>
    %70 = arith.divf %66, %69 : vector<8x16x16xf32>
    %71 = arith.truncf %70 : vector<8x16x16xf32> to vector<8x16x16xbf16>
    %72 = vector.extract_strided_slice %2 {offsets = [0, 0, 16], sizes = [8, 16, 8], strides = [1, 1, 1]} : vector<8x16x32xf32> to vector<8x16x8xf32>
    %73 = arith.truncf %72 : vector<8x16x8xf32> to vector<8x16x8xbf16>
    "tpu.trace_start"() <{level = 10 : i32, message = "rqk,rkd->rqd"}> : () -> ()
    %cst_27 = arith.constant dense<0.000000e+00> : vector<8x16x8xf32>
    %74 = tpu.matmul %71, %73, %cst_27 {dimension_numbers = #tpu.dot_dimension_numbers<[2], [1], [1], [2], [0, 0, 0, 1, 1, 2], [0], [0]>} : vector<8x16x16xbf16>, vector<8x16x8xbf16>, vector<8x16x8xf32> -> vector<8x16x8xf32>
    "tpu.trace_stop"() : () -> ()
    %75 = vector.extract_strided_slice %0 {offsets = [0, 0, 24], sizes = [8, 16, 8], strides = [1, 1, 1]} : vector<8x16x32xf32> to vector<8x16x8xf32>
    %76 = arith.truncf %75 : vector<8x16x8xf32> to vector<8x16x8xbf16>
    %77 = vector.extract_strided_slice %1 {offsets = [0, 0, 24], sizes = [8, 16, 8], strides = [1, 1, 1]} : vector<8x16x32xf32> to vector<8x16x8xf32>
    %78 = arith.truncf %77 : vector<8x16x8xf32> to vector<8x16x8xbf16>
    "tpu.trace_start"() <{level = 10 : i32, message = "rqd,rkd->rqk"}> : () -> ()
    %cst_28 = arith.constant dense<0.000000e+00> : vector<8x16x16xf32>
    %79 = tpu.matmul %76, %78, %cst_28 {dimension_numbers = #tpu.dot_dimension_numbers<[2], [2], [1], [1], [0, 0, 0, 1, 1, 1], [0], [0]>} : vector<8x16x8xbf16>, vector<8x16x8xbf16>, vector<8x16x16xf32> -> vector<8x16x16xf32>
    "tpu.trace_stop"() : () -> ()
    %cst_29 = arith.constant 0.353553385 : f32
    %80 = vector.broadcast %cst_29 : f32 to vector<8x16x16xf32>
    %81 = arith.mulf %79, %80 : vector<8x16x16xf32>
    %82 = vector.broadcast %8 : vector<8x1x16xf32> to vector<8x16x16xf32>
    %83 = arith.addf %81, %82 : vector<8x16x16xf32>
    %cst_30 = arith.constant dense<0xFF800000> : vector<8x16xf32>
    %84 = vector.multi_reduction <maximumf>, %83, %cst_30 [2] : vector<8x16x16xf32> to vector<8x16xf32>
    %85 = vector.shape_cast %84 : vector<8x16xf32> to vector<8x16x1xf32>
    %86 = vector.broadcast %85 : vector<8x16x1xf32> to vector<8x16x16xf32>
    %87 = arith.subf %83, %86 : vector<8x16x16xf32>
    %88 = math.exp %87 : vector<8x16x16xf32>
    %cst_31 = arith.constant dense<0.000000e+00> : vector<8x16xf32>
    %89 = vector.multi_reduction <add>, %88, %cst_31 [2] : vector<8x16x16xf32> to vector<8x16xf32>
    %90 = vector.shape_cast %89 : vector<8x16xf32> to vector<8x16x1xf32>
    %91 = vector.broadcast %90 : vector<8x16x1xf32> to vector<8x16x16xf32>
    %92 = arith.divf %88, %91 : vector<8x16x16xf32>
    %93 = arith.truncf %92 : vector<8x16x16xf32> to vector<8x16x16xbf16>
    %94 = vector.extract_strided_slice %2 {offsets = [0, 0, 24], sizes = [8, 16, 8], strides = [1, 1, 1]} : vector<8x16x32xf32> to vector<8x16x8xf32>
    %95 = arith.truncf %94 : vector<8x16x8xf32> to vector<8x16x8xbf16>
    "tpu.trace_start"() <{level = 10 : i32, message = "rqk,rkd->rqd"}> : () -> ()
    %cst_32 = arith.constant dense<0.000000e+00> : vector<8x16x8xf32>
    %96 = tpu.matmul %93, %95, %cst_32 {dimension_numbers = #tpu.dot_dimension_numbers<[2], [1], [1], [2], [0, 0, 0, 1, 1, 2], [0], [0]>} : vector<8x16x16xbf16>, vector<8x16x8xbf16>, vector<8x16x8xf32> -> vector<8x16x8xf32>
    "tpu.trace_stop"() : () -> ()
    %97 = tpu.concatenate %30, %52, %74, %96 in 2 : vector<8x16x8xf32>, vector<8x16x8xf32>, vector<8x16x8xf32>, vector<8x16x8xf32> -> vector<8x16x32xf32>
    %c0_33 = arith.constant 0 : index
    %c0_34 = arith.constant 0 : index
    %c0_35 = arith.constant 0 : index
    %98 = vector.load %arg5[%c0_33, %c0_34, %c0_35] : memref<8x16x32xf32, #tpu.memory_space<vmem>>, vector<8x16x32xf32>
    tpu.vector_store %arg5[%c0_33, %c0_34, %c0_35], %97 {strides = array<i32>} : memref<8x16x32xf32, #tpu.memory_space<vmem>>, vector<8x16x32xf32>,
    return
  }
  func.func @transform_0(%arg0: i32) -> (i32, i32, i32) {
    %c0_i32 = arith.constant 0 : i32
    %c0_i32_0 = arith.constant 0 : i32
    %c0_i32_1 = arith.constant 0 : i32
    return %arg0, %c0_i32, %c0_i32_0 : i32, i32, i32
  }
  func.func @transform_1(%arg0: i32) -> (i32, i32, i32) {
    %c0_i32 = arith.constant 0 : i32
    %c0_i32_0 = arith.constant 0 : i32
    %c0_i32_1 = arith.constant 0 : i32
    return %arg0, %c0_i32, %c0_i32_0 : i32, i32, i32
  }
  func.func @transform_2(%arg0: i32) -> (i32, i32, i32) {
    %c0_i32 = arith.constant 0 : i32
    %c0_i32_0 = arith.constant 0 : i32
    %c0_i32_1 = arith.constant 0 : i32
    return %arg0, %c0_i32, %c0_i32_0 : i32, i32, i32
  }
  func.func @transform_3(%arg0: i32) -> (i32, i32, i32) {
    %c0_i32 = arith.constant 0 : i32
    %c0_i32_0 = arith.constant 0 : i32
    %c0_i32_1 = arith.constant 0 : i32
    return %arg0, %c0_i32, %c0_i32_0 : i32, i32, i32
  }
  func.func @transform_4(%arg0: i32) -> (i32, i32, i32) {
    %c0_i32 = arith.constant 0 : i32
    %c0_i32_0 = arith.constant 0 : i32
    %c0_i32_1 = arith.constant 0 : i32
    return %arg0, %c0_i32, %c0_i32_0 : i32, i32, i32
  }
}

module attributes {stable_mosaic.version = 11 : i64} {
  func.func @_block_ffn_kernel(%arg0: i32, %arg1: memref<64x32xf32, #tpu.memory_space<vmem>>, %arg2: memref<64x32xf32, #tpu.memory_space<vmem>>, %arg3: memref<1x32xf32, #tpu.memory_space<vmem>>, %arg4: memref<1x32xf32, #tpu.memory_space<vmem>>, %arg5: memref<32x64xbf16, #tpu.memory_space<vmem>>, %arg6: memref<1x64xf32, #tpu.memory_space<vmem>>, %arg7: memref<64x32xbf16, #tpu.memory_space<vmem>>, %arg8: memref<1x32xf32, #tpu.memory_space<vmem>>, %arg9: memref<1x32xf32, #tpu.memory_space<vmem>>, %arg10: memref<1x32xf32, #tpu.memory_space<vmem>>, %arg11: memref<64x32xf32, #tpu.memory_space<vmem>>) attributes {dimension_semantics = [#tpu.dimension_semantics<parallel>], iteration_bounds = array<i64: 2>, scalar_prefetch = 0 : i64, scratch_operands = 0 : i64, tpu.core_type = #tpu.core_type<tc>, window_params = [{transform_indices = @transform_0, window_bounds = array<i64: 64, 32>}, {transform_indices = @transform_1, window_bounds = array<i64: 64, 32>}, {pipeline_mode = #tpu.pipeline_mode<synchronous>, transform_indices = @transform_2, window_bounds = array<i64: 1, 32>}, {pipeline_mode = #tpu.pipeline_mode<synchronous>, transform_indices = @transform_3, window_bounds = array<i64: 1, 32>}, {pipeline_mode = #tpu.pipeline_mode<synchronous>, transform_indices = @transform_4, window_bounds = array<i64: 32, 64>}, {pipeline_mode = #tpu.pipeline_mode<synchronous>, transform_indices = @transform_5, window_bounds = array<i64: 1, 64>}, {pipeline_mode = #tpu.pipeline_mode<synchronous>, transform_indices = @transform_6, window_bounds = array<i64: 64, 32>}, {pipeline_mode = #tpu.pipeline_mode<synchronous>, transform_indices = @transform_7, window_bounds = array<i64: 1, 32>}, {pipeline_mode = #tpu.pipeline_mode<synchronous>, transform_indices = @transform_8, window_bounds = array<i64: 1, 32>}, {pipeline_mode = #tpu.pipeline_mode<synchronous>, transform_indices = @transform_9, window_bounds = array<i64: 1, 32>}, {transform_indices = @transform_10, window_bounds = array<i64: 64, 32>}]} {
    %c0 = arith.constant 0 : index
    %c0_0 = arith.constant 0 : index
    %0 = vector.load %arg1[%c0, %c0_0] : memref<64x32xf32, #tpu.memory_space<vmem>>, vector<64x32xf32>
    %c0_1 = arith.constant 0 : index
    %c0_2 = arith.constant 0 : index
    %1 = vector.load %arg2[%c0_1, %c0_2] : memref<64x32xf32, #tpu.memory_space<vmem>>, vector<64x32xf32>
    %2 = arith.addf %0, %1 : vector<64x32xf32>
    %c0_3 = arith.constant 0 : index
    %c0_4 = arith.constant 0 : index
    %3 = vector.load %arg3[%c0_3, %c0_4] : memref<1x32xf32, #tpu.memory_space<vmem>>, vector<1x32xf32>
    %c0_5 = arith.constant 0 : index
    %c0_6 = arith.constant 0 : index
    %4 = vector.load %arg4[%c0_5, %c0_6] : memref<1x32xf32, #tpu.memory_space<vmem>>, vector<1x32xf32>
    %cst = arith.constant dense<0.000000e+00> : vector<64xf32>
    %5 = vector.multi_reduction <add>, %2, %cst [1] : vector<64x32xf32> to vector<64xf32>
    %6 = vector.shape_cast %5 : vector<64xf32> to vector<64x1xf32>
    %cst_7 = arith.constant 3.200000e+01 : f32
    %7 = vector.broadcast %cst_7 : f32 to vector<64x1xf32>
    %8 = arith.divf %6, %7 : vector<64x1xf32>
    %9 = vector.broadcast %8 : vector<64x1xf32> to vector<64x32xf32>
    %10 = arith.subf %2, %9 : vector<64x32xf32>
    %11 = arith.mulf %10, %10 : vector<64x32xf32>
    %cst_8 = arith.constant dense<0.000000e+00> : vector<64xf32>
    %12 = vector.multi_reduction <add>, %11, %cst_8 [1] : vector<64x32xf32> to vector<64xf32>
    %13 = vector.shape_cast %12 : vector<64xf32> to vector<64x1xf32>
    %cst_9 = arith.constant 3.200000e+01 : f32
    %14 = vector.broadcast %cst_9 : f32 to vector<64x1xf32>
    %15 = arith.divf %13, %14 : vector<64x1xf32>
    %cst_10 = arith.constant 9.99999974E-6 : f32
    %16 = vector.broadcast %cst_10 : f32 to vector<64x1xf32>
    %17 = arith.addf %15, %16 : vector<64x1xf32>
    %18 = math.rsqrt %17 : vector<64x1xf32>
    %19 = vector.broadcast %18 : vector<64x1xf32> to vector<64x32xf32>
    %20 = arith.mulf %10, %19 : vector<64x32xf32>
    %21 = vector.broadcast %3 : vector<1x32xf32> to vector<64x32xf32>
    %22 = arith.mulf %20, %21 : vector<64x32xf32>
    %23 = vector.broadcast %4 : vector<1x32xf32> to vector<64x32xf32>
    %24 = arith.addf %22, %23 : vector<64x32xf32>
    %25 = arith.truncf %24 : vector<64x32xf32> to vector<64x32xbf16>
    %c0_11 = arith.constant 0 : index
    %c0_12 = arith.constant 0 : index
    %26 = vector.load %arg5[%c0_11, %c0_12] : memref<32x64xbf16, #tpu.memory_space<vmem>>, vector<32x64xbf16>
    %cst_13 = arith.constant dense<0.000000e+00> : vector<64x64xf32>
    %27 = tpu.matmul %25, %26, %cst_13 {dimension_numbers = #tpu.dot_dimension_numbers<[1], [0], [0], [1], [0, 0, 1, 1], [], []>} : vector<64x32xbf16>, vector<32x64xbf16>, vector<64x64xf32> -> vector<64x64xf32>
    %c0_14 = arith.constant 0 : index
    %c0_15 = arith.constant 0 : index
    %28 = vector.load %arg6[%c0_14, %c0_15] : memref<1x64xf32, #tpu.memory_space<vmem>>, vector<1x64xf32>
    %29 = vector.broadcast %28 : vector<1x64xf32> to vector<64x64xf32>
    %30 = arith.addf %27, %29 : vector<64x64xf32>
    %cst_16 = arith.constant 0.000000e+00 : f32
    %31 = vector.broadcast %cst_16 : f32 to vector<64x64xf32>
    %32 = arith.maximumf %30, %31 : vector<64x64xf32>
    %33 = arith.truncf %32 : vector<64x64xf32> to vector<64x64xbf16>
    %c0_17 = arith.constant 0 : index
    %c0_18 = arith.constant 0 : index
    %34 = vector.load %arg7[%c0_17, %c0_18] : memref<64x32xbf16, #tpu.memory_space<vmem>>, vector<64x32xbf16>
    %cst_19 = arith.constant dense<0.000000e+00> : vector<64x32xf32>
    %35 = tpu.matmul %33, %34, %cst_19 {dimension_numbers = #tpu.dot_dimension_numbers<[1], [0], [0], [1], [0, 0, 1, 1], [], []>} : vector<64x64xbf16>, vector<64x32xbf16>, vector<64x32xf32> -> vector<64x32xf32>
    %c0_20 = arith.constant 0 : index
    %c0_21 = arith.constant 0 : index
    %36 = vector.load %arg8[%c0_20, %c0_21] : memref<1x32xf32, #tpu.memory_space<vmem>>, vector<1x32xf32>
    %37 = vector.broadcast %36 : vector<1x32xf32> to vector<64x32xf32>
    %38 = arith.addf %35, %37 : vector<64x32xf32>
    %39 = arith.addf %24, %38 : vector<64x32xf32>
    %c0_22 = arith.constant 0 : index
    %c0_23 = arith.constant 0 : index
    %40 = vector.load %arg9[%c0_22, %c0_23] : memref<1x32xf32, #tpu.memory_space<vmem>>, vector<1x32xf32>
    %c0_24 = arith.constant 0 : index
    %c0_25 = arith.constant 0 : index
    %41 = vector.load %arg10[%c0_24, %c0_25] : memref<1x32xf32, #tpu.memory_space<vmem>>, vector<1x32xf32>
    %cst_26 = arith.constant dense<0.000000e+00> : vector<64xf32>
    %42 = vector.multi_reduction <add>, %39, %cst_26 [1] : vector<64x32xf32> to vector<64xf32>
    %43 = vector.shape_cast %42 : vector<64xf32> to vector<64x1xf32>
    %cst_27 = arith.constant 3.200000e+01 : f32
    %44 = vector.broadcast %cst_27 : f32 to vector<64x1xf32>
    %45 = arith.divf %43, %44 : vector<64x1xf32>
    %46 = vector.broadcast %45 : vector<64x1xf32> to vector<64x32xf32>
    %47 = arith.subf %39, %46 : vector<64x32xf32>
    %48 = arith.mulf %47, %47 : vector<64x32xf32>
    %cst_28 = arith.constant dense<0.000000e+00> : vector<64xf32>
    %49 = vector.multi_reduction <add>, %48, %cst_28 [1] : vector<64x32xf32> to vector<64xf32>
    %50 = vector.shape_cast %49 : vector<64xf32> to vector<64x1xf32>
    %cst_29 = arith.constant 3.200000e+01 : f32
    %51 = vector.broadcast %cst_29 : f32 to vector<64x1xf32>
    %52 = arith.divf %50, %51 : vector<64x1xf32>
    %cst_30 = arith.constant 9.99999974E-6 : f32
    %53 = vector.broadcast %cst_30 : f32 to vector<64x1xf32>
    %54 = arith.addf %52, %53 : vector<64x1xf32>
    %55 = math.rsqrt %54 : vector<64x1xf32>
    %56 = vector.broadcast %55 : vector<64x1xf32> to vector<64x32xf32>
    %57 = arith.mulf %47, %56 : vector<64x32xf32>
    %58 = vector.broadcast %40 : vector<1x32xf32> to vector<64x32xf32>
    %59 = arith.mulf %57, %58 : vector<64x32xf32>
    %60 = vector.broadcast %41 : vector<1x32xf32> to vector<64x32xf32>
    %61 = arith.addf %59, %60 : vector<64x32xf32>
    %c0_31 = arith.constant 0 : index
    %c0_32 = arith.constant 0 : index
    %62 = vector.load %arg11[%c0_31, %c0_32] : memref<64x32xf32, #tpu.memory_space<vmem>>, vector<64x32xf32>
    tpu.vector_store %arg11[%c0_31, %c0_32], %61 {strides = array<i32>} : memref<64x32xf32, #tpu.memory_space<vmem>>, vector<64x32xf32>,
    return
  }
  func.func @transform_0(%arg0: i32) -> (i32, i32) {
    %c0_i32 = arith.constant 0 : i32
    %c0_i32_0 = arith.constant 0 : i32
    return %arg0, %c0_i32 : i32, i32
  }
  func.func @transform_1(%arg0: i32) -> (i32, i32) {
    %c0_i32 = arith.constant 0 : i32
    %c0_i32_0 = arith.constant 0 : i32
    return %arg0, %c0_i32 : i32, i32
  }
  func.func @transform_2(%arg0: i32) -> (i32, i32) {
    %c0_i32 = arith.constant 0 : i32
    %c0_i32_0 = arith.constant 0 : i32
    %c0_i32_1 = arith.constant 0 : i32
    return %c0_i32, %c0_i32_0 : i32, i32
  }
  func.func @transform_3(%arg0: i32) -> (i32, i32) {
    %c0_i32 = arith.constant 0 : i32
    %c0_i32_0 = arith.constant 0 : i32
    %c0_i32_1 = arith.constant 0 : i32
    return %c0_i32, %c0_i32_0 : i32, i32
  }
  func.func @transform_4(%arg0: i32) -> (i32, i32) {
    %c0_i32 = arith.constant 0 : i32
    %c0_i32_0 = arith.constant 0 : i32
    %c0_i32_1 = arith.constant 0 : i32
    return %c0_i32, %c0_i32_0 : i32, i32
  }
  func.func @transform_5(%arg0: i32) -> (i32, i32) {
    %c0_i32 = arith.constant 0 : i32
    %c0_i32_0 = arith.constant 0 : i32
    %c0_i32_1 = arith.constant 0 : i32
    return %c0_i32, %c0_i32_0 : i32, i32
  }
  func.func @transform_6(%arg0: i32) -> (i32, i32) {
    %c0_i32 = arith.constant 0 : i32
    %c0_i32_0 = arith.constant 0 : i32
    %c0_i32_1 = arith.constant 0 : i32
    return %c0_i32, %c0_i32_0 : i32, i32
  }
  func.func @transform_7(%arg0: i32) -> (i32, i32) {
    %c0_i32 = arith.constant 0 : i32
    %c0_i32_0 = arith.constant 0 : i32
    %c0_i32_1 = arith.constant 0 : i32
    return %c0_i32, %c0_i32_0 : i32, i32
  }
  func.func @transform_8(%arg0: i32) -> (i32, i32) {
    %c0_i32 = arith.constant 0 : i32
    %c0_i32_0 = arith.constant 0 : i32
    %c0_i32_1 = arith.constant 0 : i32
    return %c0_i32, %c0_i32_0 : i32, i32
  }
  func.func @transform_9(%arg0: i32) -> (i32, i32) {
    %c0_i32 = arith.constant 0 : i32
    %c0_i32_0 = arith.constant 0 : i32
    %c0_i32_1 = arith.constant 0 : i32
    return %c0_i32, %c0_i32_0 : i32, i32
  }
  func.func @transform_10(%arg0: i32) -> (i32, i32) {
    %c0_i32 = arith.constant 0 : i32
    %c0_i32_0 = arith.constant 0 : i32
    return %arg0, %c0_i32 : i32, i32
  }
}

module attributes {stable_mosaic.version = 11 : i64} {
  func.func @kernel(%arg0: i32, %arg1: memref<16x4x32xf32, #tpu.memory_space<vmem>>, %arg2: memref<16x4x32xf32, #tpu.memory_space<vmem>>, %arg3: memref<16x4x32xf32, #tpu.memory_space<vmem>>, %arg4: memref<16x1x4xf32, #tpu.memory_space<vmem>>, %arg5: memref<16x4x32xf32, #tpu.memory_space<vmem>>) attributes {dimension_semantics = [#tpu.dimension_semantics<parallel>], iteration_bounds = array<i64: 2>, scalar_prefetch = 0 : i64, scratch_operands = 0 : i64, tpu.core_type = #tpu.core_type<tc>, window_params = [{transform_indices = @transform_0, window_bounds = array<i64: 16, 4, 32>}, {transform_indices = @transform_1, window_bounds = array<i64: 16, 4, 32>}, {transform_indices = @transform_2, window_bounds = array<i64: 16, 4, 32>}, {transform_indices = @transform_3, window_bounds = array<i64: 16, 1, 4>}, {transform_indices = @transform_4, window_bounds = array<i64: 16, 4, 32>}]} {
    %c0 = arith.constant 0 : index
    %c0_0 = arith.constant 0 : index
    %c0_1 = arith.constant 0 : index
    %0 = vector.load %arg1[%c0, %c0_0, %c0_1] : memref<16x4x32xf32, #tpu.memory_space<vmem>>, vector<16x4x32xf32>
    %c0_2 = arith.constant 0 : index
    %c0_3 = arith.constant 0 : index
    %c0_4 = arith.constant 0 : index
    %1 = vector.load %arg2[%c0_2, %c0_3, %c0_4] : memref<16x4x32xf32, #tpu.memory_space<vmem>>, vector<16x4x32xf32>
    %c0_5 = arith.constant 0 : index
    %c0_6 = arith.constant 0 : index
    %c0_7 = arith.constant 0 : index
    %2 = vector.load %arg3[%c0_5, %c0_6, %c0_7] : memref<16x4x32xf32, #tpu.memory_space<vmem>>, vector<16x4x32xf32>
    %c0_8 = arith.constant 0 : index
    %c0_9 = arith.constant 0 : index
    %c0_10 = arith.constant 0 : index
    %3 = vector.load %arg4[%c0_8, %c0_9, %c0_10] : memref<16x1x4xf32, #tpu.memory_space<vmem>>, vector<16x1x4xf32>
    %cst = arith.constant 5.000000e-01 : f32
    %4 = vector.broadcast %cst : f32 to vector<16x1x4xf32>
    %5 = arith.cmpf ogt, %3, %4 : vector<16x1x4xf32>
    %cst_11 = arith.constant 0.000000e+00 : f32
    %cst_12 = arith.constant -1.000000e+09 : f32
    %6 = vector.broadcast %cst_11 : f32 to vector<16x1x4xf32>
    %7 = vector.broadcast %cst_12 : f32 to vector<16x1x4xf32>
    %8 = arith.select %5, %6, %7 : vector<16x1x4xi1>, vector<16x1x4xf32>
    %9 = vector.extract_strided_slice %0 {offsets = [0, 0, 0], sizes = [16, 4, 8], strides = [1, 1, 1]} : vector<16x4x32xf32> to vector<16x4x8xf32>
    %10 = arith.truncf %9 : vector<16x4x8xf32> to vector<16x4x8xbf16>
    %11 = vector.extract_strided_slice %1 {offsets = [0, 0, 0], sizes = [16, 4, 8], strides = [1, 1, 1]} : vector<16x4x32xf32> to vector<16x4x8xf32>
    %12 = arith.truncf %11 : vector<16x4x8xf32> to vector<16x4x8xbf16>
    "tpu.trace_start"() <{level = 10 : i32, message = "rqd,rkd->rqk"}> : () -> ()
    %cst_13 = arith.constant dense<0.000000e+00> : vector<16x4x4xf32>
    %13 = tpu.matmul %10, %12, %cst_13 {dimension_numbers = #tpu.dot_dimension_numbers<[2], [2], [1], [1], [0, 0, 0, 1, 1, 1], [0], [0]>} : vector<16x4x8xbf16>, vector<16x4x8xbf16>, vector<16x4x4xf32> -> vector<16x4x4xf32>
    "tpu.trace_stop"() : () -> ()
    %cst_14 = arith.constant 0.353553385 : f32
    %14 = vector.broadcast %cst_14 : f32 to vector<16x4x4xf32>
    %15 = arith.mulf %13, %14 : vector<16x4x4xf32>
    %16 = vector.broadcast %8 : vector<16x1x4xf32> to vector<16x4x4xf32>
    %17 = arith.addf %15, %16 : vector<16x4x4xf32>
    %cst_15 = arith.constant dense<0xFF800000> : vector<16x4xf32>
    %18 = vector.multi_reduction <maximumf>, %17, %cst_15 [2] : vector<16x4x4xf32> to vector<16x4xf32>
    %19 = vector.shape_cast %18 : vector<16x4xf32> to vector<16x4x1xf32>
    %20 = vector.broadcast %19 : vector<16x4x1xf32> to vector<16x4x4xf32>
    %21 = arith.subf %17, %20 : vector<16x4x4xf32>
    %22 = math.exp %21 : vector<16x4x4xf32>
    %cst_16 = arith.constant dense<0.000000e+00> : vector<16x4xf32>
    %23 = vector.multi_reduction <add>, %22, %cst_16 [2] : vector<16x4x4xf32> to vector<16x4xf32>
    %24 = vector.shape_cast %23 : vector<16x4xf32> to vector<16x4x1xf32>
    %25 = vector.broadcast %24 : vector<16x4x1xf32> to vector<16x4x4xf32>
    %26 = arith.divf %22, %25 : vector<16x4x4xf32>
    %27 = arith.truncf %26 : vector<16x4x4xf32> to vector<16x4x4xbf16>
    %28 = vector.extract_strided_slice %2 {offsets = [0, 0, 0], sizes = [16, 4, 8], strides = [1, 1, 1]} : vector<16x4x32xf32> to vector<16x4x8xf32>
    %29 = arith.truncf %28 : vector<16x4x8xf32> to vector<16x4x8xbf16>
    "tpu.trace_start"() <{level = 10 : i32, message = "rqk,rkd->rqd"}> : () -> ()
    %cst_17 = arith.constant dense<0.000000e+00> : vector<16x4x8xf32>
    %30 = tpu.matmul %27, %29, %cst_17 {dimension_numbers = #tpu.dot_dimension_numbers<[2], [1], [1], [2], [0, 0, 0, 1, 1, 2], [0], [0]>} : vector<16x4x4xbf16>, vector<16x4x8xbf16>, vector<16x4x8xf32> -> vector<16x4x8xf32>
    "tpu.trace_stop"() : () -> ()
    %31 = vector.extract_strided_slice %0 {offsets = [0, 0, 8], sizes = [16, 4, 8], strides = [1, 1, 1]} : vector<16x4x32xf32> to vector<16x4x8xf32>
    %32 = arith.truncf %31 : vector<16x4x8xf32> to vector<16x4x8xbf16>
    %33 = vector.extract_strided_slice %1 {offsets = [0, 0, 8], sizes = [16, 4, 8], strides = [1, 1, 1]} : vector<16x4x32xf32> to vector<16x4x8xf32>
    %34 = arith.truncf %33 : vector<16x4x8xf32> to vector<16x4x8xbf16>
    "tpu.trace_start"() <{level = 10 : i32, message = "rqd,rkd->rqk"}> : () -> ()
    %cst_18 = arith.constant dense<0.000000e+00> : vector<16x4x4xf32>
    %35 = tpu.matmul %32, %34, %cst_18 {dimension_numbers = #tpu.dot_dimension_numbers<[2], [2], [1], [1], [0, 0, 0, 1, 1, 1], [0], [0]>} : vector<16x4x8xbf16>, vector<16x4x8xbf16>, vector<16x4x4xf32> -> vector<16x4x4xf32>
    "tpu.trace_stop"() : () -> ()
    %cst_19 = arith.constant 0.353553385 : f32
    %36 = vector.broadcast %cst_19 : f32 to vector<16x4x4xf32>
    %37 = arith.mulf %35, %36 : vector<16x4x4xf32>
    %38 = vector.broadcast %8 : vector<16x1x4xf32> to vector<16x4x4xf32>
    %39 = arith.addf %37, %38 : vector<16x4x4xf32>
    %cst_20 = arith.constant dense<0xFF800000> : vector<16x4xf32>
    %40 = vector.multi_reduction <maximumf>, %39, %cst_20 [2] : vector<16x4x4xf32> to vector<16x4xf32>
    %41 = vector.shape_cast %40 : vector<16x4xf32> to vector<16x4x1xf32>
    %42 = vector.broadcast %41 : vector<16x4x1xf32> to vector<16x4x4xf32>
    %43 = arith.subf %39, %42 : vector<16x4x4xf32>
    %44 = math.exp %43 : vector<16x4x4xf32>
    %cst_21 = arith.constant dense<0.000000e+00> : vector<16x4xf32>
    %45 = vector.multi_reduction <add>, %44, %cst_21 [2] : vector<16x4x4xf32> to vector<16x4xf32>
    %46 = vector.shape_cast %45 : vector<16x4xf32> to vector<16x4x1xf32>
    %47 = vector.broadcast %46 : vector<16x4x1xf32> to vector<16x4x4xf32>
    %48 = arith.divf %44, %47 : vector<16x4x4xf32>
    %49 = arith.truncf %48 : vector<16x4x4xf32> to vector<16x4x4xbf16>
    %50 = vector.extract_strided_slice %2 {offsets = [0, 0, 8], sizes = [16, 4, 8], strides = [1, 1, 1]} : vector<16x4x32xf32> to vector<16x4x8xf32>
    %51 = arith.truncf %50 : vector<16x4x8xf32> to vector<16x4x8xbf16>
    "tpu.trace_start"() <{level = 10 : i32, message = "rqk,rkd->rqd"}> : () -> ()
    %cst_22 = arith.constant dense<0.000000e+00> : vector<16x4x8xf32>
    %52 = tpu.matmul %49, %51, %cst_22 {dimension_numbers = #tpu.dot_dimension_numbers<[2], [1], [1], [2], [0, 0, 0, 1, 1, 2], [0], [0]>} : vector<16x4x4xbf16>, vector<16x4x8xbf16>, vector<16x4x8xf32> -> vector<16x4x8xf32>
    "tpu.trace_stop"() : () -> ()
    %53 = vector.extract_strided_slice %0 {offsets = [0, 0, 16], sizes = [16, 4, 8], strides = [1, 1, 1]} : vector<16x4x32xf32> to vector<16x4x8xf32>
    %54 = arith.truncf %53 : vector<16x4x8xf32> to vector<16x4x8xbf16>
    %55 = vector.extract_strided_slice %1 {offsets = [0, 0, 16], sizes = [16, 4, 8], strides = [1, 1, 1]} : vector<16x4x32xf32> to vector<16x4x8xf32>
    %56 = arith.truncf %55 : vector<16x4x8xf32> to vector<16x4x8xbf16>
    "tpu.trace_start"() <{level = 10 : i32, message = "rqd,rkd->rqk"}> : () -> ()
    %cst_23 = arith.constant dense<0.000000e+00> : vector<16x4x4xf32>
    %57 = tpu.matmul %54, %56, %cst_23 {dimension_numbers = #tpu.dot_dimension_numbers<[2], [2], [1], [1], [0, 0, 0, 1, 1, 1], [0], [0]>} : vector<16x4x8xbf16>, vector<16x4x8xbf16>, vector<16x4x4xf32> -> vector<16x4x4xf32>
    "tpu.trace_stop"() : () -> ()
    %cst_24 = arith.constant 0.353553385 : f32
    %58 = vector.broadcast %cst_24 : f32 to vector<16x4x4xf32>
    %59 = arith.mulf %57, %58 : vector<16x4x4xf32>
    %60 = vector.broadcast %8 : vector<16x1x4xf32> to vector<16x4x4xf32>
    %61 = arith.addf %59, %60 : vector<16x4x4xf32>
    %cst_25 = arith.constant dense<0xFF800000> : vector<16x4xf32>
    %62 = vector.multi_reduction <maximumf>, %61, %cst_25 [2] : vector<16x4x4xf32> to vector<16x4xf32>
    %63 = vector.shape_cast %62 : vector<16x4xf32> to vector<16x4x1xf32>
    %64 = vector.broadcast %63 : vector<16x4x1xf32> to vector<16x4x4xf32>
    %65 = arith.subf %61, %64 : vector<16x4x4xf32>
    %66 = math.exp %65 : vector<16x4x4xf32>
    %cst_26 = arith.constant dense<0.000000e+00> : vector<16x4xf32>
    %67 = vector.multi_reduction <add>, %66, %cst_26 [2] : vector<16x4x4xf32> to vector<16x4xf32>
    %68 = vector.shape_cast %67 : vector<16x4xf32> to vector<16x4x1xf32>
    %69 = vector.broadcast %68 : vector<16x4x1xf32> to vector<16x4x4xf32>
    %70 = arith.divf %66, %69 : vector<16x4x4xf32>
    %71 = arith.truncf %70 : vector<16x4x4xf32> to vector<16x4x4xbf16>
    %72 = vector.extract_strided_slice %2 {offsets = [0, 0, 16], sizes = [16, 4, 8], strides = [1, 1, 1]} : vector<16x4x32xf32> to vector<16x4x8xf32>
    %73 = arith.truncf %72 : vector<16x4x8xf32> to vector<16x4x8xbf16>
    "tpu.trace_start"() <{level = 10 : i32, message = "rqk,rkd->rqd"}> : () -> ()
    %cst_27 = arith.constant dense<0.000000e+00> : vector<16x4x8xf32>
    %74 = tpu.matmul %71, %73, %cst_27 {dimension_numbers = #tpu.dot_dimension_numbers<[2], [1], [1], [2], [0, 0, 0, 1, 1, 2], [0], [0]>} : vector<16x4x4xbf16>, vector<16x4x8xbf16>, vector<16x4x8xf32> -> vector<16x4x8xf32>
    "tpu.trace_stop"() : () -> ()
    %75 = vector.extract_strided_slice %0 {offsets = [0, 0, 24], sizes = [16, 4, 8], strides = [1, 1, 1]} : vector<16x4x32xf32> to vector<16x4x8xf32>
    %76 = arith.truncf %75 : vector<16x4x8xf32> to vector<16x4x8xbf16>
    %77 = vector.extract_strided_slice %1 {offsets = [0, 0, 24], sizes = [16, 4, 8], strides = [1, 1, 1]} : vector<16x4x32xf32> to vector<16x4x8xf32>
    %78 = arith.truncf %77 : vector<16x4x8xf32> to vector<16x4x8xbf16>
    "tpu.trace_start"() <{level = 10 : i32, message = "rqd,rkd->rqk"}> : () -> ()
    %cst_28 = arith.constant dense<0.000000e+00> : vector<16x4x4xf32>
    %79 = tpu.matmul %76, %78, %cst_28 {dimension_numbers = #tpu.dot_dimension_numbers<[2], [2], [1], [1], [0, 0, 0, 1, 1, 1], [0], [0]>} : vector<16x4x8xbf16>, vector<16x4x8xbf16>, vector<16x4x4xf32> -> vector<16x4x4xf32>
    "tpu.trace_stop"() : () -> ()
    %cst_29 = arith.constant 0.353553385 : f32
    %80 = vector.broadcast %cst_29 : f32 to vector<16x4x4xf32>
    %81 = arith.mulf %79, %80 : vector<16x4x4xf32>
    %82 = vector.broadcast %8 : vector<16x1x4xf32> to vector<16x4x4xf32>
    %83 = arith.addf %81, %82 : vector<16x4x4xf32>
    %cst_30 = arith.constant dense<0xFF800000> : vector<16x4xf32>
    %84 = vector.multi_reduction <maximumf>, %83, %cst_30 [2] : vector<16x4x4xf32> to vector<16x4xf32>
    %85 = vector.shape_cast %84 : vector<16x4xf32> to vector<16x4x1xf32>
    %86 = vector.broadcast %85 : vector<16x4x1xf32> to vector<16x4x4xf32>
    %87 = arith.subf %83, %86 : vector<16x4x4xf32>
    %88 = math.exp %87 : vector<16x4x4xf32>
    %cst_31 = arith.constant dense<0.000000e+00> : vector<16x4xf32>
    %89 = vector.multi_reduction <add>, %88, %cst_31 [2] : vector<16x4x4xf32> to vector<16x4xf32>
    %90 = vector.shape_cast %89 : vector<16x4xf32> to vector<16x4x1xf32>
    %91 = vector.broadcast %90 : vector<16x4x1xf32> to vector<16x4x4xf32>
    %92 = arith.divf %88, %91 : vector<16x4x4xf32>
    %93 = arith.truncf %92 : vector<16x4x4xf32> to vector<16x4x4xbf16>
    %94 = vector.extract_strided_slice %2 {offsets = [0, 0, 24], sizes = [16, 4, 8], strides = [1, 1, 1]} : vector<16x4x32xf32> to vector<16x4x8xf32>
    %95 = arith.truncf %94 : vector<16x4x8xf32> to vector<16x4x8xbf16>
    "tpu.trace_start"() <{level = 10 : i32, message = "rqk,rkd->rqd"}> : () -> ()
    %cst_32 = arith.constant dense<0.000000e+00> : vector<16x4x8xf32>
    %96 = tpu.matmul %93, %95, %cst_32 {dimension_numbers = #tpu.dot_dimension_numbers<[2], [1], [1], [2], [0, 0, 0, 1, 1, 2], [0], [0]>} : vector<16x4x4xbf16>, vector<16x4x8xbf16>, vector<16x4x8xf32> -> vector<16x4x8xf32>
    "tpu.trace_stop"() : () -> ()
    %97 = tpu.concatenate %30, %52, %74, %96 in 2 : vector<16x4x8xf32>, vector<16x4x8xf32>, vector<16x4x8xf32>, vector<16x4x8xf32> -> vector<16x4x32xf32>
    %c0_33 = arith.constant 0 : index
    %c0_34 = arith.constant 0 : index
    %c0_35 = arith.constant 0 : index
    %98 = vector.load %arg5[%c0_33, %c0_34, %c0_35] : memref<16x4x32xf32, #tpu.memory_space<vmem>>, vector<16x4x32xf32>
    tpu.vector_store %arg5[%c0_33, %c0_34, %c0_35], %97 {strides = array<i32>} : memref<16x4x32xf32, #tpu.memory_space<vmem>>, vector<16x4x32xf32>,
    return
  }
  func.func @transform_0(%arg0: i32) -> (i32, i32, i32) {
    %c0_i32 = arith.constant 0 : i32
    %c0_i32_0 = arith.constant 0 : i32
    %c0_i32_1 = arith.constant 0 : i32
    return %arg0, %c0_i32, %c0_i32_0 : i32, i32, i32
  }
  func.func @transform_1(%arg0: i32) -> (i32, i32, i32) {
    %c0_i32 = arith.constant 0 : i32
    %c0_i32_0 = arith.constant 0 : i32
    %c0_i32_1 = arith.constant 0 : i32
    return %arg0, %c0_i32, %c0_i32_0 : i32, i32, i32
  }
  func.func @transform_2(%arg0: i32) -> (i32, i32, i32) {
    %c0_i32 = arith.constant 0 : i32
    %c0_i32_0 = arith.constant 0 : i32
    %c0_i32_1 = arith.constant 0 : i32
    return %arg0, %c0_i32, %c0_i32_0 : i32, i32, i32
  }
  func.func @transform_3(%arg0: i32) -> (i32, i32, i32) {
    %c0_i32 = arith.constant 0 : i32
    %c0_i32_0 = arith.constant 0 : i32
    %c0_i32_1 = arith.constant 0 : i32
    return %arg0, %c0_i32, %c0_i32_0 : i32, i32, i32
  }
  func.func @transform_4(%arg0: i32) -> (i32, i32, i32) {
    %c0_i32 = arith.constant 0 : i32
    %c0_i32_0 = arith.constant 0 : i32
    %c0_i32_1 = arith.constant 0 : i32
    return %arg0, %c0_i32, %c0_i32_0 : i32, i32, i32
  }
}

module attributes {stable_mosaic.version = 11 : i64} {
  func.func @_linear_kernel(%arg0: i32, %arg1: memref<64x32xf32, #tpu.memory_space<vmem>>, %arg2: memref<32x32xbf16, #tpu.memory_space<vmem>>, %arg3: memref<1x32xf32, #tpu.memory_space<vmem>>, %arg4: memref<64x32xf32, #tpu.memory_space<vmem>>) attributes {dimension_semantics = [#tpu.dimension_semantics<parallel>], iteration_bounds = array<i64: 2>, scalar_prefetch = 0 : i64, scratch_operands = 0 : i64, tpu.core_type = #tpu.core_type<tc>, window_params = [{transform_indices = @transform_0, window_bounds = array<i64: 64, 32>}, {pipeline_mode = #tpu.pipeline_mode<synchronous>, transform_indices = @transform_1, window_bounds = array<i64: 32, 32>}, {pipeline_mode = #tpu.pipeline_mode<synchronous>, transform_indices = @transform_2, window_bounds = array<i64: 1, 32>}, {transform_indices = @transform_3, window_bounds = array<i64: 64, 32>}]} {
    %c0 = arith.constant 0 : index
    %c0_0 = arith.constant 0 : index
    %0 = vector.load %arg1[%c0, %c0_0] : memref<64x32xf32, #tpu.memory_space<vmem>>, vector<64x32xf32>
    %1 = arith.truncf %0 : vector<64x32xf32> to vector<64x32xbf16>
    %c0_1 = arith.constant 0 : index
    %c0_2 = arith.constant 0 : index
    %2 = vector.load %arg2[%c0_1, %c0_2] : memref<32x32xbf16, #tpu.memory_space<vmem>>, vector<32x32xbf16>
    %cst = arith.constant dense<0.000000e+00> : vector<64x32xf32>
    %3 = tpu.matmul %1, %2, %cst {dimension_numbers = #tpu.dot_dimension_numbers<[1], [0], [0], [1], [0, 0, 1, 1], [], []>} : vector<64x32xbf16>, vector<32x32xbf16>, vector<64x32xf32> -> vector<64x32xf32>
    %c0_3 = arith.constant 0 : index
    %c0_4 = arith.constant 0 : index
    %4 = vector.load %arg3[%c0_3, %c0_4] : memref<1x32xf32, #tpu.memory_space<vmem>>, vector<1x32xf32>
    %5 = vector.broadcast %4 : vector<1x32xf32> to vector<64x32xf32>
    %6 = arith.addf %3, %5 : vector<64x32xf32>
    %c0_5 = arith.constant 0 : index
    %c0_6 = arith.constant 0 : index
    %7 = vector.load %arg4[%c0_5, %c0_6] : memref<64x32xf32, #tpu.memory_space<vmem>>, vector<64x32xf32>
    tpu.vector_store %arg4[%c0_5, %c0_6], %6 {strides = array<i32>} : memref<64x32xf32, #tpu.memory_space<vmem>>, vector<64x32xf32>,
    return
  }
  func.func @transform_0(%arg0: i32) -> (i32, i32) {
    %c0_i32 = arith.constant 0 : i32
    %c0_i32_0 = arith.constant 0 : i32
    return %arg0, %c0_i32 : i32, i32
  }
  func.func @transform_1(%arg0: i32) -> (i32, i32) {
    %c0_i32 = arith.constant 0 : i32
    %c0_i32_0 = arith.constant 0 : i32
    %c0_i32_1 = arith.constant 0 : i32
    return %c0_i32, %c0_i32_0 : i32, i32
  }
  func.func @transform_2(%arg0: i32) -> (i32, i32) {
    %c0_i32 = arith.constant 0 : i32
    %c0_i32_0 = arith.constant 0 : i32
    %c0_i32_1 = arith.constant 0 : i32
    return %c0_i32, %c0_i32_0 : i32, i32
  }
  func.func @transform_3(%arg0: i32) -> (i32, i32) {
    %c0_i32 = arith.constant 0 : i32
    %c0_i32_0 = arith.constant 0 : i32
    return %arg0, %c0_i32 : i32, i32
  }
}

</mosaic_0001>

<llo_original>
// kernel: msa_embedder_forward.14
$region0: #{msa_embedder_forward.14}
  #allocation0 [shape = 'u32[]', space=smem, size = 0x4, offset = 0x4, fixed_abs, tag = 'smem constant byte address 0x4 - core index']
  #allocation1 [shape = 'u32[72,128]{1,0:T(1,128)}', space=vmem, size = 0x9000, scoped, tag = 'internal scratch']
  %s0 = inlined_call_operand.vmem [shape: f32[128,32], index: 0, kind: input, shape index: {}]
  %s1 = inlined_call_operand.vmem [shape: bf16[32,32], index: 1, kind: input, shape index: {}]
  %s2 = inlined_call_operand.vmem [shape: f32[1,32], index: 2, kind: input, shape index: {}]
  %s3 = inlined_call_operand.vmem [shape: bf16[32,32], index: 3, kind: input, shape index: {}]
  %s4 = inlined_call_operand.vmem [shape: f32[1,32], index: 4, kind: input, shape index: {}]
  %s5 = inlined_call_operand.vmem [shape: bf16[32,32], index: 5, kind: input, shape index: {}]
  %s6 = inlined_call_operand.vmem [shape: f32[1,32], index: 6, kind: input, shape index: {}]
  %s7 = inlined_call_operand.vmem [shape: f32[128,32], index: 7, kind: output, shape index: {0}]
  %s8 = inlined_call_operand.vmem [shape: f32[128,32], index: 8, kind: output, shape index: {1}]
  %s9 = inlined_call_operand.vmem [shape: f32[128,32], index: 9, kind: output, shape index: {2}]
  %10 = xla_tuple %s7, %s8, %s9
  %s11 = sld [smem:[#allocation0]]
  $region77: #{msa_embedder_forward.14} parent=0
    _
  %s13 = ssub.s32 1, %s11
  %s14 = scalar_select 0, %s13, %s11
  loop: start=0, step=1, limit=4
  $region2: #{msa_embedder_forward.14} parent=0 // loop_pre_header
    _
  $region3: #{msa_embedder_forward.14} parent=0 // loop_header
    %s16 = sphi 0, %s20
    %p17 = scmp.ge.s32.totalorder %s16, 4
    %s26 = sphi 0, %s28
    %s29 = sphi 0, %s26
    %s30 = sphi 0, %s29
    %s46 = sphi 0, %s30
    %s50 = sphi 0, %s50
    %s52 = sphi 0, %s50
    %s53 = sphi 0, %s52
    %s67 = sphi 0, %s53
    %s71 = sphi 0, %s71
    %s73 = sphi 0, %s71
    %s74 = sphi 0, %s73
    %s88 = sphi 0, %s74
    %s92 = sphi 0, %s92
    %s94 = sphi 0, %s92
    %s95 = sphi 0, %s94
    %s109 = sphi 0, %s95
    %s113 = sphi 0, %s113
    %s115 = sphi 0, %s113
    %s116 = sphi 0, %s115
    %s130 = sphi 0, %s116
    %s134 = sphi 0, %s134
    %s136 = sphi 0, %s134
    %s137 = sphi 0, %s136
    %s151 = sphi 0, %s137
    %s155 = sphi 0, %s155
    %s157 = sphi 0, %s155
    %s158 = sphi 0, %s157
    %s172 = sphi 0, %s158
    %s178 = sphi 0, %s180
    %s181 = sphi 0, %s178
    %s182 = sphi 0, %s181
    %s198 = sphi 0, %s182
    %s204 = sphi 0, %s206
    %s207 = sphi 0, %s204
    %s208 = sphi 0, %s207
    %s224 = sphi 0, %s208
    %s230 = sphi 0, %s232
    %s233 = sphi 0, %s230
    %s234 = sphi 0, %s233
    %s250 = sphi 0, %s234
  $region4: #{msa_embedder_forward.14} parent=0 // loop_header_branch
    %19 = sbr.rel (%p17) target = $region8
  $region5: #{msa_embedder_forward.14} parent=0 // loop_body
    %s21 = ssub.s32 %s16, 1
    %s22 = ssub.s32 %s16, 2
    %s23 = sadd.s32 %s16, 1
    %s24 = ssub.s32 %s16, %s23
    %p25 = scmp.eq.s32.totalorder %s24, 0
    %s27 = sadd.s32 %s26, 1
    %s28 = scalar_select %p25, %s26, %s27
    %p31 = pneg %p25
    %p32 = scmp.eq.s32.totalorder %s16, 1
    %p33 = por %p31, %p32
    %p34 = scmp.ne.s32.totalorder %s26, %s29
    %p35 = scmp.eq.s32.totalorder %s16, 0
    %p36 = por %p34, %p35
    %p37 = scmp.ne.s32.totalorder %s26, %s29
    %p38 = scmp.eq.s32.totalorder %s21, 1
    %p39 = por %p37, %p38
    %p40 = scmp.ne.s32.totalorder %s29, %s30
    %p41 = scmp.eq.s32.totalorder %s21, 0
    %p42 = por %p40, %p41
    %p43 = scmp.ne.s32.totalorder %s29, %s30
    %p44 = scmp.eq.s32.totalorder %s22, 1
    %p45 = por %p43, %p44
    %p47 = scmp.ne.s32.totalorder %s30, %s46
    %p48 = scmp.eq.s32.totalorder %s22, 0
    %p49 = por %p47, %p48
    %s51 = sadd.s32 %s50, 1
    %p54 = scmp.eq.s32.totalorder %s16, 1
    %p55 = scmp.ne.s32.totalorder %s50, %s52
    %p56 = scmp.eq.s32.totalorder %s16, 0
    %p57 = por %p55, %p56
    %p58 = scmp.ne.s32.totalorder %s50, %s52
    %p59 = scmp.eq.s32.totalorder %s21, 1
    %p60 = por %p58, %p59
    %p61 = scmp.ne.s32.totalorder %s52, %s53
    %p62 = scmp.eq.s32.totalorder %s21, 0
    %p63 = por %p61, %p62
    %p64 = scmp.ne.s32.totalorder %s52, %s53
    %p65 = scmp.eq.s32.totalorder %s22, 1
    %p66 = por %p64, %p65
    %p68 = scmp.ne.s32.totalorder %s53, %s67
    %p69 = scmp.eq.s32.totalorder %s22, 0
    %p70 = por %p68, %p69
    %s72 = sadd.s32 %s71, 1
    %p75 = scmp.eq.s32.totalorder %s16, 1
    %p76 = scmp.ne.s32.totalorder %s71, %s73
    %p77 = scmp.eq.s32.totalorder %s16, 0
    %p78 = por %p76, %p77
    %p79 = scmp.ne.s32.totalorder %s71, %s73
    %p80 = scmp.eq.s32.totalorder %s21, 1
    %p81 = por %p79, %p80
    %p82 = scmp.ne.s32.totalorder %s73, %s74
    %p83 = scmp.eq.s32.totalorder %s21, 0
    %p84 = por %p82, %p83
    %p85 = scmp.ne.s32.totalorder %s73, %s74
    %p86 = scmp.eq.s32.totalorder %s22, 1
    %p87 = por %p85, %p86
    %p89 = scmp.ne.s32.totalorder %s74, %s88
    %p90 = scmp.eq.s32.totalorder %s22, 0
    %p91 = por %p89, %p90
    %s93 = sadd.s32 %s92, 1
    %p96 = scmp.eq.s32.totalorder %s16, 1
    %p97 = scmp.ne.s32.totalorder %s92, %s94
    %p98 = scmp.eq.s32.totalorder %s16, 0
    %p99 = por %p97, %p98
    %p100 = scmp.ne.s32.totalorder %s92, %s94
    %p101 = scmp.eq.s32.totalorder %s21, 1
    %p102 = por %p100, %p101
    %p103 = scmp.ne.s32.totalorder %s94, %s95
    %p104 = scmp.eq.s32.totalorder %s21, 0
    %p105 = por %p103, %p104
    %p106 = scmp.ne.s32.totalorder %s94, %s95
    %p107 = scmp.eq.s32.totalorder %s22, 1
    %p108 = por %p106, %p107
    %p110 = scmp.ne.s32.totalorder %s95, %s109
    %p111 = scmp.eq.s32.totalorder %s22, 0
    %p112 = por %p110, %p111
    %s114 = sadd.s32 %s113, 1
    %p117 = scmp.eq.s32.totalorder %s16, 1
    %p118 = scmp.ne.s32.totalorder %s113, %s115
    %p119 = scmp.eq.s32.totalorder %s16, 0
    %p120 = por %p118, %p119
    %p121 = scmp.ne.s32.totalorder %s113, %s115
    %p122 = scmp.eq.s32.totalorder %s21, 1
    %p123 = por %p121, %p122
    %p124 = scmp.ne.s32.totalorder %s115, %s116
    %p125 = scmp.eq.s32.totalorder %s21, 0
    %p126 = por %p124, %p125
    %p127 = scmp.ne.s32.totalorder %s115, %s116
    %p128 = scmp.eq.s32.totalorder %s22, 1
    %p129 = por %p127, %p128
    %p131 = scmp.ne.s32.totalorder %s116, %s130
    %p132 = scmp.eq.s32.totalorder %s22, 0
    %p133 = por %p131, %p132
    %s135 = sadd.s32 %s134, 1
    %p138 = scmp.eq.s32.totalorder %s16, 1
    %p139 = scmp.ne.s32.totalorder %s134, %s136
    %p140 = scmp.eq.s32.totalorder %s16, 0
    %p141 = por %p139, %p140
    %p142 = scmp.ne.s32.totalorder %s134, %s136
    %p143 = scmp.eq.s32.totalorder %s21, 1
    %p144 = por %p142, %p143
    %p145 = scmp.ne.s32.totalorder %s136, %s137
    %p146 = scmp.eq.s32.totalorder %s21, 0
    %p147 = por %p145, %p146
    %p148 = scmp.ne.s32.totalorder %s136, %s137
    %p149 = scmp.eq.s32.totalorder %s22, 1
    %p150 = por %p148, %p149
    %p152 = scmp.ne.s32.totalorder %s137, %s151
    %p153 = scmp.eq.s32.totalorder %s22, 0
    %p154 = por %p152, %p153
    %s156 = sadd.s32 %s155, 1
    %p159 = scmp.eq.s32.totalorder %s16, 1
    %p160 = scmp.ne.s32.totalorder %s155, %s157
    %p161 = scmp.eq.s32.totalorder %s16, 0
    %p162 = por %p160, %p161
    %p163 = scmp.ne.s32.totalorder %s155, %s157
    %p164 = scmp.eq.s32.totalorder %s21, 1
    %p165 = por %p163, %p164
    %p166 = scmp.ne.s32.totalorder %s157, %s158
    %p167 = scmp.eq.s32.totalorder %s21, 0
    %p168 = por %p166, %p167
    %p169 = scmp.ne.s32.totalorder %s157, %s158
    %p170 = scmp.eq.s32.totalorder %s22, 1
    %p171 = por %p169, %p170
    %p173 = scmp.ne.s32.totalorder %s158, %s172
    %p174 = scmp.eq.s32.totalorder %s22, 0
    %p175 = por %p173, %p174
    %s176 = ssub.s32 %s16, %s23
    %p177 = scmp.eq.s32.totalorder %s176, 0
    %s179 = sadd.s32 %s178, 1
    %s180 = scalar_select %p177, %s178, %s179
    %p183 = pneg %p177
    %p184 = scmp.eq.s32.totalorder %s16, 1
    %p185 = por %p183, %p184
    %p186 = scmp.ne.s32.totalorder %s178, %s181
    %p187 = scmp.eq.s32.totalorder %s16, 0
    %p188 = por %p186, %p187
    %p189 = scmp.ne.s32.totalorder %s178, %s181
    %p190 = scmp.eq.s32.totalorder %s21, 1
    %p191 = por %p189, %p190
    %p192 = scmp.ne.s32.totalorder %s181, %s182
    %p193 = scmp.eq.s32.totalorder %s21, 0
    %p194 = por %p192, %p193
    %p195 = scmp.ne.s32.totalorder %s181, %s182
    %p196 = scmp.eq.s32.totalorder %s22, 1
    %p197 = por %p195, %p196
    %p199 = scmp.ne.s32.totalorder %s182, %s198
    %p200 = scmp.eq.s32.totalorder %s22, 0
    %p201 = por %p199, %p200
    %s202 = ssub.s32 %s16, %s23
    %p203 = scmp.eq.s32.totalorder %s202, 0
    %s205 = sadd.s32 %s204, 1
    %s206 = scalar_select %p203, %s204, %s205
    %p209 = pneg %p203
    %p210 = scmp.eq.s32.totalorder %s16, 1
    %p211 = por %p209, %p210
    %p212 = scmp.ne.s32.totalorder %s204, %s207
    %p213 = scmp.eq.s32.totalorder %s16, 0
    %p214 = por %p212, %p213
    %p215 = scmp.ne.s32.totalorder %s204, %s207
    %p216 = scmp.eq.s32.totalorder %s21, 1
    %p217 = por %p215, %p216
    %p218 = scmp.ne.s32.totalorder %s207, %s208
    %p219 = scmp.eq.s32.totalorder %s21, 0
    %p220 = por %p218, %p219
    %p221 = scmp.ne.s32.totalorder %s207, %s208
    %p222 = scmp.eq.s32.totalorder %s22, 1
    %p223 = por %p221, %p222
    %p225 = scmp.ne.s32.totalorder %s208, %s224
    %p226 = scmp.eq.s32.totalorder %s22, 0
    %p227 = por %p225, %p226
    %s228 = ssub.s32 %s16, %s23
    %p229 = scmp.eq.s32.totalorder %s228, 0
    %s231 = sadd.s32 %s230, 1
    %s232 = scalar_select %p229, %s230, %s231
    %p235 = pneg %p229
    %p236 = scmp.eq.s32.totalorder %s16, 1
    %p237 = por %p235, %p236
    %p238 = scmp.ne.s32.totalorder %s230, %s233
    %p239 = scmp.eq.s32.totalorder %s16, 0
    %p240 = por %p238, %p239
    %p241 = scmp.ne.s32.totalorder %s230, %s233
    %p242 = scmp.eq.s32.totalorder %s21, 1
    %p243 = por %p241, %p242
    %p244 = scmp.ne.s32.totalorder %s233, %s234
    %p245 = scmp.eq.s32.totalorder %s21, 0
    %p246 = por %p244, %p245
    %p247 = scmp.ne.s32.totalorder %s233, %s234
    %p248 = scmp.eq.s32.totalorder %s22, 1
    %p249 = por %p247, %p248
    %p251 = scmp.ne.s32.totalorder %s234, %s250
    %p252 = scmp.eq.s32.totalorder %s22, 0
    %p253 = por %p251, %p252
    %p254 = scmp.le.s32.totalorder 1, %s16
    %p255 = scmp.lt.s32.totalorder %s16, 3
    %p256 = pnand %p254, %p255
    %p257 = pneg %p256
    // Predicated region
    $region9: #{msa_embedder_forward.14} parent=5 // pred_check
      _
    $region10: #{msa_embedder_forward.14} parent=5 // pred_check_branch
      %259 = sbr.rel (%p256) target = $region12
    $region11: #{msa_embedder_forward.14} parent=5 // pred_region
      %s260 = ssub.s32 %s16, 1
      // Predicated region
      $region13: #{msa_embedder_forward.14} parent=11 // pred_check
        %p261 = pneg %p63
      $region14: #{msa_embedder_forward.14} parent=11 // pred_check_branch
        %263 = sbr.rel (%p261) target = $region16
      $region15: #{msa_embedder_forward.14} parent=11 // pred_region
        _
      $region16: #{msa_embedder_forward.14} parent=11 // pred_fallthru
        _
      // Predicated region
      $region17: #{msa_embedder_forward.14} parent=11 // pred_check
        %p264 = pneg %p84
      $region18: #{msa_embedder_forward.14} parent=11 // pred_check_branch
        %266 = sbr.rel (%p264) target = $region20
      $region19: #{msa_embedder_forward.14} parent=11 // pred_region
        _
      $region20: #{msa_embedder_forward.14} parent=11 // pred_fallthru
        _
      // Predicated region
      $region21: #{msa_embedder_forward.14} parent=11 // pred_check
        %p267 = pneg %p105
      $region22: #{msa_embedder_forward.14} parent=11 // pred_check_branch
        %269 = sbr.rel (%p267) target = $region24
      $region23: #{msa_embedder_forward.14} parent=11 // pred_region
        _
      $region24: #{msa_embedder_forward.14} parent=11 // pred_fallthru
        _
      // Predicated region
      $region25: #{msa_embedder_forward.14} parent=11 // pred_check
        %p270 = pneg %p126
      $region26: #{msa_embedder_forward.14} parent=11 // pred_check_branch
        %272 = sbr.rel (%p270) target = $region28
      $region27: #{msa_embedder_forward.14} parent=11 // pred_region
        _
      $region28: #{msa_embedder_forward.14} parent=11 // pred_fallthru
        _
      // Predicated region
      $region29: #{msa_embedder_forward.14} parent=11 // pred_check
        %p273 = pneg %p147
      $region30: #{msa_embedder_forward.14} parent=11 // pred_check_branch
        %275 = sbr.rel (%p273) target = $region32
      $region31: #{msa_embedder_forward.14} parent=11 // pred_region
        _
      $region32: #{msa_embedder_forward.14} parent=11 // pred_fallthru
        _
      // Predicated region
      $region33: #{msa_embedder_forward.14} parent=11 // pred_check
        %p276 = pneg %p168
      $region34: #{msa_embedder_forward.14} parent=11 // pred_check_branch
        %278 = sbr.rel (%p276) target = $region36
      $region35: #{msa_embedder_forward.14} parent=11 // pred_region
        _
      $region36: #{msa_embedder_forward.14} parent=11 // pred_fallthru
        _
    $region12: #{msa_embedder_forward.14} parent=5 // pred_fallthru
      _
    %p279 = scmp.lt.s32.totalorder %s16, 2
    // Predicated region
    $region37: #{msa_embedder_forward.14} parent=5 // pred_check
      %p280 = pneg %p279
    $region38: #{msa_embedder_forward.14} parent=5 // pred_check_branch
      %282 = sbr.rel (%p280) target = $region40
    $region39: #{msa_embedder_forward.14} parent=5 // pred_region
      // Predicated region
      $region41: #{msa_embedder_forward.14} parent=39 // pred_check
        %p283 = pneg %p36
      $region42: #{msa_embedder_forward.14} parent=39 // pred_check_branch
        %285 = sbr.rel (%p283) target = $region44
      $region43: #{msa_embedder_forward.14} parent=39 // pred_region
        %s286 = smul.u32 8, %s16
        %p287 = scmp.lt.s32.totalorder %s286, 15
        %s288 = scalar_select %p287, %s286, 15
        %s289 = smul.addr %s288, 8
        %s290 = scalar_lea.vmem %s0, %s289
        %s291 = smul.u32 8, %s16
      $region44: #{msa_embedder_forward.14} parent=39 // pred_fallthru
        _
    $region40: #{msa_embedder_forward.14} parent=5 // pred_fallthru
      _
    %p292 = scmp.le.s32.totalorder 1, %s16
    %p293 = scmp.lt.s32.totalorder %s16, 3
    %p294 = pnand %p292, %p293
    %p295 = pneg %p294
    // Predicated region
    $region45: #{msa_embedder_forward.14} parent=5 // pred_check
      _
    $region46: #{msa_embedder_forward.14} parent=5 // pred_check_branch
      %297 = sbr.rel (%p294) target = $region48
    $region47: #{msa_embedder_forward.14} parent=5 // pred_region
      %s298 = ssub.s32 %s16, 1
      %s299 = smul.u32 8, %s21
      %p300 = scmp.lt.s32.totalorder %s299, 15
      %s301 = scalar_select %p300, %s299, 15
      %s302 = smul.addr %s301, 8
      %s303 = scalar_lea.vmem %s0, %s302
      %p304 = pneg %p42
      %p305 = pneg %p39
      %p306 = pneg %p63
      %p307 = pneg %p60
      %p308 = pneg %p84
      %p309 = pneg %p81
      %p310 = pneg %p105
      %p311 = pneg %p102
      %p312 = pneg %p126
      %p313 = pneg %p123
      %p314 = pneg %p147
      %p315 = pneg %p144
      %p316 = pneg %p168
      %p317 = pneg %p165
      %p318 = pneg %p194
      %p319 = pneg %p191
      %s320 = smul.u32 8, %s21
      %p321 = scmp.lt.s32.totalorder %s320, 15
      %s322 = scalar_select %p321, %s320, 15
      %s323 = smul.addr %s322, 8
      %s324 = scalar_lea.vmem %s7, %s323
      %p325 = pneg %p220
      %p326 = pneg %p217
      %s327 = smul.u32 8, %s21
      %p328 = scmp.lt.s32.totalorder %s327, 15
      %s329 = scalar_select %p328, %s327, 15
      %s330 = smul.addr %s329, 8
      %s331 = scalar_lea.vmem %s8, %s330
      %p332 = pneg %p246
      %p333 = pneg %p243
      %s334 = smul.u32 8, %s21
      %p335 = scmp.lt.s32.totalorder %s334, 15
      %s336 = scalar_select %p335, %s334, 15
      %s337 = smul.addr %s336, 8
      %s338 = scalar_lea.vmem %s9, %s337
      %s339 = smul.u32 8, %s21
      %p340 = scmp.lt.s32.totalorder %s339, 15
      %s341 = scalar_select %p340, %s339, 15
      %s342 = smul.addr %s341, 8
      %s343 = scalar_lea.vmem %s0, %s342
      %s344 = smul.u32 8, %s21
      %s345 = smul.u32 8, %s21
      %p346 = scmp.lt.s32.totalorder %s345, 15
      %s347 = scalar_select %p346, %s345, 15
      %s348 = smul.addr %s347, 8
      %s349 = scalar_lea.vmem %s7, %s348
      %s350 = smul.u32 8, %s21
      %s351 = smul.u32 8, %s21
      %p352 = scmp.lt.s32.totalorder %s351, 15
      %s353 = scalar_select %p352, %s351, 15
      %s354 = smul.addr %s353, 8
      %s355 = scalar_lea.vmem %s8, %s354
      %s356 = smul.u32 8, %s21
      %s357 = smul.u32 8, %s21
      %p358 = scmp.lt.s32.totalorder %s357, 15
      %s359 = scalar_select %p358, %s357, 15
      %s360 = smul.addr %s359, 8
      %s361 = scalar_lea.vmem %s9, %s360
      %s362 = smul.u32 8, %s21
      %v364 = vld [vmem:[%s343] sm:$0xff]
      %v365 = vld [vmem:[%s343 + $0x8] sm:$0xff]
      %v366 = vld [vmem:[%s343 + $0x10] sm:$0xff]
      %v367 = vld [vmem:[%s343 + $0x18] sm:$0xff]
      %v368 = vld [vmem:[%s343 + $0x20] sm:$0xff]
      %v369 = vld [vmem:[%s343 + $0x28] sm:$0xff]
      %v370 = vld [vmem:[%s343 + $0x30] sm:$0xff]
      %v371 = vld [vmem:[%s343 + $0x38] sm:$0xff]
      %v372 = vpack.c.bf16 %v365, %v364
      %v373 = vpack.c.bf16 %v367, %v366
      %v374 = vpack.c.bf16 %v369, %v368
      %v375 = vpack.c.bf16 %v371, %v370
      %v376 = vld [vmem:[%s1] sm:$0xf]
      %v377 = vld [vmem:[%s1 + $0x4] sm:$0xf]
      %v378 = vld [vmem:[%s1 + $0x8] sm:$0xf]
      %v379 = vld [vmem:[%s1 + $0xc] sm:$0xf]
      %v380 = vld [vmem:[%s2] sm:$0x1]
      %v382 = vperm.slane %v380, 0
      %v388 = vunpack.c.l.b16 %v376
      %v389 = vunpack.c.l.b16 %v377
      %v390 = vunpack.c.l.b16 %v378
      %v391 = vunpack.c.l.b16 %v379
      %v392 = vpack.c.b16 %v389, %v388
      %v393 = vpack.c.b16 %v391, %v390
      %vm396 = vcmask 261120
      %v398 = vsel %vm396, %v372, 0
      %v401 = vsel %vm396, %v373, 0
      %v404 = vsel %vm396, %v374, 0
      %v407 = vsel %vm396, %v375, 0
      %409 = vmatpush.bf16.msra.mxu0 0
      %410 = vmatpush.bf16.msra.mxu0 0
      %411 = vmatpush.bf16.msra.mxu0 0
      %412 = vmatpush.bf16.msra.mxu0 0
      %413 = vmatpush.bf16.msra.mxu0 0
      %414 = vmatpush.bf16.msra.mxu0 0
      %415 = vmatpush.bf16.msra.mxu0 %v393
      %416 = vmatpush.bf16.msra.mxu0 %v392
      %417 = vmatmul.bf16.gmra.mxu0 %v398
      %v418 = vpop.f32.mrf.mxu0
      %v419 = vadd.f32 %v382, %v418
      %v420 = vpop.f32.mrf.mxu0
      %v421 = vadd.f32 %v382, %v420
      %422 = vmatmul.bf16.gmra.mxu0 %v401
      %v423 = vpop.f32.mrf.mxu0
      %v424 = vadd.f32 %v382, %v423
      %v425 = vpop.f32.mrf.mxu0
      %v426 = vadd.f32 %v382, %v425
      %427 = vmatmul.bf16.gmra.mxu0 %v404
      %v428 = vpop.f32.mrf.mxu0
      %v429 = vadd.f32 %v382, %v428
      %v430 = vpop.f32.mrf.mxu0
      %v431 = vadd.f32 %v382, %v430
      %432 = vmatmul.bf16.gmra.mxu0 %v407
      %v433 = vpop.f32.mrf.mxu0
      %v434 = vadd.f32 %v382, %v433
      %v435 = vpop.f32.mrf.mxu0
      %v436 = vadd.f32 %v382, %v435
      %437 = vdwg.mxu0
      %438 = vst.msk [vmem:[%s349] sm:$0xff] %vm396, %v419
      %439 = vst.msk [vmem:[%s349 + $0x8] sm:$0xff] %vm396, %v421
      %440 = vst.msk [vmem:[%s349 + $0x10] sm:$0xff] %vm396, %v424
      %441 = vst.msk [vmem:[%s349 + $0x18] sm:$0xff] %vm396, %v426
      %442 = vst.msk [vmem:[%s349 + $0x20] sm:$0xff] %vm396, %v429
      %443 = vst.msk [vmem:[%s349 + $0x28] sm:$0xff] %vm396, %v431
      %444 = vst.msk [vmem:[%s349 + $0x30] sm:$0xff] %vm396, %v434
      %445 = vst.msk [vmem:[%s349 + $0x38] sm:$0xff] %vm396, %v436
      %v446 = vld [vmem:[%s3] sm:$0xf]
      %v447 = vld [vmem:[%s3 + $0x4] sm:$0xf]
      %v448 = vld [vmem:[%s3 + $0x8] sm:$0xf]
      %v449 = vld [vmem:[%s3 + $0xc] sm:$0xf]
      %v450 = vld [vmem:[%s4] sm:$0x1]
      %v452 = vperm.slane %v450, 0
      %v458 = vunpack.c.l.b16 %v446
      %v459 = vunpack.c.l.b16 %v447
      %v460 = vunpack.c.l.b16 %v448
      %v461 = vunpack.c.l.b16 %v449
      %v462 = vpack.c.b16 %v459, %v458
      %v463 = vpack.c.b16 %v461, %v460
      %466 = vmatpush.bf16.msra.mxu0 0
      %467 = vmatpush.bf16.msra.mxu0 0
      %468 = vmatpush.bf16.msra.mxu0 0
      %469 = vmatpush.bf16.msra.mxu0 0
      %470 = vmatpush.bf16.msra.mxu0 0
      %471 = vmatpush.bf16.msra.mxu0 0
      %472 = vmatpush.bf16.msra.mxu0 %v463
      %473 = vmatpush.bf16.msra.mxu0 %v462
      %474 = vmatmul.bf16.gmra.mxu0 %v398
      %v475 = vpop.f32.mrf.mxu0
      %v476 = vadd.f32 %v452, %v475
      %v477 = vpop.f32.mrf.mxu0
      %v478 = vadd.f32 %v452, %v477
      %479 = vmatmul.bf16.gmra.mxu0 %v401
      %v480 = vpop.f32.mrf.mxu0
      %v481 = vadd.f32 %v452, %v480
      %v482 = vpop.f32.mrf.mxu0
      %v483 = vadd.f32 %v452, %v482
      %484 = vmatmul.bf16.gmra.mxu0 %v404
      %v485 = vpop.f32.mrf.mxu0
      %v486 = vadd.f32 %v452, %v485
      %v487 = vpop.f32.mrf.mxu0
      %v488 = vadd.f32 %v452, %v487
      %489 = vmatmul.bf16.gmra.mxu0 %v407
      %v490 = vpop.f32.mrf.mxu0
      %v491 = vadd.f32 %v452, %v490
      %v492 = vpop.f32.mrf.mxu0
      %v493 = vadd.f32 %v452, %v492
      %494 = vdwg.mxu0
      %495 = vst.msk [vmem:[%s355] sm:$0xff] %vm396, %v476
      %496 = vst.msk [vmem:[%s355 + $0x8] sm:$0xff] %vm396, %v478
      %497 = vst.msk [vmem:[%s355 + $0x10] sm:$0xff] %vm396, %v481
      %498 = vst.msk [vmem:[%s355 + $0x18] sm:$0xff] %vm396, %v483
      %499 = vst.msk [vmem:[%s355 + $0x20] sm:$0xff] %vm396, %v486
      %500 = vst.msk [vmem:[%s355 + $0x28] sm:$0xff] %vm396, %v488
      %501 = vst.msk [vmem:[%s355 + $0x30] sm:$0xff] %vm396, %v491
      %502 = vst.msk [vmem:[%s355 + $0x38] sm:$0xff] %vm396, %v493
      %v503 = vld [vmem:[%s5] sm:$0xf]
      %v504 = vld [vmem:[%s5 + $0x4] sm:$0xf]
      %v505 = vld [vmem:[%s5 + $0x8] sm:$0xf]
      %v506 = vld [vmem:[%s5 + $0xc] sm:$0xf]
      %v507 = vld [vmem:[%s6] sm:$0x1]
      %v509 = vperm.slane %v507, 0
      %v515 = vunpack.c.l.b16 %v503
      %v516 = vunpack.c.l.b16 %v504
      %v517 = vunpack.c.l.b16 %v505
      %v518 = vunpack.c.l.b16 %v506
      %v519 = vpack.c.b16 %v516, %v515
      %v520 = vpack.c.b16 %v518, %v517
      %523 = vmatpush.bf16.msra.mxu0 0
      %524 = vmatpush.bf16.msra.mxu0 0
      %525 = vmatpush.bf16.msra.mxu0 0
      %526 = vmatpush.bf16.msra.mxu0 0
      %527 = vmatpush.bf16.msra.mxu0 0
      %528 = vmatpush.bf16.msra.mxu0 0
      %529 = vmatpush.bf16.msra.mxu0 %v520
      %530 = vmatpush.bf16.msra.mxu0 %v519
      %531 = vmatmul.bf16.gmra.mxu0 %v398
      %v532 = vpop.f32.mrf.mxu0
      %v533 = vadd.f32 %v509, %v532
      %v534 = vpop.f32.mrf.mxu0
      %v535 = vadd.f32 %v509, %v534
      %536 = vmatmul.bf16.gmra.mxu0 %v401
      %v537 = vpop.f32.mrf.mxu0
      %v538 = vadd.f32 %v509, %v537
      %v539 = vpop.f32.mrf.mxu0
      %v540 = vadd.f32 %v509, %v539
      %541 = vmatmul.bf16.gmra.mxu0 %v404
      %v542 = vpop.f32.mrf.mxu0
      %v543 = vadd.f32 %v509, %v542
      %v544 = vpop.f32.mrf.mxu0
      %v545 = vadd.f32 %v509, %v544
      %546 = vmatmul.bf16.gmra.mxu0 %v407
      %v547 = vpop.f32.mrf.mxu0
      %v548 = vadd.f32 %v509, %v547
      %v549 = vpop.f32.mrf.mxu0
      %v550 = vadd.f32 %v509, %v549
      %551 = vdwg.mxu0
      %552 = vst.msk [vmem:[%s361] sm:$0xff] %vm396, %v533
      %553 = vst.msk [vmem:[%s361 + $0x8] sm:$0xff] %vm396, %v535
      %554 = vst.msk [vmem:[%s361 + $0x10] sm:$0xff] %vm396, %v538
      %555 = vst.msk [vmem:[%s361 + $0x18] sm:$0xff] %vm396, %v540
      %556 = vst.msk [vmem:[%s361 + $0x20] sm:$0xff] %vm396, %v543
      %557 = vst.msk [vmem:[%s361 + $0x28] sm:$0xff] %vm396, %v545
      %558 = vst.msk [vmem:[%s361 + $0x30] sm:$0xff] %vm396, %v548
      %559 = vst.msk [vmem:[%s361 + $0x38] sm:$0xff] %vm396, %v550
      %s560 = smul.u32 8, %s21
      %p561 = scmp.lt.s32.totalorder %s560, 15
      %s562 = scalar_select %p561, %s560, 15
      %s563 = smul.addr %s562, 8
      %s564 = scalar_lea.vmem %s7, %s563
      %s565 = smul.u32 8, %s21
      %p566 = scmp.lt.s32.totalorder %s565, 15
      %s567 = scalar_select %p566, %s565, 15
      %s568 = smul.addr %s567, 8
      %s569 = scalar_lea.vmem %s8, %s568
      %s570 = smul.u32 8, %s21
      %p571 = scmp.lt.s32.totalorder %s570, 15
      %s572 = scalar_select %p571, %s570, 15
      %s573 = smul.addr %s572, 8
      %s574 = scalar_lea.vmem %s9, %s573
      // Predicated region
      $region49: #{msa_embedder_forward.14} parent=47 // pred_check
        %p575 = pneg %p191
      $region50: #{msa_embedder_forward.14} parent=47 // pred_check_branch
        %577 = sbr.rel (%p575) target = $region52
      $region51: #{msa_embedder_forward.14} parent=47 // pred_region
        %s578 = smul.u32 8, %s21
      $region52: #{msa_embedder_forward.14} parent=47 // pred_fallthru
        _
      // Predicated region
      $region53: #{msa_embedder_forward.14} parent=47 // pred_check
        %p579 = pneg %p217
      $region54: #{msa_embedder_forward.14} parent=47 // pred_check_branch
        %581 = sbr.rel (%p579) target = $region56
      $region55: #{msa_embedder_forward.14} parent=47 // pred_region
        %s582 = smul.u32 8, %s21
      $region56: #{msa_embedder_forward.14} parent=47 // pred_fallthru
        _
      // Predicated region
      $region57: #{msa_embedder_forward.14} parent=47 // pred_check
        %p583 = pneg %p243
      $region58: #{msa_embedder_forward.14} parent=47 // pred_check_branch
        %585 = sbr.rel (%p583) target = $region60
      $region59: #{msa_embedder_forward.14} parent=47 // pred_region
        %s586 = smul.u32 8, %s21
      $region60: #{msa_embedder_forward.14} parent=47 // pred_fallthru
        _
    $region48: #{msa_embedder_forward.14} parent=5 // pred_fallthru
      _
    %p587 = scmp.le.s32.totalorder 2, %s16
    // Predicated region
    $region61: #{msa_embedder_forward.14} parent=5 // pred_check
      %p588 = pneg %p587
    $region62: #{msa_embedder_forward.14} parent=5 // pred_check_branch
      %590 = sbr.rel (%p588) target = $region64
    $region63: #{msa_embedder_forward.14} parent=5 // pred_region
      %s591 = ssub.s32 %s16, 2
      // Predicated region
      $region65: #{msa_embedder_forward.14} parent=63 // pred_check
        %p592 = pneg %p197
      $region66: #{msa_embedder_forward.14} parent=63 // pred_check_branch
        %594 = sbr.rel (%p592) target = $region68
      $region67: #{msa_embedder_forward.14} parent=63 // pred_region
        %s595 = smul.u32 8, %s22
        %p596 = scmp.lt.s32.totalorder %s595, 15
        %s597 = scalar_select %p596, %s595, 15
        %s598 = smul.addr %s597, 8
        %s599 = scalar_lea.vmem %s7, %s598
      $region68: #{msa_embedder_forward.14} parent=63 // pred_fallthru
        _
      // Predicated region
      $region69: #{msa_embedder_forward.14} parent=63 // pred_check
        %p600 = pneg %p223
      $region70: #{msa_embedder_forward.14} parent=63 // pred_check_branch
        %602 = sbr.rel (%p600) target = $region72
      $region71: #{msa_embedder_forward.14} parent=63 // pred_region
        %s603 = smul.u32 8, %s22
        %p604 = scmp.lt.s32.totalorder %s603, 15
        %s605 = scalar_select %p604, %s603, 15
        %s606 = smul.addr %s605, 8
        %s607 = scalar_lea.vmem %s8, %s606
      $region72: #{msa_embedder_forward.14} parent=63 // pred_fallthru
        _
      // Predicated region
      $region73: #{msa_embedder_forward.14} parent=63 // pred_check
        %p608 = pneg %p249
      $region74: #{msa_embedder_forward.14} parent=63 // pred_check_branch
        %610 = sbr.rel (%p608) target = $region76
      $region75: #{msa_embedder_forward.14} parent=63 // pred_region
        %s611 = smul.u32 8, %s22
        %p612 = scmp.lt.s32.totalorder %s611, 15
        %s613 = scalar_select %p612, %s611, 15
        %s614 = smul.addr %s613, 8
        %s615 = scalar_lea.vmem %s9, %s614
      $region76: #{msa_embedder_forward.14} parent=63 // pred_fallthru
        _
    $region64: #{msa_embedder_forward.14} parent=5 // pred_fallthru
      _
  $region6: #{msa_embedder_forward.14} parent=0 // loop_footer
    %s20 = sadd.s32 1, %s16
  $region7: #{msa_embedder_forward.14} parent=0 // loop_footer_branch
    %15 = sbr.rel target = $region3
  $region8: #{msa_embedder_forward.14} parent=0 // loop_exit
    _

// kernel: msa_embedder_forward.16
$region0: #{msa_embedder_forward.16}
  #allocation0 [shape = 'u32[]', space=smem, size = 0x4, offset = 0x4, fixed_abs, tag = 'smem constant byte address 0x4 - core index']
  #allocation1 [shape = 'u32[72,128]{1,0:T(1,128)}', space=vmem, size = 0x9000, scoped, tag = 'internal scratch']
  %s0 = inlined_call_operand.vmem [shape: f32[128,32], index: 0, kind: input, shape index: {}]
  %s1 = inlined_call_operand.vmem [shape: bf16[32,32], index: 1, kind: input, shape index: {}]
  %s2 = inlined_call_operand.vmem [shape: f32[1,32], index: 2, kind: input, shape index: {}]
  %s3 = inlined_call_operand.vmem [shape: f32[128,32], index: 3, kind: output, shape index: {}]
  %s4 = sld [smem:[#allocation0]]
  $region45: #{msa_embedder_forward.16} parent=0
    _
  %s6 = ssub.s32 1, %s4
  %s7 = scalar_select 0, %s6, %s4
  loop: start=0, step=1, limit=4
  $region2: #{msa_embedder_forward.16} parent=0 // loop_pre_header
    _
  $region3: #{msa_embedder_forward.16} parent=0 // loop_header
    %s9 = sphi 0, %s13
    %p10 = scmp.ge.s32.totalorder %s9, 4
    %s19 = sphi 0, %s21
    %s22 = sphi 0, %s19
    %s23 = sphi 0, %s22
    %s39 = sphi 0, %s23
    %s43 = sphi 0, %s43
    %s45 = sphi 0, %s43
    %s46 = sphi 0, %s45
    %s60 = sphi 0, %s46
    %s64 = sphi 0, %s64
    %s66 = sphi 0, %s64
    %s67 = sphi 0, %s66
    %s81 = sphi 0, %s67
    %s87 = sphi 0, %s89
    %s90 = sphi 0, %s87
    %s91 = sphi 0, %s90
    %s107 = sphi 0, %s91
  $region4: #{msa_embedder_forward.16} parent=0 // loop_header_branch
    %12 = sbr.rel (%p10) target = $region8
  $region5: #{msa_embedder_forward.16} parent=0 // loop_body
    %s14 = ssub.s32 %s9, 1
    %s15 = ssub.s32 %s9, 2
    %s16 = sadd.s32 %s9, 1
    %s17 = ssub.s32 %s9, %s16
    %p18 = scmp.eq.s32.totalorder %s17, 0
    %s20 = sadd.s32 %s19, 1
    %s21 = scalar_select %p18, %s19, %s20
    %p24 = pneg %p18
    %p25 = scmp.eq.s32.totalorder %s9, 1
    %p26 = por %p24, %p25
    %p27 = scmp.ne.s32.totalorder %s19, %s22
    %p28 = scmp.eq.s32.totalorder %s9, 0
    %p29 = por %p27, %p28
    %p30 = scmp.ne.s32.totalorder %s19, %s22
    %p31 = scmp.eq.s32.totalorder %s14, 1
    %p32 = por %p30, %p31
    %p33 = scmp.ne.s32.totalorder %s22, %s23
    %p34 = scmp.eq.s32.totalorder %s14, 0
    %p35 = por %p33, %p34
    %p36 = scmp.ne.s32.totalorder %s22, %s23
    %p37 = scmp.eq.s32.totalorder %s15, 1
    %p38 = por %p36, %p37
    %p40 = scmp.ne.s32.totalorder %s23, %s39
    %p41 = scmp.eq.s32.totalorder %s15, 0
    %p42 = por %p40, %p41
    %s44 = sadd.s32 %s43, 1
    %p47 = scmp.eq.s32.totalorder %s9, 1
    %p48 = scmp.ne.s32.totalorder %s43, %s45
    %p49 = scmp.eq.s32.totalorder %s9, 0
    %p50 = por %p48, %p49
    %p51 = scmp.ne.s32.totalorder %s43, %s45
    %p52 = scmp.eq.s32.totalorder %s14, 1
    %p53 = por %p51, %p52
    %p54 = scmp.ne.s32.totalorder %s45, %s46
    %p55 = scmp.eq.s32.totalorder %s14, 0
    %p56 = por %p54, %p55
    %p57 = scmp.ne.s32.totalorder %s45, %s46
    %p58 = scmp.eq.s32.totalorder %s15, 1
    %p59 = por %p57, %p58
    %p61 = scmp.ne.s32.totalorder %s46, %s60
    %p62 = scmp.eq.s32.totalorder %s15, 0
    %p63 = por %p61, %p62
    %s65 = sadd.s32 %s64, 1
    %p68 = scmp.eq.s32.totalorder %s9, 1
    %p69 = scmp.ne.s32.totalorder %s64, %s66
    %p70 = scmp.eq.s32.totalorder %s9, 0
    %p71 = por %p69, %p70
    %p72 = scmp.ne.s32.totalorder %s64, %s66
    %p73 = scmp.eq.s32.totalorder %s14, 1
    %p74 = por %p72, %p73
    %p75 = scmp.ne.s32.totalorder %s66, %s67
    %p76 = scmp.eq.s32.totalorder %s14, 0
    %p77 = por %p75, %p76
    %p78 = scmp.ne.s32.totalorder %s66, %s67
    %p79 = scmp.eq.s32.totalorder %s15, 1
    %p80 = por %p78, %p79
    %p82 = scmp.ne.s32.totalorder %s67, %s81
    %p83 = scmp.eq.s32.totalorder %s15, 0
    %p84 = por %p82, %p83
    %s85 = ssub.s32 %s9, %s16
    %p86 = scmp.eq.s32.totalorder %s85, 0
    %s88 = sadd.s32 %s87, 1
    %s89 = scalar_select %p86, %s87, %s88
    %p92 = pneg %p86
    %p93 = scmp.eq.s32.totalorder %s9, 1
    %p94 = por %p92, %p93
    %p95 = scmp.ne.s32.totalorder %s87, %s90
    %p96 = scmp.eq.s32.totalorder %s9, 0
    %p97 = por %p95, %p96
    %p98 = scmp.ne.s32.totalorder %s87, %s90
    %p99 = scmp.eq.s32.totalorder %s14, 1
    %p100 = por %p98, %p99
    %p101 = scmp.ne.s32.totalorder %s90, %s91
    %p102 = scmp.eq.s32.totalorder %s14, 0
    %p103 = por %p101, %p102
    %p104 = scmp.ne.s32.totalorder %s90, %s91
    %p105 = scmp.eq.s32.totalorder %s15, 1
    %p106 = por %p104, %p105
    %p108 = scmp.ne.s32.totalorder %s91, %s107
    %p109 = scmp.eq.s32.totalorder %s15, 0
    %p110 = por %p108, %p109
    %p111 = scmp.le.s32.totalorder 1, %s9
    %p112 = scmp.lt.s32.totalorder %s9, 3
    %p113 = pnand %p111, %p112
    %p114 = pneg %p113
    // Predicated region
    $region9: #{msa_embedder_forward.16} parent=5 // pred_check
      _
    $region10: #{msa_embedder_forward.16} parent=5 // pred_check_branch
      %116 = sbr.rel (%p113) target = $region12
    $region11: #{msa_embedder_forward.16} parent=5 // pred_region
      %s117 = ssub.s32 %s9, 1
      // Predicated region
      $region13: #{msa_embedder_forward.16} parent=11 // pred_check
        %p118 = pneg %p56
      $region14: #{msa_embedder_forward.16} parent=11 // pred_check_branch
        %120 = sbr.rel (%p118) target = $region16
      $region15: #{msa_embedder_forward.16} parent=11 // pred_region
        _
      $region16: #{msa_embedder_forward.16} parent=11 // pred_fallthru
        _
      // Predicated region
      $region17: #{msa_embedder_forward.16} parent=11 // pred_check
        %p121 = pneg %p77
      $region18: #{msa_embedder_forward.16} parent=11 // pred_check_branch
        %123 = sbr.rel (%p121) target = $region20
      $region19: #{msa_embedder_forward.16} parent=11 // pred_region
        _
      $region20: #{msa_embedder_forward.16} parent=11 // pred_fallthru
        _
    $region12: #{msa_embedder_forward.16} parent=5 // pred_fallthru
      _
    %p124 = scmp.lt.s32.totalorder %s9, 2
    // Predicated region
    $region21: #{msa_embedder_forward.16} parent=5 // pred_check
      %p125 = pneg %p124
    $region22: #{msa_embedder_forward.16} parent=5 // pred_check_branch
      %127 = sbr.rel (%p125) target = $region24
    $region23: #{msa_embedder_forward.16} parent=5 // pred_region
      // Predicated region
      $region25: #{msa_embedder_forward.16} parent=23 // pred_check
        %p128 = pneg %p29
      $region26: #{msa_embedder_forward.16} parent=23 // pred_check_branch
        %130 = sbr.rel (%p128) target = $region28
      $region27: #{msa_embedder_forward.16} parent=23 // pred_region
        %s131 = smul.u32 8, %s9
        %p132 = scmp.lt.s32.totalorder %s131, 15
        %s133 = scalar_select %p132, %s131, 15
        %s134 = smul.addr %s133, 8
        %s135 = scalar_lea.vmem %s0, %s134
        %s136 = smul.u32 8, %s9
      $region28: #{msa_embedder_forward.16} parent=23 // pred_fallthru
        _
    $region24: #{msa_embedder_forward.16} parent=5 // pred_fallthru
      _
    %p137 = scmp.le.s32.totalorder 1, %s9
    %p138 = scmp.lt.s32.totalorder %s9, 3
    %p139 = pnand %p137, %p138
    %p140 = pneg %p139
    // Predicated region
    $region29: #{msa_embedder_forward.16} parent=5 // pred_check
      _
    $region30: #{msa_embedder_forward.16} parent=5 // pred_check_branch
      %142 = sbr.rel (%p139) target = $region32
    $region31: #{msa_embedder_forward.16} parent=5 // pred_region
      %s143 = ssub.s32 %s9, 1
      %s144 = smul.u32 8, %s14
      %p145 = scmp.lt.s32.totalorder %s144, 15
      %s146 = scalar_select %p145, %s144, 15
      %s147 = smul.addr %s146, 8
      %s148 = scalar_lea.vmem %s0, %s147
      %p149 = pneg %p35
      %p150 = pneg %p32
      %p151 = pneg %p56
      %p152 = pneg %p53
      %p153 = pneg %p77
      %p154 = pneg %p74
      %p155 = pneg %p103
      %p156 = pneg %p100
      %s157 = smul.u32 8, %s14
      %p158 = scmp.lt.s32.totalorder %s157, 15
      %s159 = scalar_select %p158, %s157, 15
      %s160 = smul.addr %s159, 8
      %s161 = scalar_lea.vmem %s3, %s160
      %s162 = smul.u32 8, %s14
      %p163 = scmp.lt.s32.totalorder %s162, 15
      %s164 = scalar_select %p163, %s162, 15
      %s165 = smul.addr %s164, 8
      %s166 = scalar_lea.vmem %s0, %s165
      %s167 = smul.u32 8, %s14
      %s168 = smul.u32 8, %s14
      %p169 = scmp.lt.s32.totalorder %s168, 15
      %s170 = scalar_select %p169, %s168, 15
      %s171 = smul.addr %s170, 8
      %s172 = scalar_lea.vmem %s3, %s171
      %s173 = smul.u32 8, %s14
      %v175 = vld [vmem:[%s166] sm:$0xff]
      %v176 = vld [vmem:[%s166 + $0x8] sm:$0xff]
      %v177 = vld [vmem:[%s166 + $0x10] sm:$0xff]
      %v178 = vld [vmem:[%s166 + $0x18] sm:$0xff]
      %v179 = vld [vmem:[%s166 + $0x20] sm:$0xff]
      %v180 = vld [vmem:[%s166 + $0x28] sm:$0xff]
      %v181 = vld [vmem:[%s166 + $0x30] sm:$0xff]
      %v182 = vld [vmem:[%s166 + $0x38] sm:$0xff]
      %v183 = vpack.c.bf16 %v176, %v175
      %v184 = vpack.c.bf16 %v178, %v177
      %v185 = vpack.c.bf16 %v180, %v179
      %v186 = vpack.c.bf16 %v182, %v181
      %v187 = vld [vmem:[%s1] sm:$0xf]
      %v188 = vld [vmem:[%s1 + $0x4] sm:$0xf]
      %v189 = vld [vmem:[%s1 + $0x8] sm:$0xf]
      %v190 = vld [vmem:[%s1 + $0xc] sm:$0xf]
      %v191 = vld [vmem:[%s2] sm:$0x1]
      %v193 = vperm.slane %v191, 0
      %v199 = vunpack.c.l.b16 %v187
      %v200 = vunpack.c.l.b16 %v188
      %v201 = vunpack.c.l.b16 %v189
      %v202 = vunpack.c.l.b16 %v190
      %v203 = vpack.c.b16 %v200, %v199
      %v204 = vpack.c.b16 %v202, %v201
      %vm207 = vcmask 261120
      %v209 = vsel %vm207, %v183, 0
      %v212 = vsel %vm207, %v184, 0
      %v215 = vsel %vm207, %v185, 0
      %v218 = vsel %vm207, %v186, 0
      %220 = vmatpush.bf16.msra.mxu0 0
      %221 = vmatpush.bf16.msra.mxu0 0
      %222 = vmatpush.bf16.msra.mxu0 0
      %223 = vmatpush.bf16.msra.mxu0 0
      %224 = vmatpush.bf16.msra.mxu0 0
      %225 = vmatpush.bf16.msra.mxu0 0
      %226 = vmatpush.bf16.msra.mxu0 %v204
      %227 = vmatpush.bf16.msra.mxu0 %v203
      %228 = vmatmul.bf16.gmra.mxu0 %v209
      %v229 = vpop.f32.mrf.mxu0
      %v230 = vadd.f32 %v193, %v229
      %v231 = vpop.f32.mrf.mxu0
      %v232 = vadd.f32 %v193, %v231
      %233 = vmatmul.bf16.gmra.mxu0 %v212
      %v234 = vpop.f32.mrf.mxu0
      %v235 = vadd.f32 %v193, %v234
      %v236 = vpop.f32.mrf.mxu0
      %v237 = vadd.f32 %v193, %v236
      %238 = vmatmul.bf16.gmra.mxu0 %v215
      %v239 = vpop.f32.mrf.mxu0
      %v240 = vadd.f32 %v193, %v239
      %v241 = vpop.f32.mrf.mxu0
      %v242 = vadd.f32 %v193, %v241
      %243 = vmatmul.bf16.gmra.mxu0 %v218
      %v244 = vpop.f32.mrf.mxu0
      %v245 = vadd.f32 %v193, %v244
      %v246 = vpop.f32.mrf.mxu0
      %v247 = vadd.f32 %v193, %v246
      %248 = vdwg.mxu0
      %249 = vst.msk [vmem:[%s172] sm:$0xff] %vm207, %v230
      %250 = vst.msk [vmem:[%s172 + $0x8] sm:$0xff] %vm207, %v232
      %251 = vst.msk [vmem:[%s172 + $0x10] sm:$0xff] %vm207, %v235
      %252 = vst.msk [vmem:[%s172 + $0x18] sm:$0xff] %vm207, %v237
      %253 = vst.msk [vmem:[%s172 + $0x20] sm:$0xff] %vm207, %v240
      %254 = vst.msk [vmem:[%s172 + $0x28] sm:$0xff] %vm207, %v242
      %255 = vst.msk [vmem:[%s172 + $0x30] sm:$0xff] %vm207, %v245
      %256 = vst.msk [vmem:[%s172 + $0x38] sm:$0xff] %vm207, %v247
      %s257 = smul.u32 8, %s14
      %p258 = scmp.lt.s32.totalorder %s257, 15
      %s259 = scalar_select %p258, %s257, 15
      %s260 = smul.addr %s259, 8
      %s261 = scalar_lea.vmem %s3, %s260
      // Predicated region
      $region33: #{msa_embedder_forward.16} parent=31 // pred_check
        %p262 = pneg %p100
      $region34: #{msa_embedder_forward.16} parent=31 // pred_check_branch
        %264 = sbr.rel (%p262) target = $region36
      $region35: #{msa_embedder_forward.16} parent=31 // pred_region
        %s265 = smul.u32 8, %s14
      $region36: #{msa_embedder_forward.16} parent=31 // pred_fallthru
        _
    $region32: #{msa_embedder_forward.16} parent=5 // pred_fallthru
      _
    %p266 = scmp.le.s32.totalorder 2, %s9
    // Predicated region
    $region37: #{msa_embedder_forward.16} parent=5 // pred_check
      %p267 = pneg %p266
    $region38: #{msa_embedder_forward.16} parent=5 // pred_check_branch
      %269 = sbr.rel (%p267) target = $region40
    $region39: #{msa_embedder_forward.16} parent=5 // pred_region
      %s270 = ssub.s32 %s9, 2
      // Predicated region
      $region41: #{msa_embedder_forward.16} parent=39 // pred_check
        %p271 = pneg %p106
      $region42: #{msa_embedder_forward.16} parent=39 // pred_check_branch
        %273 = sbr.rel (%p271) target = $region44
      $region43: #{msa_embedder_forward.16} parent=39 // pred_region
        %s274 = smul.u32 8, %s15
        %p275 = scmp.lt.s32.totalorder %s274, 15
        %s276 = scalar_select %p275, %s274, 15
        %s277 = smul.addr %s276, 8
        %s278 = scalar_lea.vmem %s3, %s277
      $region44: #{msa_embedder_forward.16} parent=39 // pred_fallthru
        _
    $region40: #{msa_embedder_forward.16} parent=5 // pred_fallthru
      _
  $region6: #{msa_embedder_forward.16} parent=0 // loop_footer
    %s13 = sadd.s32 1, %s9
  $region7: #{msa_embedder_forward.16} parent=0 // loop_footer_branch
    %8 = sbr.rel target = $region3
  $region8: #{msa_embedder_forward.16} parent=0 // loop_exit
    _

// kernel: msa_embedder_forward.17
$region0: #{msa_embedder_forward.17}
  #allocation0 [shape = 'u32[]', space=smem, size = 0x4, offset = 0x4, fixed_abs, tag = 'smem constant byte address 0x4 - core index']
  #allocation1 [shape = 'u32[72,128]{1,0:T(1,128)}', space=vmem, size = 0x9000, scoped, tag = 'internal scratch']
  %s0 = inlined_call_operand.vmem [shape: f32[128,32], index: 0, kind: input, shape index: {}]
  %s1 = inlined_call_operand.vmem [shape: f32[128,32], index: 1, kind: input, shape index: {}]
  %s2 = inlined_call_operand.vmem [shape: f32[1,32], index: 2, kind: input, shape index: {}]
  %s3 = inlined_call_operand.vmem [shape: f32[1,32], index: 3, kind: input, shape index: {}]
  %s4 = inlined_call_operand.vmem [shape: bf16[32,64], index: 4, kind: input, shape index: {}]
  %s5 = inlined_call_operand.vmem [shape: f32[1,64], index: 5, kind: input, shape index: {}]
  %s6 = inlined_call_operand.vmem [shape: bf16[64,32], index: 6, kind: input, shape index: {}]
  %s7 = inlined_call_operand.vmem [shape: f32[1,32], index: 7, kind: input, shape index: {}]
  %s8 = inlined_call_operand.vmem [shape: f32[1,32], index: 8, kind: input, shape index: {}]
  %s9 = inlined_call_operand.vmem [shape: f32[1,32], index: 9, kind: input, shape index: {}]
  %s10 = inlined_call_operand.vmem [shape: f32[128,32], index: 10, kind: output, shape index: {}]
  %s11 = sld [smem:[#allocation0]]
  $region73: #{msa_embedder_forward.17} parent=0
    _
  %s13 = ssub.s32 1, %s11
  %s14 = scalar_select 0, %s13, %s11
  loop: start=0, step=1, limit=4
  $region2: #{msa_embedder_forward.17} parent=0 // loop_pre_header
    _
  $region3: #{msa_embedder_forward.17} parent=0 // loop_header
    %s16 = sphi 0, %s20
    %p17 = scmp.ge.s32.totalorder %s16, 4
    %s26 = sphi 0, %s28
    %s29 = sphi 0, %s26
    %s30 = sphi 0, %s29
    %s46 = sphi 0, %s30
    %s52 = sphi 0, %s54
    %s55 = sphi 0, %s52
    %s56 = sphi 0, %s55
    %s72 = sphi 0, %s56
    %s76 = sphi 0, %s76
    %s78 = sphi 0, %s76
    %s79 = sphi 0, %s78
    %s93 = sphi 0, %s79
    %s97 = sphi 0, %s97
    %s99 = sphi 0, %s97
    %s100 = sphi 0, %s99
    %s114 = sphi 0, %s100
    %s118 = sphi 0, %s118
    %s120 = sphi 0, %s118
    %s121 = sphi 0, %s120
    %s135 = sphi 0, %s121
    %s139 = sphi 0, %s139
    %s141 = sphi 0, %s139
    %s142 = sphi 0, %s141
    %s156 = sphi 0, %s142
    %s160 = sphi 0, %s160
    %s162 = sphi 0, %s160
    %s163 = sphi 0, %s162
    %s177 = sphi 0, %s163
    %s181 = sphi 0, %s181
    %s183 = sphi 0, %s181
    %s184 = sphi 0, %s183
    %s198 = sphi 0, %s184
    %s202 = sphi 0, %s202
    %s204 = sphi 0, %s202
    %s205 = sphi 0, %s204
    %s219 = sphi 0, %s205
    %s223 = sphi 0, %s223
    %s225 = sphi 0, %s223
    %s226 = sphi 0, %s225
    %s240 = sphi 0, %s226
    %s246 = sphi 0, %s248
    %s249 = sphi 0, %s246
    %s250 = sphi 0, %s249
    %s266 = sphi 0, %s250
  $region4: #{msa_embedder_forward.17} parent=0 // loop_header_branch
    %19 = sbr.rel (%p17) target = $region8
  $region5: #{msa_embedder_forward.17} parent=0 // loop_body
    %s21 = ssub.s32 %s16, 1
    %s22 = ssub.s32 %s16, 2
    %s23 = sadd.s32 %s16, 1
    %s24 = ssub.s32 %s16, %s23
    %p25 = scmp.eq.s32.totalorder %s24, 0
    %s27 = sadd.s32 %s26, 1
    %s28 = scalar_select %p25, %s26, %s27
    %p31 = pneg %p25
    %p32 = scmp.eq.s32.totalorder %s16, 1
    %p33 = por %p31, %p32
    %p34 = scmp.ne.s32.totalorder %s26, %s29
    %p35 = scmp.eq.s32.totalorder %s16, 0
    %p36 = por %p34, %p35
    %p37 = scmp.ne.s32.totalorder %s26, %s29
    %p38 = scmp.eq.s32.totalorder %s21, 1
    %p39 = por %p37, %p38
    %p40 = scmp.ne.s32.totalorder %s29, %s30
    %p41 = scmp.eq.s32.totalorder %s21, 0
    %p42 = por %p40, %p41
    %p43 = scmp.ne.s32.totalorder %s29, %s30
    %p44 = scmp.eq.s32.totalorder %s22, 1
    %p45 = por %p43, %p44
    %p47 = scmp.ne.s32.totalorder %s30, %s46
    %p48 = scmp.eq.s32.totalorder %s22, 0
    %p49 = por %p47, %p48
    %s50 = ssub.s32 %s16, %s23
    %p51 = scmp.eq.s32.totalorder %s50, 0
    %s53 = sadd.s32 %s52, 1
    %s54 = scalar_select %p51, %s52, %s53
    %p57 = pneg %p51
    %p58 = scmp.eq.s32.totalorder %s16, 1
    %p59 = por %p57, %p58
    %p60 = scmp.ne.s32.totalorder %s52, %s55
    %p61 = scmp.eq.s32.totalorder %s16, 0
    %p62 = por %p60, %p61
    %p63 = scmp.ne.s32.totalorder %s52, %s55
    %p64 = scmp.eq.s32.totalorder %s21, 1
    %p65 = por %p63, %p64
    %p66 = scmp.ne.s32.totalorder %s55, %s56
    %p67 = scmp.eq.s32.totalorder %s21, 0
    %p68 = por %p66, %p67
    %p69 = scmp.ne.s32.totalorder %s55, %s56
    %p70 = scmp.eq.s32.totalorder %s22, 1
    %p71 = por %p69, %p70
    %p73 = scmp.ne.s32.totalorder %s56, %s72
    %p74 = scmp.eq.s32.totalorder %s22, 0
    %p75 = por %p73, %p74
    %s77 = sadd.s32 %s76, 1
    %p80 = scmp.eq.s32.totalorder %s16, 1
    %p81 = scmp.ne.s32.totalorder %s76, %s78
    %p82 = scmp.eq.s32.totalorder %s16, 0
    %p83 = por %p81, %p82
    %p84 = scmp.ne.s32.totalorder %s76, %s78
    %p85 = scmp.eq.s32.totalorder %s21, 1
    %p86 = por %p84, %p85
    %p87 = scmp.ne.s32.totalorder %s78, %s79
    %p88 = scmp.eq.s32.totalorder %s21, 0
    %p89 = por %p87, %p88
    %p90 = scmp.ne.s32.totalorder %s78, %s79
    %p91 = scmp.eq.s32.totalorder %s22, 1
    %p92 = por %p90, %p91
    %p94 = scmp.ne.s32.totalorder %s79, %s93
    %p95 = scmp.eq.s32.totalorder %s22, 0
    %p96 = por %p94, %p95
    %s98 = sadd.s32 %s97, 1
    %p101 = scmp.eq.s32.totalorder %s16, 1
    %p102 = scmp.ne.s32.totalorder %s97, %s99
    %p103 = scmp.eq.s32.totalorder %s16, 0
    %p104 = por %p102, %p103
    %p105 = scmp.ne.s32.totalorder %s97, %s99
    %p106 = scmp.eq.s32.totalorder %s21, 1
    %p107 = por %p105, %p106
    %p108 = scmp.ne.s32.totalorder %s99, %s100
    %p109 = scmp.eq.s32.totalorder %s21, 0
    %p110 = por %p108, %p109
    %p111 = scmp.ne.s32.totalorder %s99, %s100
    %p112 = scmp.eq.s32.totalorder %s22, 1
    %p113 = por %p111, %p112
    %p115 = scmp.ne.s32.totalorder %s100, %s114
    %p116 = scmp.eq.s32.totalorder %s22, 0
    %p117 = por %p115, %p116
    %s119 = sadd.s32 %s118, 1
    %p122 = scmp.eq.s32.totalorder %s16, 1
    %p123 = scmp.ne.s32.totalorder %s118, %s120
    %p124 = scmp.eq.s32.totalorder %s16, 0
    %p125 = por %p123, %p124
    %p126 = scmp.ne.s32.totalorder %s118, %s120
    %p127 = scmp.eq.s32.totalorder %s21, 1
    %p128 = por %p126, %p127
    %p129 = scmp.ne.s32.totalorder %s120, %s121
    %p130 = scmp.eq.s32.totalorder %s21, 0
    %p131 = por %p129, %p130
    %p132 = scmp.ne.s32.totalorder %s120, %s121
    %p133 = scmp.eq.s32.totalorder %s22, 1
    %p134 = por %p132, %p133
    %p136 = scmp.ne.s32.totalorder %s121, %s135
    %p137 = scmp.eq.s32.totalorder %s22, 0
    %p138 = por %p136, %p137
    %s140 = sadd.s32 %s139, 1
    %p143 = scmp.eq.s32.totalorder %s16, 1
    %p144 = scmp.ne.s32.totalorder %s139, %s141
    %p145 = scmp.eq.s32.totalorder %s16, 0
    %p146 = por %p144, %p145
    %p147 = scmp.ne.s32.totalorder %s139, %s141
    %p148 = scmp.eq.s32.totalorder %s21, 1
    %p149 = por %p147, %p148
    %p150 = scmp.ne.s32.totalorder %s141, %s142
    %p151 = scmp.eq.s32.totalorder %s21, 0
    %p152 = por %p150, %p151
    %p153 = scmp.ne.s32.totalorder %s141, %s142
    %p154 = scmp.eq.s32.totalorder %s22, 1
    %p155 = por %p153, %p154
    %p157 = scmp.ne.s32.totalorder %s142, %s156
    %p158 = scmp.eq.s32.totalorder %s22, 0
    %p159 = por %p157, %p158
    %s161 = sadd.s32 %s160, 1
    %p164 = scmp.eq.s32.totalorder %s16, 1
    %p165 = scmp.ne.s32.totalorder %s160, %s162
    %p166 = scmp.eq.s32.totalorder %s16, 0
    %p167 = por %p165, %p166
    %p168 = scmp.ne.s32.totalorder %s160, %s162
    %p169 = scmp.eq.s32.totalorder %s21, 1
    %p170 = por %p168, %p169
    %p171 = scmp.ne.s32.totalorder %s162, %s163
    %p172 = scmp.eq.s32.totalorder %s21, 0
    %p173 = por %p171, %p172
    %p174 = scmp.ne.s32.totalorder %s162, %s163
    %p175 = scmp.eq.s32.totalorder %s22, 1
    %p176 = por %p174, %p175
    %p178 = scmp.ne.s32.totalorder %s163, %s177
    %p179 = scmp.eq.s32.totalorder %s22, 0
    %p180 = por %p178, %p179
    %s182 = sadd.s32 %s181, 1
    %p185 = scmp.eq.s32.totalorder %s16, 1
    %p186 = scmp.ne.s32.totalorder %s181, %s183
    %p187 = scmp.eq.s32.totalorder %s16, 0
    %p188 = por %p186, %p187
    %p189 = scmp.ne.s32.totalorder %s181, %s183
    %p190 = scmp.eq.s32.totalorder %s21, 1
    %p191 = por %p189, %p190
    %p192 = scmp.ne.s32.totalorder %s183, %s184
    %p193 = scmp.eq.s32.totalorder %s21, 0
    %p194 = por %p192, %p193
    %p195 = scmp.ne.s32.totalorder %s183, %s184
    %p196 = scmp.eq.s32.totalorder %s22, 1
    %p197 = por %p195, %p196
    %p199 = scmp.ne.s32.totalorder %s184, %s198
    %p200 = scmp.eq.s32.totalorder %s22, 0
    %p201 = por %p199, %p200
    %s203 = sadd.s32 %s202, 1
    %p206 = scmp.eq.s32.totalorder %s16, 1
    %p207 = scmp.ne.s32.totalorder %s202, %s204
    %p208 = scmp.eq.s32.totalorder %s16, 0
    %p209 = por %p207, %p208
    %p210 = scmp.ne.s32.totalorder %s202, %s204
    %p211 = scmp.eq.s32.totalorder %s21, 1
    %p212 = por %p210, %p211
    %p213 = scmp.ne.s32.totalorder %s204, %s205
    %p214 = scmp.eq.s32.totalorder %s21, 0
    %p215 = por %p213, %p214
    %p216 = scmp.ne.s32.totalorder %s204, %s205
    %p217 = scmp.eq.s32.totalorder %s22, 1
    %p218 = por %p216, %p217
    %p220 = scmp.ne.s32.totalorder %s205, %s219
    %p221 = scmp.eq.s32.totalorder %s22, 0
    %p222 = por %p220, %p221
    %s224 = sadd.s32 %s223, 1
    %p227 = scmp.eq.s32.totalorder %s16, 1
    %p228 = scmp.ne.s32.totalorder %s223, %s225
    %p229 = scmp.eq.s32.totalorder %s16, 0
    %p230 = por %p228, %p229
    %p231 = scmp.ne.s32.totalorder %s223, %s225
    %p232 = scmp.eq.s32.totalorder %s21, 1
    %p233 = por %p231, %p232
    %p234 = scmp.ne.s32.totalorder %s225, %s226
    %p235 = scmp.eq.s32.totalorder %s21, 0
    %p236 = por %p234, %p235
    %p237 = scmp.ne.s32.totalorder %s225, %s226
    %p238 = scmp.eq.s32.totalorder %s22, 1
    %p239 = por %p237, %p238
    %p241 = scmp.ne.s32.totalorder %s226, %s240
    %p242 = scmp.eq.s32.totalorder %s22, 0
    %p243 = por %p241, %p242
    %s244 = ssub.s32 %s16, %s23
    %p245 = scmp.eq.s32.totalorder %s244, 0
    %s247 = sadd.s32 %s246, 1
    %s248 = scalar_select %p245, %s246, %s247
    %p251 = pneg %p245
    %p252 = scmp.eq.s32.totalorder %s16, 1
    %p253 = por %p251, %p252
    %p254 = scmp.ne.s32.totalorder %s246, %s249
    %p255 = scmp.eq.s32.totalorder %s16, 0
    %p256 = por %p254, %p255
    %p257 = scmp.ne.s32.totalorder %s246, %s249
    %p258 = scmp.eq.s32.totalorder %s21, 1
    %p259 = por %p257, %p258
    %p260 = scmp.ne.s32.totalorder %s249, %s250
    %p261 = scmp.eq.s32.totalorder %s21, 0
    %p262 = por %p260, %p261
    %p263 = scmp.ne.s32.totalorder %s249, %s250
    %p264 = scmp.eq.s32.totalorder %s22, 1
    %p265 = por %p263, %p264
    %p267 = scmp.ne.s32.totalorder %s250, %s266
    %p268 = scmp.eq.s32.totalorder %s22, 0
    %p269 = por %p267, %p268
    %p270 = scmp.le.s32.totalorder 1, %s16
    %p271 = scmp.lt.s32.totalorder %s16, 3
    %p272 = pnand %p270, %p271
    %p273 = pneg %p272
    // Predicated region
    $region9: #{msa_embedder_forward.17} parent=5 // pred_check
      _
    $region10: #{msa_embedder_forward.17} parent=5 // pred_check_branch
      %275 = sbr.rel (%p272) target = $region12
    $region11: #{msa_embedder_forward.17} parent=5 // pred_region
      %s276 = ssub.s32 %s16, 1
      // Predicated region
      $region13: #{msa_embedder_forward.17} parent=11 // pred_check
        %p277 = pneg %p89
      $region14: #{msa_embedder_forward.17} parent=11 // pred_check_branch
        %279 = sbr.rel (%p277) target = $region16
      $region15: #{msa_embedder_forward.17} parent=11 // pred_region
        _
      $region16: #{msa_embedder_forward.17} parent=11 // pred_fallthru
        _
      // Predicated region
      $region17: #{msa_embedder_forward.17} parent=11 // pred_check
        %p280 = pneg %p110
      $region18: #{msa_embedder_forward.17} parent=11 // pred_check_branch
        %282 = sbr.rel (%p280) target = $region20
      $region19: #{msa_embedder_forward.17} parent=11 // pred_region
        _
      $region20: #{msa_embedder_forward.17} parent=11 // pred_fallthru
        _
      // Predicated region
      $region21: #{msa_embedder_forward.17} parent=11 // pred_check
        %p283 = pneg %p131
      $region22: #{msa_embedder_forward.17} parent=11 // pred_check_branch
        %285 = sbr.rel (%p283) target = $region24
      $region23: #{msa_embedder_forward.17} parent=11 // pred_region
        _
      $region24: #{msa_embedder_forward.17} parent=11 // pred_fallthru
        _
      // Predicated region
      $region25: #{msa_embedder_forward.17} parent=11 // pred_check
        %p286 = pneg %p152
      $region26: #{msa_embedder_forward.17} parent=11 // pred_check_branch
        %288 = sbr.rel (%p286) target = $region28
      $region27: #{msa_embedder_forward.17} parent=11 // pred_region
        _
      $region28: #{msa_embedder_forward.17} parent=11 // pred_fallthru
        _
      // Predicated region
      $region29: #{msa_embedder_forward.17} parent=11 // pred_check
        %p289 = pneg %p173
      $region30: #{msa_embedder_forward.17} parent=11 // pred_check_branch
        %291 = sbr.rel (%p289) target = $region32
      $region31: #{msa_embedder_forward.17} parent=11 // pred_region
        _
      $region32: #{msa_embedder_forward.17} parent=11 // pred_fallthru
        _
      // Predicated region
      $region33: #{msa_embedder_forward.17} parent=11 // pred_check
        %p292 = pneg %p194
      $region34: #{msa_embedder_forward.17} parent=11 // pred_check_branch
        %294 = sbr.rel (%p292) target = $region36
      $region35: #{msa_embedder_forward.17} parent=11 // pred_region
        _
      $region36: #{msa_embedder_forward.17} parent=11 // pred_fallthru
        _
      // Predicated region
      $region37: #{msa_embedder_forward.17} parent=11 // pred_check
        %p295 = pneg %p215
      $region38: #{msa_embedder_forward.17} parent=11 // pred_check_branch
        %297 = sbr.rel (%p295) target = $region40
      $region39: #{msa_embedder_forward.17} parent=11 // pred_region
        _
      $region40: #{msa_embedder_forward.17} parent=11 // pred_fallthru
        _
      // Predicated region
      $region41: #{msa_embedder_forward.17} parent=11 // pred_check
        %p298 = pneg %p236
      $region42: #{msa_embedder_forward.17} parent=11 // pred_check_branch
        %300 = sbr.rel (%p298) target = $region44
      $region43: #{msa_embedder_forward.17} parent=11 // pred_region
        _
      $region44: #{msa_embedder_forward.17} parent=11 // pred_fallthru
        _
    $region12: #{msa_embedder_forward.17} parent=5 // pred_fallthru
      _
    %p301 = scmp.lt.s32.totalorder %s16, 2
    // Predicated region
    $region45: #{msa_embedder_forward.17} parent=5 // pred_check
      %p302 = pneg %p301
    $region46: #{msa_embedder_forward.17} parent=5 // pred_check_branch
      %304 = sbr.rel (%p302) target = $region48
    $region47: #{msa_embedder_forward.17} parent=5 // pred_region
      // Predicated region
      $region49: #{msa_embedder_forward.17} parent=47 // pred_check
        %p305 = pneg %p36
      $region50: #{msa_embedder_forward.17} parent=47 // pred_check_branch
        %307 = sbr.rel (%p305) target = $region52
      $region51: #{msa_embedder_forward.17} parent=47 // pred_region
        %s308 = smul.u32 8, %s16
        %p309 = scmp.lt.s32.totalorder %s308, 15
        %s310 = scalar_select %p309, %s308, 15
        %s311 = smul.addr %s310, 8
        %s312 = scalar_lea.vmem %s0, %s311
        %s313 = smul.u32 8, %s16
      $region52: #{msa_embedder_forward.17} parent=47 // pred_fallthru
        _
      // Predicated region
      $region53: #{msa_embedder_forward.17} parent=47 // pred_check
        %p314 = pneg %p62
      $region54: #{msa_embedder_forward.17} parent=47 // pred_check_branch
        %316 = sbr.rel (%p314) target = $region56
      $region55: #{msa_embedder_forward.17} parent=47 // pred_region
        %s317 = smul.u32 8, %s16
        %p318 = scmp.lt.s32.totalorder %s317, 15
        %s319 = scalar_select %p318, %s317, 15
        %s320 = smul.addr %s319, 8
        %s321 = scalar_lea.vmem %s1, %s320
        %s322 = smul.u32 8, %s16
      $region56: #{msa_embedder_forward.17} parent=47 // pred_fallthru
        _
    $region48: #{msa_embedder_forward.17} parent=5 // pred_fallthru
      _
    %p323 = scmp.le.s32.totalorder 1, %s16
    %p324 = scmp.lt.s32.totalorder %s16, 3
    %p325 = pnand %p323, %p324
    %p326 = pneg %p325
    // Predicated region
    $region57: #{msa_embedder_forward.17} parent=5 // pred_check
      _
    $region58: #{msa_embedder_forward.17} parent=5 // pred_check_branch
      %328 = sbr.rel (%p325) target = $region60
    $region59: #{msa_embedder_forward.17} parent=5 // pred_region
      %s329 = ssub.s32 %s16, 1
      %s330 = smul.u32 8, %s21
      %p331 = scmp.lt.s32.totalorder %s330, 15
      %s332 = scalar_select %p331, %s330, 15
      %s333 = smul.addr %s332, 8
      %s334 = scalar_lea.vmem %s0, %s333
      %p335 = pneg %p42
      %p336 = pneg %p39
      %s337 = smul.u32 8, %s21
      %p338 = scmp.lt.s32.totalorder %s337, 15
      %s339 = scalar_select %p338, %s337, 15
      %s340 = smul.addr %s339, 8
      %s341 = scalar_lea.vmem %s1, %s340
      %p342 = pneg %p68
      %p343 = pneg %p65
      %p344 = pneg %p89
      %p345 = pneg %p86
      %p346 = pneg %p110
      %p347 = pneg %p107
      %p348 = pneg %p131
      %p349 = pneg %p128
      %p350 = pneg %p152
      %p351 = pneg %p149
      %p352 = pneg %p173
      %p353 = pneg %p170
      %p354 = pneg %p194
      %p355 = pneg %p191
      %p356 = pneg %p215
      %p357 = pneg %p212
      %p358 = pneg %p236
      %p359 = pneg %p233
      %p360 = pneg %p262
      %p361 = pneg %p259
      %s362 = smul.u32 8, %s21
      %p363 = scmp.lt.s32.totalorder %s362, 15
      %s364 = scalar_select %p363, %s362, 15
      %s365 = smul.addr %s364, 8
      %s366 = scalar_lea.vmem %s10, %s365
      %s367 = smul.u32 8, %s21
      %p368 = scmp.lt.s32.totalorder %s367, 15
      %s369 = scalar_select %p368, %s367, 15
      %s370 = smul.addr %s369, 8
      %s371 = scalar_lea.vmem %s0, %s370
      %s372 = smul.u32 8, %s21
      %s373 = smul.u32 8, %s21
      %p374 = scmp.lt.s32.totalorder %s373, 15
      %s375 = scalar_select %p374, %s373, 15
      %s376 = smul.addr %s375, 8
      %s377 = scalar_lea.vmem %s1, %s376
      %s378 = smul.u32 8, %s21
      %s379 = smul.u32 8, %s21
      %p380 = scmp.lt.s32.totalorder %s379, 15
      %s381 = scalar_select %p380, %s379, 15
      %s382 = smul.addr %s381, 8
      %s383 = scalar_lea.vmem %s10, %s382
      %s384 = smul.u32 8, %s21
      %v386 = vld [vmem:[%s371] sm:$0xff]
      %v387 = vld [vmem:[%s371 + $0x8] sm:$0xff]
      %v388 = vld [vmem:[%s371 + $0x10] sm:$0xff]
      %v389 = vld [vmem:[%s371 + $0x18] sm:$0xff]
      %v390 = vld [vmem:[%s371 + $0x20] sm:$0xff]
      %v391 = vld [vmem:[%s371 + $0x28] sm:$0xff]
      %v392 = vld [vmem:[%s371 + $0x30] sm:$0xff]
      %v393 = vld [vmem:[%s371 + $0x38] sm:$0xff]
      %v394 = vld [vmem:[%s377] sm:$0xff]
      %v395 = vld [vmem:[%s377 + $0x8] sm:$0xff]
      %v396 = vld [vmem:[%s377 + $0x10] sm:$0xff]
      %v397 = vld [vmem:[%s377 + $0x18] sm:$0xff]
      %v398 = vld [vmem:[%s377 + $0x20] sm:$0xff]
      %v399 = vld [vmem:[%s377 + $0x28] sm:$0xff]
      %v400 = vld [vmem:[%s377 + $0x30] sm:$0xff]
      %v401 = vld [vmem:[%s377 + $0x38] sm:$0xff]
      %v402 = vadd.f32 %v386, %v394
      %v403 = vadd.f32 %v387, %v395
      %v404 = vadd.f32 %v388, %v396
      %v405 = vadd.f32 %v389, %v397
      %v406 = vadd.f32 %v390, %v398
      %v407 = vadd.f32 %v391, %v399
      %v408 = vadd.f32 %v392, %v400
      %v409 = vadd.f32 %v393, %v401
      %v410 = vld [vmem:[%s2] sm:$0x1]
      %v411 = vld [vmem:[%s3] sm:$0x1]
      %vm412 = vcmask 261120
      %v413 = vsel %vm412, %v402, 0.0
      %414 = vadd.xlane.f32.xlu0 %v413
      %v415 = vpop.xlane.xlu0 %414
      %v416 = vsel %vm412, %v403, 0.0
      %417 = vadd.xlane.f32.xlu0 %v416
      %v418 = vpop.xlane.xlu0 %417
      %v419 = vsel %vm412, %v404, 0.0
      %420 = vadd.xlane.f32.xlu0 %v419
      %v421 = vpop.xlane.xlu0 %420
      %v422 = vsel %vm412, %v405, 0.0
      %423 = vadd.xlane.f32.xlu0 %v422
      %v424 = vpop.xlane.xlu0 %423
      %v425 = vsel %vm412, %v406, 0.0
      %426 = vadd.xlane.f32.xlu0 %v425
      %v427 = vpop.xlane.xlu0 %426
      %v428 = vsel %vm412, %v407, 0.0
      %429 = vadd.xlane.f32.xlu0 %v428
      %v430 = vpop.xlane.xlu0 %429
      %v431 = vsel %vm412, %v408, 0.0
      %432 = vadd.xlane.f32.xlu0 %v431
      %v433 = vpop.xlane.xlu0 %432
      %v434 = vsel %vm412, %v409, 0.0
      %435 = vadd.xlane.f32.xlu0 %v434
      %v436 = vpop.xlane.xlu0 %435
      %v437 = vrcp.pop 32.0
      %v438 = vmul.f32 32.0, %v437
      %v439 = vsub.f32 1.0, %v438
      %v440 = vmul.f32 %v437, %v439
      %v441 = vadd.f32 %v437, %v440
      %vm442 = vweird.f32 %v437
      %v443 = vsel %vm442, %v437, %v441
      %v444 = vmul.f32 %v415, %v443
      %v445 = vmul.f32 %v418, %v443
      %v446 = vmul.f32 %v421, %v443
      %v447 = vmul.f32 %v424, %v443
      %v448 = vmul.f32 %v427, %v443
      %v449 = vmul.f32 %v430, %v443
      %v450 = vmul.f32 %v433, %v443
      %v451 = vmul.f32 %v436, %v443
      %v452 = vsub.f32 %v402, %v444
      %v453 = vsub.f32 %v403, %v445
      %v454 = vsub.f32 %v404, %v446
      %v455 = vsub.f32 %v405, %v447
      %v456 = vsub.f32 %v406, %v448
      %v457 = vsub.f32 %v407, %v449
      %v458 = vsub.f32 %v408, %v450
      %v459 = vsub.f32 %v409, %v451
      %v460 = vmul.f32 %v452, %v452
      %v461 = vmul.f32 %v453, %v453
      %v462 = vmul.f32 %v454, %v454
      %v463 = vmul.f32 %v455, %v455
      %v464 = vmul.f32 %v456, %v456
      %v465 = vmul.f32 %v457, %v457
      %v466 = vmul.f32 %v458, %v458
      %v467 = vmul.f32 %v459, %v459
      %v468 = vsel %vm412, %v460, 0.0
      %469 = vadd.xlane.f32.xlu0 %v468
      %v470 = vpop.xlane.xlu0 %469
      %v471 = vsel %vm412, %v461, 0.0
      %472 = vadd.xlane.f32.xlu0 %v471
      %v473 = vpop.xlane.xlu0 %472
      %v474 = vsel %vm412, %v462, 0.0
      %475 = vadd.xlane.f32.xlu0 %v474
      %v476 = vpop.xlane.xlu0 %475
      %v477 = vsel %vm412, %v463, 0.0
      %478 = vadd.xlane.f32.xlu0 %v477
      %v479 = vpop.xlane.xlu0 %478
      %v480 = vsel %vm412, %v464, 0.0
      %481 = vadd.xlane.f32.xlu0 %v480
      %v482 = vpop.xlane.xlu0 %481
      %v483 = vsel %vm412, %v465, 0.0
      %484 = vadd.xlane.f32.xlu0 %v483
      %v485 = vpop.xlane.xlu0 %484
      %v486 = vsel %vm412, %v466, 0.0
      %487 = vadd.xlane.f32.xlu0 %v486
      %v488 = vpop.xlane.xlu0 %487
      %v489 = vsel %vm412, %v467, 0.0
      %490 = vadd.xlane.f32.xlu0 %v489
      %v491 = vpop.xlane.xlu0 %490
      %v492 = vmul.f32 %v470, %v443
      %v493 = vmul.f32 %v473, %v443
      %v494 = vmul.f32 %v476, %v443
      %v495 = vmul.f32 %v479, %v443
      %v496 = vmul.f32 %v482, %v443
      %v497 = vmul.f32 %v485, %v443
      %v498 = vmul.f32 %v488, %v443
      %v499 = vmul.f32 %v491, %v443
      %v500 = vadd.f32 %v492, 1e-05
      %v501 = vadd.f32 %v493, 1e-05
      %v502 = vadd.f32 %v494, 1e-05
      %v503 = vadd.f32 %v495, 1e-05
      %v504 = vadd.f32 %v496, 1e-05
      %v505 = vadd.f32 %v497, 1e-05
      %v506 = vadd.f32 %v498, 1e-05
      %v507 = vadd.f32 %v499, 1e-05
      %v508 = vrsqrt.pop %v500
      %v509 = vmul.f32 %v508, %v500
      %v510 = vmul.f32 %v509, %v508
      %v511 = vmul.f32 0.5, %v510
      %v512 = vsub.f32 1.5, %v511
      %v513 = vmul.f32 %v508, %v512
      %vm514 = vweird.f32 %v500
      %vm515 = vweird.f32 %v508
      %vm516 = vmor %vm514, %vm515
      %v517 = vsel %vm516, %v508, %v513
      %v518 = vrsqrt.pop %v501
      %v519 = vmul.f32 %v518, %v501
      %v520 = vmul.f32 %v519, %v518
      %v521 = vmul.f32 0.5, %v520
      %v522 = vsub.f32 1.5, %v521
      %v523 = vmul.f32 %v518, %v522
      %vm524 = vweird.f32 %v501
      %vm525 = vweird.f32 %v518
      %vm526 = vmor %vm524, %vm525
      %v527 = vsel %vm526, %v518, %v523
      %v528 = vrsqrt.pop %v502
      %v529 = vmul.f32 %v528, %v502
      %v530 = vmul.f32 %v529, %v528
      %v531 = vmul.f32 0.5, %v530
      %v532 = vsub.f32 1.5, %v531
      %v533 = vmul.f32 %v528, %v532
      %vm534 = vweird.f32 %v502
      %vm535 = vweird.f32 %v528
      %vm536 = vmor %vm534, %vm535
      %v537 = vsel %vm536, %v528, %v533
      %v538 = vrsqrt.pop %v503
      %v539 = vmul.f32 %v538, %v503
      %v540 = vmul.f32 %v539, %v538
      %v541 = vmul.f32 0.5, %v540
      %v542 = vsub.f32 1.5, %v541
      %v543 = vmul.f32 %v538, %v542
      %vm544 = vweird.f32 %v503
      %vm545 = vweird.f32 %v538
      %vm546 = vmor %vm544, %vm545
      %v547 = vsel %vm546, %v538, %v543
      %v548 = vrsqrt.pop %v504
      %v549 = vmul.f32 %v548, %v504
      %v550 = vmul.f32 %v549, %v548
      %v551 = vmul.f32 0.5, %v550
      %v552 = vsub.f32 1.5, %v551
      %v553 = vmul.f32 %v548, %v552
      %vm554 = vweird.f32 %v504
      %vm555 = vweird.f32 %v548
      %vm556 = vmor %vm554, %vm555
      %v557 = vsel %vm556, %v548, %v553
      %v558 = vrsqrt.pop %v505
      %v559 = vmul.f32 %v558, %v505
      %v560 = vmul.f32 %v559, %v558
      %v561 = vmul.f32 0.5, %v560
      %v562 = vsub.f32 1.5, %v561
      %v563 = vmul.f32 %v558, %v562
      %vm564 = vweird.f32 %v505
      %vm565 = vweird.f32 %v558
      %vm566 = vmor %vm564, %vm565
      %v567 = vsel %vm566, %v558, %v563
      %v568 = vrsqrt.pop %v506
      %v569 = vmul.f32 %v568, %v506
      %v570 = vmul.f32 %v569, %v568
      %v571 = vmul.f32 0.5, %v570
      %v572 = vsub.f32 1.5, %v571
      %v573 = vmul.f32 %v568, %v572
      %vm574 = vweird.f32 %v506
      %vm575 = vweird.f32 %v568
      %vm576 = vmor %vm574, %vm575
      %v577 = vsel %vm576, %v568, %v573
      %v578 = vrsqrt.pop %v507
      %v579 = vmul.f32 %v578, %v507
      %v580 = vmul.f32 %v579, %v578
      %v581 = vmul.f32 0.5, %v580
      %v582 = vsub.f32 1.5, %v581
      %v583 = vmul.f32 %v578, %v582
      %vm584 = vweird.f32 %v507
      %vm585 = vweird.f32 %v578
      %vm586 = vmor %vm584, %vm585
      %v587 = vsel %vm586, %v578, %v583
      %v588 = vmul.f32 %v452, %v517
      %v589 = vmul.f32 %v453, %v527
      %v590 = vmul.f32 %v454, %v537
      %v591 = vmul.f32 %v455, %v547
      %v592 = vmul.f32 %v456, %v557
      %v593 = vmul.f32 %v457, %v567
      %v594 = vmul.f32 %v458, %v577
      %v595 = vmul.f32 %v459, %v587
      %v597 = vperm.slane %v410, 0
      %v599 = vmul.f32 %v588, %v597
      %v600 = vmul.f32 %v589, %v597
      %v601 = vmul.f32 %v590, %v597
      %v602 = vmul.f32 %v591, %v597
      %v603 = vmul.f32 %v592, %v597
      %v604 = vmul.f32 %v593, %v597
      %v605 = vmul.f32 %v594, %v597
      %v606 = vmul.f32 %v595, %v597
      %v608 = vperm.slane %v411, 0
      %v610 = vadd.f32 %v599, %v608
      %v611 = vadd.f32 %v600, %v608
      %v612 = vadd.f32 %v601, %v608
      %v613 = vadd.f32 %v602, %v608
      %v614 = vadd.f32 %v603, %v608
      %v615 = vadd.f32 %v604, %v608
      %v616 = vadd.f32 %v605, %v608
      %v617 = vadd.f32 %v606, %v608
      %v618 = vpack.c.bf16 %v611, %v610
      %v619 = vpack.c.bf16 %v613, %v612
      %v620 = vpack.c.bf16 %v615, %v614
      %v621 = vpack.c.bf16 %v617, %v616
      %v622 = vld [vmem:[%s4] sm:$0xf]
      %v623 = vld [vmem:[%s4 + $0x4] sm:$0xf]
      %v624 = vld [vmem:[%s4 + $0x8] sm:$0xf]
      %v625 = vld [vmem:[%s4 + $0xc] sm:$0xf]
      %v626 = vld [vmem:[%s5] sm:$0x1]
      %v628 = vperm.slane %v626, 0
      %v634 = vunpack.c.l.b16 %v622
      %v635 = vunpack.c.l.b16 %v623
      %v636 = vunpack.c.l.b16 %v624
      %v637 = vunpack.c.l.b16 %v625
      %v638 = vpack.c.b16 %v635, %v634
      %v639 = vpack.c.b16 %v637, %v636
      %v643 = vsel %vm412, %v618, 0
      %v646 = vsel %vm412, %v619, 0
      %v649 = vsel %vm412, %v620, 0
      %v652 = vsel %vm412, %v621, 0
      %654 = vmatpush.bf16.msra.mxu0 0
      %655 = vmatpush.bf16.msra.mxu0 0
      %656 = vmatpush.bf16.msra.mxu0 0
      %657 = vmatpush.bf16.msra.mxu0 0
      %658 = vmatpush.bf16.msra.mxu0 0
      %659 = vmatpush.bf16.msra.mxu0 0
      %660 = vmatpush.bf16.msra.mxu0 %v639
      %661 = vmatpush.bf16.msra.mxu0 %v638
      %662 = vmatmul.bf16.gmra.mxu0 %v643
      %v663 = vpop.f32.mrf.mxu0
      %v664 = vadd.f32 %v628, %v663
      %v665 = vpop.f32.mrf.mxu0
      %v666 = vadd.f32 %v628, %v665
      %667 = vmatmul.bf16.gmra.mxu0 %v646
      %v668 = vpop.f32.mrf.mxu0
      %v669 = vadd.f32 %v628, %v668
      %v670 = vpop.f32.mrf.mxu0
      %v671 = vadd.f32 %v628, %v670
      %672 = vmatmul.bf16.gmra.mxu0 %v649
      %v673 = vpop.f32.mrf.mxu0
      %v674 = vadd.f32 %v628, %v673
      %v675 = vpop.f32.mrf.mxu0
      %v676 = vadd.f32 %v628, %v675
      %677 = vmatmul.bf16.gmra.mxu0 %v652
      %v678 = vpop.f32.mrf.mxu0
      %v679 = vadd.f32 %v628, %v678
      %v680 = vpop.f32.mrf.mxu0
      %v681 = vadd.f32 %v628, %v680
      %682 = vdwg.mxu0
      %v683 = vmax.f32 %v664, 0.0
      %v684 = vmax.f32 %v666, 0.0
      %v685 = vmax.f32 %v669, 0.0
      %v686 = vmax.f32 %v671, 0.0
      %v687 = vmax.f32 %v674, 0.0
      %v688 = vmax.f32 %v676, 0.0
      %v689 = vmax.f32 %v679, 0.0
      %v690 = vmax.f32 %v681, 0.0
      %v691 = vpack.c.bf16 %v684, %v683
      %v692 = vpack.c.bf16 %v686, %v685
      %v693 = vpack.c.bf16 %v688, %v687
      %v694 = vpack.c.bf16 %v690, %v689
      %v695 = vld [vmem:[%s6] sm:$0xf]
      %v696 = vld [vmem:[%s6 + $0x4] sm:$0xf]
      %v697 = vld [vmem:[%s6 + $0x8] sm:$0xf]
      %v698 = vld [vmem:[%s6 + $0xc] sm:$0xf]
      %v699 = vld [vmem:[%s6 + $0x10] sm:$0xf]
      %v700 = vld [vmem:[%s6 + $0x14] sm:$0xf]
      %v701 = vld [vmem:[%s6 + $0x18] sm:$0xf]
      %v702 = vld [vmem:[%s6 + $0x1c] sm:$0xf]
      %v703 = vld [vmem:[%s7] sm:$0x1]
      %v705 = vperm.slane %v703, 0
      %v715 = vunpack.c.l.b16 %v695
      %v716 = vunpack.c.l.b16 %v696
      %v717 = vunpack.c.l.b16 %v697
      %v718 = vunpack.c.l.b16 %v698
      %v719 = vunpack.c.l.b16 %v699
      %v720 = vunpack.c.l.b16 %v700
      %v721 = vunpack.c.l.b16 %v701
      %v722 = vunpack.c.l.b16 %v702
      %v723 = vpack.c.b16 %v716, %v715
      %v724 = vpack.c.b16 %v718, %v717
      %v725 = vpack.c.b16 %v720, %v719
      %v726 = vpack.c.b16 %v722, %v721
      %vm731 = vcmask 523264
      %v733 = vsel %vm731, %v691, 0
      %v736 = vsel %vm731, %v692, 0
      %v739 = vsel %vm731, %v693, 0
      %v742 = vsel %vm731, %v694, 0
      %744 = vmatpush.bf16.msra.mxu0 0
      %745 = vmatpush.bf16.msra.mxu0 0
      %746 = vmatpush.bf16.msra.mxu0 0
      %747 = vmatpush.bf16.msra.mxu0 0
      %748 = vmatpush.bf16.msra.mxu0 %v726
      %749 = vmatpush.bf16.msra.mxu0 %v725
      %750 = vmatpush.bf16.msra.mxu0 %v724
      %751 = vmatpush.bf16.msra.mxu0 %v723
      %752 = vmatmul.bf16.gmra.mxu0 %v733
      %v753 = vpop.f32.mrf.mxu0
      %v754 = vadd.f32 %v705, %v753
      %v755 = vpop.f32.mrf.mxu0
      %v756 = vadd.f32 %v705, %v755
      %757 = vmatmul.bf16.gmra.mxu0 %v736
      %v758 = vpop.f32.mrf.mxu0
      %v759 = vadd.f32 %v705, %v758
      %v760 = vpop.f32.mrf.mxu0
      %v761 = vadd.f32 %v705, %v760
      %762 = vmatmul.bf16.gmra.mxu0 %v739
      %v763 = vpop.f32.mrf.mxu0
      %v764 = vadd.f32 %v705, %v763
      %v765 = vpop.f32.mrf.mxu0
      %v766 = vadd.f32 %v705, %v765
      %767 = vmatmul.bf16.gmra.mxu0 %v742
      %v768 = vpop.f32.mrf.mxu0
      %v769 = vadd.f32 %v705, %v768
      %v770 = vpop.f32.mrf.mxu0
      %v771 = vadd.f32 %v705, %v770
      %772 = vdwg.mxu0
      %v773 = vadd.f32 %v610, %v754
      %v774 = vadd.f32 %v611, %v756
      %v775 = vadd.f32 %v612, %v759
      %v776 = vadd.f32 %v613, %v761
      %v777 = vadd.f32 %v614, %v764
      %v778 = vadd.f32 %v615, %v766
      %v779 = vadd.f32 %v616, %v769
      %v780 = vadd.f32 %v617, %v771
      %v781 = vld [vmem:[%s8] sm:$0x1]
      %v782 = vld [vmem:[%s9] sm:$0x1]
      %v783 = vsel %vm412, %v773, 0.0
      %784 = vadd.xlane.f32.xlu0 %v783
      %v785 = vpop.xlane.xlu0 %784
      %v786 = vsel %vm412, %v774, 0.0
      %787 = vadd.xlane.f32.xlu0 %v786
      %v788 = vpop.xlane.xlu0 %787
      %v789 = vsel %vm412, %v775, 0.0
      %790 = vadd.xlane.f32.xlu0 %v789
      %v791 = vpop.xlane.xlu0 %790
      %v792 = vsel %vm412, %v776, 0.0
      %793 = vadd.xlane.f32.xlu0 %v792
      %v794 = vpop.xlane.xlu0 %793
      %v795 = vsel %vm412, %v777, 0.0
      %796 = vadd.xlane.f32.xlu0 %v795
      %v797 = vpop.xlane.xlu0 %796
      %v798 = vsel %vm412, %v778, 0.0
      %799 = vadd.xlane.f32.xlu0 %v798
      %v800 = vpop.xlane.xlu0 %799
      %v801 = vsel %vm412, %v779, 0.0
      %802 = vadd.xlane.f32.xlu0 %v801
      %v803 = vpop.xlane.xlu0 %802
      %v804 = vsel %vm412, %v780, 0.0
      %805 = vadd.xlane.f32.xlu0 %v804
      %v806 = vpop.xlane.xlu0 %805
      %v807 = vmul.f32 %v785, %v443
      %v808 = vmul.f32 %v788, %v443
      %v809 = vmul.f32 %v791, %v443
      %v810 = vmul.f32 %v794, %v443
      %v811 = vmul.f32 %v797, %v443
      %v812 = vmul.f32 %v800, %v443
      %v813 = vmul.f32 %v803, %v443
      %v814 = vmul.f32 %v806, %v443
      %v815 = vsub.f32 %v773, %v807
      %v816 = vsub.f32 %v774, %v808
      %v817 = vsub.f32 %v775, %v809
      %v818 = vsub.f32 %v776, %v810
      %v819 = vsub.f32 %v777, %v811
      %v820 = vsub.f32 %v778, %v812
      %v821 = vsub.f32 %v779, %v813
      %v822 = vsub.f32 %v780, %v814
      %v823 = vmul.f32 %v815, %v815
      %v824 = vmul.f32 %v816, %v816
      %v825 = vmul.f32 %v817, %v817
      %v826 = vmul.f32 %v818, %v818
      %v827 = vmul.f32 %v819, %v819
      %v828 = vmul.f32 %v820, %v820
      %v829 = vmul.f32 %v821, %v821
      %v830 = vmul.f32 %v822, %v822
      %v831 = vsel %vm412, %v823, 0.0
      %832 = vadd.xlane.f32.xlu0 %v831
      %v833 = vpop.xlane.xlu0 %832
      %v834 = vsel %vm412, %v824, 0.0
      %835 = vadd.xlane.f32.xlu0 %v834
      %v836 = vpop.xlane.xlu0 %835
      %v837 = vsel %vm412, %v825, 0.0
      %838 = vadd.xlane.f32.xlu0 %v837
      %v839 = vpop.xlane.xlu0 %838
      %v840 = vsel %vm412, %v826, 0.0
      %841 = vadd.xlane.f32.xlu0 %v840
      %v842 = vpop.xlane.xlu0 %841
      %v843 = vsel %vm412, %v827, 0.0
      %844 = vadd.xlane.f32.xlu0 %v843
      %v845 = vpop.xlane.xlu0 %844
      %v846 = vsel %vm412, %v828, 0.0
      %847 = vadd.xlane.f32.xlu0 %v846
      %v848 = vpop.xlane.xlu0 %847
      %v849 = vsel %vm412, %v829, 0.0
      %850 = vadd.xlane.f32.xlu0 %v849
      %v851 = vpop.xlane.xlu0 %850
      %v852 = vsel %vm412, %v830, 0.0
      %853 = vadd.xlane.f32.xlu0 %v852
      %v854 = vpop.xlane.xlu0 %853
      %v855 = vmul.f32 %v833, %v443
      %v856 = vmul.f32 %v836, %v443
      %v857 = vmul.f32 %v839, %v443
      %v858 = vmul.f32 %v842, %v443
      %v859 = vmul.f32 %v845, %v443
      %v860 = vmul.f32 %v848, %v443
      %v861 = vmul.f32 %v851, %v443
      %v862 = vmul.f32 %v854, %v443
      %v863 = vadd.f32 %v855, 1e-05
      %v864 = vadd.f32 %v856, 1e-05
      %v865 = vadd.f32 %v857, 1e-05
      %v866 = vadd.f32 %v858, 1e-05
      %v867 = vadd.f32 %v859, 1e-05
      %v868 = vadd.f32 %v860, 1e-05
      %v869 = vadd.f32 %v861, 1e-05
      %v870 = vadd.f32 %v862, 1e-05
      %v871 = vrsqrt.pop %v863
      %v872 = vmul.f32 %v871, %v863
      %v873 = vmul.f32 %v872, %v871
      %v874 = vmul.f32 0.5, %v873
      %v875 = vsub.f32 1.5, %v874
      %v876 = vmul.f32 %v871, %v875
      %vm877 = vweird.f32 %v863
      %vm878 = vweird.f32 %v871
      %vm879 = vmor %vm877, %vm878
      %v880 = vsel %vm879, %v871, %v876
      %v881 = vrsqrt.pop %v864
      %v882 = vmul.f32 %v881, %v864
      %v883 = vmul.f32 %v882, %v881
      %v884 = vmul.f32 0.5, %v883
      %v885 = vsub.f32 1.5, %v884
      %v886 = vmul.f32 %v881, %v885
      %vm887 = vweird.f32 %v864
      %vm888 = vweird.f32 %v881
      %vm889 = vmor %vm887, %vm888
      %v890 = vsel %vm889, %v881, %v886
      %v891 = vrsqrt.pop %v865
      %v892 = vmul.f32 %v891, %v865
      %v893 = vmul.f32 %v892, %v891
      %v894 = vmul.f32 0.5, %v893
      %v895 = vsub.f32 1.5, %v894
      %v896 = vmul.f32 %v891, %v895
      %vm897 = vweird.f32 %v865
      %vm898 = vweird.f32 %v891
      %vm899 = vmor %vm897, %vm898
      %v900 = vsel %vm899, %v891, %v896
      %v901 = vrsqrt.pop %v866
      %v902 = vmul.f32 %v901, %v866
      %v903 = vmul.f32 %v902, %v901
      %v904 = vmul.f32 0.5, %v903
      %v905 = vsub.f32 1.5, %v904
      %v906 = vmul.f32 %v901, %v905
      %vm907 = vweird.f32 %v866
      %vm908 = vweird.f32 %v901
      %vm909 = vmor %vm907, %vm908
      %v910 = vsel %vm909, %v901, %v906
      %v911 = vrsqrt.pop %v867
      %v912 = vmul.f32 %v911, %v867
      %v913 = vmul.f32 %v912, %v911
      %v914 = vmul.f32 0.5, %v913
      %v915 = vsub.f32 1.5, %v914
      %v916 = vmul.f32 %v911, %v915
      %vm917 = vweird.f32 %v867
      %vm918 = vweird.f32 %v911
      %vm919 = vmor %vm917, %vm918
      %v920 = vsel %vm919, %v911, %v916
      %v921 = vrsqrt.pop %v868
      %v922 = vmul.f32 %v921, %v868
      %v923 = vmul.f32 %v922, %v921
      %v924 = vmul.f32 0.5, %v923
      %v925 = vsub.f32 1.5, %v924
      %v926 = vmul.f32 %v921, %v925
      %vm927 = vweird.f32 %v868
      %vm928 = vweird.f32 %v921
      %vm929 = vmor %vm927, %vm928
      %v930 = vsel %vm929, %v921, %v926
      %v931 = vrsqrt.pop %v869
      %v932 = vmul.f32 %v931, %v869
      %v933 = vmul.f32 %v932, %v931
      %v934 = vmul.f32 0.5, %v933
      %v935 = vsub.f32 1.5, %v934
      %v936 = vmul.f32 %v931, %v935
      %vm937 = vweird.f32 %v869
      %vm938 = vweird.f32 %v931
      %vm939 = vmor %vm937, %vm938
      %v940 = vsel %vm939, %v931, %v936
      %v941 = vrsqrt.pop %v870
      %v942 = vmul.f32 %v941, %v870
      %v943 = vmul.f32 %v942, %v941
      %v944 = vmul.f32 0.5, %v943
      %v945 = vsub.f32 1.5, %v944
      %v946 = vmul.f32 %v941, %v945
      %vm947 = vweird.f32 %v870
      %vm948 = vweird.f32 %v941
      %vm949 = vmor %vm947, %vm948
      %v950 = vsel %vm949, %v941, %v946
      %v951 = vmul.f32 %v815, %v880
      %v952 = vmul.f32 %v816, %v890
      %v953 = vmul.f32 %v817, %v900
      %v954 = vmul.f32 %v818, %v910
      %v955 = vmul.f32 %v819, %v920
      %v956 = vmul.f32 %v820, %v930
      %v957 = vmul.f32 %v821, %v940
      %v958 = vmul.f32 %v822, %v950
      %v960 = vperm.slane %v781, 0
      %v962 = vmul.f32 %v951, %v960
      %v963 = vmul.f32 %v952, %v960
      %v964 = vmul.f32 %v953, %v960
      %v965 = vmul.f32 %v954, %v960
      %v966 = vmul.f32 %v955, %v960
      %v967 = vmul.f32 %v956, %v960
      %v968 = vmul.f32 %v957, %v960
      %v969 = vmul.f32 %v958, %v960
      %v971 = vperm.slane %v782, 0
      %v973 = vadd.f32 %v962, %v971
      %v974 = vadd.f32 %v963, %v971
      %v975 = vadd.f32 %v964, %v971
      %v976 = vadd.f32 %v965, %v971
      %v977 = vadd.f32 %v966, %v971
      %v978 = vadd.f32 %v967, %v971
      %v979 = vadd.f32 %v968, %v971
      %v980 = vadd.f32 %v969, %v971
      %981 = vst.msk [vmem:[%s383] sm:$0xff] %vm412, %v973
      %982 = vst.msk [vmem:[%s383 + $0x8] sm:$0xff] %vm412, %v974
      %983 = vst.msk [vmem:[%s383 + $0x10] sm:$0xff] %vm412, %v975
      %984 = vst.msk [vmem:[%s383 + $0x18] sm:$0xff] %vm412, %v976
      %985 = vst.msk [vmem:[%s383 + $0x20] sm:$0xff] %vm412, %v977
      %986 = vst.msk [vmem:[%s383 + $0x28] sm:$0xff] %vm412, %v978
      %987 = vst.msk [vmem:[%s383 + $0x30] sm:$0xff] %vm412, %v979
      %988 = vst.msk [vmem:[%s383 + $0x38] sm:$0xff] %vm412, %v980
      %s989 = smul.u32 8, %s21
      %p990 = scmp.lt.s32.totalorder %s989, 15
      %s991 = scalar_select %p990, %s989, 15
      %s992 = smul.addr %s991, 8
      %s993 = scalar_lea.vmem %s10, %s992
      // Predicated region
      $region61: #{msa_embedder_forward.17} parent=59 // pred_check
        %p994 = pneg %p259
      $region62: #{msa_embedder_forward.17} parent=59 // pred_check_branch
        %996 = sbr.rel (%p994) target = $region64
      $region63: #{msa_embedder_forward.17} parent=59 // pred_region
        %s997 = smul.u32 8, %s21
      $region64: #{msa_embedder_forward.17} parent=59 // pred_fallthru
        _
    $region60: #{msa_embedder_forward.17} parent=5 // pred_fallthru
      _
    %p998 = scmp.le.s32.totalorder 2, %s16
    // Predicated region
    $region65: #{msa_embedder_forward.17} parent=5 // pred_check
      %p999 = pneg %p998
    $region66: #{msa_embedder_forward.17} parent=5 // pred_check_branch
      %1001 = sbr.rel (%p999) target = $region68
    $region67: #{msa_embedder_forward.17} parent=5 // pred_region
      %s1002 = ssub.s32 %s16, 2
      // Predicated region
      $region69: #{msa_embedder_forward.17} parent=67 // pred_check
        %p1003 = pneg %p265
      $region70: #{msa_embedder_forward.17} parent=67 // pred_check_branch
        %1005 = sbr.rel (%p1003) target = $region72
      $region71: #{msa_embedder_forward.17} parent=67 // pred_region
        %s1006 = smul.u32 8, %s22
        %p1007 = scmp.lt.s32.totalorder %s1006, 15
        %s1008 = scalar_select %p1007, %s1006, 15
        %s1009 = smul.addr %s1008, 8
        %s1010 = scalar_lea.vmem %s10, %s1009
      $region72: #{msa_embedder_forward.17} parent=67 // pred_fallthru
        _
    $region68: #{msa_embedder_forward.17} parent=5 // pred_fallthru
      _
  $region6: #{msa_embedder_forward.17} parent=0 // loop_footer
    %s20 = sadd.s32 1, %s16
  $region7: #{msa_embedder_forward.17} parent=0 // loop_footer_branch
    %15 = sbr.rel target = $region3
  $region8: #{msa_embedder_forward.17} parent=0 // loop_exit
    _

// kernel: msa_embedder_forward.27
$region0: #{msa_embedder_forward.27}
  #allocation0 [shape = 'u32[]', space=smem, size = 0x4, offset = 0x4, fixed_abs, tag = 'smem constant byte address 0x4 - core index']
  #allocation1 [shape = 'u32[72,128]{1,0:T(1,128)}', space=vmem, size = 0x9000, scoped, tag = 'internal scratch']
  %s0 = inlined_call_operand.vmem [shape: f32[128,32], index: 0, kind: input, shape index: {}]
  %s1 = inlined_call_operand.vmem [shape: bf16[32,32], index: 1, kind: input, shape index: {}]
  %s2 = inlined_call_operand.vmem [shape: f32[1,32], index: 2, kind: input, shape index: {}]
  %s3 = inlined_call_operand.hbm [shape: f32[128,32], index: 3, kind: output, shape index: {}]
  %s4 = sld [smem:[#allocation0]]
  $region45: #{msa_embedder_forward.27} parent=0
    _
  %s6 = ssub.s32 1, %s4
  %s7 = scalar_select 0, %s6, %s4
  $region1: #{msa_embedder_forward.27} parent=0
    #allocation2 [shape = 'u8[65536]{0}', space=vmem, size = 0x10000, scoped, tag = 'output window, operand 0']
    #allocation3 [shape = 's32[2]{0}', space=sflag, size = 0x8, scoped, tag = 'scoped memory for msa_embedder_forward.27']
    %8 = vsyncpa [#allocation3], 0
    %s9 = scalar_lea.sflag [#allocation3], 1
    %10 = vsyncpa %s9, 0
    loop: start=0, step=1, limit=4
    $region2: #{msa_embedder_forward.27} parent=1 // loop_pre_header
      _
    $region3: #{msa_embedder_forward.27} parent=1 // loop_header
      %s12 = sphi 0, %s16
      %p13 = scmp.ge.s32.totalorder %s12, 4
      %s22 = sphi 0, %s24
      %s25 = sphi 0, %s22
      %s26 = sphi 0, %s25
      %s42 = sphi 0, %s26
      %s46 = sphi 0, %s46
      %s48 = sphi 0, %s46
      %s49 = sphi 0, %s48
      %s63 = sphi 0, %s49
      %s67 = sphi 0, %s67
      %s69 = sphi 0, %s67
      %s70 = sphi 0, %s69
      %s84 = sphi 0, %s70
      %s90 = sphi 0, %s92
      %s93 = sphi 0, %s90
      %s94 = sphi 0, %s93
      %s110 = sphi 0, %s94
    $region4: #{msa_embedder_forward.27} parent=1 // loop_header_branch
      %15 = sbr.rel (%p13) target = $region8
    $region5: #{msa_embedder_forward.27} parent=1 // loop_body
      %s17 = ssub.s32 %s12, 1
      %s18 = ssub.s32 %s12, 2
      %s19 = sadd.s32 %s12, 1
      %s20 = ssub.s32 %s12, %s19
      %p21 = scmp.eq.s32.totalorder %s20, 0
      %s23 = sadd.s32 %s22, 1
      %s24 = scalar_select %p21, %s22, %s23
      %p27 = pneg %p21
      %p28 = scmp.eq.s32.totalorder %s12, 1
      %p29 = por %p27, %p28
      %p30 = scmp.ne.s32.totalorder %s22, %s25
      %p31 = scmp.eq.s32.totalorder %s12, 0
      %p32 = por %p30, %p31
      %p33 = scmp.ne.s32.totalorder %s22, %s25
      %p34 = scmp.eq.s32.totalorder %s17, 1
      %p35 = por %p33, %p34
      %p36 = scmp.ne.s32.totalorder %s25, %s26
      %p37 = scmp.eq.s32.totalorder %s17, 0
      %p38 = por %p36, %p37
      %p39 = scmp.ne.s32.totalorder %s25, %s26
      %p40 = scmp.eq.s32.totalorder %s18, 1
      %p41 = por %p39, %p40
      %p43 = scmp.ne.s32.totalorder %s26, %s42
      %p44 = scmp.eq.s32.totalorder %s18, 0
      %p45 = por %p43, %p44
      %s47 = sadd.s32 %s46, 1
      %p50 = scmp.eq.s32.totalorder %s12, 1
      %p51 = scmp.ne.s32.totalorder %s46, %s48
      %p52 = scmp.eq.s32.totalorder %s12, 0
      %p53 = por %p51, %p52
      %p54 = scmp.ne.s32.totalorder %s46, %s48
      %p55 = scmp.eq.s32.totalorder %s17, 1
      %p56 = por %p54, %p55
      %p57 = scmp.ne.s32.totalorder %s48, %s49
      %p58 = scmp.eq.s32.totalorder %s17, 0
      %p59 = por %p57, %p58
      %p60 = scmp.ne.s32.totalorder %s48, %s49
      %p61 = scmp.eq.s32.totalorder %s18, 1
      %p62 = por %p60, %p61
      %p64 = scmp.ne.s32.totalorder %s49, %s63
      %p65 = scmp.eq.s32.totalorder %s18, 0
      %p66 = por %p64, %p65
      %s68 = sadd.s32 %s67, 1
      %p71 = scmp.eq.s32.totalorder %s12, 1
      %p72 = scmp.ne.s32.totalorder %s67, %s69
      %p73 = scmp.eq.s32.totalorder %s12, 0
      %p74 = por %p72, %p73
      %p75 = scmp.ne.s32.totalorder %s67, %s69
      %p76 = scmp.eq.s32.totalorder %s17, 1
      %p77 = por %p75, %p76
      %p78 = scmp.ne.s32.totalorder %s69, %s70
      %p79 = scmp.eq.s32.totalorder %s17, 0
      %p80 = por %p78, %p79
      %p81 = scmp.ne.s32.totalorder %s69, %s70
      %p82 = scmp.eq.s32.totalorder %s18, 1
      %p83 = por %p81, %p82
      %p85 = scmp.ne.s32.totalorder %s70, %s84
      %p86 = scmp.eq.s32.totalorder %s18, 0
      %p87 = por %p85, %p86
      %s88 = ssub.s32 %s12, %s19
      %p89 = scmp.eq.s32.totalorder %s88, 0
      %s91 = sadd.s32 %s90, 1
      %s92 = scalar_select %p89, %s90, %s91
      %p95 = pneg %p89
      %p96 = scmp.eq.s32.totalorder %s12, 1
      %p97 = por %p95, %p96
      %p98 = scmp.ne.s32.totalorder %s90, %s93
      %p99 = scmp.eq.s32.totalorder %s12, 0
      %p100 = por %p98, %p99
      %p101 = scmp.ne.s32.totalorder %s90, %s93
      %p102 = scmp.eq.s32.totalorder %s17, 1
      %p103 = por %p101, %p102
      %p104 = scmp.ne.s32.totalorder %s93, %s94
      %p105 = scmp.eq.s32.totalorder %s17, 0
      %p106 = por %p104, %p105
      %p107 = scmp.ne.s32.totalorder %s93, %s94
      %p108 = scmp.eq.s32.totalorder %s18, 1
      %p109 = por %p107, %p108
      %p111 = scmp.ne.s32.totalorder %s94, %s110
      %p112 = scmp.eq.s32.totalorder %s18, 0
      %p113 = por %p111, %p112
      %p114 = scmp.le.s32.totalorder 1, %s12
      %p115 = scmp.lt.s32.totalorder %s12, 3
      %p116 = pnand %p114, %p115
      %p117 = pneg %p116
      // Predicated region
      $region9: #{msa_embedder_forward.27} parent=5 // pred_check
        _
      $region10: #{msa_embedder_forward.27} parent=5 // pred_check_branch
        %119 = sbr.rel (%p116) target = $region12
      $region11: #{msa_embedder_forward.27} parent=5 // pred_region
        %s120 = ssub.s32 %s12, 1
        // Predicated region
        $region13: #{msa_embedder_forward.27} parent=11 // pred_check
          %p121 = pneg %p59
        $region14: #{msa_embedder_forward.27} parent=11 // pred_check_branch
          %123 = sbr.rel (%p121) target = $region16
        $region15: #{msa_embedder_forward.27} parent=11 // pred_region
          _
        $region16: #{msa_embedder_forward.27} parent=11 // pred_fallthru
          _
        // Predicated region
        $region17: #{msa_embedder_forward.27} parent=11 // pred_check
          %p124 = pneg %p80
        $region18: #{msa_embedder_forward.27} parent=11 // pred_check_branch
          %126 = sbr.rel (%p124) target = $region20
        $region19: #{msa_embedder_forward.27} parent=11 // pred_region
          _
        $region20: #{msa_embedder_forward.27} parent=11 // pred_fallthru
          _
      $region12: #{msa_embedder_forward.27} parent=5 // pred_fallthru
        _
      %p127 = scmp.lt.s32.totalorder %s12, 2
      // Predicated region
      $region21: #{msa_embedder_forward.27} parent=5 // pred_check
        %p128 = pneg %p127
      $region22: #{msa_embedder_forward.27} parent=5 // pred_check_branch
        %130 = sbr.rel (%p128) target = $region24
      $region23: #{msa_embedder_forward.27} parent=5 // pred_region
        // Predicated region
        $region25: #{msa_embedder_forward.27} parent=23 // pred_check
          %p131 = pneg %p32
        $region26: #{msa_embedder_forward.27} parent=23 // pred_check_branch
          %133 = sbr.rel (%p131) target = $region28
        $region27: #{msa_embedder_forward.27} parent=23 // pred_region
          %s134 = smul.u32 8, %s12
          %p135 = scmp.lt.s32.totalorder %s134, 15
          %s136 = scalar_select %p135, %s134, 15
          %s137 = smul.addr %s136, 8
          %s138 = scalar_lea.vmem %s0, %s137
          %s139 = smul.u32 8, %s12
        $region28: #{msa_embedder_forward.27} parent=23 // pred_fallthru
          _
      $region24: #{msa_embedder_forward.27} parent=5 // pred_fallthru
        _
      %p140 = scmp.le.s32.totalorder 1, %s12
      %p141 = scmp.lt.s32.totalorder %s12, 3
      %p142 = pnand %p140, %p141
      %p143 = pneg %p142
      // Predicated region
      $region29: #{msa_embedder_forward.27} parent=5 // pred_check
        _
      $region30: #{msa_embedder_forward.27} parent=5 // pred_check_branch
        %145 = sbr.rel (%p142) target = $region32
      $region31: #{msa_embedder_forward.27} parent=5 // pred_region
        %s146 = ssub.s32 %s12, 1
        %s147 = smul.u32 8, %s17
        %p148 = scmp.lt.s32.totalorder %s147, 15
        %s149 = scalar_select %p148, %s147, 15
        %s150 = smul.addr %s149, 8
        %s151 = scalar_lea.vmem %s0, %s150
        %p152 = pneg %p38
        %p153 = pneg %p35
        %p154 = pneg %p59
        %p155 = pneg %p56
        %p156 = pneg %p80
        %p157 = pneg %p77
        %p158 = pneg %p106
        %p159 = pneg %p103
        %s160 = sand.u32 %s93, 1
        %s161 = scalar_lea.sflag [#allocation3], %s160
        %s162 = sand.u32 %s93, 1
        %s163 = smul.addr %s162, 64
        %s164 = scalar_lea.vmem [#allocation2], %s163
        %s165 = smul.u32 8, %s17
        %p166 = scmp.lt.s32.totalorder %s165, 15
        %s167 = scalar_select %p166, %s165, 15
        %s168 = smul.addr %s167, 8
        %s169 = scalar_lea.vmem %s0, %s168
        %s170 = smul.u32 8, %s17
        %s171 = smul.u32 8, %s17
        %v173 = vld [vmem:[%s169] sm:$0xff]
        %v174 = vld [vmem:[%s169 + $0x8] sm:$0xff]
        %v175 = vld [vmem:[%s169 + $0x10] sm:$0xff]
        %v176 = vld [vmem:[%s169 + $0x18] sm:$0xff]
        %v177 = vld [vmem:[%s169 + $0x20] sm:$0xff]
        %v178 = vld [vmem:[%s169 + $0x28] sm:$0xff]
        %v179 = vld [vmem:[%s169 + $0x30] sm:$0xff]
        %v180 = vld [vmem:[%s169 + $0x38] sm:$0xff]
        %v181 = vpack.c.bf16 %v174, %v173
        %v182 = vpack.c.bf16 %v176, %v175
        %v183 = vpack.c.bf16 %v178, %v177
        %v184 = vpack.c.bf16 %v180, %v179
        %v185 = vld [vmem:[%s1] sm:$0xf]
        %v186 = vld [vmem:[%s1 + $0x4] sm:$0xf]
        %v187 = vld [vmem:[%s1 + $0x8] sm:$0xf]
        %v188 = vld [vmem:[%s1 + $0xc] sm:$0xf]
        %v189 = vld [vmem:[%s2] sm:$0x1]
        %v191 = vperm.slane %v189, 0
        %v197 = vunpack.c.l.b16 %v185
        %v198 = vunpack.c.l.b16 %v186
        %v199 = vunpack.c.l.b16 %v187
        %v200 = vunpack.c.l.b16 %v188
        %v201 = vpack.c.b16 %v198, %v197
        %v202 = vpack.c.b16 %v200, %v199
        %vm205 = vcmask 261120
        %v207 = vsel %vm205, %v181, 0
        %v210 = vsel %vm205, %v182, 0
        %v213 = vsel %vm205, %v183, 0
        %v216 = vsel %vm205, %v184, 0
        %218 = vmatpush.bf16.msra.mxu0 0
        %219 = vmatpush.bf16.msra.mxu0 0
        %220 = vmatpush.bf16.msra.mxu0 0
        %221 = vmatpush.bf16.msra.mxu0 0
        %222 = vmatpush.bf16.msra.mxu0 0
        %223 = vmatpush.bf16.msra.mxu0 0
        %224 = vmatpush.bf16.msra.mxu0 %v202
        %225 = vmatpush.bf16.msra.mxu0 %v201
        %226 = vmatmul.bf16.gmra.mxu0 %v207
        %v227 = vpop.f32.mrf.mxu0
        %v228 = vadd.f32 %v191, %v227
        %v229 = vpop.f32.mrf.mxu0
        %v230 = vadd.f32 %v191, %v229
        %231 = vmatmul.bf16.gmra.mxu0 %v210
        %v232 = vpop.f32.mrf.mxu0
        %v233 = vadd.f32 %v191, %v232
        %v234 = vpop.f32.mrf.mxu0
        %v235 = vadd.f32 %v191, %v234
        %236 = vmatmul.bf16.gmra.mxu0 %v213
        %v237 = vpop.f32.mrf.mxu0
        %v238 = vadd.f32 %v191, %v237
        %v239 = vpop.f32.mrf.mxu0
        %v240 = vadd.f32 %v191, %v239
        %241 = vmatmul.bf16.gmra.mxu0 %v216
        %v242 = vpop.f32.mrf.mxu0
        %v243 = vadd.f32 %v191, %v242
        %v244 = vpop.f32.mrf.mxu0
        %v245 = vadd.f32 %v191, %v244
        %246 = vdwg.mxu0
        %247 = vst.msk [vmem:[%s164] sm:$0xff] %vm205, %v228
        %248 = vst.msk [vmem:[%s164 + $0x8] sm:$0xff] %vm205, %v230
        %249 = vst.msk [vmem:[%s164 + $0x10] sm:$0xff] %vm205, %v233
        %250 = vst.msk [vmem:[%s164 + $0x18] sm:$0xff] %vm205, %v235
        %251 = vst.msk [vmem:[%s164 + $0x20] sm:$0xff] %vm205, %v238
        %252 = vst.msk [vmem:[%s164 + $0x28] sm:$0xff] %vm205, %v240
        %253 = vst.msk [vmem:[%s164 + $0x30] sm:$0xff] %vm205, %v243
        %254 = vst.msk [vmem:[%s164 + $0x38] sm:$0xff] %vm205, %v245
        %s255 = sand.u32 %s93, 1
        %s256 = scalar_lea.sflag [#allocation3], %s255
        %s257 = sand.u32 %s93, 1
        %s258 = smul.addr %s257, 64
        %s259 = scalar_lea.vmem [#allocation2], %s258
        // Predicated region
        $region33: #{msa_embedder_forward.27} parent=31 // pred_check
          %p260 = pneg %p103
        $region34: #{msa_embedder_forward.27} parent=31 // pred_check_branch
          %262 = sbr.rel (%p260) target = $region36
        $region35: #{msa_embedder_forward.27} parent=31 // pred_region
          %s263 = smul.u32 8, %s17
          %265 = vsyncadd %s256, 0
          %s266 = smul.addr %s263, 8
          %s267 = scalar_lea.hbm %s3, %s266
          %s268 = sshll.u32 %s259, 4
          %s269 = int_to_ptr.vmem [resolvable:$true] %s268
          %s270 = sshll.u32 %s267, 4
          %s271 = int_to_ptr.hbm [resolvable:$true] %s270
          %276 = dma.vmem_to_hbm [thread:$0]  %s269, 1024, %s271, %s256, 128, 128, 8
        $region36: #{msa_embedder_forward.27} parent=31 // pred_fallthru
          _
      $region32: #{msa_embedder_forward.27} parent=5 // pred_fallthru
        _
      %p277 = scmp.le.s32.totalorder 2, %s12
      // Predicated region
      $region37: #{msa_embedder_forward.27} parent=5 // pred_check
        %p278 = pneg %p277
      $region38: #{msa_embedder_forward.27} parent=5 // pred_check_branch
        %280 = sbr.rel (%p278) target = $region40
      $region39: #{msa_embedder_forward.27} parent=5 // pred_region
        %s281 = ssub.s32 %s12, 2
        // Predicated region
        $region41: #{msa_embedder_forward.27} parent=39 // pred_check
          %p282 = pneg %p109
        $region42: #{msa_embedder_forward.27} parent=39 // pred_check_branch
          %284 = sbr.rel (%p282) target = $region44
        $region43: #{msa_embedder_forward.27} parent=39 // pred_region
          %s285 = sand.u32 %s94, 1
          %s286 = scalar_lea.sflag [#allocation3], %s285
          %s287 = sand.u32 %s94, 1
          %s288 = smul.addr %s287, 64
          %s289 = scalar_lea.vmem [#allocation2], %s288
          %291 = dma.done %s286, 1024
        $region44: #{msa_embedder_forward.27} parent=39 // pred_fallthru
          _
      $region40: #{msa_embedder_forward.27} parent=5 // pred_fallthru
        _
    $region6: #{msa_embedder_forward.27} parent=1 // loop_footer
      %s16 = sadd.s32 1, %s12
    $region7: #{msa_embedder_forward.27} parent=1 // loop_footer_branch
      %11 = sbr.rel target = $region3
    $region8: #{msa_embedder_forward.27} parent=1 // loop_exit
      _
    %292 = vsyncpa [#allocation3], 1
    %s293 = scalar_lea.sflag [#allocation3], 1
    %294 = vsyncpa %s293, 1

// kernel: msa_embedder_forward.15
$region0: #{msa_embedder_forward.15}
  #allocation0 [shape = 'u32[]', space=smem, size = 0x4, offset = 0x4, fixed_abs, tag = 'smem constant byte address 0x4 - core index']
  #allocation1 [shape = 'u32[72,128]{1,0:T(1,128)}', space=vmem, size = 0x9000, scoped, tag = 'internal scratch']
  %s0 = inlined_call_operand.vmem [shape: f32[8,16,32], index: 0, kind: input, shape index: {}]
  %s1 = inlined_call_operand.vmem [shape: f32[8,16,32], index: 1, kind: input, shape index: {}]
  %s2 = inlined_call_operand.vmem [shape: f32[8,16,32], index: 2, kind: input, shape index: {}]
  %s3 = inlined_call_operand.vmem [shape: f32[8,1,16], index: 3, kind: input, shape index: {}]
  %s4 = inlined_call_operand.vmem [shape: f32[8,16,32], index: 4, kind: output, shape index: {}]
  %s5 = sld [smem:[#allocation0]]
  $region26: #{msa_embedder_forward.15} parent=0
    _
  %s7 = ssub.s32 1, %s5
  %s8 = scalar_select 0, %s7, %s5
  // Predicated region
  $region2: #{msa_embedder_forward.15} parent=0 // pred_check
    _
  $region3: #{msa_embedder_forward.15} parent=0 // pred_check_branch
    %10 = sbr.rel (0) target = $region5
  $region4: #{msa_embedder_forward.15} parent=0 // pred_region
    _
  $region5: #{msa_embedder_forward.15} parent=0 // pred_fallthru
    _
  // Predicated region
  $region6: #{msa_embedder_forward.15} parent=0 // pred_check
    _
  $region7: #{msa_embedder_forward.15} parent=0 // pred_check_branch
    %12 = sbr.rel (0) target = $region9
  $region8: #{msa_embedder_forward.15} parent=0 // pred_region
    _
  $region9: #{msa_embedder_forward.15} parent=0 // pred_fallthru
    _
  // Predicated region
  $region10: #{msa_embedder_forward.15} parent=0 // pred_check
    _
  $region11: #{msa_embedder_forward.15} parent=0 // pred_check_branch
    %14 = sbr.rel (0) target = $region13
  $region12: #{msa_embedder_forward.15} parent=0 // pred_region
    _
  $region13: #{msa_embedder_forward.15} parent=0 // pred_fallthru
    _
  // Predicated region
  $region14: #{msa_embedder_forward.15} parent=0 // pred_check
    _
  $region15: #{msa_embedder_forward.15} parent=0 // pred_check_branch
    %16 = sbr.rel (0) target = $region17
  $region16: #{msa_embedder_forward.15} parent=0 // pred_region
    _
  $region17: #{msa_embedder_forward.15} parent=0 // pred_fallthru
    _
  %v18 = vld [vmem:[%s0] sm:$0xff]
  %v19 = vld [vmem:[%s0 + $0x8] sm:$0xff]
  %v20 = vld [vmem:[%s0 + $0x10] sm:$0xff]
  %v21 = vld [vmem:[%s0 + $0x18] sm:$0xff]
  %v22 = vld [vmem:[%s0 + $0x20] sm:$0xff]
  %v23 = vld [vmem:[%s0 + $0x28] sm:$0xff]
  %v24 = vld [vmem:[%s0 + $0x30] sm:$0xff]
  %v25 = vld [vmem:[%s0 + $0x38] sm:$0xff]
  %v26 = vld [vmem:[%s0 + $0x40] sm:$0xff]
  %v27 = vld [vmem:[%s0 + $0x48] sm:$0xff]
  %v28 = vld [vmem:[%s0 + $0x50] sm:$0xff]
  %v29 = vld [vmem:[%s0 + $0x58] sm:$0xff]
  %v30 = vld [vmem:[%s0 + $0x60] sm:$0xff]
  %v31 = vld [vmem:[%s0 + $0x68] sm:$0xff]
  %v32 = vld [vmem:[%s0 + $0x70] sm:$0xff]
  %v33 = vld [vmem:[%s0 + $0x78] sm:$0xff]
  %v34 = vld [vmem:[%s1] sm:$0xff]
  %v35 = vld [vmem:[%s1 + $0x8] sm:$0xff]
  %v36 = vld [vmem:[%s1 + $0x10] sm:$0xff]
  %v37 = vld [vmem:[%s1 + $0x18] sm:$0xff]
  %v38 = vld [vmem:[%s1 + $0x20] sm:$0xff]
  %v39 = vld [vmem:[%s1 + $0x28] sm:$0xff]
  %v40 = vld [vmem:[%s1 + $0x30] sm:$0xff]
  %v41 = vld [vmem:[%s1 + $0x38] sm:$0xff]
  %v42 = vld [vmem:[%s1 + $0x40] sm:$0xff]
  %v43 = vld [vmem:[%s1 + $0x48] sm:$0xff]
  %v44 = vld [vmem:[%s1 + $0x50] sm:$0xff]
  %v45 = vld [vmem:[%s1 + $0x58] sm:$0xff]
  %v46 = vld [vmem:[%s1 + $0x60] sm:$0xff]
  %v47 = vld [vmem:[%s1 + $0x68] sm:$0xff]
  %v48 = vld [vmem:[%s1 + $0x70] sm:$0xff]
  %v49 = vld [vmem:[%s1 + $0x78] sm:$0xff]
  %v50 = vld [vmem:[%s2] sm:$0xff]
  %v51 = vld [vmem:[%s2 + $0x8] sm:$0xff]
  %v52 = vld [vmem:[%s2 + $0x10] sm:$0xff]
  %v53 = vld [vmem:[%s2 + $0x18] sm:$0xff]
  %v54 = vld [vmem:[%s2 + $0x20] sm:$0xff]
  %v55 = vld [vmem:[%s2 + $0x28] sm:$0xff]
  %v56 = vld [vmem:[%s2 + $0x30] sm:$0xff]
  %v57 = vld [vmem:[%s2 + $0x38] sm:$0xff]
  %v58 = vld [vmem:[%s2 + $0x40] sm:$0xff]
  %v59 = vld [vmem:[%s2 + $0x48] sm:$0xff]
  %v60 = vld [vmem:[%s2 + $0x50] sm:$0xff]
  %v61 = vld [vmem:[%s2 + $0x58] sm:$0xff]
  %v62 = vld [vmem:[%s2 + $0x60] sm:$0xff]
  %v63 = vld [vmem:[%s2 + $0x68] sm:$0xff]
  %v64 = vld [vmem:[%s2 + $0x70] sm:$0xff]
  %v65 = vld [vmem:[%s2 + $0x78] sm:$0xff]
  %v66 = vld [vmem:[%s3] sm:$0x1]
  %v67 = vld [vmem:[%s3 + $0x1] sm:$0x1]
  %v68 = vld [vmem:[%s3 + $0x2] sm:$0x1]
  %v69 = vld [vmem:[%s3 + $0x3] sm:$0x1]
  %v70 = vld [vmem:[%s3 + $0x4] sm:$0x1]
  %v71 = vld [vmem:[%s3 + $0x5] sm:$0x1]
  %v72 = vld [vmem:[%s3 + $0x6] sm:$0x1]
  %v73 = vld [vmem:[%s3 + $0x7] sm:$0x1]
  %vm74 = vcmp.gt.f32.partialorder %v66, 0.5
  %vm75 = vcmp.gt.f32.partialorder %v67, 0.5
  %vm76 = vcmp.gt.f32.partialorder %v68, 0.5
  %vm77 = vcmp.gt.f32.partialorder %v69, 0.5
  %vm78 = vcmp.gt.f32.partialorder %v70, 0.5
  %vm79 = vcmp.gt.f32.partialorder %v71, 0.5
  %vm80 = vcmp.gt.f32.partialorder %v72, 0.5
  %vm81 = vcmp.gt.f32.partialorder %v73, 0.5
  %v82 = vsel %vm74, 0.0, -1e+09
  %v83 = vsel %vm75, 0.0, -1e+09
  %v84 = vsel %vm76, 0.0, -1e+09
  %v85 = vsel %vm77, 0.0, -1e+09
  %v86 = vsel %vm78, 0.0, -1e+09
  %v87 = vsel %vm79, 0.0, -1e+09
  %v88 = vsel %vm80, 0.0, -1e+09
  %v89 = vsel %vm81, 0.0, -1e+09
  %v90 = vpack.c.bf16 %v18, %v18
  %v91 = vpack.c.bf16 %v19, %v19
  %v92 = vpack.c.bf16 %v20, %v20
  %v93 = vpack.c.bf16 %v21, %v21
  %v94 = vpack.c.bf16 %v22, %v22
  %v95 = vpack.c.bf16 %v23, %v23
  %v96 = vpack.c.bf16 %v24, %v24
  %v97 = vpack.c.bf16 %v25, %v25
  %v98 = vpack.c.bf16 %v26, %v26
  %v99 = vpack.c.bf16 %v27, %v27
  %v100 = vpack.c.bf16 %v28, %v28
  %v101 = vpack.c.bf16 %v29, %v29
  %v102 = vpack.c.bf16 %v30, %v30
  %v103 = vpack.c.bf16 %v31, %v31
  %v104 = vpack.c.bf16 %v32, %v32
  %v105 = vpack.c.bf16 %v33, %v33
  %v106 = vpack.c.bf16 %v34, %v34
  %v107 = vpack.c.bf16 %v35, %v35
  %v108 = vpack.c.bf16 %v36, %v36
  %v109 = vpack.c.bf16 %v37, %v37
  %v110 = vpack.c.bf16 %v38, %v38
  %v111 = vpack.c.bf16 %v39, %v39
  %v112 = vpack.c.bf16 %v40, %v40
  %v113 = vpack.c.bf16 %v41, %v41
  %v114 = vpack.c.bf16 %v42, %v42
  %v115 = vpack.c.bf16 %v43, %v43
  %v116 = vpack.c.bf16 %v44, %v44
  %v117 = vpack.c.bf16 %v45, %v45
  %v118 = vpack.c.bf16 %v46, %v46
  %v119 = vpack.c.bf16 %v47, %v47
  %v120 = vpack.c.bf16 %v48, %v48
  %v121 = vpack.c.bf16 %v49, %v49
  %v124 = vunpack.c.l.b16 %v90
  %v125 = vunpack.c.l.b16 %v91
  %v126 = vpack.c.b16 %v125, %v124
  %v129 = vunpack.c.l.b16 %v106
  %v130 = vunpack.c.l.b16 %v107
  %v131 = vpack.c.b16 %v130, %v129
  %vm132 = vcmask 64512
  %v134 = vsel %vm132, %v126, 0
  %v137 = vsel %vm132, %v131, 0
  %139 = vmatpush.bf16.xpose.msra.mxu0 0
  %140 = vmatpush.bf16.xpose.msra.mxu0 0
  %141 = vmatpush.bf16.xpose.msra.mxu0 0
  %142 = vmatpush.bf16.xpose.msra.mxu0 0
  %143 = vmatpush.bf16.xpose.msra.mxu0 0
  %144 = vmatpush.bf16.xpose.msra.mxu0 0
  %145 = vmatpush.bf16.xpose.msra.mxu0 0
  %146 = vmatpush.bf16.xpose.msra.mxu0 %v137
  %147 = vmatmul.bf16.gmra.mxu0 %v134
  %v148 = vpop.f32.mrf.mxu0
  %v149 = vadd.f32 0.0, %v148
  %v150 = vpop.f32.mrf.mxu0
  %v151 = vadd.f32 0.0, %v150
  %152 = vdwg.mxu0
  %v155 = vunpack.c.l.b16 %v92
  %v156 = vunpack.c.l.b16 %v93
  %v157 = vpack.c.b16 %v156, %v155
  %v160 = vunpack.c.l.b16 %v108
  %v161 = vunpack.c.l.b16 %v109
  %v162 = vpack.c.b16 %v161, %v160
  %v164 = vsel %vm132, %v157, 0
  %v167 = vsel %vm132, %v162, 0
  %169 = vmatpush.bf16.xpose.msra.mxu0 0
  %170 = vmatpush.bf16.xpose.msra.mxu0 0
  %171 = vmatpush.bf16.xpose.msra.mxu0 0
  %172 = vmatpush.bf16.xpose.msra.mxu0 0
  %173 = vmatpush.bf16.xpose.msra.mxu0 0
  %174 = vmatpush.bf16.xpose.msra.mxu0 0
  %175 = vmatpush.bf16.xpose.msra.mxu0 0
  %176 = vmatpush.bf16.xpose.msra.mxu0 %v167
  %177 = vmatmul.bf16.gmra.mxu0 %v164
  %v178 = vpop.f32.mrf.mxu0
  %v179 = vadd.f32 0.0, %v178
  %v180 = vpop.f32.mrf.mxu0
  %v181 = vadd.f32 0.0, %v180
  %182 = vdwg.mxu0
  %v185 = vunpack.c.l.b16 %v94
  %v186 = vunpack.c.l.b16 %v95
  %v187 = vpack.c.b16 %v186, %v185
  %v190 = vunpack.c.l.b16 %v110
  %v191 = vunpack.c.l.b16 %v111
  %v192 = vpack.c.b16 %v191, %v190
  %v194 = vsel %vm132, %v187, 0
  %v197 = vsel %vm132, %v192, 0
  %199 = vmatpush.bf16.xpose.msra.mxu0 0
  %200 = vmatpush.bf16.xpose.msra.mxu0 0
  %201 = vmatpush.bf16.xpose.msra.mxu0 0
  %202 = vmatpush.bf16.xpose.msra.mxu0 0
  %203 = vmatpush.bf16.xpose.msra.mxu0 0
  %204 = vmatpush.bf16.xpose.msra.mxu0 0
  %205 = vmatpush.bf16.xpose.msra.mxu0 0
  %206 = vmatpush.bf16.xpose.msra.mxu0 %v197
  %207 = vmatmul.bf16.gmra.mxu0 %v194
  %v208 = vpop.f32.mrf.mxu0
  %v209 = vadd.f32 0.0, %v208
  %v210 = vpop.f32.mrf.mxu0
  %v211 = vadd.f32 0.0, %v210
  %212 = vdwg.mxu0
  %v215 = vunpack.c.l.b16 %v96
  %v216 = vunpack.c.l.b16 %v97
  %v217 = vpack.c.b16 %v216, %v215
  %v220 = vunpack.c.l.b16 %v112
  %v221 = vunpack.c.l.b16 %v113
  %v222 = vpack.c.b16 %v221, %v220
  %v224 = vsel %vm132, %v217, 0
  %v227 = vsel %vm132, %v222, 0
  %229 = vmatpush.bf16.xpose.msra.mxu0 0
  %230 = vmatpush.bf16.xpose.msra.mxu0 0
  %231 = vmatpush.bf16.xpose.msra.mxu0 0
  %232 = vmatpush.bf16.xpose.msra.mxu0 0
  %233 = vmatpush.bf16.xpose.msra.mxu0 0
  %234 = vmatpush.bf16.xpose.msra.mxu0 0
  %235 = vmatpush.bf16.xpose.msra.mxu0 0
  %236 = vmatpush.bf16.xpose.msra.mxu0 %v227
  %237 = vmatmul.bf16.gmra.mxu0 %v224
  %v238 = vpop.f32.mrf.mxu0
  %v239 = vadd.f32 0.0, %v238
  %v240 = vpop.f32.mrf.mxu0
  %v241 = vadd.f32 0.0, %v240
  %242 = vdwg.mxu0
  %v245 = vunpack.c.l.b16 %v98
  %v246 = vunpack.c.l.b16 %v99
  %v247 = vpack.c.b16 %v246, %v245
  %v250 = vunpack.c.l.b16 %v114
  %v251 = vunpack.c.l.b16 %v115
  %v252 = vpack.c.b16 %v251, %v250
  %v254 = vsel %vm132, %v247, 0
  %v257 = vsel %vm132, %v252, 0
  %259 = vmatpush.bf16.xpose.msra.mxu0 0
  %260 = vmatpush.bf16.xpose.msra.mxu0 0
  %261 = vmatpush.bf16.xpose.msra.mxu0 0
  %262 = vmatpush.bf16.xpose.msra.mxu0 0
  %263 = vmatpush.bf16.xpose.msra.mxu0 0
  %264 = vmatpush.bf16.xpose.msra.mxu0 0
  %265 = vmatpush.bf16.xpose.msra.mxu0 0
  %266 = vmatpush.bf16.xpose.msra.mxu0 %v257
  %267 = vmatmul.bf16.gmra.mxu0 %v254
  %v268 = vpop.f32.mrf.mxu0
  %v269 = vadd.f32 0.0, %v268
  %v270 = vpop.f32.mrf.mxu0
  %v271 = vadd.f32 0.0, %v270
  %272 = vdwg.mxu0
  %v275 = vunpack.c.l.b16 %v100
  %v276 = vunpack.c.l.b16 %v101
  %v277 = vpack.c.b16 %v276, %v275
  %v280 = vunpack.c.l.b16 %v116
  %v281 = vunpack.c.l.b16 %v117
  %v282 = vpack.c.b16 %v281, %v280
  %v284 = vsel %vm132, %v277, 0
  %v287 = vsel %vm132, %v282, 0
  %289 = vmatpush.bf16.xpose.msra.mxu0 0
  %290 = vmatpush.bf16.xpose.msra.mxu0 0
  %291 = vmatpush.bf16.xpose.msra.mxu0 0
  %292 = vmatpush.bf16.xpose.msra.mxu0 0
  %293 = vmatpush.bf16.xpose.msra.mxu0 0
  %294 = vmatpush.bf16.xpose.msra.mxu0 0
  %295 = vmatpush.bf16.xpose.msra.mxu0 0
  %296 = vmatpush.bf16.xpose.msra.mxu0 %v287
  %297 = vmatmul.bf16.gmra.mxu0 %v284
  %v298 = vpop.f32.mrf.mxu0
  %v299 = vadd.f32 0.0, %v298
  %v300 = vpop.f32.mrf.mxu0
  %v301 = vadd.f32 0.0, %v300
  %302 = vdwg.mxu0
  %v305 = vunpack.c.l.b16 %v102
  %v306 = vunpack.c.l.b16 %v103
  %v307 = vpack.c.b16 %v306, %v305
  %v310 = vunpack.c.l.b16 %v118
  %v311 = vunpack.c.l.b16 %v119
  %v312 = vpack.c.b16 %v311, %v310
  %v314 = vsel %vm132, %v307, 0
  %v317 = vsel %vm132, %v312, 0
  %319 = vmatpush.bf16.xpose.msra.mxu0 0
  %320 = vmatpush.bf16.xpose.msra.mxu0 0
  %321 = vmatpush.bf16.xpose.msra.mxu0 0
  %322 = vmatpush.bf16.xpose.msra.mxu0 0
  %323 = vmatpush.bf16.xpose.msra.mxu0 0
  %324 = vmatpush.bf16.xpose.msra.mxu0 0
  %325 = vmatpush.bf16.xpose.msra.mxu0 0
  %326 = vmatpush.bf16.xpose.msra.mxu0 %v317
  %327 = vmatmul.bf16.gmra.mxu0 %v314
  %v328 = vpop.f32.mrf.mxu0
  %v329 = vadd.f32 0.0, %v328
  %v330 = vpop.f32.mrf.mxu0
  %v331 = vadd.f32 0.0, %v330
  %332 = vdwg.mxu0
  %v335 = vunpack.c.l.b16 %v104
  %v336 = vunpack.c.l.b16 %v105
  %v337 = vpack.c.b16 %v336, %v335
  %v340 = vunpack.c.l.b16 %v120
  %v341 = vunpack.c.l.b16 %v121
  %v342 = vpack.c.b16 %v341, %v340
  %v344 = vsel %vm132, %v337, 0
  %v347 = vsel %vm132, %v342, 0
  %349 = vmatpush.bf16.xpose.msra.mxu0 0
  %350 = vmatpush.bf16.xpose.msra.mxu0 0
  %351 = vmatpush.bf16.xpose.msra.mxu0 0
  %352 = vmatpush.bf16.xpose.msra.mxu0 0
  %353 = vmatpush.bf16.xpose.msra.mxu0 0
  %354 = vmatpush.bf16.xpose.msra.mxu0 0
  %355 = vmatpush.bf16.xpose.msra.mxu0 0
  %356 = vmatpush.bf16.xpose.msra.mxu0 %v347
  %357 = vmatmul.bf16.gmra.mxu0 %v344
  %v358 = vpop.f32.mrf.mxu0
  %v359 = vadd.f32 0.0, %v358
  %v360 = vpop.f32.mrf.mxu0
  %v361 = vadd.f32 0.0, %v360
  %362 = vdwg.mxu0
  %v363 = vmul.f32 %v149, 0.35355338
  %v364 = vmul.f32 %v151, 0.35355338
  %v365 = vmul.f32 %v179, 0.35355338
  %v366 = vmul.f32 %v181, 0.35355338
  %v367 = vmul.f32 %v209, 0.35355338
  %v368 = vmul.f32 %v211, 0.35355338
  %v369 = vmul.f32 %v239, 0.35355338
  %v370 = vmul.f32 %v241, 0.35355338
  %v371 = vmul.f32 %v269, 0.35355338
  %v372 = vmul.f32 %v271, 0.35355338
  %v373 = vmul.f32 %v299, 0.35355338
  %v374 = vmul.f32 %v301, 0.35355338
  %v375 = vmul.f32 %v329, 0.35355338
  %v376 = vmul.f32 %v331, 0.35355338
  %v377 = vmul.f32 %v359, 0.35355338
  %v378 = vmul.f32 %v361, 0.35355338
  %v387 = vperm.slane %v82, 0
  %v388 = vperm.slane %v83, 0
  %v389 = vperm.slane %v84, 0
  %v390 = vperm.slane %v85, 0
  %v391 = vperm.slane %v86, 0
  %v392 = vperm.slane %v87, 0
  %v393 = vperm.slane %v88, 0
  %v394 = vperm.slane %v89, 0
  %v403 = vadd.f32 %v363, %v387
  %v404 = vadd.f32 %v364, %v387
  %v405 = vadd.f32 %v365, %v388
  %v406 = vadd.f32 %v366, %v388
  %v407 = vadd.f32 %v367, %v389
  %v408 = vadd.f32 %v368, %v389
  %v409 = vadd.f32 %v369, %v390
  %v410 = vadd.f32 %v370, %v390
  %v411 = vadd.f32 %v371, %v391
  %v412 = vadd.f32 %v372, %v391
  %v413 = vadd.f32 %v373, %v392
  %v414 = vadd.f32 %v374, %v392
  %v415 = vadd.f32 %v375, %v393
  %v416 = vadd.f32 %v376, %v393
  %v417 = vadd.f32 %v377, %v394
  %v418 = vadd.f32 %v378, %v394
  %vm419 = vcmask 130048
  %v420 = vsel %vm419, %v403, -inf
  %421 = vmax.xlane.f32.xlu0 %v420
  %v422 = vpop.xlane.xlu0 %421
  %v423 = vsel %vm419, %v404, -inf
  %424 = vmax.xlane.f32.xlu0 %v423
  %v425 = vpop.xlane.xlu0 %424
  %v426 = vsel %vm419, %v405, -inf
  %427 = vmax.xlane.f32.xlu0 %v426
  %v428 = vpop.xlane.xlu0 %427
  %v429 = vsel %vm419, %v406, -inf
  %430 = vmax.xlane.f32.xlu0 %v429
  %v431 = vpop.xlane.xlu0 %430
  %v432 = vsel %vm419, %v407, -inf
  %433 = vmax.xlane.f32.xlu0 %v432
  %v434 = vpop.xlane.xlu0 %433
  %v435 = vsel %vm419, %v408, -inf
  %436 = vmax.xlane.f32.xlu0 %v435
  %v437 = vpop.xlane.xlu0 %436
  %v438 = vsel %vm419, %v409, -inf
  %439 = vmax.xlane.f32.xlu0 %v438
  %v440 = vpop.xlane.xlu0 %439
  %v441 = vsel %vm419, %v410, -inf
  %442 = vmax.xlane.f32.xlu0 %v441
  %v443 = vpop.xlane.xlu0 %442
  %v444 = vsel %vm419, %v411, -inf
  %445 = vmax.xlane.f32.xlu0 %v444
  %v446 = vpop.xlane.xlu0 %445
  %v447 = vsel %vm419, %v412, -inf
  %448 = vmax.xlane.f32.xlu0 %v447
  %v449 = vpop.xlane.xlu0 %448
  %v450 = vsel %vm419, %v413, -inf
  %451 = vmax.xlane.f32.xlu0 %v450
  %v452 = vpop.xlane.xlu0 %451
  %v453 = vsel %vm419, %v414, -inf
  %454 = vmax.xlane.f32.xlu0 %v453
  %v455 = vpop.xlane.xlu0 %454
  %v456 = vsel %vm419, %v415, -inf
  %457 = vmax.xlane.f32.xlu0 %v456
  %v458 = vpop.xlane.xlu0 %457
  %v459 = vsel %vm419, %v416, -inf
  %460 = vmax.xlane.f32.xlu0 %v459
  %v461 = vpop.xlane.xlu0 %460
  %v462 = vsel %vm419, %v417, -inf
  %463 = vmax.xlane.f32.xlu0 %v462
  %v464 = vpop.xlane.xlu0 %463
  %v465 = vsel %vm419, %v418, -inf
  %466 = vmax.xlane.f32.xlu0 %v465
  %v467 = vpop.xlane.xlu0 %466
  %v468 = vsub.f32 %v403, %v422
  %v469 = vsub.f32 %v404, %v425
  %v470 = vsub.f32 %v405, %v428
  %v471 = vsub.f32 %v406, %v431
  %v472 = vsub.f32 %v407, %v434
  %v473 = vsub.f32 %v408, %v437
  %v474 = vsub.f32 %v409, %v440
  %v475 = vsub.f32 %v410, %v443
  %v476 = vsub.f32 %v411, %v446
  %v477 = vsub.f32 %v412, %v449
  %v478 = vsub.f32 %v413, %v452
  %v479 = vsub.f32 %v414, %v455
  %v480 = vsub.f32 %v415, %v458
  %v481 = vsub.f32 %v416, %v461
  %v482 = vsub.f32 %v417, %v464
  %v483 = vsub.f32 %v418, %v467
  %v484 = vmul.f32 %v468, 1.442695
  %v485 = vpow.pop %v484
  %v486 = vmul.f32 %v469, 1.442695
  %v487 = vpow.pop %v486
  %v488 = vmul.f32 %v470, 1.442695
  %v489 = vpow.pop %v488
  %v490 = vmul.f32 %v471, 1.442695
  %v491 = vpow.pop %v490
  %v492 = vmul.f32 %v472, 1.442695
  %v493 = vpow.pop %v492
  %v494 = vmul.f32 %v473, 1.442695
  %v495 = vpow.pop %v494
  %v496 = vmul.f32 %v474, 1.442695
  %v497 = vpow.pop %v496
  %v498 = vmul.f32 %v475, 1.442695
  %v499 = vpow.pop %v498
  %v500 = vmul.f32 %v476, 1.442695
  %v501 = vpow.pop %v500
  %v502 = vmul.f32 %v477, 1.442695
  %v503 = vpow.pop %v502
  %v504 = vmul.f32 %v478, 1.442695
  %v505 = vpow.pop %v504
  %v506 = vmul.f32 %v479, 1.442695
  %v507 = vpow.pop %v506
  %v508 = vmul.f32 %v480, 1.442695
  %v509 = vpow.pop %v508
  %v510 = vmul.f32 %v481, 1.442695
  %v511 = vpow.pop %v510
  %v512 = vmul.f32 %v482, 1.442695
  %v513 = vpow.pop %v512
  %v514 = vmul.f32 %v483, 1.442695
  %v515 = vpow.pop %v514
  %v516 = vsel %vm419, %v485, 0.0
  %517 = vadd.xlane.f32.xlu0 %v516
  %v518 = vpop.xlane.xlu0 %517
  %v519 = vsel %vm419, %v487, 0.0
  %520 = vadd.xlane.f32.xlu0 %v519
  %v521 = vpop.xlane.xlu0 %520
  %v522 = vsel %vm419, %v489, 0.0
  %523 = vadd.xlane.f32.xlu0 %v522
  %v524 = vpop.xlane.xlu0 %523
  %v525 = vsel %vm419, %v491, 0.0
  %526 = vadd.xlane.f32.xlu0 %v525
  %v527 = vpop.xlane.xlu0 %526
  %v528 = vsel %vm419, %v493, 0.0
  %529 = vadd.xlane.f32.xlu0 %v528
  %v530 = vpop.xlane.xlu0 %529
  %v531 = vsel %vm419, %v495, 0.0
  %532 = vadd.xlane.f32.xlu0 %v531
  %v533 = vpop.xlane.xlu0 %532
  %v534 = vsel %vm419, %v497, 0.0
  %535 = vadd.xlane.f32.xlu0 %v534
  %v536 = vpop.xlane.xlu0 %535
  %v537 = vsel %vm419, %v499, 0.0
  %538 = vadd.xlane.f32.xlu0 %v537
  %v539 = vpop.xlane.xlu0 %538
  %v540 = vsel %vm419, %v501, 0.0
  %541 = vadd.xlane.f32.xlu0 %v540
  %v542 = vpop.xlane.xlu0 %541
  %v543 = vsel %vm419, %v503, 0.0
  %544 = vadd.xlane.f32.xlu0 %v543
  %v545 = vpop.xlane.xlu0 %544
  %v546 = vsel %vm419, %v505, 0.0
  %547 = vadd.xlane.f32.xlu0 %v546
  %v548 = vpop.xlane.xlu0 %547
  %v549 = vsel %vm419, %v507, 0.0
  %550 = vadd.xlane.f32.xlu0 %v549
  %v551 = vpop.xlane.xlu0 %550
  %v552 = vsel %vm419, %v509, 0.0
  %553 = vadd.xlane.f32.xlu0 %v552
  %v554 = vpop.xlane.xlu0 %553
  %v555 = vsel %vm419, %v511, 0.0
  %556 = vadd.xlane.f32.xlu0 %v555
  %v557 = vpop.xlane.xlu0 %556
  %v558 = vsel %vm419, %v513, 0.0
  %559 = vadd.xlane.f32.xlu0 %v558
  %v560 = vpop.xlane.xlu0 %559
  %v561 = vsel %vm419, %v515, 0.0
  %562 = vadd.xlane.f32.xlu0 %v561
  %v563 = vpop.xlane.xlu0 %562
  %v564 = vrcp.pop %v518
  %v565 = vmul.f32 %v518, %v564
  %v566 = vsub.f32 1.0, %v565
  %v567 = vmul.f32 %v564, %v566
  %v568 = vadd.f32 %v564, %v567
  %vm569 = vweird.f32 %v518
  %vm570 = vweird.f32 %v564
  %vm571 = vmor %vm569, %vm570
  %v572 = vsel %vm571, %v564, %v568
  %v573 = vand.u32 2147483647, %v518
  %vm574 = vcmp.eq.f32.partialorder %v573, 8.507059e+37
  %v575 = vand.u32 %v518, 2147483648
  %v576 = vor.u32 1.1754944e-38, %v575
  %v577 = vsel %vm574, %v576, %v572
  %v578 = vmul.f32 %v485, %v577
  %v579 = vrcp.pop %v521
  %v580 = vmul.f32 %v521, %v579
  %v581 = vsub.f32 1.0, %v580
  %v582 = vmul.f32 %v579, %v581
  %v583 = vadd.f32 %v579, %v582
  %vm584 = vweird.f32 %v521
  %vm585 = vweird.f32 %v579
  %vm586 = vmor %vm584, %vm585
  %v587 = vsel %vm586, %v579, %v583
  %v588 = vand.u32 2147483647, %v521
  %vm589 = vcmp.eq.f32.partialorder %v588, 8.507059e+37
  %v590 = vand.u32 %v521, 2147483648
  %v591 = vor.u32 1.1754944e-38, %v590
  %v592 = vsel %vm589, %v591, %v587
  %v593 = vmul.f32 %v487, %v592
  %v594 = vrcp.pop %v524
  %v595 = vmul.f32 %v524, %v594
  %v596 = vsub.f32 1.0, %v595
  %v597 = vmul.f32 %v594, %v596
  %v598 = vadd.f32 %v594, %v597
  %vm599 = vweird.f32 %v524
  %vm600 = vweird.f32 %v594
  %vm601 = vmor %vm599, %vm600
  %v602 = vsel %vm601, %v594, %v598
  %v603 = vand.u32 2147483647, %v524
  %vm604 = vcmp.eq.f32.partialorder %v603, 8.507059e+37
  %v605 = vand.u32 %v524, 2147483648
  %v606 = vor.u32 1.1754944e-38, %v605
  %v607 = vsel %vm604, %v606, %v602
  %v608 = vmul.f32 %v489, %v607
  %v609 = vrcp.pop %v527
  %v610 = vmul.f32 %v527, %v609
  %v611 = vsub.f32 1.0, %v610
  %v612 = vmul.f32 %v609, %v611
  %v613 = vadd.f32 %v609, %v612
  %vm614 = vweird.f32 %v527
  %vm615 = vweird.f32 %v609
  %vm616 = vmor %vm614, %vm615
  %v617 = vsel %vm616, %v609, %v613
  %v618 = vand.u32 2147483647, %v527
  %vm619 = vcmp.eq.f32.partialorder %v618, 8.507059e+37
  %v620 = vand.u32 %v527, 2147483648
  %v621 = vor.u32 1.1754944e-38, %v620
  %v622 = vsel %vm619, %v621, %v617
  %v623 = vmul.f32 %v491, %v622
  %v624 = vrcp.pop %v530
  %v625 = vmul.f32 %v530, %v624
  %v626 = vsub.f32 1.0, %v625
  %v627 = vmul.f32 %v624, %v626
  %v628 = vadd.f32 %v624, %v627
  %vm629 = vweird.f32 %v530
  %vm630 = vweird.f32 %v624
  %vm631 = vmor %vm629, %vm630
  %v632 = vsel %vm631, %v624, %v628
  %v633 = vand.u32 2147483647, %v530
  %vm634 = vcmp.eq.f32.partialorder %v633, 8.507059e+37
  %v635 = vand.u32 %v530, 2147483648
  %v636 = vor.u32 1.1754944e-38, %v635
  %v637 = vsel %vm634, %v636, %v632
  %v638 = vmul.f32 %v493, %v637
  %v639 = vrcp.pop %v533
  %v640 = vmul.f32 %v533, %v639
  %v641 = vsub.f32 1.0, %v640
  %v642 = vmul.f32 %v639, %v641
  %v643 = vadd.f32 %v639, %v642
  %vm644 = vweird.f32 %v533
  %vm645 = vweird.f32 %v639
  %vm646 = vmor %vm644, %vm645
  %v647 = vsel %vm646, %v639, %v643
  %v648 = vand.u32 2147483647, %v533
  %vm649 = vcmp.eq.f32.partialorder %v648, 8.507059e+37
  %v650 = vand.u32 %v533, 2147483648
  %v651 = vor.u32 1.1754944e-38, %v650
  %v652 = vsel %vm649, %v651, %v647
  %v653 = vmul.f32 %v495, %v652
  %v654 = vrcp.pop %v536
  %v655 = vmul.f32 %v536, %v654
  %v656 = vsub.f32 1.0, %v655
  %v657 = vmul.f32 %v654, %v656
  %v658 = vadd.f32 %v654, %v657
  %vm659 = vweird.f32 %v536
  %vm660 = vweird.f32 %v654
  %vm661 = vmor %vm659, %vm660
  %v662 = vsel %vm661, %v654, %v658
  %v663 = vand.u32 2147483647, %v536
  %vm664 = vcmp.eq.f32.partialorder %v663, 8.507059e+37
  %v665 = vand.u32 %v536, 2147483648
  %v666 = vor.u32 1.1754944e-38, %v665
  %v667 = vsel %vm664, %v666, %v662
  %v668 = vmul.f32 %v497, %v667
  %v669 = vrcp.pop %v539
  %v670 = vmul.f32 %v539, %v669
  %v671 = vsub.f32 1.0, %v670
  %v672 = vmul.f32 %v669, %v671
  %v673 = vadd.f32 %v669, %v672
  %vm674 = vweird.f32 %v539
  %vm675 = vweird.f32 %v669
  %vm676 = vmor %vm674, %vm675
  %v677 = vsel %vm676, %v669, %v673
  %v678 = vand.u32 2147483647, %v539
  %vm679 = vcmp.eq.f32.partialorder %v678, 8.507059e+37
  %v680 = vand.u32 %v539, 2147483648
  %v681 = vor.u32 1.1754944e-38, %v680
  %v682 = vsel %vm679, %v681, %v677
  %v683 = vmul.f32 %v499, %v682
  %v684 = vrcp.pop %v542
  %v685 = vmul.f32 %v542, %v684
  %v686 = vsub.f32 1.0, %v685
  %v687 = vmul.f32 %v684, %v686
  %v688 = vadd.f32 %v684, %v687
  %vm689 = vweird.f32 %v542
  %vm690 = vweird.f32 %v684
  %vm691 = vmor %vm689, %vm690
  %v692 = vsel %vm691, %v684, %v688
  %v693 = vand.u32 2147483647, %v542
  %vm694 = vcmp.eq.f32.partialorder %v693, 8.507059e+37
  %v695 = vand.u32 %v542, 2147483648
  %v696 = vor.u32 1.1754944e-38, %v695
  %v697 = vsel %vm694, %v696, %v692
  %v698 = vmul.f32 %v501, %v697
  %v699 = vrcp.pop %v545
  %v700 = vmul.f32 %v545, %v699
  %v701 = vsub.f32 1.0, %v700
  %v702 = vmul.f32 %v699, %v701
  %v703 = vadd.f32 %v699, %v702
  %vm704 = vweird.f32 %v545
  %vm705 = vweird.f32 %v699
  %vm706 = vmor %vm704, %vm705
  %v707 = vsel %vm706, %v699, %v703
  %v708 = vand.u32 2147483647, %v545
  %vm709 = vcmp.eq.f32.partialorder %v708, 8.507059e+37
  %v710 = vand.u32 %v545, 2147483648
  %v711 = vor.u32 1.1754944e-38, %v710
  %v712 = vsel %vm709, %v711, %v707
  %v713 = vmul.f32 %v503, %v712
  %v714 = vrcp.pop %v548
  %v715 = vmul.f32 %v548, %v714
  %v716 = vsub.f32 1.0, %v715
  %v717 = vmul.f32 %v714, %v716
  %v718 = vadd.f32 %v714, %v717
  %vm719 = vweird.f32 %v548
  %vm720 = vweird.f32 %v714
  %vm721 = vmor %vm719, %vm720
  %v722 = vsel %vm721, %v714, %v718
  %v723 = vand.u32 2147483647, %v548
  %vm724 = vcmp.eq.f32.partialorder %v723, 8.507059e+37
  %v725 = vand.u32 %v548, 2147483648
  %v726 = vor.u32 1.1754944e-38, %v725
  %v727 = vsel %vm724, %v726, %v722
  %v728 = vmul.f32 %v505, %v727
  %v729 = vrcp.pop %v551
  %v730 = vmul.f32 %v551, %v729
  %v731 = vsub.f32 1.0, %v730
  %v732 = vmul.f32 %v729, %v731
  %v733 = vadd.f32 %v729, %v732
  %vm734 = vweird.f32 %v551
  %vm735 = vweird.f32 %v729
  %vm736 = vmor %vm734, %vm735
  %v737 = vsel %vm736, %v729, %v733
  %v738 = vand.u32 2147483647, %v551
  %vm739 = vcmp.eq.f32.partialorder %v738, 8.507059e+37
  %v740 = vand.u32 %v551, 2147483648
  %v741 = vor.u32 1.1754944e-38, %v740
  %v742 = vsel %vm739, %v741, %v737
  %v743 = vmul.f32 %v507, %v742
  %v744 = vrcp.pop %v554
  %v745 = vmul.f32 %v554, %v744
  %v746 = vsub.f32 1.0, %v745
  %v747 = vmul.f32 %v744, %v746
  %v748 = vadd.f32 %v744, %v747
  %vm749 = vweird.f32 %v554
  %vm750 = vweird.f32 %v744
  %vm751 = vmor %vm749, %vm750
  %v752 = vsel %vm751, %v744, %v748
  %v753 = vand.u32 2147483647, %v554
  %vm754 = vcmp.eq.f32.partialorder %v753, 8.507059e+37
  %v755 = vand.u32 %v554, 2147483648
  %v756 = vor.u32 1.1754944e-38, %v755
  %v757 = vsel %vm754, %v756, %v752
  %v758 = vmul.f32 %v509, %v757
  %v759 = vrcp.pop %v557
  %v760 = vmul.f32 %v557, %v759
  %v761 = vsub.f32 1.0, %v760
  %v762 = vmul.f32 %v759, %v761
  %v763 = vadd.f32 %v759, %v762
  %vm764 = vweird.f32 %v557
  %vm765 = vweird.f32 %v759
  %vm766 = vmor %vm764, %vm765
  %v767 = vsel %vm766, %v759, %v763
  %v768 = vand.u32 2147483647, %v557
  %vm769 = vcmp.eq.f32.partialorder %v768, 8.507059e+37
  %v770 = vand.u32 %v557, 2147483648
  %v771 = vor.u32 1.1754944e-38, %v770
  %v772 = vsel %vm769, %v771, %v767
  %v773 = vmul.f32 %v511, %v772
  %v774 = vrcp.pop %v560
  %v775 = vmul.f32 %v560, %v774
  %v776 = vsub.f32 1.0, %v775
  %v777 = vmul.f32 %v774, %v776
  %v778 = vadd.f32 %v774, %v777
  %vm779 = vweird.f32 %v560
  %vm780 = vweird.f32 %v774
  %vm781 = vmor %vm779, %vm780
  %v782 = vsel %vm781, %v774, %v778
  %v783 = vand.u32 2147483647, %v560
  %vm784 = vcmp.eq.f32.partialorder %v783, 8.507059e+37
  %v785 = vand.u32 %v560, 2147483648
  %v786 = vor.u32 1.1754944e-38, %v785
  %v787 = vsel %vm784, %v786, %v782
  %v788 = vmul.f32 %v513, %v787
  %v789 = vrcp.pop %v563
  %v790 = vmul.f32 %v563, %v789
  %v791 = vsub.f32 1.0, %v790
  %v792 = vmul.f32 %v789, %v791
  %v793 = vadd.f32 %v789, %v792
  %vm794 = vweird.f32 %v563
  %vm795 = vweird.f32 %v789
  %vm796 = vmor %vm794, %vm795
  %v797 = vsel %vm796, %v789, %v793
  %v798 = vand.u32 2147483647, %v563
  %vm799 = vcmp.eq.f32.partialorder %v798, 8.507059e+37
  %v800 = vand.u32 %v563, 2147483648
  %v801 = vor.u32 1.1754944e-38, %v800
  %v802 = vsel %vm799, %v801, %v797
  %v803 = vmul.f32 %v515, %v802
  %v804 = vpack.c.bf16 %v578, %v578
  %v805 = vpack.c.bf16 %v593, %v593
  %v806 = vpack.c.bf16 %v608, %v608
  %v807 = vpack.c.bf16 %v623, %v623
  %v808 = vpack.c.bf16 %v638, %v638
  %v809 = vpack.c.bf16 %v653, %v653
  %v810 = vpack.c.bf16 %v668, %v668
  %v811 = vpack.c.bf16 %v683, %v683
  %v812 = vpack.c.bf16 %v698, %v698
  %v813 = vpack.c.bf16 %v713, %v713
  %v814 = vpack.c.bf16 %v728, %v728
  %v815 = vpack.c.bf16 %v743, %v743
  %v816 = vpack.c.bf16 %v758, %v758
  %v817 = vpack.c.bf16 %v773, %v773
  %v818 = vpack.c.bf16 %v788, %v788
  %v819 = vpack.c.bf16 %v803, %v803
  %v820 = vpack.c.bf16 %v50, %v50
  %v821 = vpack.c.bf16 %v51, %v51
  %v822 = vpack.c.bf16 %v52, %v52
  %v823 = vpack.c.bf16 %v53, %v53
  %v824 = vpack.c.bf16 %v54, %v54
  %v825 = vpack.c.bf16 %v55, %v55
  %v826 = vpack.c.bf16 %v56, %v56
  %v827 = vpack.c.bf16 %v57, %v57
  %v828 = vpack.c.bf16 %v58, %v58
  %v829 = vpack.c.bf16 %v59, %v59
  %v830 = vpack.c.bf16 %v60, %v60
  %v831 = vpack.c.bf16 %v61, %v61
  %v832 = vpack.c.bf16 %v62, %v62
  %v833 = vpack.c.bf16 %v63, %v63
  %v834 = vpack.c.bf16 %v64, %v64
  %v835 = vpack.c.bf16 %v65, %v65
  %v838 = vunpack.c.l.b16 %v804
  %v839 = vunpack.c.l.b16 %v805
  %v840 = vpack.c.b16 %v839, %v838
  %v843 = vunpack.c.l.b16 %v820
  %v844 = vunpack.c.l.b16 %v821
  %v845 = vpack.c.b16 %v844, %v843
  %v848 = vsel %vm419, %v840, 0
  %850 = vmatpush.bf16.msra.mxu0 0
  %851 = vmatpush.bf16.msra.mxu0 0
  %852 = vmatpush.bf16.msra.mxu0 0
  %853 = vmatpush.bf16.msra.mxu0 0
  %854 = vmatpush.bf16.msra.mxu0 0
  %855 = vmatpush.bf16.msra.mxu0 0
  %856 = vmatpush.bf16.msra.mxu0 0
  %857 = vmatpush.bf16.msra.mxu0 %v845
  %858 = vmatmul.bf16.gmra.mxu0 %v848
  %v859 = vpop.f32.mrf.mxu0
  %v860 = vadd.f32 0.0, %v859
  %v861 = vpop.f32.mrf.mxu0
  %v862 = vadd.f32 0.0, %v861
  %863 = vdwg.mxu0
  %v866 = vunpack.c.l.b16 %v806
  %v867 = vunpack.c.l.b16 %v807
  %v868 = vpack.c.b16 %v867, %v866
  %v871 = vunpack.c.l.b16 %v822
  %v872 = vunpack.c.l.b16 %v823
  %v873 = vpack.c.b16 %v872, %v871
  %v876 = vsel %vm419, %v868, 0
  %878 = vmatpush.bf16.msra.mxu0 0
  %879 = vmatpush.bf16.msra.mxu0 0
  %880 = vmatpush.bf16.msra.mxu0 0
  %881 = vmatpush.bf16.msra.mxu0 0
  %882 = vmatpush.bf16.msra.mxu0 0
  %883 = vmatpush.bf16.msra.mxu0 0
  %884 = vmatpush.bf16.msra.mxu0 0
  %885 = vmatpush.bf16.msra.mxu0 %v873
  %886 = vmatmul.bf16.gmra.mxu0 %v876
  %v887 = vpop.f32.mrf.mxu0
  %v888 = vadd.f32 0.0, %v887
  %v889 = vpop.f32.mrf.mxu0
  %v890 = vadd.f32 0.0, %v889
  %891 = vdwg.mxu0
  %v894 = vunpack.c.l.b16 %v808
  %v895 = vunpack.c.l.b16 %v809
  %v896 = vpack.c.b16 %v895, %v894
  %v899 = vunpack.c.l.b16 %v824
  %v900 = vunpack.c.l.b16 %v825
  %v901 = vpack.c.b16 %v900, %v899
  %v904 = vsel %vm419, %v896, 0
  %906 = vmatpush.bf16.msra.mxu0 0
  %907 = vmatpush.bf16.msra.mxu0 0
  %908 = vmatpush.bf16.msra.mxu0 0
  %909 = vmatpush.bf16.msra.mxu0 0
  %910 = vmatpush.bf16.msra.mxu0 0
  %911 = vmatpush.bf16.msra.mxu0 0
  %912 = vmatpush.bf16.msra.mxu0 0
  %913 = vmatpush.bf16.msra.mxu0 %v901
  %914 = vmatmul.bf16.gmra.mxu0 %v904
  %v915 = vpop.f32.mrf.mxu0
  %v916 = vadd.f32 0.0, %v915
  %v917 = vpop.f32.mrf.mxu0
  %v918 = vadd.f32 0.0, %v917
  %919 = vdwg.mxu0
  %v922 = vunpack.c.l.b16 %v810
  %v923 = vunpack.c.l.b16 %v811
  %v924 = vpack.c.b16 %v923, %v922
  %v927 = vunpack.c.l.b16 %v826
  %v928 = vunpack.c.l.b16 %v827
  %v929 = vpack.c.b16 %v928, %v927
  %v932 = vsel %vm419, %v924, 0
  %934 = vmatpush.bf16.msra.mxu0 0
  %935 = vmatpush.bf16.msra.mxu0 0
  %936 = vmatpush.bf16.msra.mxu0 0
  %937 = vmatpush.bf16.msra.mxu0 0
  %938 = vmatpush.bf16.msra.mxu0 0
  %939 = vmatpush.bf16.msra.mxu0 0
  %940 = vmatpush.bf16.msra.mxu0 0
  %941 = vmatpush.bf16.msra.mxu0 %v929
  %942 = vmatmul.bf16.gmra.mxu0 %v932
  %v943 = vpop.f32.mrf.mxu0
  %v944 = vadd.f32 0.0, %v943
  %v945 = vpop.f32.mrf.mxu0
  %v946 = vadd.f32 0.0, %v945
  %947 = vdwg.mxu0
  %v950 = vunpack.c.l.b16 %v812
  %v951 = vunpack.c.l.b16 %v813
  %v952 = vpack.c.b16 %v951, %v950
  %v955 = vunpack.c.l.b16 %v828
  %v956 = vunpack.c.l.b16 %v829
  %v957 = vpack.c.b16 %v956, %v955
  %v960 = vsel %vm419, %v952, 0
  %962 = vmatpush.bf16.msra.mxu0 0
  %963 = vmatpush.bf16.msra.mxu0 0
  %964 = vmatpush.bf16.msra.mxu0 0
  %965 = vmatpush.bf16.msra.mxu0 0
  %966 = vmatpush.bf16.msra.mxu0 0
  %967 = vmatpush.bf16.msra.mxu0 0
  %968 = vmatpush.bf16.msra.mxu0 0
  %969 = vmatpush.bf16.msra.mxu0 %v957
  %970 = vmatmul.bf16.gmra.mxu0 %v960
  %v971 = vpop.f32.mrf.mxu0
  %v972 = vadd.f32 0.0, %v971
  %v973 = vpop.f32.mrf.mxu0
  %v974 = vadd.f32 0.0, %v973
  %975 = vdwg.mxu0
  %v978 = vunpack.c.l.b16 %v814
  %v979 = vunpack.c.l.b16 %v815
  %v980 = vpack.c.b16 %v979, %v978
  %v983 = vunpack.c.l.b16 %v830
  %v984 = vunpack.c.l.b16 %v831
  %v985 = vpack.c.b16 %v984, %v983
  %v988 = vsel %vm419, %v980, 0
  %990 = vmatpush.bf16.msra.mxu0 0
  %991 = vmatpush.bf16.msra.mxu0 0
  %992 = vmatpush.bf16.msra.mxu0 0
  %993 = vmatpush.bf16.msra.mxu0 0
  %994 = vmatpush.bf16.msra.mxu0 0
  %995 = vmatpush.bf16.msra.mxu0 0
  %996 = vmatpush.bf16.msra.mxu0 0
  %997 = vmatpush.bf16.msra.mxu0 %v985
  %998 = vmatmul.bf16.gmra.mxu0 %v988
  %v999 = vpop.f32.mrf.mxu0
  %v1000 = vadd.f32 0.0, %v999
  %v1001 = vpop.f32.mrf.mxu0
  %v1002 = vadd.f32 0.0, %v1001
  %1003 = vdwg.mxu0
  %v1006 = vunpack.c.l.b16 %v816
  %v1007 = vunpack.c.l.b16 %v817
  %v1008 = vpack.c.b16 %v1007, %v1006
  %v1011 = vunpack.c.l.b16 %v832
  %v1012 = vunpack.c.l.b16 %v833
  %v1013 = vpack.c.b16 %v1012, %v1011
  %v1016 = vsel %vm419, %v1008, 0
  %1018 = vmatpush.bf16.msra.mxu0 0
  %1019 = vmatpush.bf16.msra.mxu0 0
  %1020 = vmatpush.bf16.msra.mxu0 0
  %1021 = vmatpush.bf16.msra.mxu0 0
  %1022 = vmatpush.bf16.msra.mxu0 0
  %1023 = vmatpush.bf16.msra.mxu0 0
  %1024 = vmatpush.bf16.msra.mxu0 0
  %1025 = vmatpush.bf16.msra.mxu0 %v1013
  %1026 = vmatmul.bf16.gmra.mxu0 %v1016
  %v1027 = vpop.f32.mrf.mxu0
  %v1028 = vadd.f32 0.0, %v1027
  %v1029 = vpop.f32.mrf.mxu0
  %v1030 = vadd.f32 0.0, %v1029
  %1031 = vdwg.mxu0
  %v1034 = vunpack.c.l.b16 %v818
  %v1035 = vunpack.c.l.b16 %v819
  %v1036 = vpack.c.b16 %v1035, %v1034
  %v1039 = vunpack.c.l.b16 %v834
  %v1040 = vunpack.c.l.b16 %v835
  %v1041 = vpack.c.b16 %v1040, %v1039
  %v1044 = vsel %vm419, %v1036, 0
  %1046 = vmatpush.bf16.msra.mxu0 0
  %1047 = vmatpush.bf16.msra.mxu0 0
  %1048 = vmatpush.bf16.msra.mxu0 0
  %1049 = vmatpush.bf16.msra.mxu0 0
  %1050 = vmatpush.bf16.msra.mxu0 0
  %1051 = vmatpush.bf16.msra.mxu0 0
  %1052 = vmatpush.bf16.msra.mxu0 0
  %1053 = vmatpush.bf16.msra.mxu0 %v1041
  %1054 = vmatmul.bf16.gmra.mxu0 %v1044
  %v1055 = vpop.f32.mrf.mxu0
  %v1056 = vadd.f32 0.0, %v1055
  %v1057 = vpop.f32.mrf.mxu0
  %v1058 = vadd.f32 0.0, %v1057
  %1059 = vdwg.mxu0
  %1060 = vrot.lane.b32.xlu0 %v126, 120
  %v1061 = vpop.permute.xlu0 %1060
  %1062 = vrot.lane.b32.xlu0 %v131, 120
  %v1063 = vpop.permute.xlu0 %1062
  %v1065 = vsel %vm132, %v1061, 0
  %v1068 = vsel %vm132, %v1063, 0
  %1070 = vmatpush.bf16.xpose.msra.mxu0 0
  %1071 = vmatpush.bf16.xpose.msra.mxu0 0
  %1072 = vmatpush.bf16.xpose.msra.mxu0 0
  %1073 = vmatpush.bf16.xpose.msra.mxu0 0
  %1074 = vmatpush.bf16.xpose.msra.mxu0 0
  %1075 = vmatpush.bf16.xpose.msra.mxu0 0
  %1076 = vmatpush.bf16.xpose.msra.mxu0 0
  %1077 = vmatpush.bf16.xpose.msra.mxu0 %v1068
  %1078 = vmatmul.bf16.gmra.mxu0 %v1065
  %v1079 = vpop.f32.mrf.mxu0
  %v1080 = vadd.f32 0.0, %v1079
  %v1081 = vpop.f32.mrf.mxu0
  %v1082 = vadd.f32 0.0, %v1081
  %1083 = vdwg.mxu0
  %1084 = vrot.lane.b32.xlu0 %v157, 120
  %v1085 = vpop.permute.xlu0 %1084
  %1086 = vrot.lane.b32.xlu0 %v162, 120
  %v1087 = vpop.permute.xlu0 %1086
  %v1089 = vsel %vm132, %v1085, 0
  %v1092 = vsel %vm132, %v1087, 0
  %1094 = vmatpush.bf16.xpose.msra.mxu0 0
  %1095 = vmatpush.bf16.xpose.msra.mxu0 0
  %1096 = vmatpush.bf16.xpose.msra.mxu0 0
  %1097 = vmatpush.bf16.xpose.msra.mxu0 0
  %1098 = vmatpush.bf16.xpose.msra.mxu0 0
  %1099 = vmatpush.bf16.xpose.msra.mxu0 0
  %1100 = vmatpush.bf16.xpose.msra.mxu0 0
  %1101 = vmatpush.bf16.xpose.msra.mxu0 %v1092
  %1102 = vmatmul.bf16.gmra.mxu0 %v1089
  %v1103 = vpop.f32.mrf.mxu0
  %v1104 = vadd.f32 0.0, %v1103
  %v1105 = vpop.f32.mrf.mxu0
  %v1106 = vadd.f32 0.0, %v1105
  %1107 = vdwg.mxu0
  %1108 = vrot.lane.b32.xlu0 %v187, 120
  %v1109 = vpop.permute.xlu0 %1108
  %1110 = vrot.lane.b32.xlu0 %v192, 120
  %v1111 = vpop.permute.xlu0 %1110
  %v1113 = vsel %vm132, %v1109, 0
  %v1116 = vsel %vm132, %v1111, 0
  %1118 = vmatpush.bf16.xpose.msra.mxu0 0
  %1119 = vmatpush.bf16.xpose.msra.mxu0 0
  %1120 = vmatpush.bf16.xpose.msra.mxu0 0
  %1121 = vmatpush.bf16.xpose.msra.mxu0 0
  %1122 = vmatpush.bf16.xpose.msra.mxu0 0
  %1123 = vmatpush.bf16.xpose.msra.mxu0 0
  %1124 = vmatpush.bf16.xpose.msra.mxu0 0
  %1125 = vmatpush.bf16.xpose.msra.mxu0 %v1116
  %1126 = vmatmul.bf16.gmra.mxu0 %v1113
  %v1127 = vpop.f32.mrf.mxu0
  %v1128 = vadd.f32 0.0, %v1127
  %v1129 = vpop.f32.mrf.mxu0
  %v1130 = vadd.f32 0.0, %v1129
  %1131 = vdwg.mxu0
  %1132 = vrot.lane.b32.xlu0 %v217, 120
  %v1133 = vpop.permute.xlu0 %1132
  %1134 = vrot.lane.b32.xlu0 %v222, 120
  %v1135 = vpop.permute.xlu0 %1134
  %v1137 = vsel %vm132, %v1133, 0
  %v1140 = vsel %vm132, %v1135, 0
  %1142 = vmatpush.bf16.xpose.msra.mxu0 0
  %1143 = vmatpush.bf16.xpose.msra.mxu0 0
  %1144 = vmatpush.bf16.xpose.msra.mxu0 0
  %1145 = vmatpush.bf16.xpose.msra.mxu0 0
  %1146 = vmatpush.bf16.xpose.msra.mxu0 0
  %1147 = vmatpush.bf16.xpose.msra.mxu0 0
  %1148 = vmatpush.bf16.xpose.msra.mxu0 0
  %1149 = vmatpush.bf16.xpose.msra.mxu0 %v1140
  %1150 = vmatmul.bf16.gmra.mxu0 %v1137
  %v1151 = vpop.f32.mrf.mxu0
  %v1152 = vadd.f32 0.0, %v1151
  %v1153 = vpop.f32.mrf.mxu0
  %v1154 = vadd.f32 0.0, %v1153
  %1155 = vdwg.mxu0
  %1156 = vrot.lane.b32.xlu0 %v247, 120
  %v1157 = vpop.permute.xlu0 %1156
  %1158 = vrot.lane.b32.xlu0 %v252, 120
  %v1159 = vpop.permute.xlu0 %1158
  %v1161 = vsel %vm132, %v1157, 0
  %v1164 = vsel %vm132, %v1159, 0
  %1166 = vmatpush.bf16.xpose.msra.mxu0 0
  %1167 = vmatpush.bf16.xpose.msra.mxu0 0
  %1168 = vmatpush.bf16.xpose.msra.mxu0 0
  %1169 = vmatpush.bf16.xpose.msra.mxu0 0
  %1170 = vmatpush.bf16.xpose.msra.mxu0 0
  %1171 = vmatpush.bf16.xpose.msra.mxu0 0
  %1172 = vmatpush.bf16.xpose.msra.mxu0 0
  %1173 = vmatpush.bf16.xpose.msra.mxu0 %v1164
  %1174 = vmatmul.bf16.gmra.mxu0 %v1161
  %v1175 = vpop.f32.mrf.mxu0
  %v1176 = vadd.f32 0.0, %v1175
  %v1177 = vpop.f32.mrf.mxu0
  %v1178 = vadd.f32 0.0, %v1177
  %1179 = vdwg.mxu0
  %1180 = vrot.lane.b32.xlu0 %v277, 120
  %v1181 = vpop.permute.xlu0 %1180
  %1182 = vrot.lane.b32.xlu0 %v282, 120
  %v1183 = vpop.permute.xlu0 %1182
  %v1185 = vsel %vm132, %v1181, 0
  %v1188 = vsel %vm132, %v1183, 0
  %1190 = vmatpush.bf16.xpose.msra.mxu0 0
  %1191 = vmatpush.bf16.xpose.msra.mxu0 0
  %1192 = vmatpush.bf16.xpose.msra.mxu0 0
  %1193 = vmatpush.bf16.xpose.msra.mxu0 0
  %1194 = vmatpush.bf16.xpose.msra.mxu0 0
  %1195 = vmatpush.bf16.xpose.msra.mxu0 0
  %1196 = vmatpush.bf16.xpose.msra.mxu0 0
  %1197 = vmatpush.bf16.xpose.msra.mxu0 %v1188
  %1198 = vmatmul.bf16.gmra.mxu0 %v1185
  %v1199 = vpop.f32.mrf.mxu0
  %v1200 = vadd.f32 0.0, %v1199
  %v1201 = vpop.f32.mrf.mxu0
  %v1202 = vadd.f32 0.0, %v1201
  %1203 = vdwg.mxu0
  %1204 = vrot.lane.b32.xlu0 %v307, 120
  %v1205 = vpop.permute.xlu0 %1204
  %1206 = vrot.lane.b32.xlu0 %v312, 120
  %v1207 = vpop.permute.xlu0 %1206
  %v1209 = vsel %vm132, %v1205, 0
  %v1212 = vsel %vm132, %v1207, 0
  %1214 = vmatpush.bf16.xpose.msra.mxu0 0
  %1215 = vmatpush.bf16.xpose.msra.mxu0 0
  %1216 = vmatpush.bf16.xpose.msra.mxu0 0
  %1217 = vmatpush.bf16.xpose.msra.mxu0 0
  %1218 = vmatpush.bf16.xpose.msra.mxu0 0
  %1219 = vmatpush.bf16.xpose.msra.mxu0 0
  %1220 = vmatpush.bf16.xpose.msra.mxu0 0
  %1221 = vmatpush.bf16.xpose.msra.mxu0 %v1212
  %1222 = vmatmul.bf16.gmra.mxu0 %v1209
  %v1223 = vpop.f32.mrf.mxu0
  %v1224 = vadd.f32 0.0, %v1223
  %v1225 = vpop.f32.mrf.mxu0
  %v1226 = vadd.f32 0.0, %v1225
  %1227 = vdwg.mxu0
  %1228 = vrot.lane.b32.xlu0 %v337, 120
  %v1229 = vpop.permute.xlu0 %1228
  %1230 = vrot.lane.b32.xlu0 %v342, 120
  %v1231 = vpop.permute.xlu0 %1230
  %v1233 = vsel %vm132, %v1229, 0
  %v1236 = vsel %vm132, %v1231, 0
  %1238 = vmatpush.bf16.xpose.msra.mxu0 0
  %1239 = vmatpush.bf16.xpose.msra.mxu0 0
  %1240 = vmatpush.bf16.xpose.msra.mxu0 0
  %1241 = vmatpush.bf16.xpose.msra.mxu0 0
  %1242 = vmatpush.bf16.xpose.msra.mxu0 0
  %1243 = vmatpush.bf16.xpose.msra.mxu0 0
  %1244 = vmatpush.bf16.xpose.msra.mxu0 0
  %1245 = vmatpush.bf16.xpose.msra.mxu0 %v1236
  %1246 = vmatmul.bf16.gmra.mxu0 %v1233
  %v1247 = vpop.f32.mrf.mxu0
  %v1248 = vadd.f32 0.0, %v1247
  %v1249 = vpop.f32.mrf.mxu0
  %v1250 = vadd.f32 0.0, %v1249
  %1251 = vdwg.mxu0
  %v1252 = vmul.f32 %v1080, 0.35355338
  %v1253 = vmul.f32 %v1082, 0.35355338
  %v1254 = vmul.f32 %v1104, 0.35355338
  %v1255 = vmul.f32 %v1106, 0.35355338
  %v1256 = vmul.f32 %v1128, 0.35355338
  %v1257 = vmul.f32 %v1130, 0.35355338
  %v1258 = vmul.f32 %v1152, 0.35355338
  %v1259 = vmul.f32 %v1154, 0.35355338
  %v1260 = vmul.f32 %v1176, 0.35355338
  %v1261 = vmul.f32 %v1178, 0.35355338
  %v1262 = vmul.f32 %v1200, 0.35355338
  %v1263 = vmul.f32 %v1202, 0.35355338
  %v1264 = vmul.f32 %v1224, 0.35355338
  %v1265 = vmul.f32 %v1226, 0.35355338
  %v1266 = vmul.f32 %v1248, 0.35355338
  %v1267 = vmul.f32 %v1250, 0.35355338
  %v1268 = vadd.f32 %v1252, %v387
  %v1269 = vadd.f32 %v1253, %v387
  %v1270 = vadd.f32 %v1254, %v388
  %v1271 = vadd.f32 %v1255, %v388
  %v1272 = vadd.f32 %v1256, %v389
  %v1273 = vadd.f32 %v1257, %v389
  %v1274 = vadd.f32 %v1258, %v390
  %v1275 = vadd.f32 %v1259, %v390
  %v1276 = vadd.f32 %v1260, %v391
  %v1277 = vadd.f32 %v1261, %v391
  %v1278 = vadd.f32 %v1262, %v392
  %v1279 = vadd.f32 %v1263, %v392
  %v1280 = vadd.f32 %v1264, %v393
  %v1281 = vadd.f32 %v1265, %v393
  %v1282 = vadd.f32 %v1266, %v394
  %v1283 = vadd.f32 %v1267, %v394
  %v1284 = vsel %vm419, %v1268, -inf
  %1285 = vmax.xlane.f32.xlu0 %v1284
  %v1286 = vpop.xlane.xlu0 %1285
  %v1287 = vsel %vm419, %v1269, -inf
  %1288 = vmax.xlane.f32.xlu0 %v1287
  %v1289 = vpop.xlane.xlu0 %1288
  %v1290 = vsel %vm419, %v1270, -inf
  %1291 = vmax.xlane.f32.xlu0 %v1290
  %v1292 = vpop.xlane.xlu0 %1291
  %v1293 = vsel %vm419, %v1271, -inf
  %1294 = vmax.xlane.f32.xlu0 %v1293
  %v1295 = vpop.xlane.xlu0 %1294
  %v1296 = vsel %vm419, %v1272, -inf
  %1297 = vmax.xlane.f32.xlu0 %v1296
  %v1298 = vpop.xlane.xlu0 %1297
  %v1299 = vsel %vm419, %v1273, -inf
  %1300 = vmax.xlane.f32.xlu0 %v1299
  %v1301 = vpop.xlane.xlu0 %1300
  %v1302 = vsel %vm419, %v1274, -inf
  %1303 = vmax.xlane.f32.xlu0 %v1302
  %v1304 = vpop.xlane.xlu0 %1303
  %v1305 = vsel %vm419, %v1275, -inf
  %1306 = vmax.xlane.f32.xlu0 %v1305
  %v1307 = vpop.xlane.xlu0 %1306
  %v1308 = vsel %vm419, %v1276, -inf
  %1309 = vmax.xlane.f32.xlu0 %v1308
  %v1310 = vpop.xlane.xlu0 %1309
  %v1311 = vsel %vm419, %v1277, -inf
  %1312 = vmax.xlane.f32.xlu0 %v1311
  %v1313 = vpop.xlane.xlu0 %1312
  %v1314 = vsel %vm419, %v1278, -inf
  %1315 = vmax.xlane.f32.xlu0 %v1314
  %v1316 = vpop.xlane.xlu0 %1315
  %v1317 = vsel %vm419, %v1279, -inf
  %1318 = vmax.xlane.f32.xlu0 %v1317
  %v1319 = vpop.xlane.xlu0 %1318
  %v1320 = vsel %vm419, %v1280, -inf
  %1321 = vmax.xlane.f32.xlu0 %v1320
  %v1322 = vpop.xlane.xlu0 %1321
  %v1323 = vsel %vm419, %v1281, -inf
  %1324 = vmax.xlane.f32.xlu0 %v1323
  %v1325 = vpop.xlane.xlu0 %1324
  %v1326 = vsel %vm419, %v1282, -inf
  %1327 = vmax.xlane.f32.xlu0 %v1326
  %v1328 = vpop.xlane.xlu0 %1327
  %v1329 = vsel %vm419, %v1283, -inf
  %1330 = vmax.xlane.f32.xlu0 %v1329
  %v1331 = vpop.xlane.xlu0 %1330
  %v1332 = vsub.f32 %v1268, %v1286
  %v1333 = vsub.f32 %v1269, %v1289
  %v1334 = vsub.f32 %v1270, %v1292
  %v1335 = vsub.f32 %v1271, %v1295
  %v1336 = vsub.f32 %v1272, %v1298
  %v1337 = vsub.f32 %v1273, %v1301
  %v1338 = vsub.f32 %v1274, %v1304
  %v1339 = vsub.f32 %v1275, %v1307
  %v1340 = vsub.f32 %v1276, %v1310
  %v1341 = vsub.f32 %v1277, %v1313
  %v1342 = vsub.f32 %v1278, %v1316
  %v1343 = vsub.f32 %v1279, %v1319
  %v1344 = vsub.f32 %v1280, %v1322
  %v1345 = vsub.f32 %v1281, %v1325
  %v1346 = vsub.f32 %v1282, %v1328
  %v1347 = vsub.f32 %v1283, %v1331
  %v1348 = vmul.f32 %v1332, 1.442695
  %v1349 = vpow.pop %v1348
  %v1350 = vmul.f32 %v1333, 1.442695
  %v1351 = vpow.pop %v1350
  %v1352 = vmul.f32 %v1334, 1.442695
  %v1353 = vpow.pop %v1352
  %v1354 = vmul.f32 %v1335, 1.442695
  %v1355 = vpow.pop %v1354
  %v1356 = vmul.f32 %v1336, 1.442695
  %v1357 = vpow.pop %v1356
  %v1358 = vmul.f32 %v1337, 1.442695
  %v1359 = vpow.pop %v1358
  %v1360 = vmul.f32 %v1338, 1.442695
  %v1361 = vpow.pop %v1360
  %v1362 = vmul.f32 %v1339, 1.442695
  %v1363 = vpow.pop %v1362
  %v1364 = vmul.f32 %v1340, 1.442695
  %v1365 = vpow.pop %v1364
  %v1366 = vmul.f32 %v1341, 1.442695
  %v1367 = vpow.pop %v1366
  %v1368 = vmul.f32 %v1342, 1.442695
  %v1369 = vpow.pop %v1368
  %v1370 = vmul.f32 %v1343, 1.442695
  %v1371 = vpow.pop %v1370
  %v1372 = vmul.f32 %v1344, 1.442695
  %v1373 = vpow.pop %v1372
  %v1374 = vmul.f32 %v1345, 1.442695
  %v1375 = vpow.pop %v1374
  %v1376 = vmul.f32 %v1346, 1.442695
  %v1377 = vpow.pop %v1376
  %v1378 = vmul.f32 %v1347, 1.442695
  %v1379 = vpow.pop %v1378
  %v1380 = vsel %vm419, %v1349, 0.0
  %1381 = vadd.xlane.f32.xlu0 %v1380
  %v1382 = vpop.xlane.xlu0 %1381
  %v1383 = vsel %vm419, %v1351, 0.0
  %1384 = vadd.xlane.f32.xlu0 %v1383
  %v1385 = vpop.xlane.xlu0 %1384
  %v1386 = vsel %vm419, %v1353, 0.0
  %1387 = vadd.xlane.f32.xlu0 %v1386
  %v1388 = vpop.xlane.xlu0 %1387
  %v1389 = vsel %vm419, %v1355, 0.0
  %1390 = vadd.xlane.f32.xlu0 %v1389
  %v1391 = vpop.xlane.xlu0 %1390
  %v1392 = vsel %vm419, %v1357, 0.0
  %1393 = vadd.xlane.f32.xlu0 %v1392
  %v1394 = vpop.xlane.xlu0 %1393
  %v1395 = vsel %vm419, %v1359, 0.0
  %1396 = vadd.xlane.f32.xlu0 %v1395
  %v1397 = vpop.xlane.xlu0 %1396
  %v1398 = vsel %vm419, %v1361, 0.0
  %1399 = vadd.xlane.f32.xlu0 %v1398
  %v1400 = vpop.xlane.xlu0 %1399
  %v1401 = vsel %vm419, %v1363, 0.0
  %1402 = vadd.xlane.f32.xlu0 %v1401
  %v1403 = vpop.xlane.xlu0 %1402
  %v1404 = vsel %vm419, %v1365, 0.0
  %1405 = vadd.xlane.f32.xlu0 %v1404
  %v1406 = vpop.xlane.xlu0 %1405
  %v1407 = vsel %vm419, %v1367, 0.0
  %1408 = vadd.xlane.f32.xlu0 %v1407
  %v1409 = vpop.xlane.xlu0 %1408
  %v1410 = vsel %vm419, %v1369, 0.0
  %1411 = vadd.xlane.f32.xlu0 %v1410
  %v1412 = vpop.xlane.xlu0 %1411
  %v1413 = vsel %vm419, %v1371, 0.0
  %1414 = vadd.xlane.f32.xlu0 %v1413
  %v1415 = vpop.xlane.xlu0 %1414
  %v1416 = vsel %vm419, %v1373, 0.0
  %1417 = vadd.xlane.f32.xlu0 %v1416
  %v1418 = vpop.xlane.xlu0 %1417
  %v1419 = vsel %vm419, %v1375, 0.0
  %1420 = vadd.xlane.f32.xlu0 %v1419
  %v1421 = vpop.xlane.xlu0 %1420
  %v1422 = vsel %vm419, %v1377, 0.0
  %1423 = vadd.xlane.f32.xlu0 %v1422
  %v1424 = vpop.xlane.xlu0 %1423
  %v1425 = vsel %vm419, %v1379, 0.0
  %1426 = vadd.xlane.f32.xlu0 %v1425
  %v1427 = vpop.xlane.xlu0 %1426
  %v1428 = vrcp.pop %v1382
  %v1429 = vmul.f32 %v1382, %v1428
  %v1430 = vsub.f32 1.0, %v1429
  %v1431 = vmul.f32 %v1428, %v1430
  %v1432 = vadd.f32 %v1428, %v1431
  %vm1433 = vweird.f32 %v1382
  %vm1434 = vweird.f32 %v1428
  %vm1435 = vmor %vm1433, %vm1434
  %v1436 = vsel %vm1435, %v1428, %v1432
  %v1437 = vand.u32 2147483647, %v1382
  %vm1438 = vcmp.eq.f32.partialorder %v1437, 8.507059e+37
  %v1439 = vand.u32 %v1382, 2147483648
  %v1440 = vor.u32 1.1754944e-38, %v1439
  %v1441 = vsel %vm1438, %v1440, %v1436
  %v1442 = vmul.f32 %v1349, %v1441
  %v1443 = vrcp.pop %v1385
  %v1444 = vmul.f32 %v1385, %v1443
  %v1445 = vsub.f32 1.0, %v1444
  %v1446 = vmul.f32 %v1443, %v1445
  %v1447 = vadd.f32 %v1443, %v1446
  %vm1448 = vweird.f32 %v1385
  %vm1449 = vweird.f32 %v1443
  %vm1450 = vmor %vm1448, %vm1449
  %v1451 = vsel %vm1450, %v1443, %v1447
  %v1452 = vand.u32 2147483647, %v1385
  %vm1453 = vcmp.eq.f32.partialorder %v1452, 8.507059e+37
  %v1454 = vand.u32 %v1385, 2147483648
  %v1455 = vor.u32 1.1754944e-38, %v1454
  %v1456 = vsel %vm1453, %v1455, %v1451
  %v1457 = vmul.f32 %v1351, %v1456
  %v1458 = vrcp.pop %v1388
  %v1459 = vmul.f32 %v1388, %v1458
  %v1460 = vsub.f32 1.0, %v1459
  %v1461 = vmul.f32 %v1458, %v1460
  %v1462 = vadd.f32 %v1458, %v1461
  %vm1463 = vweird.f32 %v1388
  %vm1464 = vweird.f32 %v1458
  %vm1465 = vmor %vm1463, %vm1464
  %v1466 = vsel %vm1465, %v1458, %v1462
  %v1467 = vand.u32 2147483647, %v1388
  %vm1468 = vcmp.eq.f32.partialorder %v1467, 8.507059e+37
  %v1469 = vand.u32 %v1388, 2147483648
  %v1470 = vor.u32 1.1754944e-38, %v1469
  %v1471 = vsel %vm1468, %v1470, %v1466
  %v1472 = vmul.f32 %v1353, %v1471
  %v1473 = vrcp.pop %v1391
  %v1474 = vmul.f32 %v1391, %v1473
  %v1475 = vsub.f32 1.0, %v1474
  %v1476 = vmul.f32 %v1473, %v1475
  %v1477 = vadd.f32 %v1473, %v1476
  %vm1478 = vweird.f32 %v1391
  %vm1479 = vweird.f32 %v1473
  %vm1480 = vmor %vm1478, %vm1479
  %v1481 = vsel %vm1480, %v1473, %v1477
  %v1482 = vand.u32 2147483647, %v1391
  %vm1483 = vcmp.eq.f32.partialorder %v1482, 8.507059e+37
  %v1484 = vand.u32 %v1391, 2147483648
  %v1485 = vor.u32 1.1754944e-38, %v1484
  %v1486 = vsel %vm1483, %v1485, %v1481
  %v1487 = vmul.f32 %v1355, %v1486
  %v1488 = vrcp.pop %v1394
  %v1489 = vmul.f32 %v1394, %v1488
  %v1490 = vsub.f32 1.0, %v1489
  %v1491 = vmul.f32 %v1488, %v1490
  %v1492 = vadd.f32 %v1488, %v1491
  %vm1493 = vweird.f32 %v1394
  %vm1494 = vweird.f32 %v1488
  %vm1495 = vmor %vm1493, %vm1494
  %v1496 = vsel %vm1495, %v1488, %v1492
  %v1497 = vand.u32 2147483647, %v1394
  %vm1498 = vcmp.eq.f32.partialorder %v1497, 8.507059e+37
  %v1499 = vand.u32 %v1394, 2147483648
  %v1500 = vor.u32 1.1754944e-38, %v1499
  %v1501 = vsel %vm1498, %v1500, %v1496
  %v1502 = vmul.f32 %v1357, %v1501
  %v1503 = vrcp.pop %v1397
  %v1504 = vmul.f32 %v1397, %v1503
  %v1505 = vsub.f32 1.0, %v1504
  %v1506 = vmul.f32 %v1503, %v1505
  %v1507 = vadd.f32 %v1503, %v1506
  %vm1508 = vweird.f32 %v1397
  %vm1509 = vweird.f32 %v1503
  %vm1510 = vmor %vm1508, %vm1509
  %v1511 = vsel %vm1510, %v1503, %v1507
  %v1512 = vand.u32 2147483647, %v1397
  %vm1513 = vcmp.eq.f32.partialorder %v1512, 8.507059e+37
  %v1514 = vand.u32 %v1397, 2147483648
  %v1515 = vor.u32 1.1754944e-38, %v1514
  %v1516 = vsel %vm1513, %v1515, %v1511
  %v1517 = vmul.f32 %v1359, %v1516
  %v1518 = vrcp.pop %v1400
  %v1519 = vmul.f32 %v1400, %v1518
  %v1520 = vsub.f32 1.0, %v1519
  %v1521 = vmul.f32 %v1518, %v1520
  %v1522 = vadd.f32 %v1518, %v1521
  %vm1523 = vweird.f32 %v1400
  %vm1524 = vweird.f32 %v1518
  %vm1525 = vmor %vm1523, %vm1524
  %v1526 = vsel %vm1525, %v1518, %v1522
  %v1527 = vand.u32 2147483647, %v1400
  %vm1528 = vcmp.eq.f32.partialorder %v1527, 8.507059e+37
  %v1529 = vand.u32 %v1400, 2147483648
  %v1530 = vor.u32 1.1754944e-38, %v1529
  %v1531 = vsel %vm1528, %v1530, %v1526
  %v1532 = vmul.f32 %v1361, %v1531
  %v1533 = vrcp.pop %v1403
  %v1534 = vmul.f32 %v1403, %v1533
  %v1535 = vsub.f32 1.0, %v1534
  %v1536 = vmul.f32 %v1533, %v1535
  %v1537 = vadd.f32 %v1533, %v1536
  %vm1538 = vweird.f32 %v1403
  %vm1539 = vweird.f32 %v1533
  %vm1540 = vmor %vm1538, %vm1539
  %v1541 = vsel %vm1540, %v1533, %v1537
  %v1542 = vand.u32 2147483647, %v1403
  %vm1543 = vcmp.eq.f32.partialorder %v1542, 8.507059e+37
  %v1544 = vand.u32 %v1403, 2147483648
  %v1545 = vor.u32 1.1754944e-38, %v1544
  %v1546 = vsel %vm1543, %v1545, %v1541
  %v1547 = vmul.f32 %v1363, %v1546
  %v1548 = vrcp.pop %v1406
  %v1549 = vmul.f32 %v1406, %v1548
  %v1550 = vsub.f32 1.0, %v1549
  %v1551 = vmul.f32 %v1548, %v1550
  %v1552 = vadd.f32 %v1548, %v1551
  %vm1553 = vweird.f32 %v1406
  %vm1554 = vweird.f32 %v1548
  %vm1555 = vmor %vm1553, %vm1554
  %v1556 = vsel %vm1555, %v1548, %v1552
  %v1557 = vand.u32 2147483647, %v1406
  %vm1558 = vcmp.eq.f32.partialorder %v1557, 8.507059e+37
  %v1559 = vand.u32 %v1406, 2147483648
  %v1560 = vor.u32 1.1754944e-38, %v1559
  %v1561 = vsel %vm1558, %v1560, %v1556
  %v1562 = vmul.f32 %v1365, %v1561
  %v1563 = vrcp.pop %v1409
  %v1564 = vmul.f32 %v1409, %v1563
  %v1565 = vsub.f32 1.0, %v1564
  %v1566 = vmul.f32 %v1563, %v1565
  %v1567 = vadd.f32 %v1563, %v1566
  %vm1568 = vweird.f32 %v1409
  %vm1569 = vweird.f32 %v1563
  %vm1570 = vmor %vm1568, %vm1569
  %v1571 = vsel %vm1570, %v1563, %v1567
  %v1572 = vand.u32 2147483647, %v1409
  %vm1573 = vcmp.eq.f32.partialorder %v1572, 8.507059e+37
  %v1574 = vand.u32 %v1409, 2147483648
  %v1575 = vor.u32 1.1754944e-38, %v1574
  %v1576 = vsel %vm1573, %v1575, %v1571
  %v1577 = vmul.f32 %v1367, %v1576
  %v1578 = vrcp.pop %v1412
  %v1579 = vmul.f32 %v1412, %v1578
  %v1580 = vsub.f32 1.0, %v1579
  %v1581 = vmul.f32 %v1578, %v1580
  %v1582 = vadd.f32 %v1578, %v1581
  %vm1583 = vweird.f32 %v1412
  %vm1584 = vweird.f32 %v1578
  %vm1585 = vmor %vm1583, %vm1584
  %v1586 = vsel %vm1585, %v1578, %v1582
  %v1587 = vand.u32 2147483647, %v1412
  %vm1588 = vcmp.eq.f32.partialorder %v1587, 8.507059e+37
  %v1589 = vand.u32 %v1412, 2147483648
  %v1590 = vor.u32 1.1754944e-38, %v1589
  %v1591 = vsel %vm1588, %v1590, %v1586
  %v1592 = vmul.f32 %v1369, %v1591
  %v1593 = vrcp.pop %v1415
  %v1594 = vmul.f32 %v1415, %v1593
  %v1595 = vsub.f32 1.0, %v1594
  %v1596 = vmul.f32 %v1593, %v1595
  %v1597 = vadd.f32 %v1593, %v1596
  %vm1598 = vweird.f32 %v1415
  %vm1599 = vweird.f32 %v1593
  %vm1600 = vmor %vm1598, %vm1599
  %v1601 = vsel %vm1600, %v1593, %v1597
  %v1602 = vand.u32 2147483647, %v1415
  %vm1603 = vcmp.eq.f32.partialorder %v1602, 8.507059e+37
  %v1604 = vand.u32 %v1415, 2147483648
  %v1605 = vor.u32 1.1754944e-38, %v1604
  %v1606 = vsel %vm1603, %v1605, %v1601
  %v1607 = vmul.f32 %v1371, %v1606
  %v1608 = vrcp.pop %v1418
  %v1609 = vmul.f32 %v1418, %v1608
  %v1610 = vsub.f32 1.0, %v1609
  %v1611 = vmul.f32 %v1608, %v1610
  %v1612 = vadd.f32 %v1608, %v1611
  %vm1613 = vweird.f32 %v1418
  %vm1614 = vweird.f32 %v1608
  %vm1615 = vmor %vm1613, %vm1614
  %v1616 = vsel %vm1615, %v1608, %v1612
  %v1617 = vand.u32 2147483647, %v1418
  %vm1618 = vcmp.eq.f32.partialorder %v1617, 8.507059e+37
  %v1619 = vand.u32 %v1418, 2147483648
  %v1620 = vor.u32 1.1754944e-38, %v1619
  %v1621 = vsel %vm1618, %v1620, %v1616
  %v1622 = vmul.f32 %v1373, %v1621
  %v1623 = vrcp.pop %v1421
  %v1624 = vmul.f32 %v1421, %v1623
  %v1625 = vsub.f32 1.0, %v1624
  %v1626 = vmul.f32 %v1623, %v1625
  %v1627 = vadd.f32 %v1623, %v1626
  %vm1628 = vweird.f32 %v1421
  %vm1629 = vweird.f32 %v1623
  %vm1630 = vmor %vm1628, %vm1629
  %v1631 = vsel %vm1630, %v1623, %v1627
  %v1632 = vand.u32 2147483647, %v1421
  %vm1633 = vcmp.eq.f32.partialorder %v1632, 8.507059e+37
  %v1634 = vand.u32 %v1421, 2147483648
  %v1635 = vor.u32 1.1754944e-38, %v1634
  %v1636 = vsel %vm1633, %v1635, %v1631
  %v1637 = vmul.f32 %v1375, %v1636
  %v1638 = vrcp.pop %v1424
  %v1639 = vmul.f32 %v1424, %v1638
  %v1640 = vsub.f32 1.0, %v1639
  %v1641 = vmul.f32 %v1638, %v1640
  %v1642 = vadd.f32 %v1638, %v1641
  %vm1643 = vweird.f32 %v1424
  %vm1644 = vweird.f32 %v1638
  %vm1645 = vmor %vm1643, %vm1644
  %v1646 = vsel %vm1645, %v1638, %v1642
  %v1647 = vand.u32 2147483647, %v1424
  %vm1648 = vcmp.eq.f32.partialorder %v1647, 8.507059e+37
  %v1649 = vand.u32 %v1424, 2147483648
  %v1650 = vor.u32 1.1754944e-38, %v1649
  %v1651 = vsel %vm1648, %v1650, %v1646
  %v1652 = vmul.f32 %v1377, %v1651
  %v1653 = vrcp.pop %v1427
  %v1654 = vmul.f32 %v1427, %v1653
  %v1655 = vsub.f32 1.0, %v1654
  %v1656 = vmul.f32 %v1653, %v1655
  %v1657 = vadd.f32 %v1653, %v1656
  %vm1658 = vweird.f32 %v1427
  %vm1659 = vweird.f32 %v1653
  %vm1660 = vmor %vm1658, %vm1659
  %v1661 = vsel %vm1660, %v1653, %v1657
  %v1662 = vand.u32 2147483647, %v1427
  %vm1663 = vcmp.eq.f32.partialorder %v1662, 8.507059e+37
  %v1664 = vand.u32 %v1427, 2147483648
  %v1665 = vor.u32 1.1754944e-38, %v1664
  %v1666 = vsel %vm1663, %v1665, %v1661
  %v1667 = vmul.f32 %v1379, %v1666
  %v1668 = vpack.c.bf16 %v1442, %v1442
  %v1669 = vpack.c.bf16 %v1457, %v1457
  %v1670 = vpack.c.bf16 %v1472, %v1472
  %v1671 = vpack.c.bf16 %v1487, %v1487
  %v1672 = vpack.c.bf16 %v1502, %v1502
  %v1673 = vpack.c.bf16 %v1517, %v1517
  %v1674 = vpack.c.bf16 %v1532, %v1532
  %v1675 = vpack.c.bf16 %v1547, %v1547
  %v1676 = vpack.c.bf16 %v1562, %v1562
  %v1677 = vpack.c.bf16 %v1577, %v1577
  %v1678 = vpack.c.bf16 %v1592, %v1592
  %v1679 = vpack.c.bf16 %v1607, %v1607
  %v1680 = vpack.c.bf16 %v1622, %v1622
  %v1681 = vpack.c.bf16 %v1637, %v1637
  %v1682 = vpack.c.bf16 %v1652, %v1652
  %v1683 = vpack.c.bf16 %v1667, %v1667
  %v1686 = vunpack.c.l.b16 %v1668
  %v1687 = vunpack.c.l.b16 %v1669
  %v1688 = vpack.c.b16 %v1687, %v1686
  %1689 = vrot.lane.b32.xlu0 %v845, 120
  %v1690 = vpop.permute.xlu0 %1689
  %v1693 = vsel %vm419, %v1688, 0
  %1695 = vmatpush.bf16.msra.mxu0 0
  %1696 = vmatpush.bf16.msra.mxu0 0
  %1697 = vmatpush.bf16.msra.mxu0 0
  %1698 = vmatpush.bf16.msra.mxu0 0
  %1699 = vmatpush.bf16.msra.mxu0 0
  %1700 = vmatpush.bf16.msra.mxu0 0
  %1701 = vmatpush.bf16.msra.mxu0 0
  %1702 = vmatpush.bf16.msra.mxu0 %v1690
  %1703 = vmatmul.bf16.gmra.mxu0 %v1693
  %v1704 = vpop.f32.mrf.mxu0
  %v1705 = vadd.f32 0.0, %v1704
  %v1706 = vpop.f32.mrf.mxu0
  %v1707 = vadd.f32 0.0, %v1706
  %1708 = vdwg.mxu0
  %v1711 = vunpack.c.l.b16 %v1670
  %v1712 = vunpack.c.l.b16 %v1671
  %v1713 = vpack.c.b16 %v1712, %v1711
  %1714 = vrot.lane.b32.xlu0 %v873, 120
  %v1715 = vpop.permute.xlu0 %1714
  %v1718 = vsel %vm419, %v1713, 0
  %1720 = vmatpush.bf16.msra.mxu0 0
  %1721 = vmatpush.bf16.msra.mxu0 0
  %1722 = vmatpush.bf16.msra.mxu0 0
  %1723 = vmatpush.bf16.msra.mxu0 0
  %1724 = vmatpush.bf16.msra.mxu0 0
  %1725 = vmatpush.bf16.msra.mxu0 0
  %1726 = vmatpush.bf16.msra.mxu0 0
  %1727 = vmatpush.bf16.msra.mxu0 %v1715
  %1728 = vmatmul.bf16.gmra.mxu0 %v1718
  %v1729 = vpop.f32.mrf.mxu0
  %v1730 = vadd.f32 0.0, %v1729
  %v1731 = vpop.f32.mrf.mxu0
  %v1732 = vadd.f32 0.0, %v1731
  %1733 = vdwg.mxu0
  %v1736 = vunpack.c.l.b16 %v1672
  %v1737 = vunpack.c.l.b16 %v1673
  %v1738 = vpack.c.b16 %v1737, %v1736
  %1739 = vrot.lane.b32.xlu0 %v901, 120
  %v1740 = vpop.permute.xlu0 %1739
  %v1743 = vsel %vm419, %v1738, 0
  %1745 = vmatpush.bf16.msra.mxu0 0
  %1746 = vmatpush.bf16.msra.mxu0 0
  %1747 = vmatpush.bf16.msra.mxu0 0
  %1748 = vmatpush.bf16.msra.mxu0 0
  %1749 = vmatpush.bf16.msra.mxu0 0
  %1750 = vmatpush.bf16.msra.mxu0 0
  %1751 = vmatpush.bf16.msra.mxu0 0
  %1752 = vmatpush.bf16.msra.mxu0 %v1740
  %1753 = vmatmul.bf16.gmra.mxu0 %v1743
  %v1754 = vpop.f32.mrf.mxu0
  %v1755 = vadd.f32 0.0, %v1754
  %v1756 = vpop.f32.mrf.mxu0
  %v1757 = vadd.f32 0.0, %v1756
  %1758 = vdwg.mxu0
  %v1761 = vunpack.c.l.b16 %v1674
  %v1762 = vunpack.c.l.b16 %v1675
  %v1763 = vpack.c.b16 %v1762, %v1761
  %1764 = vrot.lane.b32.xlu0 %v929, 120
  %v1765 = vpop.permute.xlu0 %1764
  %v1768 = vsel %vm419, %v1763, 0
  %1770 = vmatpush.bf16.msra.mxu0 0
  %1771 = vmatpush.bf16.msra.mxu0 0
  %1772 = vmatpush.bf16.msra.mxu0 0
  %1773 = vmatpush.bf16.msra.mxu0 0
  %1774 = vmatpush.bf16.msra.mxu0 0
  %1775 = vmatpush.bf16.msra.mxu0 0
  %1776 = vmatpush.bf16.msra.mxu0 0
  %1777 = vmatpush.bf16.msra.mxu0 %v1765
  %1778 = vmatmul.bf16.gmra.mxu0 %v1768
  %v1779 = vpop.f32.mrf.mxu0
  %v1780 = vadd.f32 0.0, %v1779
  %v1781 = vpop.f32.mrf.mxu0
  %v1782 = vadd.f32 0.0, %v1781
  %1783 = vdwg.mxu0
  %v1786 = vunpack.c.l.b16 %v1676
  %v1787 = vunpack.c.l.b16 %v1677
  %v1788 = vpack.c.b16 %v1787, %v1786
  %1789 = vrot.lane.b32.xlu0 %v957, 120
  %v1790 = vpop.permute.xlu0 %1789
  %v1793 = vsel %vm419, %v1788, 0
  %1795 = vmatpush.bf16.msra.mxu0 0
  %1796 = vmatpush.bf16.msra.mxu0 0
  %1797 = vmatpush.bf16.msra.mxu0 0
  %1798 = vmatpush.bf16.msra.mxu0 0
  %1799 = vmatpush.bf16.msra.mxu0 0
  %1800 = vmatpush.bf16.msra.mxu0 0
  %1801 = vmatpush.bf16.msra.mxu0 0
  %1802 = vmatpush.bf16.msra.mxu0 %v1790
  %1803 = vmatmul.bf16.gmra.mxu0 %v1793
  %v1804 = vpop.f32.mrf.mxu0
  %v1805 = vadd.f32 0.0, %v1804
  %v1806 = vpop.f32.mrf.mxu0
  %v1807 = vadd.f32 0.0, %v1806
  %1808 = vdwg.mxu0
  %v1811 = vunpack.c.l.b16 %v1678
  %v1812 = vunpack.c.l.b16 %v1679
  %v1813 = vpack.c.b16 %v1812, %v1811
  %1814 = vrot.lane.b32.xlu0 %v985, 120
  %v1815 = vpop.permute.xlu0 %1814
  %v1818 = vsel %vm419, %v1813, 0
  %1820 = vmatpush.bf16.msra.mxu0 0
  %1821 = vmatpush.bf16.msra.mxu0 0
  %1822 = vmatpush.bf16.msra.mxu0 0
  %1823 = vmatpush.bf16.msra.mxu0 0
  %1824 = vmatpush.bf16.msra.mxu0 0
  %1825 = vmatpush.bf16.msra.mxu0 0
  %1826 = vmatpush.bf16.msra.mxu0 0
  %1827 = vmatpush.bf16.msra.mxu0 %v1815
  %1828 = vmatmul.bf16.gmra.mxu0 %v1818
  %v1829 = vpop.f32.mrf.mxu0
  %v1830 = vadd.f32 0.0, %v1829
  %v1831 = vpop.f32.mrf.mxu0
  %v1832 = vadd.f32 0.0, %v1831
  %1833 = vdwg.mxu0
  %v1836 = vunpack.c.l.b16 %v1680
  %v1837 = vunpack.c.l.b16 %v1681
  %v1838 = vpack.c.b16 %v1837, %v1836
  %1839 = vrot.lane.b32.xlu0 %v1013, 120
  %v1840 = vpop.permute.xlu0 %1839
  %v1843 = vsel %vm419, %v1838, 0
  %1845 = vmatpush.bf16.msra.mxu0 0
  %1846 = vmatpush.bf16.msra.mxu0 0
  %1847 = vmatpush.bf16.msra.mxu0 0
  %1848 = vmatpush.bf16.msra.mxu0 0
  %1849 = vmatpush.bf16.msra.mxu0 0
  %1850 = vmatpush.bf16.msra.mxu0 0
  %1851 = vmatpush.bf16.msra.mxu0 0
  %1852 = vmatpush.bf16.msra.mxu0 %v1840
  %1853 = vmatmul.bf16.gmra.mxu0 %v1843
  %v1854 = vpop.f32.mrf.mxu0
  %v1855 = vadd.f32 0.0, %v1854
  %v1856 = vpop.f32.mrf.mxu0
  %v1857 = vadd.f32 0.0, %v1856
  %1858 = vdwg.mxu0
  %v1861 = vunpack.c.l.b16 %v1682
  %v1862 = vunpack.c.l.b16 %v1683
  %v1863 = vpack.c.b16 %v1862, %v1861
  %1864 = vrot.lane.b32.xlu0 %v1041, 120
  %v1865 = vpop.permute.xlu0 %1864
  %v1868 = vsel %vm419, %v1863, 0
  %1870 = vmatpush.bf16.msra.mxu0 0
  %1871 = vmatpush.bf16.msra.mxu0 0
  %1872 = vmatpush.bf16.msra.mxu0 0
  %1873 = vmatpush.bf16.msra.mxu0 0
  %1874 = vmatpush.bf16.msra.mxu0 0
  %1875 = vmatpush.bf16.msra.mxu0 0
  %1876 = vmatpush.bf16.msra.mxu0 0
  %1877 = vmatpush.bf16.msra.mxu0 %v1865
  %1878 = vmatmul.bf16.gmra.mxu0 %v1868
  %v1879 = vpop.f32.mrf.mxu0
  %v1880 = vadd.f32 0.0, %v1879
  %v1881 = vpop.f32.mrf.mxu0
  %v1882 = vadd.f32 0.0, %v1881
  %1883 = vdwg.mxu0
  %1884 = vrot.lane.b32.xlu0 %v126, 112
  %v1885 = vpop.permute.xlu0 %1884
  %1886 = vrot.lane.b32.xlu0 %v131, 112
  %v1887 = vpop.permute.xlu0 %1886
  %v1889 = vsel %vm132, %v1885, 0
  %v1892 = vsel %vm132, %v1887, 0
  %1894 = vmatpush.bf16.xpose.msra.mxu0 0
  %1895 = vmatpush.bf16.xpose.msra.mxu0 0
  %1896 = vmatpush.bf16.xpose.msra.mxu0 0
  %1897 = vmatpush.bf16.xpose.msra.mxu0 0
  %1898 = vmatpush.bf16.xpose.msra.mxu0 0
  %1899 = vmatpush.bf16.xpose.msra.mxu0 0
  %1900 = vmatpush.bf16.xpose.msra.mxu0 0
  %1901 = vmatpush.bf16.xpose.msra.mxu0 %v1892
  %1902 = vmatmul.bf16.gmra.mxu0 %v1889
  %v1903 = vpop.f32.mrf.mxu0
  %v1904 = vadd.f32 0.0, %v1903
  %v1905 = vpop.f32.mrf.mxu0
  %v1906 = vadd.f32 0.0, %v1905
  %1907 = vdwg.mxu0
  %1908 = vrot.lane.b32.xlu0 %v157, 112
  %v1909 = vpop.permute.xlu0 %1908
  %1910 = vrot.lane.b32.xlu0 %v162, 112
  %v1911 = vpop.permute.xlu0 %1910
  %v1913 = vsel %vm132, %v1909, 0
  %v1916 = vsel %vm132, %v1911, 0
  %1918 = vmatpush.bf16.xpose.msra.mxu0 0
  %1919 = vmatpush.bf16.xpose.msra.mxu0 0
  %1920 = vmatpush.bf16.xpose.msra.mxu0 0
  %1921 = vmatpush.bf16.xpose.msra.mxu0 0
  %1922 = vmatpush.bf16.xpose.msra.mxu0 0
  %1923 = vmatpush.bf16.xpose.msra.mxu0 0
  %1924 = vmatpush.bf16.xpose.msra.mxu0 0
  %1925 = vmatpush.bf16.xpose.msra.mxu0 %v1916
  %1926 = vmatmul.bf16.gmra.mxu0 %v1913
  %v1927 = vpop.f32.mrf.mxu0
  %v1928 = vadd.f32 0.0, %v1927
  %v1929 = vpop.f32.mrf.mxu0
  %v1930 = vadd.f32 0.0, %v1929
  %1931 = vdwg.mxu0
  %1932 = vrot.lane.b32.xlu0 %v187, 112
  %v1933 = vpop.permute.xlu0 %1932
  %1934 = vrot.lane.b32.xlu0 %v192, 112
  %v1935 = vpop.permute.xlu0 %1934
  %v1937 = vsel %vm132, %v1933, 0
  %v1940 = vsel %vm132, %v1935, 0
  %1942 = vmatpush.bf16.xpose.msra.mxu0 0
  %1943 = vmatpush.bf16.xpose.msra.mxu0 0
  %1944 = vmatpush.bf16.xpose.msra.mxu0 0
  %1945 = vmatpush.bf16.xpose.msra.mxu0 0
  %1946 = vmatpush.bf16.xpose.msra.mxu0 0
  %1947 = vmatpush.bf16.xpose.msra.mxu0 0
  %1948 = vmatpush.bf16.xpose.msra.mxu0 0
  %1949 = vmatpush.bf16.xpose.msra.mxu0 %v1940
  %1950 = vmatmul.bf16.gmra.mxu0 %v1937
  %v1951 = vpop.f32.mrf.mxu0
  %v1952 = vadd.f32 0.0, %v1951
  %v1953 = vpop.f32.mrf.mxu0
  %v1954 = vadd.f32 0.0, %v1953
  %1955 = vdwg.mxu0
  %1956 = vrot.lane.b32.xlu0 %v217, 112
  %v1957 = vpop.permute.xlu0 %1956
  %1958 = vrot.lane.b32.xlu0 %v222, 112
  %v1959 = vpop.permute.xlu0 %1958
  %v1961 = vsel %vm132, %v1957, 0
  %v1964 = vsel %vm132, %v1959, 0
  %1966 = vmatpush.bf16.xpose.msra.mxu0 0
  %1967 = vmatpush.bf16.xpose.msra.mxu0 0
  %1968 = vmatpush.bf16.xpose.msra.mxu0 0
  %1969 = vmatpush.bf16.xpose.msra.mxu0 0
  %1970 = vmatpush.bf16.xpose.msra.mxu0 0
  %1971 = vmatpush.bf16.xpose.msra.mxu0 0
  %1972 = vmatpush.bf16.xpose.msra.mxu0 0
  %1973 = vmatpush.bf16.xpose.msra.mxu0 %v1964
  %1974 = vmatmul.bf16.gmra.mxu0 %v1961
  %v1975 = vpop.f32.mrf.mxu0
  %v1976 = vadd.f32 0.0, %v1975
  %v1977 = vpop.f32.mrf.mxu0
  %v1978 = vadd.f32 0.0, %v1977
  %1979 = vdwg.mxu0
  %1980 = vrot.lane.b32.xlu0 %v247, 112
  %v1981 = vpop.permute.xlu0 %1980
  %1982 = vrot.lane.b32.xlu0 %v252, 112
  %v1983 = vpop.permute.xlu0 %1982
  %v1985 = vsel %vm132, %v1981, 0
  %v1988 = vsel %vm132, %v1983, 0
  %1990 = vmatpush.bf16.xpose.msra.mxu0 0
  %1991 = vmatpush.bf16.xpose.msra.mxu0 0
  %1992 = vmatpush.bf16.xpose.msra.mxu0 0
  %1993 = vmatpush.bf16.xpose.msra.mxu0 0
  %1994 = vmatpush.bf16.xpose.msra.mxu0 0
  %1995 = vmatpush.bf16.xpose.msra.mxu0 0
  %1996 = vmatpush.bf16.xpose.msra.mxu0 0
  %1997 = vmatpush.bf16.xpose.msra.mxu0 %v1988
  %1998 = vmatmul.bf16.gmra.mxu0 %v1985
  %v1999 = vpop.f32.mrf.mxu0
  %v2000 = vadd.f32 0.0, %v1999
  %v2001 = vpop.f32.mrf.mxu0
  %v2002 = vadd.f32 0.0, %v2001
  %2003 = vdwg.mxu0
  %2004 = vrot.lane.b32.xlu0 %v277, 112
  %v2005 = vpop.permute.xlu0 %2004
  %2006 = vrot.lane.b32.xlu0 %v282, 112
  %v2007 = vpop.permute.xlu0 %2006
  %v2009 = vsel %vm132, %v2005, 0
  %v2012 = vsel %vm132, %v2007, 0
  %2014 = vmatpush.bf16.xpose.msra.mxu0 0
  %2015 = vmatpush.bf16.xpose.msra.mxu0 0
  %2016 = vmatpush.bf16.xpose.msra.mxu0 0
  %2017 = vmatpush.bf16.xpose.msra.mxu0 0
  %2018 = vmatpush.bf16.xpose.msra.mxu0 0
  %2019 = vmatpush.bf16.xpose.msra.mxu0 0
  %2020 = vmatpush.bf16.xpose.msra.mxu0 0
  %2021 = vmatpush.bf16.xpose.msra.mxu0 %v2012
  %2022 = vmatmul.bf16.gmra.mxu0 %v2009
  %v2023 = vpop.f32.mrf.mxu0
  %v2024 = vadd.f32 0.0, %v2023
  %v2025 = vpop.f32.mrf.mxu0
  %v2026 = vadd.f32 0.0, %v2025
  %2027 = vdwg.mxu0
  %2028 = vrot.lane.b32.xlu0 %v307, 112
  %v2029 = vpop.permute.xlu0 %2028
  %2030 = vrot.lane.b32.xlu0 %v312, 112
  %v2031 = vpop.permute.xlu0 %2030
  %v2033 = vsel %vm132, %v2029, 0
  %v2036 = vsel %vm132, %v2031, 0
  %2038 = vmatpush.bf16.xpose.msra.mxu0 0
  %2039 = vmatpush.bf16.xpose.msra.mxu0 0
  %2040 = vmatpush.bf16.xpose.msra.mxu0 0
  %2041 = vmatpush.bf16.xpose.msra.mxu0 0
  %2042 = vmatpush.bf16.xpose.msra.mxu0 0
  %2043 = vmatpush.bf16.xpose.msra.mxu0 0
  %2044 = vmatpush.bf16.xpose.msra.mxu0 0
  %2045 = vmatpush.bf16.xpose.msra.mxu0 %v2036
  %2046 = vmatmul.bf16.gmra.mxu0 %v2033
  %v2047 = vpop.f32.mrf.mxu0
  %v2048 = vadd.f32 0.0, %v2047
  %v2049 = vpop.f32.mrf.mxu0
  %v2050 = vadd.f32 0.0, %v2049
  %2051 = vdwg.mxu0
  %2052 = vrot.lane.b32.xlu0 %v337, 112
  %v2053 = vpop.permute.xlu0 %2052
  %2054 = vrot.lane.b32.xlu0 %v342, 112
  %v2055 = vpop.permute.xlu0 %2054
  %v2057 = vsel %vm132, %v2053, 0
  %v2060 = vsel %vm132, %v2055, 0
  %2062 = vmatpush.bf16.xpose.msra.mxu0 0
  %2063 = vmatpush.bf16.xpose.msra.mxu0 0
  %2064 = vmatpush.bf16.xpose.msra.mxu0 0
  %2065 = vmatpush.bf16.xpose.msra.mxu0 0
  %2066 = vmatpush.bf16.xpose.msra.mxu0 0
  %2067 = vmatpush.bf16.xpose.msra.mxu0 0
  %2068 = vmatpush.bf16.xpose.msra.mxu0 0
  %2069 = vmatpush.bf16.xpose.msra.mxu0 %v2060
  %2070 = vmatmul.bf16.gmra.mxu0 %v2057
  %v2071 = vpop.f32.mrf.mxu0
  %v2072 = vadd.f32 0.0, %v2071
  %v2073 = vpop.f32.mrf.mxu0
  %v2074 = vadd.f32 0.0, %v2073
  %2075 = vdwg.mxu0
  %v2076 = vmul.f32 %v1904, 0.35355338
  %v2077 = vmul.f32 %v1906, 0.35355338
  %v2078 = vmul.f32 %v1928, 0.35355338
  %v2079 = vmul.f32 %v1930, 0.35355338
  %v2080 = vmul.f32 %v1952, 0.35355338
  %v2081 = vmul.f32 %v1954, 0.35355338
  %v2082 = vmul.f32 %v1976, 0.35355338
  %v2083 = vmul.f32 %v1978, 0.35355338
  %v2084 = vmul.f32 %v2000, 0.35355338
  %v2085 = vmul.f32 %v2002, 0.35355338
  %v2086 = vmul.f32 %v2024, 0.35355338
  %v2087 = vmul.f32 %v2026, 0.35355338
  %v2088 = vmul.f32 %v2048, 0.35355338
  %v2089 = vmul.f32 %v2050, 0.35355338
  %v2090 = vmul.f32 %v2072, 0.35355338
  %v2091 = vmul.f32 %v2074, 0.35355338
  %v2092 = vadd.f32 %v2076, %v387
  %v2093 = vadd.f32 %v2077, %v387
  %v2094 = vadd.f32 %v2078, %v388
  %v2095 = vadd.f32 %v2079, %v388
  %v2096 = vadd.f32 %v2080, %v389
  %v2097 = vadd.f32 %v2081, %v389
  %v2098 = vadd.f32 %v2082, %v390
  %v2099 = vadd.f32 %v2083, %v390
  %v2100 = vadd.f32 %v2084, %v391
  %v2101 = vadd.f32 %v2085, %v391
  %v2102 = vadd.f32 %v2086, %v392
  %v2103 = vadd.f32 %v2087, %v392
  %v2104 = vadd.f32 %v2088, %v393
  %v2105 = vadd.f32 %v2089, %v393
  %v2106 = vadd.f32 %v2090, %v394
  %v2107 = vadd.f32 %v2091, %v394
  %v2108 = vsel %vm419, %v2092, -inf
  %2109 = vmax.xlane.f32.xlu0 %v2108
  %v2110 = vpop.xlane.xlu0 %2109
  %v2111 = vsel %vm419, %v2093, -inf
  %2112 = vmax.xlane.f32.xlu0 %v2111
  %v2113 = vpop.xlane.xlu0 %2112
  %v2114 = vsel %vm419, %v2094, -inf
  %2115 = vmax.xlane.f32.xlu0 %v2114
  %v2116 = vpop.xlane.xlu0 %2115
  %v2117 = vsel %vm419, %v2095, -inf
  %2118 = vmax.xlane.f32.xlu0 %v2117
  %v2119 = vpop.xlane.xlu0 %2118
  %v2120 = vsel %vm419, %v2096, -inf
  %2121 = vmax.xlane.f32.xlu0 %v2120
  %v2122 = vpop.xlane.xlu0 %2121
  %v2123 = vsel %vm419, %v2097, -inf
  %2124 = vmax.xlane.f32.xlu0 %v2123
  %v2125 = vpop.xlane.xlu0 %2124
  %v2126 = vsel %vm419, %v2098, -inf
  %2127 = vmax.xlane.f32.xlu0 %v2126
  %v2128 = vpop.xlane.xlu0 %2127
  %v2129 = vsel %vm419, %v2099, -inf
  %2130 = vmax.xlane.f32.xlu0 %v2129
  %v2131 = vpop.xlane.xlu0 %2130
  %v2132 = vsel %vm419, %v2100, -inf
  %2133 = vmax.xlane.f32.xlu0 %v2132
  %v2134 = vpop.xlane.xlu0 %2133
  %v2135 = vsel %vm419, %v2101, -inf
  %2136 = vmax.xlane.f32.xlu0 %v2135
  %v2137 = vpop.xlane.xlu0 %2136
  %v2138 = vsel %vm419, %v2102, -inf
  %2139 = vmax.xlane.f32.xlu0 %v2138
  %v2140 = vpop.xlane.xlu0 %2139
  %v2141 = vsel %vm419, %v2103, -inf
  %2142 = vmax.xlane.f32.xlu0 %v2141
  %v2143 = vpop.xlane.xlu0 %2142
  %v2144 = vsel %vm419, %v2104, -inf
  %2145 = vmax.xlane.f32.xlu0 %v2144
  %v2146 = vpop.xlane.xlu0 %2145
  %v2147 = vsel %vm419, %v2105, -inf
  %2148 = vmax.xlane.f32.xlu0 %v2147
  %v2149 = vpop.xlane.xlu0 %2148
  %v2150 = vsel %vm419, %v2106, -inf
  %2151 = vmax.xlane.f32.xlu0 %v2150
  %v2152 = vpop.xlane.xlu0 %2151
  %v2153 = vsel %vm419, %v2107, -inf
  %2154 = vmax.xlane.f32.xlu0 %v2153
  %v2155 = vpop.xlane.xlu0 %2154
  %v2156 = vsub.f32 %v2092, %v2110
  %v2157 = vsub.f32 %v2093, %v2113
  %v2158 = vsub.f32 %v2094, %v2116
  %v2159 = vsub.f32 %v2095, %v2119
  %v2160 = vsub.f32 %v2096, %v2122
  %v2161 = vsub.f32 %v2097, %v2125
  %v2162 = vsub.f32 %v2098, %v2128
  %v2163 = vsub.f32 %v2099, %v2131
  %v2164 = vsub.f32 %v2100, %v2134
  %v2165 = vsub.f32 %v2101, %v2137
  %v2166 = vsub.f32 %v2102, %v2140
  %v2167 = vsub.f32 %v2103, %v2143
  %v2168 = vsub.f32 %v2104, %v2146
  %v2169 = vsub.f32 %v2105, %v2149
  %v2170 = vsub.f32 %v2106, %v2152
  %v2171 = vsub.f32 %v2107, %v2155
  %v2172 = vmul.f32 %v2156, 1.442695
  %v2173 = vpow.pop %v2172
  %v2174 = vmul.f32 %v2157, 1.442695
  %v2175 = vpow.pop %v2174
  %v2176 = vmul.f32 %v2158, 1.442695
  %v2177 = vpow.pop %v2176
  %v2178 = vmul.f32 %v2159, 1.442695
  %v2179 = vpow.pop %v2178
  %v2180 = vmul.f32 %v2160, 1.442695
  %v2181 = vpow.pop %v2180
  %v2182 = vmul.f32 %v2161, 1.442695
  %v2183 = vpow.pop %v2182
  %v2184 = vmul.f32 %v2162, 1.442695
  %v2185 = vpow.pop %v2184
  %v2186 = vmul.f32 %v2163, 1.442695
  %v2187 = vpow.pop %v2186
  %v2188 = vmul.f32 %v2164, 1.442695
  %v2189 = vpow.pop %v2188
  %v2190 = vmul.f32 %v2165, 1.442695
  %v2191 = vpow.pop %v2190
  %v2192 = vmul.f32 %v2166, 1.442695
  %v2193 = vpow.pop %v2192
  %v2194 = vmul.f32 %v2167, 1.442695
  %v2195 = vpow.pop %v2194
  %v2196 = vmul.f32 %v2168, 1.442695
  %v2197 = vpow.pop %v2196
  %v2198 = vmul.f32 %v2169, 1.442695
  %v2199 = vpow.pop %v2198
  %v2200 = vmul.f32 %v2170, 1.442695
  %v2201 = vpow.pop %v2200
  %v2202 = vmul.f32 %v2171, 1.442695
  %v2203 = vpow.pop %v2202
  %v2204 = vsel %vm419, %v2173, 0.0
  %2205 = vadd.xlane.f32.xlu0 %v2204
  %v2206 = vpop.xlane.xlu0 %2205
  %v2207 = vsel %vm419, %v2175, 0.0
  %2208 = vadd.xlane.f32.xlu0 %v2207
  %v2209 = vpop.xlane.xlu0 %2208
  %v2210 = vsel %vm419, %v2177, 0.0
  %2211 = vadd.xlane.f32.xlu0 %v2210
  %v2212 = vpop.xlane.xlu0 %2211
  %v2213 = vsel %vm419, %v2179, 0.0
  %2214 = vadd.xlane.f32.xlu0 %v2213
  %v2215 = vpop.xlane.xlu0 %2214
  %v2216 = vsel %vm419, %v2181, 0.0
  %2217 = vadd.xlane.f32.xlu0 %v2216
  %v2218 = vpop.xlane.xlu0 %2217
  %v2219 = vsel %vm419, %v2183, 0.0
  %2220 = vadd.xlane.f32.xlu0 %v2219
  %v2221 = vpop.xlane.xlu0 %2220
  %v2222 = vsel %vm419, %v2185, 0.0
  %2223 = vadd.xlane.f32.xlu0 %v2222
  %v2224 = vpop.xlane.xlu0 %2223
  %v2225 = vsel %vm419, %v2187, 0.0
  %2226 = vadd.xlane.f32.xlu0 %v2225
  %v2227 = vpop.xlane.xlu0 %2226
  %v2228 = vsel %vm419, %v2189, 0.0
  %2229 = vadd.xlane.f32.xlu0 %v2228
  %v2230 = vpop.xlane.xlu0 %2229
  %v2231 = vsel %vm419, %v2191, 0.0
  %2232 = vadd.xlane.f32.xlu0 %v2231
  %v2233 = vpop.xlane.xlu0 %2232
  %v2234 = vsel %vm419, %v2193, 0.0
  %2235 = vadd.xlane.f32.xlu0 %v2234
  %v2236 = vpop.xlane.xlu0 %2235
  %v2237 = vsel %vm419, %v2195, 0.0
  %2238 = vadd.xlane.f32.xlu0 %v2237
  %v2239 = vpop.xlane.xlu0 %2238
  %v2240 = vsel %vm419, %v2197, 0.0
  %2241 = vadd.xlane.f32.xlu0 %v2240
  %v2242 = vpop.xlane.xlu0 %2241
  %v2243 = vsel %vm419, %v2199, 0.0
  %2244 = vadd.xlane.f32.xlu0 %v2243
  %v2245 = vpop.xlane.xlu0 %2244
  %v2246 = vsel %vm419, %v2201, 0.0
  %2247 = vadd.xlane.f32.xlu0 %v2246
  %v2248 = vpop.xlane.xlu0 %2247
  %v2249 = vsel %vm419, %v2203, 0.0
  %2250 = vadd.xlane.f32.xlu0 %v2249
  %v2251 = vpop.xlane.xlu0 %2250
  %v2252 = vrcp.pop %v2206
  %v2253 = vmul.f32 %v2206, %v2252
  %v2254 = vsub.f32 1.0, %v2253
  %v2255 = vmul.f32 %v2252, %v2254
  %v2256 = vadd.f32 %v2252, %v2255
  %vm2257 = vweird.f32 %v2206
  %vm2258 = vweird.f32 %v2252
  %vm2259 = vmor %vm2257, %vm2258
  %v2260 = vsel %vm2259, %v2252, %v2256
  %v2261 = vand.u32 2147483647, %v2206
  %vm2262 = vcmp.eq.f32.partialorder %v2261, 8.507059e+37
  %v2263 = vand.u32 %v2206, 2147483648
  %v2264 = vor.u32 1.1754944e-38, %v2263
  %v2265 = vsel %vm2262, %v2264, %v2260
  %v2266 = vmul.f32 %v2173, %v2265
  %v2267 = vrcp.pop %v2209
  %v2268 = vmul.f32 %v2209, %v2267
  %v2269 = vsub.f32 1.0, %v2268
  %v2270 = vmul.f32 %v2267, %v2269
  %v2271 = vadd.f32 %v2267, %v2270
  %vm2272 = vweird.f32 %v2209
  %vm2273 = vweird.f32 %v2267
  %vm2274 = vmor %vm2272, %vm2273
  %v2275 = vsel %vm2274, %v2267, %v2271
  %v2276 = vand.u32 2147483647, %v2209
  %vm2277 = vcmp.eq.f32.partialorder %v2276, 8.507059e+37
  %v2278 = vand.u32 %v2209, 2147483648
  %v2279 = vor.u32 1.1754944e-38, %v2278
  %v2280 = vsel %vm2277, %v2279, %v2275
  %v2281 = vmul.f32 %v2175, %v2280
  %v2282 = vrcp.pop %v2212
  %v2283 = vmul.f32 %v2212, %v2282
  %v2284 = vsub.f32 1.0, %v2283
  %v2285 = vmul.f32 %v2282, %v2284
  %v2286 = vadd.f32 %v2282, %v2285
  %vm2287 = vweird.f32 %v2212
  %vm2288 = vweird.f32 %v2282
  %vm2289 = vmor %vm2287, %vm2288
  %v2290 = vsel %vm2289, %v2282, %v2286
  %v2291 = vand.u32 2147483647, %v2212
  %vm2292 = vcmp.eq.f32.partialorder %v2291, 8.507059e+37
  %v2293 = vand.u32 %v2212, 2147483648
  %v2294 = vor.u32 1.1754944e-38, %v2293
  %v2295 = vsel %vm2292, %v2294, %v2290
  %v2296 = vmul.f32 %v2177, %v2295
  %v2297 = vrcp.pop %v2215
  %v2298 = vmul.f32 %v2215, %v2297
  %v2299 = vsub.f32 1.0, %v2298
  %v2300 = vmul.f32 %v2297, %v2299
  %v2301 = vadd.f32 %v2297, %v2300
  %vm2302 = vweird.f32 %v2215
  %vm2303 = vweird.f32 %v2297
  %vm2304 = vmor %vm2302, %vm2303
  %v2305 = vsel %vm2304, %v2297, %v2301
  %v2306 = vand.u32 2147483647, %v2215
  %vm2307 = vcmp.eq.f32.partialorder %v2306, 8.507059e+37
  %v2308 = vand.u32 %v2215, 2147483648
  %v2309 = vor.u32 1.1754944e-38, %v2308
  %v2310 = vsel %vm2307, %v2309, %v2305
  %v2311 = vmul.f32 %v2179, %v2310
  %v2312 = vrcp.pop %v2218
  %v2313 = vmul.f32 %v2218, %v2312
  %v2314 = vsub.f32 1.0, %v2313
  %v2315 = vmul.f32 %v2312, %v2314
  %v2316 = vadd.f32 %v2312, %v2315
  %vm2317 = vweird.f32 %v2218
  %vm2318 = vweird.f32 %v2312
  %vm2319 = vmor %vm2317, %vm2318
  %v2320 = vsel %vm2319, %v2312, %v2316
  %v2321 = vand.u32 2147483647, %v2218
  %vm2322 = vcmp.eq.f32.partialorder %v2321, 8.507059e+37
  %v2323 = vand.u32 %v2218, 2147483648
  %v2324 = vor.u32 1.1754944e-38, %v2323
  %v2325 = vsel %vm2322, %v2324, %v2320
  %v2326 = vmul.f32 %v2181, %v2325
  %v2327 = vrcp.pop %v2221
  %v2328 = vmul.f32 %v2221, %v2327
  %v2329 = vsub.f32 1.0, %v2328
  %v2330 = vmul.f32 %v2327, %v2329
  %v2331 = vadd.f32 %v2327, %v2330
  %vm2332 = vweird.f32 %v2221
  %vm2333 = vweird.f32 %v2327
  %vm2334 = vmor %vm2332, %vm2333
  %v2335 = vsel %vm2334, %v2327, %v2331
  %v2336 = vand.u32 2147483647, %v2221
  %vm2337 = vcmp.eq.f32.partialorder %v2336, 8.507059e+37
  %v2338 = vand.u32 %v2221, 2147483648
  %v2339 = vor.u32 1.1754944e-38, %v2338
  %v2340 = vsel %vm2337, %v2339, %v2335
  %v2341 = vmul.f32 %v2183, %v2340
  %v2342 = vrcp.pop %v2224
  %v2343 = vmul.f32 %v2224, %v2342
  %v2344 = vsub.f32 1.0, %v2343
  %v2345 = vmul.f32 %v2342, %v2344
  %v2346 = vadd.f32 %v2342, %v2345
  %vm2347 = vweird.f32 %v2224
  %vm2348 = vweird.f32 %v2342
  %vm2349 = vmor %vm2347, %vm2348
  %v2350 = vsel %vm2349, %v2342, %v2346
  %v2351 = vand.u32 2147483647, %v2224
  %vm2352 = vcmp.eq.f32.partialorder %v2351, 8.507059e+37
  %v2353 = vand.u32 %v2224, 2147483648
  %v2354 = vor.u32 1.1754944e-38, %v2353
  %v2355 = vsel %vm2352, %v2354, %v2350
  %v2356 = vmul.f32 %v2185, %v2355
  %v2357 = vrcp.pop %v2227
  %v2358 = vmul.f32 %v2227, %v2357
  %v2359 = vsub.f32 1.0, %v2358
  %v2360 = vmul.f32 %v2357, %v2359
  %v2361 = vadd.f32 %v2357, %v2360
  %vm2362 = vweird.f32 %v2227
  %vm2363 = vweird.f32 %v2357
  %vm2364 = vmor %vm2362, %vm2363
  %v2365 = vsel %vm2364, %v2357, %v2361
  %v2366 = vand.u32 2147483647, %v2227
  %vm2367 = vcmp.eq.f32.partialorder %v2366, 8.507059e+37
  %v2368 = vand.u32 %v2227, 2147483648
  %v2369 = vor.u32 1.1754944e-38, %v2368
  %v2370 = vsel %vm2367, %v2369, %v2365
  %v2371 = vmul.f32 %v2187, %v2370
  %v2372 = vrcp.pop %v2230
  %v2373 = vmul.f32 %v2230, %v2372
  %v2374 = vsub.f32 1.0, %v2373
  %v2375 = vmul.f32 %v2372, %v2374
  %v2376 = vadd.f32 %v2372, %v2375
  %vm2377 = vweird.f32 %v2230
  %vm2378 = vweird.f32 %v2372
  %vm2379 = vmor %vm2377, %vm2378
  %v2380 = vsel %vm2379, %v2372, %v2376
  %v2381 = vand.u32 2147483647, %v2230
  %vm2382 = vcmp.eq.f32.partialorder %v2381, 8.507059e+37
  %v2383 = vand.u32 %v2230, 2147483648
  %v2384 = vor.u32 1.1754944e-38, %v2383
  %v2385 = vsel %vm2382, %v2384, %v2380
  %v2386 = vmul.f32 %v2189, %v2385
  %v2387 = vrcp.pop %v2233
  %v2388 = vmul.f32 %v2233, %v2387
  %v2389 = vsub.f32 1.0, %v2388
  %v2390 = vmul.f32 %v2387, %v2389
  %v2391 = vadd.f32 %v2387, %v2390
  %vm2392 = vweird.f32 %v2233
  %vm2393 = vweird.f32 %v2387
  %vm2394 = vmor %vm2392, %vm2393
  %v2395 = vsel %vm2394, %v2387, %v2391
  %v2396 = vand.u32 2147483647, %v2233
  %vm2397 = vcmp.eq.f32.partialorder %v2396, 8.507059e+37
  %v2398 = vand.u32 %v2233, 2147483648
  %v2399 = vor.u32 1.1754944e-38, %v2398
  %v2400 = vsel %vm2397, %v2399, %v2395
  %v2401 = vmul.f32 %v2191, %v2400
  %v2402 = vrcp.pop %v2236
  %v2403 = vmul.f32 %v2236, %v2402
  %v2404 = vsub.f32 1.0, %v2403
  %v2405 = vmul.f32 %v2402, %v2404
  %v2406 = vadd.f32 %v2402, %v2405
  %vm2407 = vweird.f32 %v2236
  %vm2408 = vweird.f32 %v2402
  %vm2409 = vmor %vm2407, %vm2408
  %v2410 = vsel %vm2409, %v2402, %v2406
  %v2411 = vand.u32 2147483647, %v2236
  %vm2412 = vcmp.eq.f32.partialorder %v2411, 8.507059e+37
  %v2413 = vand.u32 %v2236, 2147483648
  %v2414 = vor.u32 1.1754944e-38, %v2413
  %v2415 = vsel %vm2412, %v2414, %v2410
  %v2416 = vmul.f32 %v2193, %v2415
  %v2417 = vrcp.pop %v2239
  %v2418 = vmul.f32 %v2239, %v2417
  %v2419 = vsub.f32 1.0, %v2418
  %v2420 = vmul.f32 %v2417, %v2419
  %v2421 = vadd.f32 %v2417, %v2420
  %vm2422 = vweird.f32 %v2239
  %vm2423 = vweird.f32 %v2417
  %vm2424 = vmor %vm2422, %vm2423
  %v2425 = vsel %vm2424, %v2417, %v2421
  %v2426 = vand.u32 2147483647, %v2239
  %vm2427 = vcmp.eq.f32.partialorder %v2426, 8.507059e+37
  %v2428 = vand.u32 %v2239, 2147483648
  %v2429 = vor.u32 1.1754944e-38, %v2428
  %v2430 = vsel %vm2427, %v2429, %v2425
  %v2431 = vmul.f32 %v2195, %v2430
  %v2432 = vrcp.pop %v2242
  %v2433 = vmul.f32 %v2242, %v2432
  %v2434 = vsub.f32 1.0, %v2433
  %v2435 = vmul.f32 %v2432, %v2434
  %v2436 = vadd.f32 %v2432, %v2435
  %vm2437 = vweird.f32 %v2242
  %vm2438 = vweird.f32 %v2432
  %vm2439 = vmor %vm2437, %vm2438
  %v2440 = vsel %vm2439, %v2432, %v2436
  %v2441 = vand.u32 2147483647, %v2242
  %vm2442 = vcmp.eq.f32.partialorder %v2441, 8.507059e+37
  %v2443 = vand.u32 %v2242, 2147483648
  %v2444 = vor.u32 1.1754944e-38, %v2443
  %v2445 = vsel %vm2442, %v2444, %v2440
  %v2446 = vmul.f32 %v2197, %v2445
  %v2447 = vrcp.pop %v2245
  %v2448 = vmul.f32 %v2245, %v2447
  %v2449 = vsub.f32 1.0, %v2448
  %v2450 = vmul.f32 %v2447, %v2449
  %v2451 = vadd.f32 %v2447, %v2450
  %vm2452 = vweird.f32 %v2245
  %vm2453 = vweird.f32 %v2447
  %vm2454 = vmor %vm2452, %vm2453
  %v2455 = vsel %vm2454, %v2447, %v2451
  %v2456 = vand.u32 2147483647, %v2245
  %vm2457 = vcmp.eq.f32.partialorder %v2456, 8.507059e+37
  %v2458 = vand.u32 %v2245, 2147483648
  %v2459 = vor.u32 1.1754944e-38, %v2458
  %v2460 = vsel %vm2457, %v2459, %v2455
  %v2461 = vmul.f32 %v2199, %v2460
  %v2462 = vrcp.pop %v2248
  %v2463 = vmul.f32 %v2248, %v2462
  %v2464 = vsub.f32 1.0, %v2463
  %v2465 = vmul.f32 %v2462, %v2464
  %v2466 = vadd.f32 %v2462, %v2465
  %vm2467 = vweird.f32 %v2248
  %vm2468 = vweird.f32 %v2462
  %vm2469 = vmor %vm2467, %vm2468
  %v2470 = vsel %vm2469, %v2462, %v2466
  %v2471 = vand.u32 2147483647, %v2248
  %vm2472 = vcmp.eq.f32.partialorder %v2471, 8.507059e+37
  %v2473 = vand.u32 %v2248, 2147483648
  %v2474 = vor.u32 1.1754944e-38, %v2473
  %v2475 = vsel %vm2472, %v2474, %v2470
  %v2476 = vmul.f32 %v2201, %v2475
  %v2477 = vrcp.pop %v2251
  %v2478 = vmul.f32 %v2251, %v2477
  %v2479 = vsub.f32 1.0, %v2478
  %v2480 = vmul.f32 %v2477, %v2479
  %v2481 = vadd.f32 %v2477, %v2480
  %vm2482 = vweird.f32 %v2251
  %vm2483 = vweird.f32 %v2477
  %vm2484 = vmor %vm2482, %vm2483
  %v2485 = vsel %vm2484, %v2477, %v2481
  %v2486 = vand.u32 2147483647, %v2251
  %vm2487 = vcmp.eq.f32.partialorder %v2486, 8.507059e+37
  %v2488 = vand.u32 %v2251, 2147483648
  %v2489 = vor.u32 1.1754944e-38, %v2488
  %v2490 = vsel %vm2487, %v2489, %v2485
  %v2491 = vmul.f32 %v2203, %v2490
  %v2492 = vpack.c.bf16 %v2266, %v2266
  %v2493 = vpack.c.bf16 %v2281, %v2281
  %v2494 = vpack.c.bf16 %v2296, %v2296
  %v2495 = vpack.c.bf16 %v2311, %v2311
  %v2496 = vpack.c.bf16 %v2326, %v2326
  %v2497 = vpack.c.bf16 %v2341, %v2341
  %v2498 = vpack.c.bf16 %v2356, %v2356
  %v2499 = vpack.c.bf16 %v2371, %v2371
  %v2500 = vpack.c.bf16 %v2386, %v2386
  %v2501 = vpack.c.bf16 %v2401, %v2401
  %v2502 = vpack.c.bf16 %v2416, %v2416
  %v2503 = vpack.c.bf16 %v2431, %v2431
  %v2504 = vpack.c.bf16 %v2446, %v2446
  %v2505 = vpack.c.bf16 %v2461, %v2461
  %v2506 = vpack.c.bf16 %v2476, %v2476
  %v2507 = vpack.c.bf16 %v2491, %v2491
  %v2510 = vunpack.c.l.b16 %v2492
  %v2511 = vunpack.c.l.b16 %v2493
  %v2512 = vpack.c.b16 %v2511, %v2510
  %2513 = vrot.lane.b32.xlu0 %v845, 112
  %v2514 = vpop.permute.xlu0 %2513
  %v2517 = vsel %vm419, %v2512, 0
  %2519 = vmatpush.bf16.msra.mxu0 0
  %2520 = vmatpush.bf16.msra.mxu0 0
  %2521 = vmatpush.bf16.msra.mxu0 0
  %2522 = vmatpush.bf16.msra.mxu0 0
  %2523 = vmatpush.bf16.msra.mxu0 0
  %2524 = vmatpush.bf16.msra.mxu0 0
  %2525 = vmatpush.bf16.msra.mxu0 0
  %2526 = vmatpush.bf16.msra.mxu0 %v2514
  %2527 = vmatmul.bf16.gmra.mxu0 %v2517
  %v2528 = vpop.f32.mrf.mxu0
  %v2529 = vadd.f32 0.0, %v2528
  %v2530 = vpop.f32.mrf.mxu0
  %v2531 = vadd.f32 0.0, %v2530
  %2532 = vdwg.mxu0
  %v2535 = vunpack.c.l.b16 %v2494
  %v2536 = vunpack.c.l.b16 %v2495
  %v2537 = vpack.c.b16 %v2536, %v2535
  %2538 = vrot.lane.b32.xlu0 %v873, 112
  %v2539 = vpop.permute.xlu0 %2538
  %v2542 = vsel %vm419, %v2537, 0
  %2544 = vmatpush.bf16.msra.mxu0 0
  %2545 = vmatpush.bf16.msra.mxu0 0
  %2546 = vmatpush.bf16.msra.mxu0 0
  %2547 = vmatpush.bf16.msra.mxu0 0
  %2548 = vmatpush.bf16.msra.mxu0 0
  %2549 = vmatpush.bf16.msra.mxu0 0
  %2550 = vmatpush.bf16.msra.mxu0 0
  %2551 = vmatpush.bf16.msra.mxu0 %v2539
  %2552 = vmatmul.bf16.gmra.mxu0 %v2542
  %v2553 = vpop.f32.mrf.mxu0
  %v2554 = vadd.f32 0.0, %v2553
  %v2555 = vpop.f32.mrf.mxu0
  %v2556 = vadd.f32 0.0, %v2555
  %2557 = vdwg.mxu0
  %v2560 = vunpack.c.l.b16 %v2496
  %v2561 = vunpack.c.l.b16 %v2497
  %v2562 = vpack.c.b16 %v2561, %v2560
  %2563 = vrot.lane.b32.xlu0 %v901, 112
  %v2564 = vpop.permute.xlu0 %2563
  %v2567 = vsel %vm419, %v2562, 0
  %2569 = vmatpush.bf16.msra.mxu0 0
  %2570 = vmatpush.bf16.msra.mxu0 0
  %2571 = vmatpush.bf16.msra.mxu0 0
  %2572 = vmatpush.bf16.msra.mxu0 0
  %2573 = vmatpush.bf16.msra.mxu0 0
  %2574 = vmatpush.bf16.msra.mxu0 0
  %2575 = vmatpush.bf16.msra.mxu0 0
  %2576 = vmatpush.bf16.msra.mxu0 %v2564
  %2577 = vmatmul.bf16.gmra.mxu0 %v2567
  %v2578 = vpop.f32.mrf.mxu0
  %v2579 = vadd.f32 0.0, %v2578
  %v2580 = vpop.f32.mrf.mxu0
  %v2581 = vadd.f32 0.0, %v2580
  %2582 = vdwg.mxu0
  %v2585 = vunpack.c.l.b16 %v2498
  %v2586 = vunpack.c.l.b16 %v2499
  %v2587 = vpack.c.b16 %v2586, %v2585
  %2588 = vrot.lane.b32.xlu0 %v929, 112
  %v2589 = vpop.permute.xlu0 %2588
  %v2592 = vsel %vm419, %v2587, 0
  %2594 = vmatpush.bf16.msra.mxu0 0
  %2595 = vmatpush.bf16.msra.mxu0 0
  %2596 = vmatpush.bf16.msra.mxu0 0
  %2597 = vmatpush.bf16.msra.mxu0 0
  %2598 = vmatpush.bf16.msra.mxu0 0
  %2599 = vmatpush.bf16.msra.mxu0 0
  %2600 = vmatpush.bf16.msra.mxu0 0
  %2601 = vmatpush.bf16.msra.mxu0 %v2589
  %2602 = vmatmul.bf16.gmra.mxu0 %v2592
  %v2603 = vpop.f32.mrf.mxu0
  %v2604 = vadd.f32 0.0, %v2603
  %v2605 = vpop.f32.mrf.mxu0
  %v2606 = vadd.f32 0.0, %v2605
  %2607 = vdwg.mxu0
  %v2610 = vunpack.c.l.b16 %v2500
  %v2611 = vunpack.c.l.b16 %v2501
  %v2612 = vpack.c.b16 %v2611, %v2610
  %2613 = vrot.lane.b32.xlu0 %v957, 112
  %v2614 = vpop.permute.xlu0 %2613
  %v2617 = vsel %vm419, %v2612, 0
  %2619 = vmatpush.bf16.msra.mxu0 0
  %2620 = vmatpush.bf16.msra.mxu0 0
  %2621 = vmatpush.bf16.msra.mxu0 0
  %2622 = vmatpush.bf16.msra.mxu0 0
  %2623 = vmatpush.bf16.msra.mxu0 0
  %2624 = vmatpush.bf16.msra.mxu0 0
  %2625 = vmatpush.bf16.msra.mxu0 0
  %2626 = vmatpush.bf16.msra.mxu0 %v2614
  %2627 = vmatmul.bf16.gmra.mxu0 %v2617
  %v2628 = vpop.f32.mrf.mxu0
  %v2629 = vadd.f32 0.0, %v2628
  %v2630 = vpop.f32.mrf.mxu0
  %v2631 = vadd.f32 0.0, %v2630
  %2632 = vdwg.mxu0
  %v2635 = vunpack.c.l.b16 %v2502
  %v2636 = vunpack.c.l.b16 %v2503
  %v2637 = vpack.c.b16 %v2636, %v2635
  %2638 = vrot.lane.b32.xlu0 %v985, 112
  %v2639 = vpop.permute.xlu0 %2638
  %v2642 = vsel %vm419, %v2637, 0
  %2644 = vmatpush.bf16.msra.mxu0 0
  %2645 = vmatpush.bf16.msra.mxu0 0
  %2646 = vmatpush.bf16.msra.mxu0 0
  %2647 = vmatpush.bf16.msra.mxu0 0
  %2648 = vmatpush.bf16.msra.mxu0 0
  %2649 = vmatpush.bf16.msra.mxu0 0
  %2650 = vmatpush.bf16.msra.mxu0 0
  %2651 = vmatpush.bf16.msra.mxu0 %v2639
  %2652 = vmatmul.bf16.gmra.mxu0 %v2642
  %v2653 = vpop.f32.mrf.mxu0
  %v2654 = vadd.f32 0.0, %v2653
  %v2655 = vpop.f32.mrf.mxu0
  %v2656 = vadd.f32 0.0, %v2655
  %2657 = vdwg.mxu0
  %v2660 = vunpack.c.l.b16 %v2504
  %v2661 = vunpack.c.l.b16 %v2505
  %v2662 = vpack.c.b16 %v2661, %v2660
  %2663 = vrot.lane.b32.xlu0 %v1013, 112
  %v2664 = vpop.permute.xlu0 %2663
  %v2667 = vsel %vm419, %v2662, 0
  %2669 = vmatpush.bf16.msra.mxu0 0
  %2670 = vmatpush.bf16.msra.mxu0 0
  %2671 = vmatpush.bf16.msra.mxu0 0
  %2672 = vmatpush.bf16.msra.mxu0 0
  %2673 = vmatpush.bf16.msra.mxu0 0
  %2674 = vmatpush.bf16.msra.mxu0 0
  %2675 = vmatpush.bf16.msra.mxu0 0
  %2676 = vmatpush.bf16.msra.mxu0 %v2664
  %2677 = vmatmul.bf16.gmra.mxu0 %v2667
  %v2678 = vpop.f32.mrf.mxu0
  %v2679 = vadd.f32 0.0, %v2678
  %v2680 = vpop.f32.mrf.mxu0
  %v2681 = vadd.f32 0.0, %v2680
  %2682 = vdwg.mxu0
  %v2685 = vunpack.c.l.b16 %v2506
  %v2686 = vunpack.c.l.b16 %v2507
  %v2687 = vpack.c.b16 %v2686, %v2685
  %2688 = vrot.lane.b32.xlu0 %v1041, 112
  %v2689 = vpop.permute.xlu0 %2688
  %v2692 = vsel %vm419, %v2687, 0
  %2694 = vmatpush.bf16.msra.mxu0 0
  %2695 = vmatpush.bf16.msra.mxu0 0
  %2696 = vmatpush.bf16.msra.mxu0 0
  %2697 = vmatpush.bf16.msra.mxu0 0
  %2698 = vmatpush.bf16.msra.mxu0 0
  %2699 = vmatpush.bf16.msra.mxu0 0
  %2700 = vmatpush.bf16.msra.mxu0 0
  %2701 = vmatpush.bf16.msra.mxu0 %v2689
  %2702 = vmatmul.bf16.gmra.mxu0 %v2692
  %v2703 = vpop.f32.mrf.mxu0
  %v2704 = vadd.f32 0.0, %v2703
  %v2705 = vpop.f32.mrf.mxu0
  %v2706 = vadd.f32 0.0, %v2705
  %2707 = vdwg.mxu0
  %2708 = vrot.lane.b32.xlu0 %v126, 104
  %v2709 = vpop.permute.xlu0 %2708
  %2710 = vrot.lane.b32.xlu0 %v131, 104
  %v2711 = vpop.permute.xlu0 %2710
  %v2713 = vsel %vm132, %v2709, 0
  %v2716 = vsel %vm132, %v2711, 0
  %2718 = vmatpush.bf16.xpose.msra.mxu0 0
  %2719 = vmatpush.bf16.xpose.msra.mxu0 0
  %2720 = vmatpush.bf16.xpose.msra.mxu0 0
  %2721 = vmatpush.bf16.xpose.msra.mxu0 0
  %2722 = vmatpush.bf16.xpose.msra.mxu0 0
  %2723 = vmatpush.bf16.xpose.msra.mxu0 0
  %2724 = vmatpush.bf16.xpose.msra.mxu0 0
  %2725 = vmatpush.bf16.xpose.msra.mxu0 %v2716
  %2726 = vmatmul.bf16.gmra.mxu0 %v2713
  %v2727 = vpop.f32.mrf.mxu0
  %v2728 = vadd.f32 0.0, %v2727
  %v2729 = vpop.f32.mrf.mxu0
  %v2730 = vadd.f32 0.0, %v2729
  %2731 = vdwg.mxu0
  %2732 = vrot.lane.b32.xlu0 %v157, 104
  %v2733 = vpop.permute.xlu0 %2732
  %2734 = vrot.lane.b32.xlu0 %v162, 104
  %v2735 = vpop.permute.xlu0 %2734
  %v2737 = vsel %vm132, %v2733, 0
  %v2740 = vsel %vm132, %v2735, 0
  %2742 = vmatpush.bf16.xpose.msra.mxu0 0
  %2743 = vmatpush.bf16.xpose.msra.mxu0 0
  %2744 = vmatpush.bf16.xpose.msra.mxu0 0
  %2745 = vmatpush.bf16.xpose.msra.mxu0 0
  %2746 = vmatpush.bf16.xpose.msra.mxu0 0
  %2747 = vmatpush.bf16.xpose.msra.mxu0 0
  %2748 = vmatpush.bf16.xpose.msra.mxu0 0
  %2749 = vmatpush.bf16.xpose.msra.mxu0 %v2740
  %2750 = vmatmul.bf16.gmra.mxu0 %v2737
  %v2751 = vpop.f32.mrf.mxu0
  %v2752 = vadd.f32 0.0, %v2751
  %v2753 = vpop.f32.mrf.mxu0
  %v2754 = vadd.f32 0.0, %v2753
  %2755 = vdwg.mxu0
  %2756 = vrot.lane.b32.xlu0 %v187, 104
  %v2757 = vpop.permute.xlu0 %2756
  %2758 = vrot.lane.b32.xlu0 %v192, 104
  %v2759 = vpop.permute.xlu0 %2758
  %v2761 = vsel %vm132, %v2757, 0
  %v2764 = vsel %vm132, %v2759, 0
  %2766 = vmatpush.bf16.xpose.msra.mxu0 0
  %2767 = vmatpush.bf16.xpose.msra.mxu0 0
  %2768 = vmatpush.bf16.xpose.msra.mxu0 0
  %2769 = vmatpush.bf16.xpose.msra.mxu0 0
  %2770 = vmatpush.bf16.xpose.msra.mxu0 0
  %2771 = vmatpush.bf16.xpose.msra.mxu0 0
  %2772 = vmatpush.bf16.xpose.msra.mxu0 0
  %2773 = vmatpush.bf16.xpose.msra.mxu0 %v2764
  %2774 = vmatmul.bf16.gmra.mxu0 %v2761
  %v2775 = vpop.f32.mrf.mxu0
  %v2776 = vadd.f32 0.0, %v2775
  %v2777 = vpop.f32.mrf.mxu0
  %v2778 = vadd.f32 0.0, %v2777
  %2779 = vdwg.mxu0
  %2780 = vrot.lane.b32.xlu0 %v217, 104
  %v2781 = vpop.permute.xlu0 %2780
  %2782 = vrot.lane.b32.xlu0 %v222, 104
  %v2783 = vpop.permute.xlu0 %2782
  %v2785 = vsel %vm132, %v2781, 0
  %v2788 = vsel %vm132, %v2783, 0
  %2790 = vmatpush.bf16.xpose.msra.mxu0 0
  %2791 = vmatpush.bf16.xpose.msra.mxu0 0
  %2792 = vmatpush.bf16.xpose.msra.mxu0 0
  %2793 = vmatpush.bf16.xpose.msra.mxu0 0
  %2794 = vmatpush.bf16.xpose.msra.mxu0 0
  %2795 = vmatpush.bf16.xpose.msra.mxu0 0
  %2796 = vmatpush.bf16.xpose.msra.mxu0 0
  %2797 = vmatpush.bf16.xpose.msra.mxu0 %v2788
  %2798 = vmatmul.bf16.gmra.mxu0 %v2785
  %v2799 = vpop.f32.mrf.mxu0
  %v2800 = vadd.f32 0.0, %v2799
  %v2801 = vpop.f32.mrf.mxu0
  %v2802 = vadd.f32 0.0, %v2801
  %2803 = vdwg.mxu0
  %2804 = vrot.lane.b32.xlu0 %v247, 104
  %v2805 = vpop.permute.xlu0 %2804
  %2806 = vrot.lane.b32.xlu0 %v252, 104
  %v2807 = vpop.permute.xlu0 %2806
  %v2809 = vsel %vm132, %v2805, 0
  %v2812 = vsel %vm132, %v2807, 0
  %2814 = vmatpush.bf16.xpose.msra.mxu0 0
  %2815 = vmatpush.bf16.xpose.msra.mxu0 0
  %2816 = vmatpush.bf16.xpose.msra.mxu0 0
  %2817 = vmatpush.bf16.xpose.msra.mxu0 0
  %2818 = vmatpush.bf16.xpose.msra.mxu0 0
  %2819 = vmatpush.bf16.xpose.msra.mxu0 0
  %2820 = vmatpush.bf16.xpose.msra.mxu0 0
  %2821 = vmatpush.bf16.xpose.msra.mxu0 %v2812
  %2822 = vmatmul.bf16.gmra.mxu0 %v2809
  %v2823 = vpop.f32.mrf.mxu0
  %v2824 = vadd.f32 0.0, %v2823
  %v2825 = vpop.f32.mrf.mxu0
  %v2826 = vadd.f32 0.0, %v2825
  %2827 = vdwg.mxu0
  %2828 = vrot.lane.b32.xlu0 %v277, 104
  %v2829 = vpop.permute.xlu0 %2828
  %2830 = vrot.lane.b32.xlu0 %v282, 104
  %v2831 = vpop.permute.xlu0 %2830
  %v2833 = vsel %vm132, %v2829, 0
  %v2836 = vsel %vm132, %v2831, 0
  %2838 = vmatpush.bf16.xpose.msra.mxu0 0
  %2839 = vmatpush.bf16.xpose.msra.mxu0 0
  %2840 = vmatpush.bf16.xpose.msra.mxu0 0
  %2841 = vmatpush.bf16.xpose.msra.mxu0 0
  %2842 = vmatpush.bf16.xpose.msra.mxu0 0
  %2843 = vmatpush.bf16.xpose.msra.mxu0 0
  %2844 = vmatpush.bf16.xpose.msra.mxu0 0
  %2845 = vmatpush.bf16.xpose.msra.mxu0 %v2836
  %2846 = vmatmul.bf16.gmra.mxu0 %v2833
  %v2847 = vpop.f32.mrf.mxu0
  %v2848 = vadd.f32 0.0, %v2847
  %v2849 = vpop.f32.mrf.mxu0
  %v2850 = vadd.f32 0.0, %v2849
  %2851 = vdwg.mxu0
  %2852 = vrot.lane.b32.xlu0 %v307, 104
  %v2853 = vpop.permute.xlu0 %2852
  %2854 = vrot.lane.b32.xlu0 %v312, 104
  %v2855 = vpop.permute.xlu0 %2854
  %v2857 = vsel %vm132, %v2853, 0
  %v2860 = vsel %vm132, %v2855, 0
  %2862 = vmatpush.bf16.xpose.msra.mxu0 0
  %2863 = vmatpush.bf16.xpose.msra.mxu0 0
  %2864 = vmatpush.bf16.xpose.msra.mxu0 0
  %2865 = vmatpush.bf16.xpose.msra.mxu0 0
  %2866 = vmatpush.bf16.xpose.msra.mxu0 0
  %2867 = vmatpush.bf16.xpose.msra.mxu0 0
  %2868 = vmatpush.bf16.xpose.msra.mxu0 0
  %2869 = vmatpush.bf16.xpose.msra.mxu0 %v2860
  %2870 = vmatmul.bf16.gmra.mxu0 %v2857
  %v2871 = vpop.f32.mrf.mxu0
  %v2872 = vadd.f32 0.0, %v2871
  %v2873 = vpop.f32.mrf.mxu0
  %v2874 = vadd.f32 0.0, %v2873
  %2875 = vdwg.mxu0
  %2876 = vrot.lane.b32.xlu0 %v337, 104
  %v2877 = vpop.permute.xlu0 %2876
  %2878 = vrot.lane.b32.xlu0 %v342, 104
  %v2879 = vpop.permute.xlu0 %2878
  %v2881 = vsel %vm132, %v2877, 0
  %v2884 = vsel %vm132, %v2879, 0
  %2886 = vmatpush.bf16.xpose.msra.mxu0 0
  %2887 = vmatpush.bf16.xpose.msra.mxu0 0
  %2888 = vmatpush.bf16.xpose.msra.mxu0 0
  %2889 = vmatpush.bf16.xpose.msra.mxu0 0
  %2890 = vmatpush.bf16.xpose.msra.mxu0 0
  %2891 = vmatpush.bf16.xpose.msra.mxu0 0
  %2892 = vmatpush.bf16.xpose.msra.mxu0 0
  %2893 = vmatpush.bf16.xpose.msra.mxu0 %v2884
  %2894 = vmatmul.bf16.gmra.mxu0 %v2881
  %v2895 = vpop.f32.mrf.mxu0
  %v2896 = vadd.f32 0.0, %v2895
  %v2897 = vpop.f32.mrf.mxu0
  %v2898 = vadd.f32 0.0, %v2897
  %2899 = vdwg.mxu0
  %v2900 = vmul.f32 %v2728, 0.35355338
  %v2901 = vmul.f32 %v2730, 0.35355338
  %v2902 = vmul.f32 %v2752, 0.35355338
  %v2903 = vmul.f32 %v2754, 0.35355338
  %v2904 = vmul.f32 %v2776, 0.35355338
  %v2905 = vmul.f32 %v2778, 0.35355338
  %v2906 = vmul.f32 %v2800, 0.35355338
  %v2907 = vmul.f32 %v2802, 0.35355338
  %v2908 = vmul.f32 %v2824, 0.35355338
  %v2909 = vmul.f32 %v2826, 0.35355338
  %v2910 = vmul.f32 %v2848, 0.35355338
  %v2911 = vmul.f32 %v2850, 0.35355338
  %v2912 = vmul.f32 %v2872, 0.35355338
  %v2913 = vmul.f32 %v2874, 0.35355338
  %v2914 = vmul.f32 %v2896, 0.35355338
  %v2915 = vmul.f32 %v2898, 0.35355338
  %v2916 = vadd.f32 %v2900, %v387
  %v2917 = vadd.f32 %v2901, %v387
  %v2918 = vadd.f32 %v2902, %v388
  %v2919 = vadd.f32 %v2903, %v388
  %v2920 = vadd.f32 %v2904, %v389
  %v2921 = vadd.f32 %v2905, %v389
  %v2922 = vadd.f32 %v2906, %v390
  %v2923 = vadd.f32 %v2907, %v390
  %v2924 = vadd.f32 %v2908, %v391
  %v2925 = vadd.f32 %v2909, %v391
  %v2926 = vadd.f32 %v2910, %v392
  %v2927 = vadd.f32 %v2911, %v392
  %v2928 = vadd.f32 %v2912, %v393
  %v2929 = vadd.f32 %v2913, %v393
  %v2930 = vadd.f32 %v2914, %v394
  %v2931 = vadd.f32 %v2915, %v394
  %v2932 = vsel %vm419, %v2916, -inf
  %2933 = vmax.xlane.f32.xlu0 %v2932
  %v2934 = vpop.xlane.xlu0 %2933
  %v2935 = vsel %vm419, %v2917, -inf
  %2936 = vmax.xlane.f32.xlu0 %v2935
  %v2937 = vpop.xlane.xlu0 %2936
  %v2938 = vsel %vm419, %v2918, -inf
  %2939 = vmax.xlane.f32.xlu0 %v2938
  %v2940 = vpop.xlane.xlu0 %2939
  %v2941 = vsel %vm419, %v2919, -inf
  %2942 = vmax.xlane.f32.xlu0 %v2941
  %v2943 = vpop.xlane.xlu0 %2942
  %v2944 = vsel %vm419, %v2920, -inf
  %2945 = vmax.xlane.f32.xlu0 %v2944
  %v2946 = vpop.xlane.xlu0 %2945
  %v2947 = vsel %vm419, %v2921, -inf
  %2948 = vmax.xlane.f32.xlu0 %v2947
  %v2949 = vpop.xlane.xlu0 %2948
  %v2950 = vsel %vm419, %v2922, -inf
  %2951 = vmax.xlane.f32.xlu0 %v2950
  %v2952 = vpop.xlane.xlu0 %2951
  %v2953 = vsel %vm419, %v2923, -inf
  %2954 = vmax.xlane.f32.xlu0 %v2953
  %v2955 = vpop.xlane.xlu0 %2954
  %v2956 = vsel %vm419, %v2924, -inf
  %2957 = vmax.xlane.f32.xlu0 %v2956
  %v2958 = vpop.xlane.xlu0 %2957
  %v2959 = vsel %vm419, %v2925, -inf
  %2960 = vmax.xlane.f32.xlu0 %v2959
  %v2961 = vpop.xlane.xlu0 %2960
  %v2962 = vsel %vm419, %v2926, -inf
  %2963 = vmax.xlane.f32.xlu0 %v2962
  %v2964 = vpop.xlane.xlu0 %2963
  %v2965 = vsel %vm419, %v2927, -inf
  %2966 = vmax.xlane.f32.xlu0 %v2965
  %v2967 = vpop.xlane.xlu0 %2966
  %v2968 = vsel %vm419, %v2928, -inf
  %2969 = vmax.xlane.f32.xlu0 %v2968
  %v2970 = vpop.xlane.xlu0 %2969
  %v2971 = vsel %vm419, %v2929, -inf
  %2972 = vmax.xlane.f32.xlu0 %v2971
  %v2973 = vpop.xlane.xlu0 %2972
  %v2974 = vsel %vm419, %v2930, -inf
  %2975 = vmax.xlane.f32.xlu0 %v2974
  %v2976 = vpop.xlane.xlu0 %2975
  %v2977 = vsel %vm419, %v2931, -inf
  %2978 = vmax.xlane.f32.xlu0 %v2977
  %v2979 = vpop.xlane.xlu0 %2978
  %v2980 = vsub.f32 %v2916, %v2934
  %v2981 = vsub.f32 %v2917, %v2937
  %v2982 = vsub.f32 %v2918, %v2940
  %v2983 = vsub.f32 %v2919, %v2943
  %v2984 = vsub.f32 %v2920, %v2946
  %v2985 = vsub.f32 %v2921, %v2949
  %v2986 = vsub.f32 %v2922, %v2952
  %v2987 = vsub.f32 %v2923, %v2955
  %v2988 = vsub.f32 %v2924, %v2958
  %v2989 = vsub.f32 %v2925, %v2961
  %v2990 = vsub.f32 %v2926, %v2964
  %v2991 = vsub.f32 %v2927, %v2967
  %v2992 = vsub.f32 %v2928, %v2970
  %v2993 = vsub.f32 %v2929, %v2973
  %v2994 = vsub.f32 %v2930, %v2976
  %v2995 = vsub.f32 %v2931, %v2979
  %v2996 = vmul.f32 %v2980, 1.442695
  %v2997 = vpow.pop %v2996
  %v2998 = vmul.f32 %v2981, 1.442695
  %v2999 = vpow.pop %v2998
  %v3000 = vmul.f32 %v2982, 1.442695
  %v3001 = vpow.pop %v3000
  %v3002 = vmul.f32 %v2983, 1.442695
  %v3003 = vpow.pop %v3002
  %v3004 = vmul.f32 %v2984, 1.442695
  %v3005 = vpow.pop %v3004
  %v3006 = vmul.f32 %v2985, 1.442695
  %v3007 = vpow.pop %v3006
  %v3008 = vmul.f32 %v2986, 1.442695
  %v3009 = vpow.pop %v3008
  %v3010 = vmul.f32 %v2987, 1.442695
  %v3011 = vpow.pop %v3010
  %v3012 = vmul.f32 %v2988, 1.442695
  %v3013 = vpow.pop %v3012
  %v3014 = vmul.f32 %v2989, 1.442695
  %v3015 = vpow.pop %v3014
  %v3016 = vmul.f32 %v2990, 1.442695
  %v3017 = vpow.pop %v3016
  %v3018 = vmul.f32 %v2991, 1.442695
  %v3019 = vpow.pop %v3018
  %v3020 = vmul.f32 %v2992, 1.442695
  %v3021 = vpow.pop %v3020
  %v3022 = vmul.f32 %v2993, 1.442695
  %v3023 = vpow.pop %v3022
  %v3024 = vmul.f32 %v2994, 1.442695
  %v3025 = vpow.pop %v3024
  %v3026 = vmul.f32 %v2995, 1.442695
  %v3027 = vpow.pop %v3026
  %v3028 = vsel %vm419, %v2997, 0.0
  %3029 = vadd.xlane.f32.xlu0 %v3028
  %v3030 = vpop.xlane.xlu0 %3029
  %v3031 = vsel %vm419, %v2999, 0.0
  %3032 = vadd.xlane.f32.xlu0 %v3031
  %v3033 = vpop.xlane.xlu0 %3032
  %v3034 = vsel %vm419, %v3001, 0.0
  %3035 = vadd.xlane.f32.xlu0 %v3034
  %v3036 = vpop.xlane.xlu0 %3035
  %v3037 = vsel %vm419, %v3003, 0.0
  %3038 = vadd.xlane.f32.xlu0 %v3037
  %v3039 = vpop.xlane.xlu0 %3038
  %v3040 = vsel %vm419, %v3005, 0.0
  %3041 = vadd.xlane.f32.xlu0 %v3040
  %v3042 = vpop.xlane.xlu0 %3041
  %v3043 = vsel %vm419, %v3007, 0.0
  %3044 = vadd.xlane.f32.xlu0 %v3043
  %v3045 = vpop.xlane.xlu0 %3044
  %v3046 = vsel %vm419, %v3009, 0.0
  %3047 = vadd.xlane.f32.xlu0 %v3046
  %v3048 = vpop.xlane.xlu0 %3047
  %v3049 = vsel %vm419, %v3011, 0.0
  %3050 = vadd.xlane.f32.xlu0 %v3049
  %v3051 = vpop.xlane.xlu0 %3050
  %v3052 = vsel %vm419, %v3013, 0.0
  %3053 = vadd.xlane.f32.xlu0 %v3052
  %v3054 = vpop.xlane.xlu0 %3053
  %v3055 = vsel %vm419, %v3015, 0.0
  %3056 = vadd.xlane.f32.xlu0 %v3055
  %v3057 = vpop.xlane.xlu0 %3056
  %v3058 = vsel %vm419, %v3017, 0.0
  %3059 = vadd.xlane.f32.xlu0 %v3058
  %v3060 = vpop.xlane.xlu0 %3059
  %v3061 = vsel %vm419, %v3019, 0.0
  %3062 = vadd.xlane.f32.xlu0 %v3061
  %v3063 = vpop.xlane.xlu0 %3062
  %v3064 = vsel %vm419, %v3021, 0.0
  %3065 = vadd.xlane.f32.xlu0 %v3064
  %v3066 = vpop.xlane.xlu0 %3065
  %v3067 = vsel %vm419, %v3023, 0.0
  %3068 = vadd.xlane.f32.xlu0 %v3067
  %v3069 = vpop.xlane.xlu0 %3068
  %v3070 = vsel %vm419, %v3025, 0.0
  %3071 = vadd.xlane.f32.xlu0 %v3070
  %v3072 = vpop.xlane.xlu0 %3071
  %v3073 = vsel %vm419, %v3027, 0.0
  %3074 = vadd.xlane.f32.xlu0 %v3073
  %v3075 = vpop.xlane.xlu0 %3074
  %v3076 = vrcp.pop %v3030
  %v3077 = vmul.f32 %v3030, %v3076
  %v3078 = vsub.f32 1.0, %v3077
  %v3079 = vmul.f32 %v3076, %v3078
  %v3080 = vadd.f32 %v3076, %v3079
  %vm3081 = vweird.f32 %v3030
  %vm3082 = vweird.f32 %v3076
  %vm3083 = vmor %vm3081, %vm3082
  %v3084 = vsel %vm3083, %v3076, %v3080
  %v3085 = vand.u32 2147483647, %v3030
  %vm3086 = vcmp.eq.f32.partialorder %v3085, 8.507059e+37
  %v3087 = vand.u32 %v3030, 2147483648
  %v3088 = vor.u32 1.1754944e-38, %v3087
  %v3089 = vsel %vm3086, %v3088, %v3084
  %v3090 = vmul.f32 %v2997, %v3089
  %v3091 = vrcp.pop %v3033
  %v3092 = vmul.f32 %v3033, %v3091
  %v3093 = vsub.f32 1.0, %v3092
  %v3094 = vmul.f32 %v3091, %v3093
  %v3095 = vadd.f32 %v3091, %v3094
  %vm3096 = vweird.f32 %v3033
  %vm3097 = vweird.f32 %v3091
  %vm3098 = vmor %vm3096, %vm3097
  %v3099 = vsel %vm3098, %v3091, %v3095
  %v3100 = vand.u32 2147483647, %v3033
  %vm3101 = vcmp.eq.f32.partialorder %v3100, 8.507059e+37
  %v3102 = vand.u32 %v3033, 2147483648
  %v3103 = vor.u32 1.1754944e-38, %v3102
  %v3104 = vsel %vm3101, %v3103, %v3099
  %v3105 = vmul.f32 %v2999, %v3104
  %v3106 = vrcp.pop %v3036
  %v3107 = vmul.f32 %v3036, %v3106
  %v3108 = vsub.f32 1.0, %v3107
  %v3109 = vmul.f32 %v3106, %v3108
  %v3110 = vadd.f32 %v3106, %v3109
  %vm3111 = vweird.f32 %v3036
  %vm3112 = vweird.f32 %v3106
  %vm3113 = vmor %vm3111, %vm3112
  %v3114 = vsel %vm3113, %v3106, %v3110
  %v3115 = vand.u32 2147483647, %v3036
  %vm3116 = vcmp.eq.f32.partialorder %v3115, 8.507059e+37
  %v3117 = vand.u32 %v3036, 2147483648
  %v3118 = vor.u32 1.1754944e-38, %v3117
  %v3119 = vsel %vm3116, %v3118, %v3114
  %v3120 = vmul.f32 %v3001, %v3119
  %v3121 = vrcp.pop %v3039
  %v3122 = vmul.f32 %v3039, %v3121
  %v3123 = vsub.f32 1.0, %v3122
  %v3124 = vmul.f32 %v3121, %v3123
  %v3125 = vadd.f32 %v3121, %v3124
  %vm3126 = vweird.f32 %v3039
  %vm3127 = vweird.f32 %v3121
  %vm3128 = vmor %vm3126, %vm3127
  %v3129 = vsel %vm3128, %v3121, %v3125
  %v3130 = vand.u32 2147483647, %v3039
  %vm3131 = vcmp.eq.f32.partialorder %v3130, 8.507059e+37
  %v3132 = vand.u32 %v3039, 2147483648
  %v3133 = vor.u32 1.1754944e-38, %v3132
  %v3134 = vsel %vm3131, %v3133, %v3129
  %v3135 = vmul.f32 %v3003, %v3134
  %v3136 = vrcp.pop %v3042
  %v3137 = vmul.f32 %v3042, %v3136
  %v3138 = vsub.f32 1.0, %v3137
  %v3139 = vmul.f32 %v3136, %v3138
  %v3140 = vadd.f32 %v3136, %v3139
  %vm3141 = vweird.f32 %v3042
  %vm3142 = vweird.f32 %v3136
  %vm3143 = vmor %vm3141, %vm3142
  %v3144 = vsel %vm3143, %v3136, %v3140
  %v3145 = vand.u32 2147483647, %v3042
  %vm3146 = vcmp.eq.f32.partialorder %v3145, 8.507059e+37
  %v3147 = vand.u32 %v3042, 2147483648
  %v3148 = vor.u32 1.1754944e-38, %v3147
  %v3149 = vsel %vm3146, %v3148, %v3144
  %v3150 = vmul.f32 %v3005, %v3149
  %v3151 = vrcp.pop %v3045
  %v3152 = vmul.f32 %v3045, %v3151
  %v3153 = vsub.f32 1.0, %v3152
  %v3154 = vmul.f32 %v3151, %v3153
  %v3155 = vadd.f32 %v3151, %v3154
  %vm3156 = vweird.f32 %v3045
  %vm3157 = vweird.f32 %v3151
  %vm3158 = vmor %vm3156, %vm3157
  %v3159 = vsel %vm3158, %v3151, %v3155
  %v3160 = vand.u32 2147483647, %v3045
  %vm3161 = vcmp.eq.f32.partialorder %v3160, 8.507059e+37
  %v3162 = vand.u32 %v3045, 2147483648
  %v3163 = vor.u32 1.1754944e-38, %v3162
  %v3164 = vsel %vm3161, %v3163, %v3159
  %v3165 = vmul.f32 %v3007, %v3164
  %v3166 = vrcp.pop %v3048
  %v3167 = vmul.f32 %v3048, %v3166
  %v3168 = vsub.f32 1.0, %v3167
  %v3169 = vmul.f32 %v3166, %v3168
  %v3170 = vadd.f32 %v3166, %v3169
  %vm3171 = vweird.f32 %v3048
  %vm3172 = vweird.f32 %v3166
  %vm3173 = vmor %vm3171, %vm3172
  %v3174 = vsel %vm3173, %v3166, %v3170
  %v3175 = vand.u32 2147483647, %v3048
  %vm3176 = vcmp.eq.f32.partialorder %v3175, 8.507059e+37
  %v3177 = vand.u32 %v3048, 2147483648
  %v3178 = vor.u32 1.1754944e-38, %v3177
  %v3179 = vsel %vm3176, %v3178, %v3174
  %v3180 = vmul.f32 %v3009, %v3179
  %v3181 = vrcp.pop %v3051
  %v3182 = vmul.f32 %v3051, %v3181
  %v3183 = vsub.f32 1.0, %v3182
  %v3184 = vmul.f32 %v3181, %v3183
  %v3185 = vadd.f32 %v3181, %v3184
  %vm3186 = vweird.f32 %v3051
  %vm3187 = vweird.f32 %v3181
  %vm3188 = vmor %vm3186, %vm3187
  %v3189 = vsel %vm3188, %v3181, %v3185
  %v3190 = vand.u32 2147483647, %v3051
  %vm3191 = vcmp.eq.f32.partialorder %v3190, 8.507059e+37
  %v3192 = vand.u32 %v3051, 2147483648
  %v3193 = vor.u32 1.1754944e-38, %v3192
  %v3194 = vsel %vm3191, %v3193, %v3189
  %v3195 = vmul.f32 %v3011, %v3194
  %v3196 = vrcp.pop %v3054
  %v3197 = vmul.f32 %v3054, %v3196
  %v3198 = vsub.f32 1.0, %v3197
  %v3199 = vmul.f32 %v3196, %v3198
  %v3200 = vadd.f32 %v3196, %v3199
  %vm3201 = vweird.f32 %v3054
  %vm3202 = vweird.f32 %v3196
  %vm3203 = vmor %vm3201, %vm3202
  %v3204 = vsel %vm3203, %v3196, %v3200
  %v3205 = vand.u32 2147483647, %v3054
  %vm3206 = vcmp.eq.f32.partialorder %v3205, 8.507059e+37
  %v3207 = vand.u32 %v3054, 2147483648
  %v3208 = vor.u32 1.1754944e-38, %v3207
  %v3209 = vsel %vm3206, %v3208, %v3204
  %v3210 = vmul.f32 %v3013, %v3209
  %v3211 = vrcp.pop %v3057
  %v3212 = vmul.f32 %v3057, %v3211
  %v3213 = vsub.f32 1.0, %v3212
  %v3214 = vmul.f32 %v3211, %v3213
  %v3215 = vadd.f32 %v3211, %v3214
  %vm3216 = vweird.f32 %v3057
  %vm3217 = vweird.f32 %v3211
  %vm3218 = vmor %vm3216, %vm3217
  %v3219 = vsel %vm3218, %v3211, %v3215
  %v3220 = vand.u32 2147483647, %v3057
  %vm3221 = vcmp.eq.f32.partialorder %v3220, 8.507059e+37
  %v3222 = vand.u32 %v3057, 2147483648
  %v3223 = vor.u32 1.1754944e-38, %v3222
  %v3224 = vsel %vm3221, %v3223, %v3219
  %v3225 = vmul.f32 %v3015, %v3224
  %v3226 = vrcp.pop %v3060
  %v3227 = vmul.f32 %v3060, %v3226
  %v3228 = vsub.f32 1.0, %v3227
  %v3229 = vmul.f32 %v3226, %v3228
  %v3230 = vadd.f32 %v3226, %v3229
  %vm3231 = vweird.f32 %v3060
  %vm3232 = vweird.f32 %v3226
  %vm3233 = vmor %vm3231, %vm3232
  %v3234 = vsel %vm3233, %v3226, %v3230
  %v3235 = vand.u32 2147483647, %v3060
  %vm3236 = vcmp.eq.f32.partialorder %v3235, 8.507059e+37
  %v3237 = vand.u32 %v3060, 2147483648
  %v3238 = vor.u32 1.1754944e-38, %v3237
  %v3239 = vsel %vm3236, %v3238, %v3234
  %v3240 = vmul.f32 %v3017, %v3239
  %v3241 = vrcp.pop %v3063
  %v3242 = vmul.f32 %v3063, %v3241
  %v3243 = vsub.f32 1.0, %v3242
  %v3244 = vmul.f32 %v3241, %v3243
  %v3245 = vadd.f32 %v3241, %v3244
  %vm3246 = vweird.f32 %v3063
  %vm3247 = vweird.f32 %v3241
  %vm3248 = vmor %vm3246, %vm3247
  %v3249 = vsel %vm3248, %v3241, %v3245
  %v3250 = vand.u32 2147483647, %v3063
  %vm3251 = vcmp.eq.f32.partialorder %v3250, 8.507059e+37
  %v3252 = vand.u32 %v3063, 2147483648
  %v3253 = vor.u32 1.1754944e-38, %v3252
  %v3254 = vsel %vm3251, %v3253, %v3249
  %v3255 = vmul.f32 %v3019, %v3254
  %v3256 = vrcp.pop %v3066
  %v3257 = vmul.f32 %v3066, %v3256
  %v3258 = vsub.f32 1.0, %v3257
  %v3259 = vmul.f32 %v3256, %v3258
  %v3260 = vadd.f32 %v3256, %v3259
  %vm3261 = vweird.f32 %v3066
  %vm3262 = vweird.f32 %v3256
  %vm3263 = vmor %vm3261, %vm3262
  %v3264 = vsel %vm3263, %v3256, %v3260
  %v3265 = vand.u32 2147483647, %v3066
  %vm3266 = vcmp.eq.f32.partialorder %v3265, 8.507059e+37
  %v3267 = vand.u32 %v3066, 2147483648
  %v3268 = vor.u32 1.1754944e-38, %v3267
  %v3269 = vsel %vm3266, %v3268, %v3264
  %v3270 = vmul.f32 %v3021, %v3269
  %v3271 = vrcp.pop %v3069
  %v3272 = vmul.f32 %v3069, %v3271
  %v3273 = vsub.f32 1.0, %v3272
  %v3274 = vmul.f32 %v3271, %v3273
  %v3275 = vadd.f32 %v3271, %v3274
  %vm3276 = vweird.f32 %v3069
  %vm3277 = vweird.f32 %v3271
  %vm3278 = vmor %vm3276, %vm3277
  %v3279 = vsel %vm3278, %v3271, %v3275
  %v3280 = vand.u32 2147483647, %v3069
  %vm3281 = vcmp.eq.f32.partialorder %v3280, 8.507059e+37
  %v3282 = vand.u32 %v3069, 2147483648
  %v3283 = vor.u32 1.1754944e-38, %v3282
  %v3284 = vsel %vm3281, %v3283, %v3279
  %v3285 = vmul.f32 %v3023, %v3284
  %v3286 = vrcp.pop %v3072
  %v3287 = vmul.f32 %v3072, %v3286
  %v3288 = vsub.f32 1.0, %v3287
  %v3289 = vmul.f32 %v3286, %v3288
  %v3290 = vadd.f32 %v3286, %v3289
  %vm3291 = vweird.f32 %v3072
  %vm3292 = vweird.f32 %v3286
  %vm3293 = vmor %vm3291, %vm3292
  %v3294 = vsel %vm3293, %v3286, %v3290
  %v3295 = vand.u32 2147483647, %v3072
  %vm3296 = vcmp.eq.f32.partialorder %v3295, 8.507059e+37
  %v3297 = vand.u32 %v3072, 2147483648
  %v3298 = vor.u32 1.1754944e-38, %v3297
  %v3299 = vsel %vm3296, %v3298, %v3294
  %v3300 = vmul.f32 %v3025, %v3299
  %v3301 = vrcp.pop %v3075
  %v3302 = vmul.f32 %v3075, %v3301
  %v3303 = vsub.f32 1.0, %v3302
  %v3304 = vmul.f32 %v3301, %v3303
  %v3305 = vadd.f32 %v3301, %v3304
  %vm3306 = vweird.f32 %v3075
  %vm3307 = vweird.f32 %v3301
  %vm3308 = vmor %vm3306, %vm3307
  %v3309 = vsel %vm3308, %v3301, %v3305
  %v3310 = vand.u32 2147483647, %v3075
  %vm3311 = vcmp.eq.f32.partialorder %v3310, 8.507059e+37
  %v3312 = vand.u32 %v3075, 2147483648
  %v3313 = vor.u32 1.1754944e-38, %v3312
  %v3314 = vsel %vm3311, %v3313, %v3309
  %v3315 = vmul.f32 %v3027, %v3314
  %v3316 = vpack.c.bf16 %v3090, %v3090
  %v3317 = vpack.c.bf16 %v3105, %v3105
  %v3318 = vpack.c.bf16 %v3120, %v3120
  %v3319 = vpack.c.bf16 %v3135, %v3135
  %v3320 = vpack.c.bf16 %v3150, %v3150
  %v3321 = vpack.c.bf16 %v3165, %v3165
  %v3322 = vpack.c.bf16 %v3180, %v3180
  %v3323 = vpack.c.bf16 %v3195, %v3195
  %v3324 = vpack.c.bf16 %v3210, %v3210
  %v3325 = vpack.c.bf16 %v3225, %v3225
  %v3326 = vpack.c.bf16 %v3240, %v3240
  %v3327 = vpack.c.bf16 %v3255, %v3255
  %v3328 = vpack.c.bf16 %v3270, %v3270
  %v3329 = vpack.c.bf16 %v3285, %v3285
  %v3330 = vpack.c.bf16 %v3300, %v3300
  %v3331 = vpack.c.bf16 %v3315, %v3315
  %v3334 = vunpack.c.l.b16 %v3316
  %v3335 = vunpack.c.l.b16 %v3317
  %v3336 = vpack.c.b16 %v3335, %v3334
  %3337 = vrot.lane.b32.xlu0 %v845, 104
  %v3338 = vpop.permute.xlu0 %3337
  %v3341 = vsel %vm419, %v3336, 0
  %3343 = vmatpush.bf16.msra.mxu0 0
  %3344 = vmatpush.bf16.msra.mxu0 0
  %3345 = vmatpush.bf16.msra.mxu0 0
  %3346 = vmatpush.bf16.msra.mxu0 0
  %3347 = vmatpush.bf16.msra.mxu0 0
  %3348 = vmatpush.bf16.msra.mxu0 0
  %3349 = vmatpush.bf16.msra.mxu0 0
  %3350 = vmatpush.bf16.msra.mxu0 %v3338
  %3351 = vmatmul.bf16.gmra.mxu0 %v3341
  %v3352 = vpop.f32.mrf.mxu0
  %v3353 = vadd.f32 0.0, %v3352
  %v3354 = vpop.f32.mrf.mxu0
  %v3355 = vadd.f32 0.0, %v3354
  %3356 = vdwg.mxu0
  %v3359 = vunpack.c.l.b16 %v3318
  %v3360 = vunpack.c.l.b16 %v3319
  %v3361 = vpack.c.b16 %v3360, %v3359
  %3362 = vrot.lane.b32.xlu0 %v873, 104
  %v3363 = vpop.permute.xlu0 %3362
  %v3366 = vsel %vm419, %v3361, 0
  %3368 = vmatpush.bf16.msra.mxu0 0
  %3369 = vmatpush.bf16.msra.mxu0 0
  %3370 = vmatpush.bf16.msra.mxu0 0
  %3371 = vmatpush.bf16.msra.mxu0 0
  %3372 = vmatpush.bf16.msra.mxu0 0
  %3373 = vmatpush.bf16.msra.mxu0 0
  %3374 = vmatpush.bf16.msra.mxu0 0
  %3375 = vmatpush.bf16.msra.mxu0 %v3363
  %3376 = vmatmul.bf16.gmra.mxu0 %v3366
  %v3377 = vpop.f32.mrf.mxu0
  %v3378 = vadd.f32 0.0, %v3377
  %v3379 = vpop.f32.mrf.mxu0
  %v3380 = vadd.f32 0.0, %v3379
  %3381 = vdwg.mxu0
  %v3384 = vunpack.c.l.b16 %v3320
  %v3385 = vunpack.c.l.b16 %v3321
  %v3386 = vpack.c.b16 %v3385, %v3384
  %3387 = vrot.lane.b32.xlu0 %v901, 104
  %v3388 = vpop.permute.xlu0 %3387
  %v3391 = vsel %vm419, %v3386, 0
  %3393 = vmatpush.bf16.msra.mxu0 0
  %3394 = vmatpush.bf16.msra.mxu0 0
  %3395 = vmatpush.bf16.msra.mxu0 0
  %3396 = vmatpush.bf16.msra.mxu0 0
  %3397 = vmatpush.bf16.msra.mxu0 0
  %3398 = vmatpush.bf16.msra.mxu0 0
  %3399 = vmatpush.bf16.msra.mxu0 0
  %3400 = vmatpush.bf16.msra.mxu0 %v3388
  %3401 = vmatmul.bf16.gmra.mxu0 %v3391
  %v3402 = vpop.f32.mrf.mxu0
  %v3403 = vadd.f32 0.0, %v3402
  %v3404 = vpop.f32.mrf.mxu0
  %v3405 = vadd.f32 0.0, %v3404
  %3406 = vdwg.mxu0
  %v3409 = vunpack.c.l.b16 %v3322
  %v3410 = vunpack.c.l.b16 %v3323
  %v3411 = vpack.c.b16 %v3410, %v3409
  %3412 = vrot.lane.b32.xlu0 %v929, 104
  %v3413 = vpop.permute.xlu0 %3412
  %v3416 = vsel %vm419, %v3411, 0
  %3418 = vmatpush.bf16.msra.mxu0 0
  %3419 = vmatpush.bf16.msra.mxu0 0
  %3420 = vmatpush.bf16.msra.mxu0 0
  %3421 = vmatpush.bf16.msra.mxu0 0
  %3422 = vmatpush.bf16.msra.mxu0 0
  %3423 = vmatpush.bf16.msra.mxu0 0
  %3424 = vmatpush.bf16.msra.mxu0 0
  %3425 = vmatpush.bf16.msra.mxu0 %v3413
  %3426 = vmatmul.bf16.gmra.mxu0 %v3416
  %v3427 = vpop.f32.mrf.mxu0
  %v3428 = vadd.f32 0.0, %v3427
  %v3429 = vpop.f32.mrf.mxu0
  %v3430 = vadd.f32 0.0, %v3429
  %3431 = vdwg.mxu0
  %v3434 = vunpack.c.l.b16 %v3324
  %v3435 = vunpack.c.l.b16 %v3325
  %v3436 = vpack.c.b16 %v3435, %v3434
  %3437 = vrot.lane.b32.xlu0 %v957, 104
  %v3438 = vpop.permute.xlu0 %3437
  %v3441 = vsel %vm419, %v3436, 0
  %3443 = vmatpush.bf16.msra.mxu0 0
  %3444 = vmatpush.bf16.msra.mxu0 0
  %3445 = vmatpush.bf16.msra.mxu0 0
  %3446 = vmatpush.bf16.msra.mxu0 0
  %3447 = vmatpush.bf16.msra.mxu0 0
  %3448 = vmatpush.bf16.msra.mxu0 0
  %3449 = vmatpush.bf16.msra.mxu0 0
  %3450 = vmatpush.bf16.msra.mxu0 %v3438
  %3451 = vmatmul.bf16.gmra.mxu0 %v3441
  %v3452 = vpop.f32.mrf.mxu0
  %v3453 = vadd.f32 0.0, %v3452
  %v3454 = vpop.f32.mrf.mxu0
  %v3455 = vadd.f32 0.0, %v3454
  %3456 = vdwg.mxu0
  %v3459 = vunpack.c.l.b16 %v3326
  %v3460 = vunpack.c.l.b16 %v3327
  %v3461 = vpack.c.b16 %v3460, %v3459
  %3462 = vrot.lane.b32.xlu0 %v985, 104
  %v3463 = vpop.permute.xlu0 %3462
  %v3466 = vsel %vm419, %v3461, 0
  %3468 = vmatpush.bf16.msra.mxu0 0
  %3469 = vmatpush.bf16.msra.mxu0 0
  %3470 = vmatpush.bf16.msra.mxu0 0
  %3471 = vmatpush.bf16.msra.mxu0 0
  %3472 = vmatpush.bf16.msra.mxu0 0
  %3473 = vmatpush.bf16.msra.mxu0 0
  %3474 = vmatpush.bf16.msra.mxu0 0
  %3475 = vmatpush.bf16.msra.mxu0 %v3463
  %3476 = vmatmul.bf16.gmra.mxu0 %v3466
  %v3477 = vpop.f32.mrf.mxu0
  %v3478 = vadd.f32 0.0, %v3477
  %v3479 = vpop.f32.mrf.mxu0
  %v3480 = vadd.f32 0.0, %v3479
  %3481 = vdwg.mxu0
  %v3484 = vunpack.c.l.b16 %v3328
  %v3485 = vunpack.c.l.b16 %v3329
  %v3486 = vpack.c.b16 %v3485, %v3484
  %3487 = vrot.lane.b32.xlu0 %v1013, 104
  %v3488 = vpop.permute.xlu0 %3487
  %v3491 = vsel %vm419, %v3486, 0
  %3493 = vmatpush.bf16.msra.mxu0 0
  %3494 = vmatpush.bf16.msra.mxu0 0
  %3495 = vmatpush.bf16.msra.mxu0 0
  %3496 = vmatpush.bf16.msra.mxu0 0
  %3497 = vmatpush.bf16.msra.mxu0 0
  %3498 = vmatpush.bf16.msra.mxu0 0
  %3499 = vmatpush.bf16.msra.mxu0 0
  %3500 = vmatpush.bf16.msra.mxu0 %v3488
  %3501 = vmatmul.bf16.gmra.mxu0 %v3491
  %v3502 = vpop.f32.mrf.mxu0
  %v3503 = vadd.f32 0.0, %v3502
  %v3504 = vpop.f32.mrf.mxu0
  %v3505 = vadd.f32 0.0, %v3504
  %3506 = vdwg.mxu0
  %v3509 = vunpack.c.l.b16 %v3330
  %v3510 = vunpack.c.l.b16 %v3331
  %v3511 = vpack.c.b16 %v3510, %v3509
  %3512 = vrot.lane.b32.xlu0 %v1041, 104
  %v3513 = vpop.permute.xlu0 %3512
  %v3516 = vsel %vm419, %v3511, 0
  %3518 = vmatpush.bf16.msra.mxu0 0
  %3519 = vmatpush.bf16.msra.mxu0 0
  %3520 = vmatpush.bf16.msra.mxu0 0
  %3521 = vmatpush.bf16.msra.mxu0 0
  %3522 = vmatpush.bf16.msra.mxu0 0
  %3523 = vmatpush.bf16.msra.mxu0 0
  %3524 = vmatpush.bf16.msra.mxu0 0
  %3525 = vmatpush.bf16.msra.mxu0 %v3513
  %3526 = vmatmul.bf16.gmra.mxu0 %v3516
  %v3527 = vpop.f32.mrf.mxu0
  %v3528 = vadd.f32 0.0, %v3527
  %v3529 = vpop.f32.mrf.mxu0
  %v3530 = vadd.f32 0.0, %v3529
  %3531 = vdwg.mxu0
  %3548 = vrot.lane.b32.xlu0 %v1705, 8
  %v3549 = vpop.permute.xlu0 %3548
  %3550 = vrot.lane.b32.xlu0 %v1707, 8
  %v3551 = vpop.permute.xlu0 %3550
  %3552 = vrot.lane.b32.xlu0 %v1730, 8
  %v3553 = vpop.permute.xlu0 %3552
  %3554 = vrot.lane.b32.xlu0 %v1732, 8
  %v3555 = vpop.permute.xlu0 %3554
  %3556 = vrot.lane.b32.xlu0 %v1755, 8
  %v3557 = vpop.permute.xlu0 %3556
  %3558 = vrot.lane.b32.xlu0 %v1757, 8
  %v3559 = vpop.permute.xlu0 %3558
  %3560 = vrot.lane.b32.xlu0 %v1780, 8
  %v3561 = vpop.permute.xlu0 %3560
  %3562 = vrot.lane.b32.xlu0 %v1782, 8
  %v3563 = vpop.permute.xlu0 %3562
  %3564 = vrot.lane.b32.xlu0 %v1805, 8
  %v3565 = vpop.permute.xlu0 %3564
  %3566 = vrot.lane.b32.xlu0 %v1807, 8
  %v3567 = vpop.permute.xlu0 %3566
  %3568 = vrot.lane.b32.xlu0 %v1830, 8
  %v3569 = vpop.permute.xlu0 %3568
  %3570 = vrot.lane.b32.xlu0 %v1832, 8
  %v3571 = vpop.permute.xlu0 %3570
  %3572 = vrot.lane.b32.xlu0 %v1855, 8
  %v3573 = vpop.permute.xlu0 %3572
  %3574 = vrot.lane.b32.xlu0 %v1857, 8
  %v3575 = vpop.permute.xlu0 %3574
  %3576 = vrot.lane.b32.xlu0 %v1880, 8
  %v3577 = vpop.permute.xlu0 %3576
  %3578 = vrot.lane.b32.xlu0 %v1882, 8
  %v3579 = vpop.permute.xlu0 %3578
  %3612 = vrot.lane.b32.xlu0 %v2529, 16
  %v3613 = vpop.permute.xlu0 %3612
  %3614 = vrot.lane.b32.xlu0 %v2531, 16
  %v3615 = vpop.permute.xlu0 %3614
  %3616 = vrot.lane.b32.xlu0 %v2554, 16
  %v3617 = vpop.permute.xlu0 %3616
  %3618 = vrot.lane.b32.xlu0 %v2556, 16
  %v3619 = vpop.permute.xlu0 %3618
  %3620 = vrot.lane.b32.xlu0 %v2579, 16
  %v3621 = vpop.permute.xlu0 %3620
  %3622 = vrot.lane.b32.xlu0 %v2581, 16
  %v3623 = vpop.permute.xlu0 %3622
  %3624 = vrot.lane.b32.xlu0 %v2604, 16
  %v3625 = vpop.permute.xlu0 %3624
  %3626 = vrot.lane.b32.xlu0 %v2606, 16
  %v3627 = vpop.permute.xlu0 %3626
  %3628 = vrot.lane.b32.xlu0 %v2629, 16
  %v3629 = vpop.permute.xlu0 %3628
  %3630 = vrot.lane.b32.xlu0 %v2631, 16
  %v3631 = vpop.permute.xlu0 %3630
  %3632 = vrot.lane.b32.xlu0 %v2654, 16
  %v3633 = vpop.permute.xlu0 %3632
  %3634 = vrot.lane.b32.xlu0 %v2656, 16
  %v3635 = vpop.permute.xlu0 %3634
  %3636 = vrot.lane.b32.xlu0 %v2679, 16
  %v3637 = vpop.permute.xlu0 %3636
  %3638 = vrot.lane.b32.xlu0 %v2681, 16
  %v3639 = vpop.permute.xlu0 %3638
  %3640 = vrot.lane.b32.xlu0 %v2704, 16
  %v3641 = vpop.permute.xlu0 %3640
  %3642 = vrot.lane.b32.xlu0 %v2706, 16
  %v3643 = vpop.permute.xlu0 %3642
  %3676 = vrot.lane.b32.xlu0 %v3353, 24
  %v3677 = vpop.permute.xlu0 %3676
  %3678 = vrot.lane.b32.xlu0 %v3355, 24
  %v3679 = vpop.permute.xlu0 %3678
  %3680 = vrot.lane.b32.xlu0 %v3378, 24
  %v3681 = vpop.permute.xlu0 %3680
  %3682 = vrot.lane.b32.xlu0 %v3380, 24
  %v3683 = vpop.permute.xlu0 %3682
  %3684 = vrot.lane.b32.xlu0 %v3403, 24
  %v3685 = vpop.permute.xlu0 %3684
  %3686 = vrot.lane.b32.xlu0 %v3405, 24
  %v3687 = vpop.permute.xlu0 %3686
  %3688 = vrot.lane.b32.xlu0 %v3428, 24
  %v3689 = vpop.permute.xlu0 %3688
  %3690 = vrot.lane.b32.xlu0 %v3430, 24
  %v3691 = vpop.permute.xlu0 %3690
  %3692 = vrot.lane.b32.xlu0 %v3453, 24
  %v3693 = vpop.permute.xlu0 %3692
  %3694 = vrot.lane.b32.xlu0 %v3455, 24
  %v3695 = vpop.permute.xlu0 %3694
  %3696 = vrot.lane.b32.xlu0 %v3478, 24
  %v3697 = vpop.permute.xlu0 %3696
  %3698 = vrot.lane.b32.xlu0 %v3480, 24
  %v3699 = vpop.permute.xlu0 %3698
  %3700 = vrot.lane.b32.xlu0 %v3503, 24
  %v3701 = vpop.permute.xlu0 %3700
  %3702 = vrot.lane.b32.xlu0 %v3505, 24
  %v3703 = vpop.permute.xlu0 %3702
  %3704 = vrot.lane.b32.xlu0 %v3528, 24
  %v3705 = vpop.permute.xlu0 %3704
  %3706 = vrot.lane.b32.xlu0 %v3530, 24
  %v3707 = vpop.permute.xlu0 %3706
  %v3724 = vsel %vm132, %v860, %v3549
  %v3725 = vsel %vm132, %v862, %v3551
  %v3726 = vsel %vm132, %v888, %v3553
  %v3727 = vsel %vm132, %v890, %v3555
  %v3728 = vsel %vm132, %v916, %v3557
  %v3729 = vsel %vm132, %v918, %v3559
  %v3730 = vsel %vm132, %v944, %v3561
  %v3731 = vsel %vm132, %v946, %v3563
  %v3732 = vsel %vm132, %v972, %v3565
  %v3733 = vsel %vm132, %v974, %v3567
  %v3734 = vsel %vm132, %v1000, %v3569
  %v3735 = vsel %vm132, %v1002, %v3571
  %v3736 = vsel %vm132, %v1028, %v3573
  %v3737 = vsel %vm132, %v1030, %v3575
  %v3738 = vsel %vm132, %v1056, %v3577
  %v3739 = vsel %vm132, %v1058, %v3579
  %v3740 = vsel %vm419, %v3724, %v3613
  %v3741 = vsel %vm419, %v3725, %v3615
  %v3742 = vsel %vm419, %v3726, %v3617
  %v3743 = vsel %vm419, %v3727, %v3619
  %v3744 = vsel %vm419, %v3728, %v3621
  %v3745 = vsel %vm419, %v3729, %v3623
  %v3746 = vsel %vm419, %v3730, %v3625
  %v3747 = vsel %vm419, %v3731, %v3627
  %v3748 = vsel %vm419, %v3732, %v3629
  %v3749 = vsel %vm419, %v3733, %v3631
  %v3750 = vsel %vm419, %v3734, %v3633
  %v3751 = vsel %vm419, %v3735, %v3635
  %v3752 = vsel %vm419, %v3736, %v3637
  %v3753 = vsel %vm419, %v3737, %v3639
  %v3754 = vsel %vm419, %v3738, %v3641
  %v3755 = vsel %vm419, %v3739, %v3643
  %vm3756 = vcmask 195584
  %v3757 = vsel %vm3756, %v3740, %v3677
  %v3758 = vsel %vm3756, %v3741, %v3679
  %v3759 = vsel %vm3756, %v3742, %v3681
  %v3760 = vsel %vm3756, %v3743, %v3683
  %v3761 = vsel %vm3756, %v3744, %v3685
  %v3762 = vsel %vm3756, %v3745, %v3687
  %v3763 = vsel %vm3756, %v3746, %v3689
  %v3764 = vsel %vm3756, %v3747, %v3691
  %v3765 = vsel %vm3756, %v3748, %v3693
  %v3766 = vsel %vm3756, %v3749, %v3695
  %v3767 = vsel %vm3756, %v3750, %v3697
  %v3768 = vsel %vm3756, %v3751, %v3699
  %v3769 = vsel %vm3756, %v3752, %v3701
  %v3770 = vsel %vm3756, %v3753, %v3703
  %v3771 = vsel %vm3756, %v3754, %v3705
  %v3772 = vsel %vm3756, %v3755, %v3707
  %vm3773 = vcmask 261120
  %3774 = vst.msk [vmem:[%s4] sm:$0xff] %vm3773, %v3757
  %3775 = vst.msk [vmem:[%s4 + $0x8] sm:$0xff] %vm3773, %v3758
  %3776 = vst.msk [vmem:[%s4 + $0x10] sm:$0xff] %vm3773, %v3759
  %3777 = vst.msk [vmem:[%s4 + $0x18] sm:$0xff] %vm3773, %v3760
  %3778 = vst.msk [vmem:[%s4 + $0x20] sm:$0xff] %vm3773, %v3761
  %3779 = vst.msk [vmem:[%s4 + $0x28] sm:$0xff] %vm3773, %v3762
  %3780 = vst.msk [vmem:[%s4 + $0x30] sm:$0xff] %vm3773, %v3763
  %3781 = vst.msk [vmem:[%s4 + $0x38] sm:$0xff] %vm3773, %v3764
  %3782 = vst.msk [vmem:[%s4 + $0x40] sm:$0xff] %vm3773, %v3765
  %3783 = vst.msk [vmem:[%s4 + $0x48] sm:$0xff] %vm3773, %v3766
  %3784 = vst.msk [vmem:[%s4 + $0x50] sm:$0xff] %vm3773, %v3767
  %3785 = vst.msk [vmem:[%s4 + $0x58] sm:$0xff] %vm3773, %v3768
  %3786 = vst.msk [vmem:[%s4 + $0x60] sm:$0xff] %vm3773, %v3769
  %3787 = vst.msk [vmem:[%s4 + $0x68] sm:$0xff] %vm3773, %v3770
  %3788 = vst.msk [vmem:[%s4 + $0x70] sm:$0xff] %vm3773, %v3771
  %3789 = vst.msk [vmem:[%s4 + $0x78] sm:$0xff] %vm3773, %v3772
  // Predicated region
  $region18: #{msa_embedder_forward.15} parent=0 // pred_check
    _
  $region19: #{msa_embedder_forward.15} parent=0 // pred_check_branch
    %3791 = sbr.rel (0) target = $region21
  $region20: #{msa_embedder_forward.15} parent=0 // pred_region
    _
  $region21: #{msa_embedder_forward.15} parent=0 // pred_fallthru
    _
  // Predicated region
  $region22: #{msa_embedder_forward.15} parent=0 // pred_check
    _
  $region23: #{msa_embedder_forward.15} parent=0 // pred_check_branch
    %3793 = sbr.rel (0) target = $region25
  $region24: #{msa_embedder_forward.15} parent=0 // pred_region
    _
  $region25: #{msa_embedder_forward.15} parent=0 // pred_fallthru
    _

// kernel: msa_embedder_forward.23
$region0: #{msa_embedder_forward.23}
  #allocation0 [shape = 'u32[]', space=smem, size = 0x4, offset = 0x4, fixed_abs, tag = 'smem constant byte address 0x4 - core index']
  #allocation1 [shape = 'u32[72,128]{1,0:T(1,128)}', space=vmem, size = 0x9000, scoped, tag = 'internal scratch']
  %s0 = inlined_call_operand.vmem [shape: f32[32,4,32], index: 0, kind: input, shape index: {}]
  %s1 = inlined_call_operand.vmem [shape: f32[32,4,32], index: 1, kind: input, shape index: {}]
  %s2 = inlined_call_operand.vmem [shape: f32[32,4,32], index: 2, kind: input, shape index: {}]
  %s3 = inlined_call_operand.vmem [shape: f32[32,1,4], index: 3, kind: input, shape index: {}]
  %s4 = inlined_call_operand.vmem [shape: f32[32,4,32], index: 4, kind: output, shape index: {}]
  %s5 = sld [smem:[#allocation0]]
  $region49: #{msa_embedder_forward.23} parent=0
    _
  %s7 = ssub.s32 1, %s5
  %s8 = scalar_select 0, %s7, %s5
  loop: start=0, step=1, limit=4
  $region2: #{msa_embedder_forward.23} parent=0 // loop_pre_header
    _
  $region3: #{msa_embedder_forward.23} parent=0 // loop_header
    %s10 = sphi 0, %s14
    %p11 = scmp.ge.s32.totalorder %s10, 4
    %s20 = sphi 0, %s22
    %s23 = sphi 0, %s20
    %s24 = sphi 0, %s23
    %s40 = sphi 0, %s24
    %s46 = sphi 0, %s48
    %s49 = sphi 0, %s46
    %s50 = sphi 0, %s49
    %s66 = sphi 0, %s50
    %s72 = sphi 0, %s74
    %s75 = sphi 0, %s72
    %s76 = sphi 0, %s75
    %s92 = sphi 0, %s76
    %s98 = sphi 0, %s100
    %s101 = sphi 0, %s98
    %s102 = sphi 0, %s101
    %s118 = sphi 0, %s102
    %s124 = sphi 0, %s126
    %s127 = sphi 0, %s124
    %s128 = sphi 0, %s127
    %s144 = sphi 0, %s128
  $region4: #{msa_embedder_forward.23} parent=0 // loop_header_branch
    %13 = sbr.rel (%p11) target = $region8
  $region5: #{msa_embedder_forward.23} parent=0 // loop_body
    %s15 = ssub.s32 %s10, 1
    %s16 = ssub.s32 %s10, 2
    %s17 = sadd.s32 %s10, 1
    %s18 = ssub.s32 %s10, %s17
    %p19 = scmp.eq.s32.totalorder %s18, 0
    %s21 = sadd.s32 %s20, 1
    %s22 = scalar_select %p19, %s20, %s21
    %p25 = pneg %p19
    %p26 = scmp.eq.s32.totalorder %s10, 1
    %p27 = por %p25, %p26
    %p28 = scmp.ne.s32.totalorder %s20, %s23
    %p29 = scmp.eq.s32.totalorder %s10, 0
    %p30 = por %p28, %p29
    %p31 = scmp.ne.s32.totalorder %s20, %s23
    %p32 = scmp.eq.s32.totalorder %s15, 1
    %p33 = por %p31, %p32
    %p34 = scmp.ne.s32.totalorder %s23, %s24
    %p35 = scmp.eq.s32.totalorder %s15, 0
    %p36 = por %p34, %p35
    %p37 = scmp.ne.s32.totalorder %s23, %s24
    %p38 = scmp.eq.s32.totalorder %s16, 1
    %p39 = por %p37, %p38
    %p41 = scmp.ne.s32.totalorder %s24, %s40
    %p42 = scmp.eq.s32.totalorder %s16, 0
    %p43 = por %p41, %p42
    %s44 = ssub.s32 %s10, %s17
    %p45 = scmp.eq.s32.totalorder %s44, 0
    %s47 = sadd.s32 %s46, 1
    %s48 = scalar_select %p45, %s46, %s47
    %p51 = pneg %p45
    %p52 = scmp.eq.s32.totalorder %s10, 1
    %p53 = por %p51, %p52
    %p54 = scmp.ne.s32.totalorder %s46, %s49
    %p55 = scmp.eq.s32.totalorder %s10, 0
    %p56 = por %p54, %p55
    %p57 = scmp.ne.s32.totalorder %s46, %s49
    %p58 = scmp.eq.s32.totalorder %s15, 1
    %p59 = por %p57, %p58
    %p60 = scmp.ne.s32.totalorder %s49, %s50
    %p61 = scmp.eq.s32.totalorder %s15, 0
    %p62 = por %p60, %p61
    %p63 = scmp.ne.s32.totalorder %s49, %s50
    %p64 = scmp.eq.s32.totalorder %s16, 1
    %p65 = por %p63, %p64
    %p67 = scmp.ne.s32.totalorder %s50, %s66
    %p68 = scmp.eq.s32.totalorder %s16, 0
    %p69 = por %p67, %p68
    %s70 = ssub.s32 %s10, %s17
    %p71 = scmp.eq.s32.totalorder %s70, 0
    %s73 = sadd.s32 %s72, 1
    %s74 = scalar_select %p71, %s72, %s73
    %p77 = pneg %p71
    %p78 = scmp.eq.s32.totalorder %s10, 1
    %p79 = por %p77, %p78
    %p80 = scmp.ne.s32.totalorder %s72, %s75
    %p81 = scmp.eq.s32.totalorder %s10, 0
    %p82 = por %p80, %p81
    %p83 = scmp.ne.s32.totalorder %s72, %s75
    %p84 = scmp.eq.s32.totalorder %s15, 1
    %p85 = por %p83, %p84
    %p86 = scmp.ne.s32.totalorder %s75, %s76
    %p87 = scmp.eq.s32.totalorder %s15, 0
    %p88 = por %p86, %p87
    %p89 = scmp.ne.s32.totalorder %s75, %s76
    %p90 = scmp.eq.s32.totalorder %s16, 1
    %p91 = por %p89, %p90
    %p93 = scmp.ne.s32.totalorder %s76, %s92
    %p94 = scmp.eq.s32.totalorder %s16, 0
    %p95 = por %p93, %p94
    %s96 = ssub.s32 %s10, %s17
    %p97 = scmp.eq.s32.totalorder %s96, 0
    %s99 = sadd.s32 %s98, 1
    %s100 = scalar_select %p97, %s98, %s99
    %p103 = pneg %p97
    %p104 = scmp.eq.s32.totalorder %s10, 1
    %p105 = por %p103, %p104
    %p106 = scmp.ne.s32.totalorder %s98, %s101
    %p107 = scmp.eq.s32.totalorder %s10, 0
    %p108 = por %p106, %p107
    %p109 = scmp.ne.s32.totalorder %s98, %s101
    %p110 = scmp.eq.s32.totalorder %s15, 1
    %p111 = por %p109, %p110
    %p112 = scmp.ne.s32.totalorder %s101, %s102
    %p113 = scmp.eq.s32.totalorder %s15, 0
    %p114 = por %p112, %p113
    %p115 = scmp.ne.s32.totalorder %s101, %s102
    %p116 = scmp.eq.s32.totalorder %s16, 1
    %p117 = por %p115, %p116
    %p119 = scmp.ne.s32.totalorder %s102, %s118
    %p120 = scmp.eq.s32.totalorder %s16, 0
    %p121 = por %p119, %p120
    %s122 = ssub.s32 %s10, %s17
    %p123 = scmp.eq.s32.totalorder %s122, 0
    %s125 = sadd.s32 %s124, 1
    %s126 = scalar_select %p123, %s124, %s125
    %p129 = pneg %p123
    %p130 = scmp.eq.s32.totalorder %s10, 1
    %p131 = por %p129, %p130
    %p132 = scmp.ne.s32.totalorder %s124, %s127
    %p133 = scmp.eq.s32.totalorder %s10, 0
    %p134 = por %p132, %p133
    %p135 = scmp.ne.s32.totalorder %s124, %s127
    %p136 = scmp.eq.s32.totalorder %s15, 1
    %p137 = por %p135, %p136
    %p138 = scmp.ne.s32.totalorder %s127, %s128
    %p139 = scmp.eq.s32.totalorder %s15, 0
    %p140 = por %p138, %p139
    %p141 = scmp.ne.s32.totalorder %s127, %s128
    %p142 = scmp.eq.s32.totalorder %s16, 1
    %p143 = por %p141, %p142
    %p145 = scmp.ne.s32.totalorder %s128, %s144
    %p146 = scmp.eq.s32.totalorder %s16, 0
    %p147 = por %p145, %p146
    %p148 = scmp.le.s32.totalorder 1, %s10
    %p149 = scmp.lt.s32.totalorder %s10, 3
    %p150 = pnand %p148, %p149
    %p151 = pneg %p150
    // Predicated region
    $region9: #{msa_embedder_forward.23} parent=5 // pred_check
      _
    $region10: #{msa_embedder_forward.23} parent=5 // pred_check_branch
      %153 = sbr.rel (%p150) target = $region12
    $region11: #{msa_embedder_forward.23} parent=5 // pred_region
      %s154 = ssub.s32 %s10, 1
    $region12: #{msa_embedder_forward.23} parent=5 // pred_fallthru
      _
    %p155 = scmp.lt.s32.totalorder %s10, 2
    // Predicated region
    $region13: #{msa_embedder_forward.23} parent=5 // pred_check
      %p156 = pneg %p155
    $region14: #{msa_embedder_forward.23} parent=5 // pred_check_branch
      %158 = sbr.rel (%p156) target = $region16
    $region15: #{msa_embedder_forward.23} parent=5 // pred_region
      // Predicated region
      $region17: #{msa_embedder_forward.23} parent=15 // pred_check
        %p159 = pneg %p30
      $region18: #{msa_embedder_forward.23} parent=15 // pred_check_branch
        %161 = sbr.rel (%p159) target = $region20
      $region19: #{msa_embedder_forward.23} parent=15 // pred_region
        %s162 = smul.u32 16, %s10
        %p163 = scmp.lt.s32.totalorder %s162, 31
        %s164 = scalar_select %p163, %s162, 31
        %s165 = smul.addr %s164, 4
        %s166 = scalar_lea.vmem %s0, %s165
        %s167 = smul.u32 16, %s10
      $region20: #{msa_embedder_forward.23} parent=15 // pred_fallthru
        _
      // Predicated region
      $region21: #{msa_embedder_forward.23} parent=15 // pred_check
        %p168 = pneg %p56
      $region22: #{msa_embedder_forward.23} parent=15 // pred_check_branch
        %170 = sbr.rel (%p168) target = $region24
      $region23: #{msa_embedder_forward.23} parent=15 // pred_region
        %s171 = smul.u32 16, %s10
        %p172 = scmp.lt.s32.totalorder %s171, 31
        %s173 = scalar_select %p172, %s171, 31
        %s174 = smul.addr %s173, 4
        %s175 = scalar_lea.vmem %s1, %s174
        %s176 = smul.u32 16, %s10
      $region24: #{msa_embedder_forward.23} parent=15 // pred_fallthru
        _
      // Predicated region
      $region25: #{msa_embedder_forward.23} parent=15 // pred_check
        %p177 = pneg %p82
      $region26: #{msa_embedder_forward.23} parent=15 // pred_check_branch
        %179 = sbr.rel (%p177) target = $region28
      $region27: #{msa_embedder_forward.23} parent=15 // pred_region
        %s180 = smul.u32 16, %s10
        %p181 = scmp.lt.s32.totalorder %s180, 31
        %s182 = scalar_select %p181, %s180, 31
        %s183 = smul.addr %s182, 4
        %s184 = scalar_lea.vmem %s2, %s183
        %s185 = smul.u32 16, %s10
      $region28: #{msa_embedder_forward.23} parent=15 // pred_fallthru
        _
      // Predicated region
      $region29: #{msa_embedder_forward.23} parent=15 // pred_check
        %p186 = pneg %p108
      $region30: #{msa_embedder_forward.23} parent=15 // pred_check_branch
        %188 = sbr.rel (%p186) target = $region32
      $region31: #{msa_embedder_forward.23} parent=15 // pred_region
        %s189 = smul.u32 16, %s10
        %p190 = scmp.lt.s32.totalorder %s189, 31
        %s191 = scalar_select %p190, %s189, 31
        %s192 = scalar_lea.vmem %s3, %s191
        %s193 = smul.u32 16, %s10
      $region32: #{msa_embedder_forward.23} parent=15 // pred_fallthru
        _
    $region16: #{msa_embedder_forward.23} parent=5 // pred_fallthru
      _
    %p194 = scmp.le.s32.totalorder 1, %s10
    %p195 = scmp.lt.s32.totalorder %s10, 3
    %p196 = pnand %p194, %p195
    %p197 = pneg %p196
    // Predicated region
    $region33: #{msa_embedder_forward.23} parent=5 // pred_check
      _
    $region34: #{msa_embedder_forward.23} parent=5 // pred_check_branch
      %199 = sbr.rel (%p196) target = $region36
    $region35: #{msa_embedder_forward.23} parent=5 // pred_region
      %s200 = ssub.s32 %s10, 1
      %s201 = smul.u32 16, %s15
      %p202 = scmp.lt.s32.totalorder %s201, 31
      %s203 = scalar_select %p202, %s201, 31
      %s204 = smul.addr %s203, 4
      %s205 = scalar_lea.vmem %s0, %s204
      %p206 = pneg %p36
      %p207 = pneg %p33
      %s208 = smul.u32 16, %s15
      %p209 = scmp.lt.s32.totalorder %s208, 31
      %s210 = scalar_select %p209, %s208, 31
      %s211 = smul.addr %s210, 4
      %s212 = scalar_lea.vmem %s1, %s211
      %p213 = pneg %p62
      %p214 = pneg %p59
      %s215 = smul.u32 16, %s15
      %p216 = scmp.lt.s32.totalorder %s215, 31
      %s217 = scalar_select %p216, %s215, 31
      %s218 = smul.addr %s217, 4
      %s219 = scalar_lea.vmem %s2, %s218
      %p220 = pneg %p88
      %p221 = pneg %p85
      %s222 = smul.u32 16, %s15
      %p223 = scmp.lt.s32.totalorder %s222, 31
      %s224 = scalar_select %p223, %s222, 31
      %s225 = scalar_lea.vmem %s3, %s224
      %p226 = pneg %p114
      %p227 = pneg %p111
      %p228 = pneg %p140
      %p229 = pneg %p137
      %s230 = smul.u32 16, %s15
      %p231 = scmp.lt.s32.totalorder %s230, 31
      %s232 = scalar_select %p231, %s230, 31
      %s233 = smul.addr %s232, 4
      %s234 = scalar_lea.vmem %s4, %s233
      %s235 = smul.u32 16, %s15
      %p236 = scmp.lt.s32.totalorder %s235, 31
      %s237 = scalar_select %p236, %s235, 31
      %s238 = smul.addr %s237, 4
      %s239 = scalar_lea.vmem %s0, %s238
      %s240 = smul.u32 16, %s15
      %s241 = smul.u32 16, %s15
      %p242 = scmp.lt.s32.totalorder %s241, 31
      %s243 = scalar_select %p242, %s241, 31
      %s244 = smul.addr %s243, 4
      %s245 = scalar_lea.vmem %s1, %s244
      %s246 = smul.u32 16, %s15
      %s247 = smul.u32 16, %s15
      %p248 = scmp.lt.s32.totalorder %s247, 31
      %s249 = scalar_select %p248, %s247, 31
      %s250 = smul.addr %s249, 4
      %s251 = scalar_lea.vmem %s2, %s250
      %s252 = smul.u32 16, %s15
      %s253 = smul.u32 16, %s15
      %p254 = scmp.lt.s32.totalorder %s253, 31
      %s255 = scalar_select %p254, %s253, 31
      %s256 = scalar_lea.vmem %s3, %s255
      %s257 = smul.u32 16, %s15
      %s258 = smul.u32 16, %s15
      %p259 = scmp.lt.s32.totalorder %s258, 31
      %s260 = scalar_select %p259, %s258, 31
      %s261 = smul.addr %s260, 4
      %s262 = scalar_lea.vmem %s4, %s261
      %s263 = smul.u32 16, %s15
      %v265 = vld [vmem:[%s239] sm:$0xf]
      %v266 = vld [vmem:[%s239 + $0x4] sm:$0xf]
      %v267 = vld [vmem:[%s239 + $0x8] sm:$0xf]
      %v268 = vld [vmem:[%s239 + $0xc] sm:$0xf]
      %v269 = vld [vmem:[%s239 + $0x10] sm:$0xf]
      %v270 = vld [vmem:[%s239 + $0x14] sm:$0xf]
      %v271 = vld [vmem:[%s239 + $0x18] sm:$0xf]
      %v272 = vld [vmem:[%s239 + $0x1c] sm:$0xf]
      %v273 = vld [vmem:[%s239 + $0x20] sm:$0xf]
      %v274 = vld [vmem:[%s239 + $0x24] sm:$0xf]
      %v275 = vld [vmem:[%s239 + $0x28] sm:$0xf]
      %v276 = vld [vmem:[%s239 + $0x2c] sm:$0xf]
      %v277 = vld [vmem:[%s239 + $0x30] sm:$0xf]
      %v278 = vld [vmem:[%s239 + $0x34] sm:$0xf]
      %v279 = vld [vmem:[%s239 + $0x38] sm:$0xf]
      %v280 = vld [vmem:[%s239 + $0x3c] sm:$0xf]
      %v281 = vld [vmem:[%s245] sm:$0xf]
      %v282 = vld [vmem:[%s245 + $0x4] sm:$0xf]
      %v283 = vld [vmem:[%s245 + $0x8] sm:$0xf]
      %v284 = vld [vmem:[%s245 + $0xc] sm:$0xf]
      %v285 = vld [vmem:[%s245 + $0x10] sm:$0xf]
      %v286 = vld [vmem:[%s245 + $0x14] sm:$0xf]
      %v287 = vld [vmem:[%s245 + $0x18] sm:$0xf]
      %v288 = vld [vmem:[%s245 + $0x1c] sm:$0xf]
      %v289 = vld [vmem:[%s245 + $0x20] sm:$0xf]
      %v290 = vld [vmem:[%s245 + $0x24] sm:$0xf]
      %v291 = vld [vmem:[%s245 + $0x28] sm:$0xf]
      %v292 = vld [vmem:[%s245 + $0x2c] sm:$0xf]
      %v293 = vld [vmem:[%s245 + $0x30] sm:$0xf]
      %v294 = vld [vmem:[%s245 + $0x34] sm:$0xf]
      %v295 = vld [vmem:[%s245 + $0x38] sm:$0xf]
      %v296 = vld [vmem:[%s245 + $0x3c] sm:$0xf]
      %v297 = vld [vmem:[%s251] sm:$0xf]
      %v298 = vld [vmem:[%s251 + $0x4] sm:$0xf]
      %v299 = vld [vmem:[%s251 + $0x8] sm:$0xf]
      %v300 = vld [vmem:[%s251 + $0xc] sm:$0xf]
      %v301 = vld [vmem:[%s251 + $0x10] sm:$0xf]
      %v302 = vld [vmem:[%s251 + $0x14] sm:$0xf]
      %v303 = vld [vmem:[%s251 + $0x18] sm:$0xf]
      %v304 = vld [vmem:[%s251 + $0x1c] sm:$0xf]
      %v305 = vld [vmem:[%s251 + $0x20] sm:$0xf]
      %v306 = vld [vmem:[%s251 + $0x24] sm:$0xf]
      %v307 = vld [vmem:[%s251 + $0x28] sm:$0xf]
      %v308 = vld [vmem:[%s251 + $0x2c] sm:$0xf]
      %v309 = vld [vmem:[%s251 + $0x30] sm:$0xf]
      %v310 = vld [vmem:[%s251 + $0x34] sm:$0xf]
      %v311 = vld [vmem:[%s251 + $0x38] sm:$0xf]
      %v312 = vld [vmem:[%s251 + $0x3c] sm:$0xf]
      %v313 = vld [vmem:[%s256] sm:$0x1]
      %v314 = vld [vmem:[%s256 + $0x1] sm:$0x1]
      %v315 = vld [vmem:[%s256 + $0x2] sm:$0x1]
      %v316 = vld [vmem:[%s256 + $0x3] sm:$0x1]
      %v317 = vld [vmem:[%s256 + $0x4] sm:$0x1]
      %v318 = vld [vmem:[%s256 + $0x5] sm:$0x1]
      %v319 = vld [vmem:[%s256 + $0x6] sm:$0x1]
      %v320 = vld [vmem:[%s256 + $0x7] sm:$0x1]
      %v321 = vld [vmem:[%s256 + $0x8] sm:$0x1]
      %v322 = vld [vmem:[%s256 + $0x9] sm:$0x1]
      %v323 = vld [vmem:[%s256 + $0xa] sm:$0x1]
      %v324 = vld [vmem:[%s256 + $0xb] sm:$0x1]
      %v325 = vld [vmem:[%s256 + $0xc] sm:$0x1]
      %v326 = vld [vmem:[%s256 + $0xd] sm:$0x1]
      %v327 = vld [vmem:[%s256 + $0xe] sm:$0x1]
      %v328 = vld [vmem:[%s256 + $0xf] sm:$0x1]
      %vm329 = vcmp.gt.f32.partialorder %v313, 0.5
      %vm330 = vcmp.gt.f32.partialorder %v314, 0.5
      %vm331 = vcmp.gt.f32.partialorder %v315, 0.5
      %vm332 = vcmp.gt.f32.partialorder %v316, 0.5
      %vm333 = vcmp.gt.f32.partialorder %v317, 0.5
      %vm334 = vcmp.gt.f32.partialorder %v318, 0.5
      %vm335 = vcmp.gt.f32.partialorder %v319, 0.5
      %vm336 = vcmp.gt.f32.partialorder %v320, 0.5
      %vm337 = vcmp.gt.f32.partialorder %v321, 0.5
      %vm338 = vcmp.gt.f32.partialorder %v322, 0.5
      %vm339 = vcmp.gt.f32.partialorder %v323, 0.5
      %vm340 = vcmp.gt.f32.partialorder %v324, 0.5
      %vm341 = vcmp.gt.f32.partialorder %v325, 0.5
      %vm342 = vcmp.gt.f32.partialorder %v326, 0.5
      %vm343 = vcmp.gt.f32.partialorder %v327, 0.5
      %vm344 = vcmp.gt.f32.partialorder %v328, 0.5
      %v345 = vsel %vm329, 0.0, -1e+09
      %v346 = vsel %vm330, 0.0, -1e+09
      %v347 = vsel %vm331, 0.0, -1e+09
      %v348 = vsel %vm332, 0.0, -1e+09
      %v349 = vsel %vm333, 0.0, -1e+09
      %v350 = vsel %vm334, 0.0, -1e+09
      %v351 = vsel %vm335, 0.0, -1e+09
      %v352 = vsel %vm336, 0.0, -1e+09
      %v353 = vsel %vm337, 0.0, -1e+09
      %v354 = vsel %vm338, 0.0, -1e+09
      %v355 = vsel %vm339, 0.0, -1e+09
      %v356 = vsel %vm340, 0.0, -1e+09
      %v357 = vsel %vm341, 0.0, -1e+09
      %v358 = vsel %vm342, 0.0, -1e+09
      %v359 = vsel %vm343, 0.0, -1e+09
      %v360 = vsel %vm344, 0.0, -1e+09
      %v361 = vpack.c.bf16 %v265, %v265
      %v362 = vpack.c.bf16 %v266, %v266
      %v363 = vpack.c.bf16 %v267, %v267
      %v364 = vpack.c.bf16 %v268, %v268
      %v365 = vpack.c.bf16 %v269, %v269
      %v366 = vpack.c.bf16 %v270, %v270
      %v367 = vpack.c.bf16 %v271, %v271
      %v368 = vpack.c.bf16 %v272, %v272
      %v369 = vpack.c.bf16 %v273, %v273
      %v370 = vpack.c.bf16 %v274, %v274
      %v371 = vpack.c.bf16 %v275, %v275
      %v372 = vpack.c.bf16 %v276, %v276
      %v373 = vpack.c.bf16 %v277, %v277
      %v374 = vpack.c.bf16 %v278, %v278
      %v375 = vpack.c.bf16 %v279, %v279
      %v376 = vpack.c.bf16 %v280, %v280
      %v377 = vpack.c.bf16 %v281, %v281
      %v378 = vpack.c.bf16 %v282, %v282
      %v379 = vpack.c.bf16 %v283, %v283
      %v380 = vpack.c.bf16 %v284, %v284
      %v381 = vpack.c.bf16 %v285, %v285
      %v382 = vpack.c.bf16 %v286, %v286
      %v383 = vpack.c.bf16 %v287, %v287
      %v384 = vpack.c.bf16 %v288, %v288
      %v385 = vpack.c.bf16 %v289, %v289
      %v386 = vpack.c.bf16 %v290, %v290
      %v387 = vpack.c.bf16 %v291, %v291
      %v388 = vpack.c.bf16 %v292, %v292
      %v389 = vpack.c.bf16 %v293, %v293
      %v390 = vpack.c.bf16 %v294, %v294
      %v391 = vpack.c.bf16 %v295, %v295
      %v392 = vpack.c.bf16 %v296, %v296
      %vm393 = vcmask 64512
      %v395 = vsel %vm393, %v361, 0
      %v398 = vsel %vm393, %v377, 0
      %400 = vmatpush.bf16.xpose.msra.mxu0 0
      %401 = vmatpush.bf16.xpose.msra.mxu0 0
      %402 = vmatpush.bf16.xpose.msra.mxu0 0
      %403 = vmatpush.bf16.xpose.msra.mxu0 0
      %404 = vmatpush.bf16.xpose.msra.mxu0 0
      %405 = vmatpush.bf16.xpose.msra.mxu0 0
      %406 = vmatpush.bf16.xpose.msra.mxu0 0
      %407 = vmatpush.bf16.xpose.msra.mxu0 %v398
      %408 = vmatmul.bf16.gmra.mxu0 %v395
      %v409 = vpop.f32.mrf.mxu0
      %v410 = vadd.f32 0.0, %v409
      %v411 = vpop.f32.mrf.mxu0
      %412 = vdwg.mxu0
      %v414 = vsel %vm393, %v362, 0
      %v417 = vsel %vm393, %v378, 0
      %419 = vmatpush.bf16.xpose.msra.mxu0 0
      %420 = vmatpush.bf16.xpose.msra.mxu0 0
      %421 = vmatpush.bf16.xpose.msra.mxu0 0
      %422 = vmatpush.bf16.xpose.msra.mxu0 0
      %423 = vmatpush.bf16.xpose.msra.mxu0 0
      %424 = vmatpush.bf16.xpose.msra.mxu0 0
      %425 = vmatpush.bf16.xpose.msra.mxu0 0
      %426 = vmatpush.bf16.xpose.msra.mxu0 %v417
      %427 = vmatmul.bf16.gmra.mxu0 %v414
      %v428 = vpop.f32.mrf.mxu0
      %v429 = vadd.f32 0.0, %v428
      %v430 = vpop.f32.mrf.mxu0
      %431 = vdwg.mxu0
      %v433 = vsel %vm393, %v363, 0
      %v436 = vsel %vm393, %v379, 0
      %438 = vmatpush.bf16.xpose.msra.mxu0 0
      %439 = vmatpush.bf16.xpose.msra.mxu0 0
      %440 = vmatpush.bf16.xpose.msra.mxu0 0
      %441 = vmatpush.bf16.xpose.msra.mxu0 0
      %442 = vmatpush.bf16.xpose.msra.mxu0 0
      %443 = vmatpush.bf16.xpose.msra.mxu0 0
      %444 = vmatpush.bf16.xpose.msra.mxu0 0
      %445 = vmatpush.bf16.xpose.msra.mxu0 %v436
      %446 = vmatmul.bf16.gmra.mxu0 %v433
      %v447 = vpop.f32.mrf.mxu0
      %v448 = vadd.f32 0.0, %v447
      %v449 = vpop.f32.mrf.mxu0
      %450 = vdwg.mxu0
      %v452 = vsel %vm393, %v364, 0
      %v455 = vsel %vm393, %v380, 0
      %457 = vmatpush.bf16.xpose.msra.mxu0 0
      %458 = vmatpush.bf16.xpose.msra.mxu0 0
      %459 = vmatpush.bf16.xpose.msra.mxu0 0
      %460 = vmatpush.bf16.xpose.msra.mxu0 0
      %461 = vmatpush.bf16.xpose.msra.mxu0 0
      %462 = vmatpush.bf16.xpose.msra.mxu0 0
      %463 = vmatpush.bf16.xpose.msra.mxu0 0
      %464 = vmatpush.bf16.xpose.msra.mxu0 %v455
      %465 = vmatmul.bf16.gmra.mxu0 %v452
      %v466 = vpop.f32.mrf.mxu0
      %v467 = vadd.f32 0.0, %v466
      %v468 = vpop.f32.mrf.mxu0
      %469 = vdwg.mxu0
      %v471 = vsel %vm393, %v365, 0
      %v474 = vsel %vm393, %v381, 0
      %476 = vmatpush.bf16.xpose.msra.mxu0 0
      %477 = vmatpush.bf16.xpose.msra.mxu0 0
      %478 = vmatpush.bf16.xpose.msra.mxu0 0
      %479 = vmatpush.bf16.xpose.msra.mxu0 0
      %480 = vmatpush.bf16.xpose.msra.mxu0 0
      %481 = vmatpush.bf16.xpose.msra.mxu0 0
      %482 = vmatpush.bf16.xpose.msra.mxu0 0
      %483 = vmatpush.bf16.xpose.msra.mxu0 %v474
      %484 = vmatmul.bf16.gmra.mxu0 %v471
      %v485 = vpop.f32.mrf.mxu0
      %v486 = vadd.f32 0.0, %v485
      %v487 = vpop.f32.mrf.mxu0
      %488 = vdwg.mxu0
      %v490 = vsel %vm393, %v366, 0
      %v493 = vsel %vm393, %v382, 0
      %495 = vmatpush.bf16.xpose.msra.mxu0 0
      %496 = vmatpush.bf16.xpose.msra.mxu0 0
      %497 = vmatpush.bf16.xpose.msra.mxu0 0
      %498 = vmatpush.bf16.xpose.msra.mxu0 0
      %499 = vmatpush.bf16.xpose.msra.mxu0 0
      %500 = vmatpush.bf16.xpose.msra.mxu0 0
      %501 = vmatpush.bf16.xpose.msra.mxu0 0
      %502 = vmatpush.bf16.xpose.msra.mxu0 %v493
      %503 = vmatmul.bf16.gmra.mxu0 %v490
      %v504 = vpop.f32.mrf.mxu0
      %v505 = vadd.f32 0.0, %v504
      %v506 = vpop.f32.mrf.mxu0
      %507 = vdwg.mxu0
      %v509 = vsel %vm393, %v367, 0
      %v512 = vsel %vm393, %v383, 0
      %514 = vmatpush.bf16.xpose.msra.mxu0 0
      %515 = vmatpush.bf16.xpose.msra.mxu0 0
      %516 = vmatpush.bf16.xpose.msra.mxu0 0
      %517 = vmatpush.bf16.xpose.msra.mxu0 0
      %518 = vmatpush.bf16.xpose.msra.mxu0 0
      %519 = vmatpush.bf16.xpose.msra.mxu0 0
      %520 = vmatpush.bf16.xpose.msra.mxu0 0
      %521 = vmatpush.bf16.xpose.msra.mxu0 %v512
      %522 = vmatmul.bf16.gmra.mxu0 %v509
      %v523 = vpop.f32.mrf.mxu0
      %v524 = vadd.f32 0.0, %v523
      %v525 = vpop.f32.mrf.mxu0
      %526 = vdwg.mxu0
      %v528 = vsel %vm393, %v368, 0
      %v531 = vsel %vm393, %v384, 0
      %533 = vmatpush.bf16.xpose.msra.mxu0 0
      %534 = vmatpush.bf16.xpose.msra.mxu0 0
      %535 = vmatpush.bf16.xpose.msra.mxu0 0
      %536 = vmatpush.bf16.xpose.msra.mxu0 0
      %537 = vmatpush.bf16.xpose.msra.mxu0 0
      %538 = vmatpush.bf16.xpose.msra.mxu0 0
      %539 = vmatpush.bf16.xpose.msra.mxu0 0
      %540 = vmatpush.bf16.xpose.msra.mxu0 %v531
      %541 = vmatmul.bf16.gmra.mxu0 %v528
      %v542 = vpop.f32.mrf.mxu0
      %v543 = vadd.f32 0.0, %v542
      %v544 = vpop.f32.mrf.mxu0
      %545 = vdwg.mxu0
      %v547 = vsel %vm393, %v369, 0
      %v550 = vsel %vm393, %v385, 0
      %552 = vmatpush.bf16.xpose.msra.mxu0 0
      %553 = vmatpush.bf16.xpose.msra.mxu0 0
      %554 = vmatpush.bf16.xpose.msra.mxu0 0
      %555 = vmatpush.bf16.xpose.msra.mxu0 0
      %556 = vmatpush.bf16.xpose.msra.mxu0 0
      %557 = vmatpush.bf16.xpose.msra.mxu0 0
      %558 = vmatpush.bf16.xpose.msra.mxu0 0
      %559 = vmatpush.bf16.xpose.msra.mxu0 %v550
      %560 = vmatmul.bf16.gmra.mxu0 %v547
      %v561 = vpop.f32.mrf.mxu0
      %v562 = vadd.f32 0.0, %v561
      %v563 = vpop.f32.mrf.mxu0
      %564 = vdwg.mxu0
      %v566 = vsel %vm393, %v370, 0
      %v569 = vsel %vm393, %v386, 0
      %571 = vmatpush.bf16.xpose.msra.mxu0 0
      %572 = vmatpush.bf16.xpose.msra.mxu0 0
      %573 = vmatpush.bf16.xpose.msra.mxu0 0
      %574 = vmatpush.bf16.xpose.msra.mxu0 0
      %575 = vmatpush.bf16.xpose.msra.mxu0 0
      %576 = vmatpush.bf16.xpose.msra.mxu0 0
      %577 = vmatpush.bf16.xpose.msra.mxu0 0
      %578 = vmatpush.bf16.xpose.msra.mxu0 %v569
      %579 = vmatmul.bf16.gmra.mxu0 %v566
      %v580 = vpop.f32.mrf.mxu0
      %v581 = vadd.f32 0.0, %v580
      %v582 = vpop.f32.mrf.mxu0
      %583 = vdwg.mxu0
      %v585 = vsel %vm393, %v371, 0
      %v588 = vsel %vm393, %v387, 0
      %590 = vmatpush.bf16.xpose.msra.mxu0 0
      %591 = vmatpush.bf16.xpose.msra.mxu0 0
      %592 = vmatpush.bf16.xpose.msra.mxu0 0
      %593 = vmatpush.bf16.xpose.msra.mxu0 0
      %594 = vmatpush.bf16.xpose.msra.mxu0 0
      %595 = vmatpush.bf16.xpose.msra.mxu0 0
      %596 = vmatpush.bf16.xpose.msra.mxu0 0
      %597 = vmatpush.bf16.xpose.msra.mxu0 %v588
      %598 = vmatmul.bf16.gmra.mxu0 %v585
      %v599 = vpop.f32.mrf.mxu0
      %v600 = vadd.f32 0.0, %v599
      %v601 = vpop.f32.mrf.mxu0
      %602 = vdwg.mxu0
      %v604 = vsel %vm393, %v372, 0
      %v607 = vsel %vm393, %v388, 0
      %609 = vmatpush.bf16.xpose.msra.mxu0 0
      %610 = vmatpush.bf16.xpose.msra.mxu0 0
      %611 = vmatpush.bf16.xpose.msra.mxu0 0
      %612 = vmatpush.bf16.xpose.msra.mxu0 0
      %613 = vmatpush.bf16.xpose.msra.mxu0 0
      %614 = vmatpush.bf16.xpose.msra.mxu0 0
      %615 = vmatpush.bf16.xpose.msra.mxu0 0
      %616 = vmatpush.bf16.xpose.msra.mxu0 %v607
      %617 = vmatmul.bf16.gmra.mxu0 %v604
      %v618 = vpop.f32.mrf.mxu0
      %v619 = vadd.f32 0.0, %v618
      %v620 = vpop.f32.mrf.mxu0
      %621 = vdwg.mxu0
      %v623 = vsel %vm393, %v373, 0
      %v626 = vsel %vm393, %v389, 0
      %628 = vmatpush.bf16.xpose.msra.mxu0 0
      %629 = vmatpush.bf16.xpose.msra.mxu0 0
      %630 = vmatpush.bf16.xpose.msra.mxu0 0
      %631 = vmatpush.bf16.xpose.msra.mxu0 0
      %632 = vmatpush.bf16.xpose.msra.mxu0 0
      %633 = vmatpush.bf16.xpose.msra.mxu0 0
      %634 = vmatpush.bf16.xpose.msra.mxu0 0
      %635 = vmatpush.bf16.xpose.msra.mxu0 %v626
      %636 = vmatmul.bf16.gmra.mxu0 %v623
      %v637 = vpop.f32.mrf.mxu0
      %v638 = vadd.f32 0.0, %v637
      %v639 = vpop.f32.mrf.mxu0
      %640 = vdwg.mxu0
      %v642 = vsel %vm393, %v374, 0
      %v645 = vsel %vm393, %v390, 0
      %647 = vmatpush.bf16.xpose.msra.mxu0 0
      %648 = vmatpush.bf16.xpose.msra.mxu0 0
      %649 = vmatpush.bf16.xpose.msra.mxu0 0
      %650 = vmatpush.bf16.xpose.msra.mxu0 0
      %651 = vmatpush.bf16.xpose.msra.mxu0 0
      %652 = vmatpush.bf16.xpose.msra.mxu0 0
      %653 = vmatpush.bf16.xpose.msra.mxu0 0
      %654 = vmatpush.bf16.xpose.msra.mxu0 %v645
      %655 = vmatmul.bf16.gmra.mxu0 %v642
      %v656 = vpop.f32.mrf.mxu0
      %v657 = vadd.f32 0.0, %v656
      %v658 = vpop.f32.mrf.mxu0
      %659 = vdwg.mxu0
      %v661 = vsel %vm393, %v375, 0
      %v664 = vsel %vm393, %v391, 0
      %666 = vmatpush.bf16.xpose.msra.mxu0 0
      %667 = vmatpush.bf16.xpose.msra.mxu0 0
      %668 = vmatpush.bf16.xpose.msra.mxu0 0
      %669 = vmatpush.bf16.xpose.msra.mxu0 0
      %670 = vmatpush.bf16.xpose.msra.mxu0 0
      %671 = vmatpush.bf16.xpose.msra.mxu0 0
      %672 = vmatpush.bf16.xpose.msra.mxu0 0
      %673 = vmatpush.bf16.xpose.msra.mxu0 %v664
      %674 = vmatmul.bf16.gmra.mxu0 %v661
      %v675 = vpop.f32.mrf.mxu0
      %v676 = vadd.f32 0.0, %v675
      %v677 = vpop.f32.mrf.mxu0
      %678 = vdwg.mxu0
      %v680 = vsel %vm393, %v376, 0
      %v683 = vsel %vm393, %v392, 0
      %685 = vmatpush.bf16.xpose.msra.mxu0 0
      %686 = vmatpush.bf16.xpose.msra.mxu0 0
      %687 = vmatpush.bf16.xpose.msra.mxu0 0
      %688 = vmatpush.bf16.xpose.msra.mxu0 0
      %689 = vmatpush.bf16.xpose.msra.mxu0 0
      %690 = vmatpush.bf16.xpose.msra.mxu0 0
      %691 = vmatpush.bf16.xpose.msra.mxu0 0
      %692 = vmatpush.bf16.xpose.msra.mxu0 %v683
      %693 = vmatmul.bf16.gmra.mxu0 %v680
      %v694 = vpop.f32.mrf.mxu0
      %v695 = vadd.f32 0.0, %v694
      %v696 = vpop.f32.mrf.mxu0
      %697 = vdwg.mxu0
      %v698 = vmul.f32 %v410, 0.35355338
      %v699 = vmul.f32 %v429, 0.35355338
      %v700 = vmul.f32 %v448, 0.35355338
      %v701 = vmul.f32 %v467, 0.35355338
      %v702 = vmul.f32 %v486, 0.35355338
      %v703 = vmul.f32 %v505, 0.35355338
      %v704 = vmul.f32 %v524, 0.35355338
      %v705 = vmul.f32 %v543, 0.35355338
      %v706 = vmul.f32 %v562, 0.35355338
      %v707 = vmul.f32 %v581, 0.35355338
      %v708 = vmul.f32 %v600, 0.35355338
      %v709 = vmul.f32 %v619, 0.35355338
      %v710 = vmul.f32 %v638, 0.35355338
      %v711 = vmul.f32 %v657, 0.35355338
      %v712 = vmul.f32 %v676, 0.35355338
      %v713 = vmul.f32 %v695, 0.35355338
      %v730 = vperm.slane %v345, 0
      %v731 = vperm.slane %v346, 0
      %v732 = vperm.slane %v347, 0
      %v733 = vperm.slane %v348, 0
      %v734 = vperm.slane %v349, 0
      %v735 = vperm.slane %v350, 0
      %v736 = vperm.slane %v351, 0
      %v737 = vperm.slane %v352, 0
      %v738 = vperm.slane %v353, 0
      %v739 = vperm.slane %v354, 0
      %v740 = vperm.slane %v355, 0
      %v741 = vperm.slane %v356, 0
      %v742 = vperm.slane %v357, 0
      %v743 = vperm.slane %v358, 0
      %v744 = vperm.slane %v359, 0
      %v745 = vperm.slane %v360, 0
      %v762 = vadd.f32 %v698, %v730
      %v763 = vadd.f32 %v699, %v731
      %v764 = vadd.f32 %v700, %v732
      %v765 = vadd.f32 %v701, %v733
      %v766 = vadd.f32 %v702, %v734
      %v767 = vadd.f32 %v703, %v735
      %v768 = vadd.f32 %v704, %v736
      %v769 = vadd.f32 %v705, %v737
      %v770 = vadd.f32 %v706, %v738
      %v771 = vadd.f32 %v707, %v739
      %v772 = vadd.f32 %v708, %v740
      %v773 = vadd.f32 %v709, %v741
      %v774 = vadd.f32 %v710, %v742
      %v775 = vadd.f32 %v711, %v743
      %v776 = vadd.f32 %v712, %v744
      %v777 = vadd.f32 %v713, %v745
      %vm778 = vcmask 27648
      %v779 = vsel %vm778, %v762, -inf
      %780 = vmax.xlane.f32.xlu0 %v779
      %v781 = vpop.xlane.xlu0 %780
      %v782 = vsel %vm778, %v763, -inf
      %783 = vmax.xlane.f32.xlu0 %v782
      %v784 = vpop.xlane.xlu0 %783
      %v785 = vsel %vm778, %v764, -inf
      %786 = vmax.xlane.f32.xlu0 %v785
      %v787 = vpop.xlane.xlu0 %786
      %v788 = vsel %vm778, %v765, -inf
      %789 = vmax.xlane.f32.xlu0 %v788
      %v790 = vpop.xlane.xlu0 %789
      %v791 = vsel %vm778, %v766, -inf
      %792 = vmax.xlane.f32.xlu0 %v791
      %v793 = vpop.xlane.xlu0 %792
      %v794 = vsel %vm778, %v767, -inf
      %795 = vmax.xlane.f32.xlu0 %v794
      %v796 = vpop.xlane.xlu0 %795
      %v797 = vsel %vm778, %v768, -inf
      %798 = vmax.xlane.f32.xlu0 %v797
      %v799 = vpop.xlane.xlu0 %798
      %v800 = vsel %vm778, %v769, -inf
      %801 = vmax.xlane.f32.xlu0 %v800
      %v802 = vpop.xlane.xlu0 %801
      %v803 = vsel %vm778, %v770, -inf
      %804 = vmax.xlane.f32.xlu0 %v803
      %v805 = vpop.xlane.xlu0 %804
      %v806 = vsel %vm778, %v771, -inf
      %807 = vmax.xlane.f32.xlu0 %v806
      %v808 = vpop.xlane.xlu0 %807
      %v809 = vsel %vm778, %v772, -inf
      %810 = vmax.xlane.f32.xlu0 %v809
      %v811 = vpop.xlane.xlu0 %810
      %v812 = vsel %vm778, %v773, -inf
      %813 = vmax.xlane.f32.xlu0 %v812
      %v814 = vpop.xlane.xlu0 %813
      %v815 = vsel %vm778, %v774, -inf
      %816 = vmax.xlane.f32.xlu0 %v815
      %v817 = vpop.xlane.xlu0 %816
      %v818 = vsel %vm778, %v775, -inf
      %819 = vmax.xlane.f32.xlu0 %v818
      %v820 = vpop.xlane.xlu0 %819
      %v821 = vsel %vm778, %v776, -inf
      %822 = vmax.xlane.f32.xlu0 %v821
      %v823 = vpop.xlane.xlu0 %822
      %v824 = vsel %vm778, %v777, -inf
      %825 = vmax.xlane.f32.xlu0 %v824
      %v826 = vpop.xlane.xlu0 %825
      %v827 = vsub.f32 %v762, %v781
      %v828 = vsub.f32 %v763, %v784
      %v829 = vsub.f32 %v764, %v787
      %v830 = vsub.f32 %v765, %v790
      %v831 = vsub.f32 %v766, %v793
      %v832 = vsub.f32 %v767, %v796
      %v833 = vsub.f32 %v768, %v799
      %v834 = vsub.f32 %v769, %v802
      %v835 = vsub.f32 %v770, %v805
      %v836 = vsub.f32 %v771, %v808
      %v837 = vsub.f32 %v772, %v811
      %v838 = vsub.f32 %v773, %v814
      %v839 = vsub.f32 %v774, %v817
      %v840 = vsub.f32 %v775, %v820
      %v841 = vsub.f32 %v776, %v823
      %v842 = vsub.f32 %v777, %v826
      %v843 = vmul.f32 %v827, 1.442695
      %v844 = vpow.pop %v843
      %v845 = vmul.f32 %v828, 1.442695
      %v846 = vpow.pop %v845
      %v847 = vmul.f32 %v829, 1.442695
      %v848 = vpow.pop %v847
      %v849 = vmul.f32 %v830, 1.442695
      %v850 = vpow.pop %v849
      %v851 = vmul.f32 %v831, 1.442695
      %v852 = vpow.pop %v851
      %v853 = vmul.f32 %v832, 1.442695
      %v854 = vpow.pop %v853
      %v855 = vmul.f32 %v833, 1.442695
      %v856 = vpow.pop %v855
      %v857 = vmul.f32 %v834, 1.442695
      %v858 = vpow.pop %v857
      %v859 = vmul.f32 %v835, 1.442695
      %v860 = vpow.pop %v859
      %v861 = vmul.f32 %v836, 1.442695
      %v862 = vpow.pop %v861
      %v863 = vmul.f32 %v837, 1.442695
      %v864 = vpow.pop %v863
      %v865 = vmul.f32 %v838, 1.442695
      %v866 = vpow.pop %v865
      %v867 = vmul.f32 %v839, 1.442695
      %v868 = vpow.pop %v867
      %v869 = vmul.f32 %v840, 1.442695
      %v870 = vpow.pop %v869
      %v871 = vmul.f32 %v841, 1.442695
      %v872 = vpow.pop %v871
      %v873 = vmul.f32 %v842, 1.442695
      %v874 = vpow.pop %v873
      %v875 = vsel %vm778, %v844, 0.0
      %876 = vadd.xlane.f32.xlu0 %v875
      %v877 = vpop.xlane.xlu0 %876
      %v878 = vsel %vm778, %v846, 0.0
      %879 = vadd.xlane.f32.xlu0 %v878
      %v880 = vpop.xlane.xlu0 %879
      %v881 = vsel %vm778, %v848, 0.0
      %882 = vadd.xlane.f32.xlu0 %v881
      %v883 = vpop.xlane.xlu0 %882
      %v884 = vsel %vm778, %v850, 0.0
      %885 = vadd.xlane.f32.xlu0 %v884
      %v886 = vpop.xlane.xlu0 %885
      %v887 = vsel %vm778, %v852, 0.0
      %888 = vadd.xlane.f32.xlu0 %v887
      %v889 = vpop.xlane.xlu0 %888
      %v890 = vsel %vm778, %v854, 0.0
      %891 = vadd.xlane.f32.xlu0 %v890
      %v892 = vpop.xlane.xlu0 %891
      %v893 = vsel %vm778, %v856, 0.0
      %894 = vadd.xlane.f32.xlu0 %v893
      %v895 = vpop.xlane.xlu0 %894
      %v896 = vsel %vm778, %v858, 0.0
      %897 = vadd.xlane.f32.xlu0 %v896
      %v898 = vpop.xlane.xlu0 %897
      %v899 = vsel %vm778, %v860, 0.0
      %900 = vadd.xlane.f32.xlu0 %v899
      %v901 = vpop.xlane.xlu0 %900
      %v902 = vsel %vm778, %v862, 0.0
      %903 = vadd.xlane.f32.xlu0 %v902
      %v904 = vpop.xlane.xlu0 %903
      %v905 = vsel %vm778, %v864, 0.0
      %906 = vadd.xlane.f32.xlu0 %v905
      %v907 = vpop.xlane.xlu0 %906
      %v908 = vsel %vm778, %v866, 0.0
      %909 = vadd.xlane.f32.xlu0 %v908
      %v910 = vpop.xlane.xlu0 %909
      %v911 = vsel %vm778, %v868, 0.0
      %912 = vadd.xlane.f32.xlu0 %v911
      %v913 = vpop.xlane.xlu0 %912
      %v914 = vsel %vm778, %v870, 0.0
      %915 = vadd.xlane.f32.xlu0 %v914
      %v916 = vpop.xlane.xlu0 %915
      %v917 = vsel %vm778, %v872, 0.0
      %918 = vadd.xlane.f32.xlu0 %v917
      %v919 = vpop.xlane.xlu0 %918
      %v920 = vsel %vm778, %v874, 0.0
      %921 = vadd.xlane.f32.xlu0 %v920
      %v922 = vpop.xlane.xlu0 %921
      %v923 = vrcp.pop %v877
      %v924 = vmul.f32 %v877, %v923
      %v925 = vsub.f32 1.0, %v924
      %v926 = vmul.f32 %v923, %v925
      %v927 = vadd.f32 %v923, %v926
      %vm928 = vweird.f32 %v877
      %vm929 = vweird.f32 %v923
      %vm930 = vmor %vm928, %vm929
      %v931 = vsel %vm930, %v923, %v927
      %v932 = vand.u32 2147483647, %v877
      %vm933 = vcmp.eq.f32.partialorder %v932, 8.507059e+37
      %v934 = vand.u32 %v877, 2147483648
      %v935 = vor.u32 1.1754944e-38, %v934
      %v936 = vsel %vm933, %v935, %v931
      %v937 = vmul.f32 %v844, %v936
      %v938 = vrcp.pop %v880
      %v939 = vmul.f32 %v880, %v938
      %v940 = vsub.f32 1.0, %v939
      %v941 = vmul.f32 %v938, %v940
      %v942 = vadd.f32 %v938, %v941
      %vm943 = vweird.f32 %v880
      %vm944 = vweird.f32 %v938
      %vm945 = vmor %vm943, %vm944
      %v946 = vsel %vm945, %v938, %v942
      %v947 = vand.u32 2147483647, %v880
      %vm948 = vcmp.eq.f32.partialorder %v947, 8.507059e+37
      %v949 = vand.u32 %v880, 2147483648
      %v950 = vor.u32 1.1754944e-38, %v949
      %v951 = vsel %vm948, %v950, %v946
      %v952 = vmul.f32 %v846, %v951
      %v953 = vrcp.pop %v883
      %v954 = vmul.f32 %v883, %v953
      %v955 = vsub.f32 1.0, %v954
      %v956 = vmul.f32 %v953, %v955
      %v957 = vadd.f32 %v953, %v956
      %vm958 = vweird.f32 %v883
      %vm959 = vweird.f32 %v953
      %vm960 = vmor %vm958, %vm959
      %v961 = vsel %vm960, %v953, %v957
      %v962 = vand.u32 2147483647, %v883
      %vm963 = vcmp.eq.f32.partialorder %v962, 8.507059e+37
      %v964 = vand.u32 %v883, 2147483648
      %v965 = vor.u32 1.1754944e-38, %v964
      %v966 = vsel %vm963, %v965, %v961
      %v967 = vmul.f32 %v848, %v966
      %v968 = vrcp.pop %v886
      %v969 = vmul.f32 %v886, %v968
      %v970 = vsub.f32 1.0, %v969
      %v971 = vmul.f32 %v968, %v970
      %v972 = vadd.f32 %v968, %v971
      %vm973 = vweird.f32 %v886
      %vm974 = vweird.f32 %v968
      %vm975 = vmor %vm973, %vm974
      %v976 = vsel %vm975, %v968, %v972
      %v977 = vand.u32 2147483647, %v886
      %vm978 = vcmp.eq.f32.partialorder %v977, 8.507059e+37
      %v979 = vand.u32 %v886, 2147483648
      %v980 = vor.u32 1.1754944e-38, %v979
      %v981 = vsel %vm978, %v980, %v976
      %v982 = vmul.f32 %v850, %v981
      %v983 = vrcp.pop %v889
      %v984 = vmul.f32 %v889, %v983
      %v985 = vsub.f32 1.0, %v984
      %v986 = vmul.f32 %v983, %v985
      %v987 = vadd.f32 %v983, %v986
      %vm988 = vweird.f32 %v889
      %vm989 = vweird.f32 %v983
      %vm990 = vmor %vm988, %vm989
      %v991 = vsel %vm990, %v983, %v987
      %v992 = vand.u32 2147483647, %v889
      %vm993 = vcmp.eq.f32.partialorder %v992, 8.507059e+37
      %v994 = vand.u32 %v889, 2147483648
      %v995 = vor.u32 1.1754944e-38, %v994
      %v996 = vsel %vm993, %v995, %v991
      %v997 = vmul.f32 %v852, %v996
      %v998 = vrcp.pop %v892
      %v999 = vmul.f32 %v892, %v998
      %v1000 = vsub.f32 1.0, %v999
      %v1001 = vmul.f32 %v998, %v1000
      %v1002 = vadd.f32 %v998, %v1001
      %vm1003 = vweird.f32 %v892
      %vm1004 = vweird.f32 %v998
      %vm1005 = vmor %vm1003, %vm1004
      %v1006 = vsel %vm1005, %v998, %v1002
      %v1007 = vand.u32 2147483647, %v892
      %vm1008 = vcmp.eq.f32.partialorder %v1007, 8.507059e+37
      %v1009 = vand.u32 %v892, 2147483648
      %v1010 = vor.u32 1.1754944e-38, %v1009
      %v1011 = vsel %vm1008, %v1010, %v1006
      %v1012 = vmul.f32 %v854, %v1011
      %v1013 = vrcp.pop %v895
      %v1014 = vmul.f32 %v895, %v1013
      %v1015 = vsub.f32 1.0, %v1014
      %v1016 = vmul.f32 %v1013, %v1015
      %v1017 = vadd.f32 %v1013, %v1016
      %vm1018 = vweird.f32 %v895
      %vm1019 = vweird.f32 %v1013
      %vm1020 = vmor %vm1018, %vm1019
      %v1021 = vsel %vm1020, %v1013, %v1017
      %v1022 = vand.u32 2147483647, %v895
      %vm1023 = vcmp.eq.f32.partialorder %v1022, 8.507059e+37
      %v1024 = vand.u32 %v895, 2147483648
      %v1025 = vor.u32 1.1754944e-38, %v1024
      %v1026 = vsel %vm1023, %v1025, %v1021
      %v1027 = vmul.f32 %v856, %v1026
      %v1028 = vrcp.pop %v898
      %v1029 = vmul.f32 %v898, %v1028
      %v1030 = vsub.f32 1.0, %v1029
      %v1031 = vmul.f32 %v1028, %v1030
      %v1032 = vadd.f32 %v1028, %v1031
      %vm1033 = vweird.f32 %v898
      %vm1034 = vweird.f32 %v1028
      %vm1035 = vmor %vm1033, %vm1034
      %v1036 = vsel %vm1035, %v1028, %v1032
      %v1037 = vand.u32 2147483647, %v898
      %vm1038 = vcmp.eq.f32.partialorder %v1037, 8.507059e+37
      %v1039 = vand.u32 %v898, 2147483648
      %v1040 = vor.u32 1.1754944e-38, %v1039
      %v1041 = vsel %vm1038, %v1040, %v1036
      %v1042 = vmul.f32 %v858, %v1041
      %v1043 = vrcp.pop %v901
      %v1044 = vmul.f32 %v901, %v1043
      %v1045 = vsub.f32 1.0, %v1044
      %v1046 = vmul.f32 %v1043, %v1045
      %v1047 = vadd.f32 %v1043, %v1046
      %vm1048 = vweird.f32 %v901
      %vm1049 = vweird.f32 %v1043
      %vm1050 = vmor %vm1048, %vm1049
      %v1051 = vsel %vm1050, %v1043, %v1047
      %v1052 = vand.u32 2147483647, %v901
      %vm1053 = vcmp.eq.f32.partialorder %v1052, 8.507059e+37
      %v1054 = vand.u32 %v901, 2147483648
      %v1055 = vor.u32 1.1754944e-38, %v1054
      %v1056 = vsel %vm1053, %v1055, %v1051
      %v1057 = vmul.f32 %v860, %v1056
      %v1058 = vrcp.pop %v904
      %v1059 = vmul.f32 %v904, %v1058
      %v1060 = vsub.f32 1.0, %v1059
      %v1061 = vmul.f32 %v1058, %v1060
      %v1062 = vadd.f32 %v1058, %v1061
      %vm1063 = vweird.f32 %v904
      %vm1064 = vweird.f32 %v1058
      %vm1065 = vmor %vm1063, %vm1064
      %v1066 = vsel %vm1065, %v1058, %v1062
      %v1067 = vand.u32 2147483647, %v904
      %vm1068 = vcmp.eq.f32.partialorder %v1067, 8.507059e+37
      %v1069 = vand.u32 %v904, 2147483648
      %v1070 = vor.u32 1.1754944e-38, %v1069
      %v1071 = vsel %vm1068, %v1070, %v1066
      %v1072 = vmul.f32 %v862, %v1071
      %v1073 = vrcp.pop %v907
      %v1074 = vmul.f32 %v907, %v1073
      %v1075 = vsub.f32 1.0, %v1074
      %v1076 = vmul.f32 %v1073, %v1075
      %v1077 = vadd.f32 %v1073, %v1076
      %vm1078 = vweird.f32 %v907
      %vm1079 = vweird.f32 %v1073
      %vm1080 = vmor %vm1078, %vm1079
      %v1081 = vsel %vm1080, %v1073, %v1077
      %v1082 = vand.u32 2147483647, %v907
      %vm1083 = vcmp.eq.f32.partialorder %v1082, 8.507059e+37
      %v1084 = vand.u32 %v907, 2147483648
      %v1085 = vor.u32 1.1754944e-38, %v1084
      %v1086 = vsel %vm1083, %v1085, %v1081
      %v1087 = vmul.f32 %v864, %v1086
      %v1088 = vrcp.pop %v910
      %v1089 = vmul.f32 %v910, %v1088
      %v1090 = vsub.f32 1.0, %v1089
      %v1091 = vmul.f32 %v1088, %v1090
      %v1092 = vadd.f32 %v1088, %v1091
      %vm1093 = vweird.f32 %v910
      %vm1094 = vweird.f32 %v1088
      %vm1095 = vmor %vm1093, %vm1094
      %v1096 = vsel %vm1095, %v1088, %v1092
      %v1097 = vand.u32 2147483647, %v910
      %vm1098 = vcmp.eq.f32.partialorder %v1097, 8.507059e+37
      %v1099 = vand.u32 %v910, 2147483648
      %v1100 = vor.u32 1.1754944e-38, %v1099
      %v1101 = vsel %vm1098, %v1100, %v1096
      %v1102 = vmul.f32 %v866, %v1101
      %v1103 = vrcp.pop %v913
      %v1104 = vmul.f32 %v913, %v1103
      %v1105 = vsub.f32 1.0, %v1104
      %v1106 = vmul.f32 %v1103, %v1105
      %v1107 = vadd.f32 %v1103, %v1106
      %vm1108 = vweird.f32 %v913
      %vm1109 = vweird.f32 %v1103
      %vm1110 = vmor %vm1108, %vm1109
      %v1111 = vsel %vm1110, %v1103, %v1107
      %v1112 = vand.u32 2147483647, %v913
      %vm1113 = vcmp.eq.f32.partialorder %v1112, 8.507059e+37
      %v1114 = vand.u32 %v913, 2147483648
      %v1115 = vor.u32 1.1754944e-38, %v1114
      %v1116 = vsel %vm1113, %v1115, %v1111
      %v1117 = vmul.f32 %v868, %v1116
      %v1118 = vrcp.pop %v916
      %v1119 = vmul.f32 %v916, %v1118
      %v1120 = vsub.f32 1.0, %v1119
      %v1121 = vmul.f32 %v1118, %v1120
      %v1122 = vadd.f32 %v1118, %v1121
      %vm1123 = vweird.f32 %v916
      %vm1124 = vweird.f32 %v1118
      %vm1125 = vmor %vm1123, %vm1124
      %v1126 = vsel %vm1125, %v1118, %v1122
      %v1127 = vand.u32 2147483647, %v916
      %vm1128 = vcmp.eq.f32.partialorder %v1127, 8.507059e+37
      %v1129 = vand.u32 %v916, 2147483648
      %v1130 = vor.u32 1.1754944e-38, %v1129
      %v1131 = vsel %vm1128, %v1130, %v1126
      %v1132 = vmul.f32 %v870, %v1131
      %v1133 = vrcp.pop %v919
      %v1134 = vmul.f32 %v919, %v1133
      %v1135 = vsub.f32 1.0, %v1134
      %v1136 = vmul.f32 %v1133, %v1135
      %v1137 = vadd.f32 %v1133, %v1136
      %vm1138 = vweird.f32 %v919
      %vm1139 = vweird.f32 %v1133
      %vm1140 = vmor %vm1138, %vm1139
      %v1141 = vsel %vm1140, %v1133, %v1137
      %v1142 = vand.u32 2147483647, %v919
      %vm1143 = vcmp.eq.f32.partialorder %v1142, 8.507059e+37
      %v1144 = vand.u32 %v919, 2147483648
      %v1145 = vor.u32 1.1754944e-38, %v1144
      %v1146 = vsel %vm1143, %v1145, %v1141
      %v1147 = vmul.f32 %v872, %v1146
      %v1148 = vrcp.pop %v922
      %v1149 = vmul.f32 %v922, %v1148
      %v1150 = vsub.f32 1.0, %v1149
      %v1151 = vmul.f32 %v1148, %v1150
      %v1152 = vadd.f32 %v1148, %v1151
      %vm1153 = vweird.f32 %v922
      %vm1154 = vweird.f32 %v1148
      %vm1155 = vmor %vm1153, %vm1154
      %v1156 = vsel %vm1155, %v1148, %v1152
      %v1157 = vand.u32 2147483647, %v922
      %vm1158 = vcmp.eq.f32.partialorder %v1157, 8.507059e+37
      %v1159 = vand.u32 %v922, 2147483648
      %v1160 = vor.u32 1.1754944e-38, %v1159
      %v1161 = vsel %vm1158, %v1160, %v1156
      %v1162 = vmul.f32 %v874, %v1161
      %v1163 = vpack.c.bf16 %v937, %v937
      %v1164 = vpack.c.bf16 %v952, %v952
      %v1165 = vpack.c.bf16 %v967, %v967
      %v1166 = vpack.c.bf16 %v982, %v982
      %v1167 = vpack.c.bf16 %v997, %v997
      %v1168 = vpack.c.bf16 %v1012, %v1012
      %v1169 = vpack.c.bf16 %v1027, %v1027
      %v1170 = vpack.c.bf16 %v1042, %v1042
      %v1171 = vpack.c.bf16 %v1057, %v1057
      %v1172 = vpack.c.bf16 %v1072, %v1072
      %v1173 = vpack.c.bf16 %v1087, %v1087
      %v1174 = vpack.c.bf16 %v1102, %v1102
      %v1175 = vpack.c.bf16 %v1117, %v1117
      %v1176 = vpack.c.bf16 %v1132, %v1132
      %v1177 = vpack.c.bf16 %v1147, %v1147
      %v1178 = vpack.c.bf16 %v1162, %v1162
      %v1179 = vpack.c.bf16 %v297, %v297
      %v1180 = vpack.c.bf16 %v298, %v298
      %v1181 = vpack.c.bf16 %v299, %v299
      %v1182 = vpack.c.bf16 %v300, %v300
      %v1183 = vpack.c.bf16 %v301, %v301
      %v1184 = vpack.c.bf16 %v302, %v302
      %v1185 = vpack.c.bf16 %v303, %v303
      %v1186 = vpack.c.bf16 %v304, %v304
      %v1187 = vpack.c.bf16 %v305, %v305
      %v1188 = vpack.c.bf16 %v306, %v306
      %v1189 = vpack.c.bf16 %v307, %v307
      %v1190 = vpack.c.bf16 %v308, %v308
      %v1191 = vpack.c.bf16 %v309, %v309
      %v1192 = vpack.c.bf16 %v310, %v310
      %v1193 = vpack.c.bf16 %v311, %v311
      %v1194 = vpack.c.bf16 %v312, %v312
      %vm1195 = vcmask 31744
      %v1197 = vsel %vm1195, %v1163, 0
      %vm1199 = vcmask 1041408
      %v1201 = vsel %vm1199, %v1179, 0
      %1203 = vmatpush.bf16.msra.mxu0 0
      %1204 = vmatpush.bf16.msra.mxu0 0
      %1205 = vmatpush.bf16.msra.mxu0 0
      %1206 = vmatpush.bf16.msra.mxu0 0
      %1207 = vmatpush.bf16.msra.mxu0 0
      %1208 = vmatpush.bf16.msra.mxu0 0
      %1209 = vmatpush.bf16.msra.mxu0 0
      %1210 = vmatpush.bf16.msra.mxu0 %v1201
      %1211 = vmatmul.bf16.gmra.mxu0 %v1197
      %v1212 = vpop.f32.mrf.mxu0
      %v1213 = vadd.f32 0.0, %v1212
      %v1214 = vpop.f32.mrf.mxu0
      %1215 = vdwg.mxu0
      %v1217 = vsel %vm1195, %v1164, 0
      %v1220 = vsel %vm1199, %v1180, 0
      %1222 = vmatpush.bf16.msra.mxu0 0
      %1223 = vmatpush.bf16.msra.mxu0 0
      %1224 = vmatpush.bf16.msra.mxu0 0
      %1225 = vmatpush.bf16.msra.mxu0 0
      %1226 = vmatpush.bf16.msra.mxu0 0
      %1227 = vmatpush.bf16.msra.mxu0 0
      %1228 = vmatpush.bf16.msra.mxu0 0
      %1229 = vmatpush.bf16.msra.mxu0 %v1220
      %1230 = vmatmul.bf16.gmra.mxu0 %v1217
      %v1231 = vpop.f32.mrf.mxu0
      %v1232 = vadd.f32 0.0, %v1231
      %v1233 = vpop.f32.mrf.mxu0
      %1234 = vdwg.mxu0
      %v1236 = vsel %vm1195, %v1165, 0
      %v1239 = vsel %vm1199, %v1181, 0
      %1241 = vmatpush.bf16.msra.mxu0 0
      %1242 = vmatpush.bf16.msra.mxu0 0
      %1243 = vmatpush.bf16.msra.mxu0 0
      %1244 = vmatpush.bf16.msra.mxu0 0
      %1245 = vmatpush.bf16.msra.mxu0 0
      %1246 = vmatpush.bf16.msra.mxu0 0
      %1247 = vmatpush.bf16.msra.mxu0 0
      %1248 = vmatpush.bf16.msra.mxu0 %v1239
      %1249 = vmatmul.bf16.gmra.mxu0 %v1236
      %v1250 = vpop.f32.mrf.mxu0
      %v1251 = vadd.f32 0.0, %v1250
      %v1252 = vpop.f32.mrf.mxu0
      %1253 = vdwg.mxu0
      %v1255 = vsel %vm1195, %v1166, 0
      %v1258 = vsel %vm1199, %v1182, 0
      %1260 = vmatpush.bf16.msra.mxu0 0
      %1261 = vmatpush.bf16.msra.mxu0 0
      %1262 = vmatpush.bf16.msra.mxu0 0
      %1263 = vmatpush.bf16.msra.mxu0 0
      %1264 = vmatpush.bf16.msra.mxu0 0
      %1265 = vmatpush.bf16.msra.mxu0 0
      %1266 = vmatpush.bf16.msra.mxu0 0
      %1267 = vmatpush.bf16.msra.mxu0 %v1258
      %1268 = vmatmul.bf16.gmra.mxu0 %v1255
      %v1269 = vpop.f32.mrf.mxu0
      %v1270 = vadd.f32 0.0, %v1269
      %v1271 = vpop.f32.mrf.mxu0
      %1272 = vdwg.mxu0
      %v1274 = vsel %vm1195, %v1167, 0
      %v1277 = vsel %vm1199, %v1183, 0
      %1279 = vmatpush.bf16.msra.mxu0 0
      %1280 = vmatpush.bf16.msra.mxu0 0
      %1281 = vmatpush.bf16.msra.mxu0 0
      %1282 = vmatpush.bf16.msra.mxu0 0
      %1283 = vmatpush.bf16.msra.mxu0 0
      %1284 = vmatpush.bf16.msra.mxu0 0
      %1285 = vmatpush.bf16.msra.mxu0 0
      %1286 = vmatpush.bf16.msra.mxu0 %v1277
      %1287 = vmatmul.bf16.gmra.mxu0 %v1274
      %v1288 = vpop.f32.mrf.mxu0
      %v1289 = vadd.f32 0.0, %v1288
      %v1290 = vpop.f32.mrf.mxu0
      %1291 = vdwg.mxu0
      %v1293 = vsel %vm1195, %v1168, 0
      %v1296 = vsel %vm1199, %v1184, 0
      %1298 = vmatpush.bf16.msra.mxu0 0
      %1299 = vmatpush.bf16.msra.mxu0 0
      %1300 = vmatpush.bf16.msra.mxu0 0
      %1301 = vmatpush.bf16.msra.mxu0 0
      %1302 = vmatpush.bf16.msra.mxu0 0
      %1303 = vmatpush.bf16.msra.mxu0 0
      %1304 = vmatpush.bf16.msra.mxu0 0
      %1305 = vmatpush.bf16.msra.mxu0 %v1296
      %1306 = vmatmul.bf16.gmra.mxu0 %v1293
      %v1307 = vpop.f32.mrf.mxu0
      %v1308 = vadd.f32 0.0, %v1307
      %v1309 = vpop.f32.mrf.mxu0
      %1310 = vdwg.mxu0
      %v1312 = vsel %vm1195, %v1169, 0
      %v1315 = vsel %vm1199, %v1185, 0
      %1317 = vmatpush.bf16.msra.mxu0 0
      %1318 = vmatpush.bf16.msra.mxu0 0
      %1319 = vmatpush.bf16.msra.mxu0 0
      %1320 = vmatpush.bf16.msra.mxu0 0
      %1321 = vmatpush.bf16.msra.mxu0 0
      %1322 = vmatpush.bf16.msra.mxu0 0
      %1323 = vmatpush.bf16.msra.mxu0 0
      %1324 = vmatpush.bf16.msra.mxu0 %v1315
      %1325 = vmatmul.bf16.gmra.mxu0 %v1312
      %v1326 = vpop.f32.mrf.mxu0
      %v1327 = vadd.f32 0.0, %v1326
      %v1328 = vpop.f32.mrf.mxu0
      %1329 = vdwg.mxu0
      %v1331 = vsel %vm1195, %v1170, 0
      %v1334 = vsel %vm1199, %v1186, 0
      %1336 = vmatpush.bf16.msra.mxu0 0
      %1337 = vmatpush.bf16.msra.mxu0 0
      %1338 = vmatpush.bf16.msra.mxu0 0
      %1339 = vmatpush.bf16.msra.mxu0 0
      %1340 = vmatpush.bf16.msra.mxu0 0
      %1341 = vmatpush.bf16.msra.mxu0 0
      %1342 = vmatpush.bf16.msra.mxu0 0
      %1343 = vmatpush.bf16.msra.mxu0 %v1334
      %1344 = vmatmul.bf16.gmra.mxu0 %v1331
      %v1345 = vpop.f32.mrf.mxu0
      %v1346 = vadd.f32 0.0, %v1345
      %v1347 = vpop.f32.mrf.mxu0
      %1348 = vdwg.mxu0
      %v1350 = vsel %vm1195, %v1171, 0
      %v1353 = vsel %vm1199, %v1187, 0
      %1355 = vmatpush.bf16.msra.mxu0 0
      %1356 = vmatpush.bf16.msra.mxu0 0
      %1357 = vmatpush.bf16.msra.mxu0 0
      %1358 = vmatpush.bf16.msra.mxu0 0
      %1359 = vmatpush.bf16.msra.mxu0 0
      %1360 = vmatpush.bf16.msra.mxu0 0
      %1361 = vmatpush.bf16.msra.mxu0 0
      %1362 = vmatpush.bf16.msra.mxu0 %v1353
      %1363 = vmatmul.bf16.gmra.mxu0 %v1350
      %v1364 = vpop.f32.mrf.mxu0
      %v1365 = vadd.f32 0.0, %v1364
      %v1366 = vpop.f32.mrf.mxu0
      %1367 = vdwg.mxu0
      %v1369 = vsel %vm1195, %v1172, 0
      %v1372 = vsel %vm1199, %v1188, 0
      %1374 = vmatpush.bf16.msra.mxu0 0
      %1375 = vmatpush.bf16.msra.mxu0 0
      %1376 = vmatpush.bf16.msra.mxu0 0
      %1377 = vmatpush.bf16.msra.mxu0 0
      %1378 = vmatpush.bf16.msra.mxu0 0
      %1379 = vmatpush.bf16.msra.mxu0 0
      %1380 = vmatpush.bf16.msra.mxu0 0
      %1381 = vmatpush.bf16.msra.mxu0 %v1372
      %1382 = vmatmul.bf16.gmra.mxu0 %v1369
      %v1383 = vpop.f32.mrf.mxu0
      %v1384 = vadd.f32 0.0, %v1383
      %v1385 = vpop.f32.mrf.mxu0
      %1386 = vdwg.mxu0
      %v1388 = vsel %vm1195, %v1173, 0
      %v1391 = vsel %vm1199, %v1189, 0
      %1393 = vmatpush.bf16.msra.mxu0 0
      %1394 = vmatpush.bf16.msra.mxu0 0
      %1395 = vmatpush.bf16.msra.mxu0 0
      %1396 = vmatpush.bf16.msra.mxu0 0
      %1397 = vmatpush.bf16.msra.mxu0 0
      %1398 = vmatpush.bf16.msra.mxu0 0
      %1399 = vmatpush.bf16.msra.mxu0 0
      %1400 = vmatpush.bf16.msra.mxu0 %v1391
      %1401 = vmatmul.bf16.gmra.mxu0 %v1388
      %v1402 = vpop.f32.mrf.mxu0
      %v1403 = vadd.f32 0.0, %v1402
      %v1404 = vpop.f32.mrf.mxu0
      %1405 = vdwg.mxu0
      %v1407 = vsel %vm1195, %v1174, 0
      %v1410 = vsel %vm1199, %v1190, 0
      %1412 = vmatpush.bf16.msra.mxu0 0
      %1413 = vmatpush.bf16.msra.mxu0 0
      %1414 = vmatpush.bf16.msra.mxu0 0
      %1415 = vmatpush.bf16.msra.mxu0 0
      %1416 = vmatpush.bf16.msra.mxu0 0
      %1417 = vmatpush.bf16.msra.mxu0 0
      %1418 = vmatpush.bf16.msra.mxu0 0
      %1419 = vmatpush.bf16.msra.mxu0 %v1410
      %1420 = vmatmul.bf16.gmra.mxu0 %v1407
      %v1421 = vpop.f32.mrf.mxu0
      %v1422 = vadd.f32 0.0, %v1421
      %v1423 = vpop.f32.mrf.mxu0
      %1424 = vdwg.mxu0
      %v1426 = vsel %vm1195, %v1175, 0
      %v1429 = vsel %vm1199, %v1191, 0
      %1431 = vmatpush.bf16.msra.mxu0 0
      %1432 = vmatpush.bf16.msra.mxu0 0
      %1433 = vmatpush.bf16.msra.mxu0 0
      %1434 = vmatpush.bf16.msra.mxu0 0
      %1435 = vmatpush.bf16.msra.mxu0 0
      %1436 = vmatpush.bf16.msra.mxu0 0
      %1437 = vmatpush.bf16.msra.mxu0 0
      %1438 = vmatpush.bf16.msra.mxu0 %v1429
      %1439 = vmatmul.bf16.gmra.mxu0 %v1426
      %v1440 = vpop.f32.mrf.mxu0
      %v1441 = vadd.f32 0.0, %v1440
      %v1442 = vpop.f32.mrf.mxu0
      %1443 = vdwg.mxu0
      %v1445 = vsel %vm1195, %v1176, 0
      %v1448 = vsel %vm1199, %v1192, 0
      %1450 = vmatpush.bf16.msra.mxu0 0
      %1451 = vmatpush.bf16.msra.mxu0 0
      %1452 = vmatpush.bf16.msra.mxu0 0
      %1453 = vmatpush.bf16.msra.mxu0 0
      %1454 = vmatpush.bf16.msra.mxu0 0
      %1455 = vmatpush.bf16.msra.mxu0 0
      %1456 = vmatpush.bf16.msra.mxu0 0
      %1457 = vmatpush.bf16.msra.mxu0 %v1448
      %1458 = vmatmul.bf16.gmra.mxu0 %v1445
      %v1459 = vpop.f32.mrf.mxu0
      %v1460 = vadd.f32 0.0, %v1459
      %v1461 = vpop.f32.mrf.mxu0
      %1462 = vdwg.mxu0
      %v1464 = vsel %vm1195, %v1177, 0
      %v1467 = vsel %vm1199, %v1193, 0
      %1469 = vmatpush.bf16.msra.mxu0 0
      %1470 = vmatpush.bf16.msra.mxu0 0
      %1471 = vmatpush.bf16.msra.mxu0 0
      %1472 = vmatpush.bf16.msra.mxu0 0
      %1473 = vmatpush.bf16.msra.mxu0 0
      %1474 = vmatpush.bf16.msra.mxu0 0
      %1475 = vmatpush.bf16.msra.mxu0 0
      %1476 = vmatpush.bf16.msra.mxu0 %v1467
      %1477 = vmatmul.bf16.gmra.mxu0 %v1464
      %v1478 = vpop.f32.mrf.mxu0
      %v1479 = vadd.f32 0.0, %v1478
      %v1480 = vpop.f32.mrf.mxu0
      %1481 = vdwg.mxu0
      %v1483 = vsel %vm1195, %v1178, 0
      %v1486 = vsel %vm1199, %v1194, 0
      %1488 = vmatpush.bf16.msra.mxu0 0
      %1489 = vmatpush.bf16.msra.mxu0 0
      %1490 = vmatpush.bf16.msra.mxu0 0
      %1491 = vmatpush.bf16.msra.mxu0 0
      %1492 = vmatpush.bf16.msra.mxu0 0
      %1493 = vmatpush.bf16.msra.mxu0 0
      %1494 = vmatpush.bf16.msra.mxu0 0
      %1495 = vmatpush.bf16.msra.mxu0 %v1486
      %1496 = vmatmul.bf16.gmra.mxu0 %v1483
      %v1497 = vpop.f32.mrf.mxu0
      %v1498 = vadd.f32 0.0, %v1497
      %v1499 = vpop.f32.mrf.mxu0
      %1500 = vdwg.mxu0
      %v1502 = vunpack.c.l.b16 %v361
      %v1503 = vpack.c.b16 %v1502, %v1502
      %1504 = vrot.lane.b32.xlu0 %v1503, 120
      %v1505 = vpop.permute.xlu0 %1504
      %v1507 = vunpack.c.l.b16 %v377
      %v1508 = vpack.c.b16 %v1507, %v1507
      %1509 = vrot.lane.b32.xlu0 %v1508, 120
      %v1510 = vpop.permute.xlu0 %1509
      %v1512 = vsel %vm393, %v1505, 0
      %v1515 = vsel %vm393, %v1510, 0
      %1517 = vmatpush.bf16.xpose.msra.mxu0 0
      %1518 = vmatpush.bf16.xpose.msra.mxu0 0
      %1519 = vmatpush.bf16.xpose.msra.mxu0 0
      %1520 = vmatpush.bf16.xpose.msra.mxu0 0
      %1521 = vmatpush.bf16.xpose.msra.mxu0 0
      %1522 = vmatpush.bf16.xpose.msra.mxu0 0
      %1523 = vmatpush.bf16.xpose.msra.mxu0 0
      %1524 = vmatpush.bf16.xpose.msra.mxu0 %v1515
      %1525 = vmatmul.bf16.gmra.mxu0 %v1512
      %v1526 = vpop.f32.mrf.mxu0
      %v1527 = vadd.f32 0.0, %v1526
      %v1528 = vpop.f32.mrf.mxu0
      %1529 = vdwg.mxu0
      %v1531 = vunpack.c.l.b16 %v362
      %v1532 = vpack.c.b16 %v1531, %v1531
      %1533 = vrot.lane.b32.xlu0 %v1532, 120
      %v1534 = vpop.permute.xlu0 %1533
      %v1536 = vunpack.c.l.b16 %v378
      %v1537 = vpack.c.b16 %v1536, %v1536
      %1538 = vrot.lane.b32.xlu0 %v1537, 120
      %v1539 = vpop.permute.xlu0 %1538
      %v1541 = vsel %vm393, %v1534, 0
      %v1544 = vsel %vm393, %v1539, 0
      %1546 = vmatpush.bf16.xpose.msra.mxu0 0
      %1547 = vmatpush.bf16.xpose.msra.mxu0 0
      %1548 = vmatpush.bf16.xpose.msra.mxu0 0
      %1549 = vmatpush.bf16.xpose.msra.mxu0 0
      %1550 = vmatpush.bf16.xpose.msra.mxu0 0
      %1551 = vmatpush.bf16.xpose.msra.mxu0 0
      %1552 = vmatpush.bf16.xpose.msra.mxu0 0
      %1553 = vmatpush.bf16.xpose.msra.mxu0 %v1544
      %1554 = vmatmul.bf16.gmra.mxu0 %v1541
      %v1555 = vpop.f32.mrf.mxu0
      %v1556 = vadd.f32 0.0, %v1555
      %v1557 = vpop.f32.mrf.mxu0
      %1558 = vdwg.mxu0
      %v1560 = vunpack.c.l.b16 %v363
      %v1561 = vpack.c.b16 %v1560, %v1560
      %1562 = vrot.lane.b32.xlu0 %v1561, 120
      %v1563 = vpop.permute.xlu0 %1562
      %v1565 = vunpack.c.l.b16 %v379
      %v1566 = vpack.c.b16 %v1565, %v1565
      %1567 = vrot.lane.b32.xlu0 %v1566, 120
      %v1568 = vpop.permute.xlu0 %1567
      %v1570 = vsel %vm393, %v1563, 0
      %v1573 = vsel %vm393, %v1568, 0
      %1575 = vmatpush.bf16.xpose.msra.mxu0 0
      %1576 = vmatpush.bf16.xpose.msra.mxu0 0
      %1577 = vmatpush.bf16.xpose.msra.mxu0 0
      %1578 = vmatpush.bf16.xpose.msra.mxu0 0
      %1579 = vmatpush.bf16.xpose.msra.mxu0 0
      %1580 = vmatpush.bf16.xpose.msra.mxu0 0
      %1581 = vmatpush.bf16.xpose.msra.mxu0 0
      %1582 = vmatpush.bf16.xpose.msra.mxu0 %v1573
      %1583 = vmatmul.bf16.gmra.mxu0 %v1570
      %v1584 = vpop.f32.mrf.mxu0
      %v1585 = vadd.f32 0.0, %v1584
      %v1586 = vpop.f32.mrf.mxu0
      %1587 = vdwg.mxu0
      %v1589 = vunpack.c.l.b16 %v364
      %v1590 = vpack.c.b16 %v1589, %v1589
      %1591 = vrot.lane.b32.xlu0 %v1590, 120
      %v1592 = vpop.permute.xlu0 %1591
      %v1594 = vunpack.c.l.b16 %v380
      %v1595 = vpack.c.b16 %v1594, %v1594
      %1596 = vrot.lane.b32.xlu0 %v1595, 120
      %v1597 = vpop.permute.xlu0 %1596
      %v1599 = vsel %vm393, %v1592, 0
      %v1602 = vsel %vm393, %v1597, 0
      %1604 = vmatpush.bf16.xpose.msra.mxu0 0
      %1605 = vmatpush.bf16.xpose.msra.mxu0 0
      %1606 = vmatpush.bf16.xpose.msra.mxu0 0
      %1607 = vmatpush.bf16.xpose.msra.mxu0 0
      %1608 = vmatpush.bf16.xpose.msra.mxu0 0
      %1609 = vmatpush.bf16.xpose.msra.mxu0 0
      %1610 = vmatpush.bf16.xpose.msra.mxu0 0
      %1611 = vmatpush.bf16.xpose.msra.mxu0 %v1602
      %1612 = vmatmul.bf16.gmra.mxu0 %v1599
      %v1613 = vpop.f32.mrf.mxu0
      %v1614 = vadd.f32 0.0, %v1613
      %v1615 = vpop.f32.mrf.mxu0
      %1616 = vdwg.mxu0
      %v1618 = vunpack.c.l.b16 %v365
      %v1619 = vpack.c.b16 %v1618, %v1618
      %1620 = vrot.lane.b32.xlu0 %v1619, 120
      %v1621 = vpop.permute.xlu0 %1620
      %v1623 = vunpack.c.l.b16 %v381
      %v1624 = vpack.c.b16 %v1623, %v1623
      %1625 = vrot.lane.b32.xlu0 %v1624, 120
      %v1626 = vpop.permute.xlu0 %1625
      %v1628 = vsel %vm393, %v1621, 0
      %v1631 = vsel %vm393, %v1626, 0
      %1633 = vmatpush.bf16.xpose.msra.mxu0 0
      %1634 = vmatpush.bf16.xpose.msra.mxu0 0
      %1635 = vmatpush.bf16.xpose.msra.mxu0 0
      %1636 = vmatpush.bf16.xpose.msra.mxu0 0
      %1637 = vmatpush.bf16.xpose.msra.mxu0 0
      %1638 = vmatpush.bf16.xpose.msra.mxu0 0
      %1639 = vmatpush.bf16.xpose.msra.mxu0 0
      %1640 = vmatpush.bf16.xpose.msra.mxu0 %v1631
      %1641 = vmatmul.bf16.gmra.mxu0 %v1628
      %v1642 = vpop.f32.mrf.mxu0
      %v1643 = vadd.f32 0.0, %v1642
      %v1644 = vpop.f32.mrf.mxu0
      %1645 = vdwg.mxu0
      %v1647 = vunpack.c.l.b16 %v366
      %v1648 = vpack.c.b16 %v1647, %v1647
      %1649 = vrot.lane.b32.xlu0 %v1648, 120
      %v1650 = vpop.permute.xlu0 %1649
      %v1652 = vunpack.c.l.b16 %v382
      %v1653 = vpack.c.b16 %v1652, %v1652
      %1654 = vrot.lane.b32.xlu0 %v1653, 120
      %v1655 = vpop.permute.xlu0 %1654
      %v1657 = vsel %vm393, %v1650, 0
      %v1660 = vsel %vm393, %v1655, 0
      %1662 = vmatpush.bf16.xpose.msra.mxu0 0
      %1663 = vmatpush.bf16.xpose.msra.mxu0 0
      %1664 = vmatpush.bf16.xpose.msra.mxu0 0
      %1665 = vmatpush.bf16.xpose.msra.mxu0 0
      %1666 = vmatpush.bf16.xpose.msra.mxu0 0
      %1667 = vmatpush.bf16.xpose.msra.mxu0 0
      %1668 = vmatpush.bf16.xpose.msra.mxu0 0
      %1669 = vmatpush.bf16.xpose.msra.mxu0 %v1660
      %1670 = vmatmul.bf16.gmra.mxu0 %v1657
      %v1671 = vpop.f32.mrf.mxu0
      %v1672 = vadd.f32 0.0, %v1671
      %v1673 = vpop.f32.mrf.mxu0
      %1674 = vdwg.mxu0
      %v1676 = vunpack.c.l.b16 %v367
      %v1677 = vpack.c.b16 %v1676, %v1676
      %1678 = vrot.lane.b32.xlu0 %v1677, 120
      %v1679 = vpop.permute.xlu0 %1678
      %v1681 = vunpack.c.l.b16 %v383
      %v1682 = vpack.c.b16 %v1681, %v1681
      %1683 = vrot.lane.b32.xlu0 %v1682, 120
      %v1684 = vpop.permute.xlu0 %1683
      %v1686 = vsel %vm393, %v1679, 0
      %v1689 = vsel %vm393, %v1684, 0
      %1691 = vmatpush.bf16.xpose.msra.mxu0 0
      %1692 = vmatpush.bf16.xpose.msra.mxu0 0
      %1693 = vmatpush.bf16.xpose.msra.mxu0 0
      %1694 = vmatpush.bf16.xpose.msra.mxu0 0
      %1695 = vmatpush.bf16.xpose.msra.mxu0 0
      %1696 = vmatpush.bf16.xpose.msra.mxu0 0
      %1697 = vmatpush.bf16.xpose.msra.mxu0 0
      %1698 = vmatpush.bf16.xpose.msra.mxu0 %v1689
      %1699 = vmatmul.bf16.gmra.mxu0 %v1686
      %v1700 = vpop.f32.mrf.mxu0
      %v1701 = vadd.f32 0.0, %v1700
      %v1702 = vpop.f32.mrf.mxu0
      %1703 = vdwg.mxu0
      %v1705 = vunpack.c.l.b16 %v368
      %v1706 = vpack.c.b16 %v1705, %v1705
      %1707 = vrot.lane.b32.xlu0 %v1706, 120
      %v1708 = vpop.permute.xlu0 %1707
      %v1710 = vunpack.c.l.b16 %v384
      %v1711 = vpack.c.b16 %v1710, %v1710
      %1712 = vrot.lane.b32.xlu0 %v1711, 120
      %v1713 = vpop.permute.xlu0 %1712
      %v1715 = vsel %vm393, %v1708, 0
      %v1718 = vsel %vm393, %v1713, 0
      %1720 = vmatpush.bf16.xpose.msra.mxu0 0
      %1721 = vmatpush.bf16.xpose.msra.mxu0 0
      %1722 = vmatpush.bf16.xpose.msra.mxu0 0
      %1723 = vmatpush.bf16.xpose.msra.mxu0 0
      %1724 = vmatpush.bf16.xpose.msra.mxu0 0
      %1725 = vmatpush.bf16.xpose.msra.mxu0 0
      %1726 = vmatpush.bf16.xpose.msra.mxu0 0
      %1727 = vmatpush.bf16.xpose.msra.mxu0 %v1718
      %1728 = vmatmul.bf16.gmra.mxu0 %v1715
      %v1729 = vpop.f32.mrf.mxu0
      %v1730 = vadd.f32 0.0, %v1729
      %v1731 = vpop.f32.mrf.mxu0
      %1732 = vdwg.mxu0
      %v1734 = vunpack.c.l.b16 %v369
      %v1735 = vpack.c.b16 %v1734, %v1734
      %1736 = vrot.lane.b32.xlu0 %v1735, 120
      %v1737 = vpop.permute.xlu0 %1736
      %v1739 = vunpack.c.l.b16 %v385
      %v1740 = vpack.c.b16 %v1739, %v1739
      %1741 = vrot.lane.b32.xlu0 %v1740, 120
      %v1742 = vpop.permute.xlu0 %1741
      %v1744 = vsel %vm393, %v1737, 0
      %v1747 = vsel %vm393, %v1742, 0
      %1749 = vmatpush.bf16.xpose.msra.mxu0 0
      %1750 = vmatpush.bf16.xpose.msra.mxu0 0
      %1751 = vmatpush.bf16.xpose.msra.mxu0 0
      %1752 = vmatpush.bf16.xpose.msra.mxu0 0
      %1753 = vmatpush.bf16.xpose.msra.mxu0 0
      %1754 = vmatpush.bf16.xpose.msra.mxu0 0
      %1755 = vmatpush.bf16.xpose.msra.mxu0 0
      %1756 = vmatpush.bf16.xpose.msra.mxu0 %v1747
      %1757 = vmatmul.bf16.gmra.mxu0 %v1744
      %v1758 = vpop.f32.mrf.mxu0
      %v1759 = vadd.f32 0.0, %v1758
      %v1760 = vpop.f32.mrf.mxu0
      %1761 = vdwg.mxu0
      %v1763 = vunpack.c.l.b16 %v370
      %v1764 = vpack.c.b16 %v1763, %v1763
      %1765 = vrot.lane.b32.xlu0 %v1764, 120
      %v1766 = vpop.permute.xlu0 %1765
      %v1768 = vunpack.c.l.b16 %v386
      %v1769 = vpack.c.b16 %v1768, %v1768
      %1770 = vrot.lane.b32.xlu0 %v1769, 120
      %v1771 = vpop.permute.xlu0 %1770
      %v1773 = vsel %vm393, %v1766, 0
      %v1776 = vsel %vm393, %v1771, 0
      %1778 = vmatpush.bf16.xpose.msra.mxu0 0
      %1779 = vmatpush.bf16.xpose.msra.mxu0 0
      %1780 = vmatpush.bf16.xpose.msra.mxu0 0
      %1781 = vmatpush.bf16.xpose.msra.mxu0 0
      %1782 = vmatpush.bf16.xpose.msra.mxu0 0
      %1783 = vmatpush.bf16.xpose.msra.mxu0 0
      %1784 = vmatpush.bf16.xpose.msra.mxu0 0
      %1785 = vmatpush.bf16.xpose.msra.mxu0 %v1776
      %1786 = vmatmul.bf16.gmra.mxu0 %v1773
      %v1787 = vpop.f32.mrf.mxu0
      %v1788 = vadd.f32 0.0, %v1787
      %v1789 = vpop.f32.mrf.mxu0
      %1790 = vdwg.mxu0
      %v1792 = vunpack.c.l.b16 %v371
      %v1793 = vpack.c.b16 %v1792, %v1792
      %1794 = vrot.lane.b32.xlu0 %v1793, 120
      %v1795 = vpop.permute.xlu0 %1794
      %v1797 = vunpack.c.l.b16 %v387
      %v1798 = vpack.c.b16 %v1797, %v1797
      %1799 = vrot.lane.b32.xlu0 %v1798, 120
      %v1800 = vpop.permute.xlu0 %1799
      %v1802 = vsel %vm393, %v1795, 0
      %v1805 = vsel %vm393, %v1800, 0
      %1807 = vmatpush.bf16.xpose.msra.mxu0 0
      %1808 = vmatpush.bf16.xpose.msra.mxu0 0
      %1809 = vmatpush.bf16.xpose.msra.mxu0 0
      %1810 = vmatpush.bf16.xpose.msra.mxu0 0
      %1811 = vmatpush.bf16.xpose.msra.mxu0 0
      %1812 = vmatpush.bf16.xpose.msra.mxu0 0
      %1813 = vmatpush.bf16.xpose.msra.mxu0 0
      %1814 = vmatpush.bf16.xpose.msra.mxu0 %v1805
      %1815 = vmatmul.bf16.gmra.mxu0 %v1802
      %v1816 = vpop.f32.mrf.mxu0
      %v1817 = vadd.f32 0.0, %v1816
      %v1818 = vpop.f32.mrf.mxu0
      %1819 = vdwg.mxu0
      %v1821 = vunpack.c.l.b16 %v372
      %v1822 = vpack.c.b16 %v1821, %v1821
      %1823 = vrot.lane.b32.xlu0 %v1822, 120
      %v1824 = vpop.permute.xlu0 %1823
      %v1826 = vunpack.c.l.b16 %v388
      %v1827 = vpack.c.b16 %v1826, %v1826
      %1828 = vrot.lane.b32.xlu0 %v1827, 120
      %v1829 = vpop.permute.xlu0 %1828
      %v1831 = vsel %vm393, %v1824, 0
      %v1834 = vsel %vm393, %v1829, 0
      %1836 = vmatpush.bf16.xpose.msra.mxu0 0
      %1837 = vmatpush.bf16.xpose.msra.mxu0 0
      %1838 = vmatpush.bf16.xpose.msra.mxu0 0
      %1839 = vmatpush.bf16.xpose.msra.mxu0 0
      %1840 = vmatpush.bf16.xpose.msra.mxu0 0
      %1841 = vmatpush.bf16.xpose.msra.mxu0 0
      %1842 = vmatpush.bf16.xpose.msra.mxu0 0
      %1843 = vmatpush.bf16.xpose.msra.mxu0 %v1834
      %1844 = vmatmul.bf16.gmra.mxu0 %v1831
      %v1845 = vpop.f32.mrf.mxu0
      %v1846 = vadd.f32 0.0, %v1845
      %v1847 = vpop.f32.mrf.mxu0
      %1848 = vdwg.mxu0
      %v1850 = vunpack.c.l.b16 %v373
      %v1851 = vpack.c.b16 %v1850, %v1850
      %1852 = vrot.lane.b32.xlu0 %v1851, 120
      %v1853 = vpop.permute.xlu0 %1852
      %v1855 = vunpack.c.l.b16 %v389
      %v1856 = vpack.c.b16 %v1855, %v1855
      %1857 = vrot.lane.b32.xlu0 %v1856, 120
      %v1858 = vpop.permute.xlu0 %1857
      %v1860 = vsel %vm393, %v1853, 0
      %v1863 = vsel %vm393, %v1858, 0
      %1865 = vmatpush.bf16.xpose.msra.mxu0 0
      %1866 = vmatpush.bf16.xpose.msra.mxu0 0
      %1867 = vmatpush.bf16.xpose.msra.mxu0 0
      %1868 = vmatpush.bf16.xpose.msra.mxu0 0
      %1869 = vmatpush.bf16.xpose.msra.mxu0 0
      %1870 = vmatpush.bf16.xpose.msra.mxu0 0
      %1871 = vmatpush.bf16.xpose.msra.mxu0 0
      %1872 = vmatpush.bf16.xpose.msra.mxu0 %v1863
      %1873 = vmatmul.bf16.gmra.mxu0 %v1860
      %v1874 = vpop.f32.mrf.mxu0
      %v1875 = vadd.f32 0.0, %v1874
      %v1876 = vpop.f32.mrf.mxu0
      %1877 = vdwg.mxu0
      %v1879 = vunpack.c.l.b16 %v374
      %v1880 = vpack.c.b16 %v1879, %v1879
      %1881 = vrot.lane.b32.xlu0 %v1880, 120
      %v1882 = vpop.permute.xlu0 %1881
      %v1884 = vunpack.c.l.b16 %v390
      %v1885 = vpack.c.b16 %v1884, %v1884
      %1886 = vrot.lane.b32.xlu0 %v1885, 120
      %v1887 = vpop.permute.xlu0 %1886
      %v1889 = vsel %vm393, %v1882, 0
      %v1892 = vsel %vm393, %v1887, 0
      %1894 = vmatpush.bf16.xpose.msra.mxu0 0
      %1895 = vmatpush.bf16.xpose.msra.mxu0 0
      %1896 = vmatpush.bf16.xpose.msra.mxu0 0
      %1897 = vmatpush.bf16.xpose.msra.mxu0 0
      %1898 = vmatpush.bf16.xpose.msra.mxu0 0
      %1899 = vmatpush.bf16.xpose.msra.mxu0 0
      %1900 = vmatpush.bf16.xpose.msra.mxu0 0
      %1901 = vmatpush.bf16.xpose.msra.mxu0 %v1892
      %1902 = vmatmul.bf16.gmra.mxu0 %v1889
      %v1903 = vpop.f32.mrf.mxu0
      %v1904 = vadd.f32 0.0, %v1903
      %v1905 = vpop.f32.mrf.mxu0
      %1906 = vdwg.mxu0
      %v1908 = vunpack.c.l.b16 %v375
      %v1909 = vpack.c.b16 %v1908, %v1908
      %1910 = vrot.lane.b32.xlu0 %v1909, 120
      %v1911 = vpop.permute.xlu0 %1910
      %v1913 = vunpack.c.l.b16 %v391
      %v1914 = vpack.c.b16 %v1913, %v1913
      %1915 = vrot.lane.b32.xlu0 %v1914, 120
      %v1916 = vpop.permute.xlu0 %1915
      %v1918 = vsel %vm393, %v1911, 0
      %v1921 = vsel %vm393, %v1916, 0
      %1923 = vmatpush.bf16.xpose.msra.mxu0 0
      %1924 = vmatpush.bf16.xpose.msra.mxu0 0
      %1925 = vmatpush.bf16.xpose.msra.mxu0 0
      %1926 = vmatpush.bf16.xpose.msra.mxu0 0
      %1927 = vmatpush.bf16.xpose.msra.mxu0 0
      %1928 = vmatpush.bf16.xpose.msra.mxu0 0
      %1929 = vmatpush.bf16.xpose.msra.mxu0 0
      %1930 = vmatpush.bf16.xpose.msra.mxu0 %v1921
      %1931 = vmatmul.bf16.gmra.mxu0 %v1918
      %v1932 = vpop.f32.mrf.mxu0
      %v1933 = vadd.f32 0.0, %v1932
      %v1934 = vpop.f32.mrf.mxu0
      %1935 = vdwg.mxu0
      %v1937 = vunpack.c.l.b16 %v376
      %v1938 = vpack.c.b16 %v1937, %v1937
      %1939 = vrot.lane.b32.xlu0 %v1938, 120
      %v1940 = vpop.permute.xlu0 %1939
      %v1942 = vunpack.c.l.b16 %v392
      %v1943 = vpack.c.b16 %v1942, %v1942
      %1944 = vrot.lane.b32.xlu0 %v1943, 120
      %v1945 = vpop.permute.xlu0 %1944
      %v1947 = vsel %vm393, %v1940, 0
      %v1950 = vsel %vm393, %v1945, 0
      %1952 = vmatpush.bf16.xpose.msra.mxu0 0
      %1953 = vmatpush.bf16.xpose.msra.mxu0 0
      %1954 = vmatpush.bf16.xpose.msra.mxu0 0
      %1955 = vmatpush.bf16.xpose.msra.mxu0 0
      %1956 = vmatpush.bf16.xpose.msra.mxu0 0
      %1957 = vmatpush.bf16.xpose.msra.mxu0 0
      %1958 = vmatpush.bf16.xpose.msra.mxu0 0
      %1959 = vmatpush.bf16.xpose.msra.mxu0 %v1950
      %1960 = vmatmul.bf16.gmra.mxu0 %v1947
      %v1961 = vpop.f32.mrf.mxu0
      %v1962 = vadd.f32 0.0, %v1961
      %v1963 = vpop.f32.mrf.mxu0
      %1964 = vdwg.mxu0
      %v1965 = vmul.f32 %v1527, 0.35355338
      %v1966 = vmul.f32 %v1556, 0.35355338
      %v1967 = vmul.f32 %v1585, 0.35355338
      %v1968 = vmul.f32 %v1614, 0.35355338
      %v1969 = vmul.f32 %v1643, 0.35355338
      %v1970 = vmul.f32 %v1672, 0.35355338
      %v1971 = vmul.f32 %v1701, 0.35355338
      %v1972 = vmul.f32 %v1730, 0.35355338
      %v1973 = vmul.f32 %v1759, 0.35355338
      %v1974 = vmul.f32 %v1788, 0.35355338
      %v1975 = vmul.f32 %v1817, 0.35355338
      %v1976 = vmul.f32 %v1846, 0.35355338
      %v1977 = vmul.f32 %v1875, 0.35355338
      %v1978 = vmul.f32 %v1904, 0.35355338
      %v1979 = vmul.f32 %v1933, 0.35355338
      %v1980 = vmul.f32 %v1962, 0.35355338
      %v1981 = vadd.f32 %v1965, %v730
      %v1982 = vadd.f32 %v1966, %v731
      %v1983 = vadd.f32 %v1967, %v732
      %v1984 = vadd.f32 %v1968, %v733
      %v1985 = vadd.f32 %v1969, %v734
      %v1986 = vadd.f32 %v1970, %v735
      %v1987 = vadd.f32 %v1971, %v736
      %v1988 = vadd.f32 %v1972, %v737
      %v1989 = vadd.f32 %v1973, %v738
      %v1990 = vadd.f32 %v1974, %v739
      %v1991 = vadd.f32 %v1975, %v740
      %v1992 = vadd.f32 %v1976, %v741
      %v1993 = vadd.f32 %v1977, %v742
      %v1994 = vadd.f32 %v1978, %v743
      %v1995 = vadd.f32 %v1979, %v744
      %v1996 = vadd.f32 %v1980, %v745
      %v1997 = vsel %vm778, %v1981, -inf
      %1998 = vmax.xlane.f32.xlu0 %v1997
      %v1999 = vpop.xlane.xlu0 %1998
      %v2000 = vsel %vm778, %v1982, -inf
      %2001 = vmax.xlane.f32.xlu0 %v2000
      %v2002 = vpop.xlane.xlu0 %2001
      %v2003 = vsel %vm778, %v1983, -inf
      %2004 = vmax.xlane.f32.xlu0 %v2003
      %v2005 = vpop.xlane.xlu0 %2004
      %v2006 = vsel %vm778, %v1984, -inf
      %2007 = vmax.xlane.f32.xlu0 %v2006
      %v2008 = vpop.xlane.xlu0 %2007
      %v2009 = vsel %vm778, %v1985, -inf
      %2010 = vmax.xlane.f32.xlu0 %v2009
      %v2011 = vpop.xlane.xlu0 %2010
      %v2012 = vsel %vm778, %v1986, -inf
      %2013 = vmax.xlane.f32.xlu0 %v2012
      %v2014 = vpop.xlane.xlu0 %2013
      %v2015 = vsel %vm778, %v1987, -inf
      %2016 = vmax.xlane.f32.xlu0 %v2015
      %v2017 = vpop.xlane.xlu0 %2016
      %v2018 = vsel %vm778, %v1988, -inf
      %2019 = vmax.xlane.f32.xlu0 %v2018
      %v2020 = vpop.xlane.xlu0 %2019
      %v2021 = vsel %vm778, %v1989, -inf
      %2022 = vmax.xlane.f32.xlu0 %v2021
      %v2023 = vpop.xlane.xlu0 %2022
      %v2024 = vsel %vm778, %v1990, -inf
      %2025 = vmax.xlane.f32.xlu0 %v2024
      %v2026 = vpop.xlane.xlu0 %2025
      %v2027 = vsel %vm778, %v1991, -inf
      %2028 = vmax.xlane.f32.xlu0 %v2027
      %v2029 = vpop.xlane.xlu0 %2028
      %v2030 = vsel %vm778, %v1992, -inf
      %2031 = vmax.xlane.f32.xlu0 %v2030
      %v2032 = vpop.xlane.xlu0 %2031
      %v2033 = vsel %vm778, %v1993, -inf
      %2034 = vmax.xlane.f32.xlu0 %v2033
      %v2035 = vpop.xlane.xlu0 %2034
      %v2036 = vsel %vm778, %v1994, -inf
      %2037 = vmax.xlane.f32.xlu0 %v2036
      %v2038 = vpop.xlane.xlu0 %2037
      %v2039 = vsel %vm778, %v1995, -inf
      %2040 = vmax.xlane.f32.xlu0 %v2039
      %v2041 = vpop.xlane.xlu0 %2040
      %v2042 = vsel %vm778, %v1996, -inf
      %2043 = vmax.xlane.f32.xlu0 %v2042
      %v2044 = vpop.xlane.xlu0 %2043
      %v2045 = vsub.f32 %v1981, %v1999
      %v2046 = vsub.f32 %v1982, %v2002
      %v2047 = vsub.f32 %v1983, %v2005
      %v2048 = vsub.f32 %v1984, %v2008
      %v2049 = vsub.f32 %v1985, %v2011
      %v2050 = vsub.f32 %v1986, %v2014
      %v2051 = vsub.f32 %v1987, %v2017
      %v2052 = vsub.f32 %v1988, %v2020
      %v2053 = vsub.f32 %v1989, %v2023
      %v2054 = vsub.f32 %v1990, %v2026
      %v2055 = vsub.f32 %v1991, %v2029
      %v2056 = vsub.f32 %v1992, %v2032
      %v2057 = vsub.f32 %v1993, %v2035
      %v2058 = vsub.f32 %v1994, %v2038
      %v2059 = vsub.f32 %v1995, %v2041
      %v2060 = vsub.f32 %v1996, %v2044
      %v2061 = vmul.f32 %v2045, 1.442695
      %v2062 = vpow.pop %v2061
      %v2063 = vmul.f32 %v2046, 1.442695
      %v2064 = vpow.pop %v2063
      %v2065 = vmul.f32 %v2047, 1.442695
      %v2066 = vpow.pop %v2065
      %v2067 = vmul.f32 %v2048, 1.442695
      %v2068 = vpow.pop %v2067
      %v2069 = vmul.f32 %v2049, 1.442695
      %v2070 = vpow.pop %v2069
      %v2071 = vmul.f32 %v2050, 1.442695
      %v2072 = vpow.pop %v2071
      %v2073 = vmul.f32 %v2051, 1.442695
      %v2074 = vpow.pop %v2073
      %v2075 = vmul.f32 %v2052, 1.442695
      %v2076 = vpow.pop %v2075
      %v2077 = vmul.f32 %v2053, 1.442695
      %v2078 = vpow.pop %v2077
      %v2079 = vmul.f32 %v2054, 1.442695
      %v2080 = vpow.pop %v2079
      %v2081 = vmul.f32 %v2055, 1.442695
      %v2082 = vpow.pop %v2081
      %v2083 = vmul.f32 %v2056, 1.442695
      %v2084 = vpow.pop %v2083
      %v2085 = vmul.f32 %v2057, 1.442695
      %v2086 = vpow.pop %v2085
      %v2087 = vmul.f32 %v2058, 1.442695
      %v2088 = vpow.pop %v2087
      %v2089 = vmul.f32 %v2059, 1.442695
      %v2090 = vpow.pop %v2089
      %v2091 = vmul.f32 %v2060, 1.442695
      %v2092 = vpow.pop %v2091
      %v2093 = vsel %vm778, %v2062, 0.0
      %2094 = vadd.xlane.f32.xlu0 %v2093
      %v2095 = vpop.xlane.xlu0 %2094
      %v2096 = vsel %vm778, %v2064, 0.0
      %2097 = vadd.xlane.f32.xlu0 %v2096
      %v2098 = vpop.xlane.xlu0 %2097
      %v2099 = vsel %vm778, %v2066, 0.0
      %2100 = vadd.xlane.f32.xlu0 %v2099
      %v2101 = vpop.xlane.xlu0 %2100
      %v2102 = vsel %vm778, %v2068, 0.0
      %2103 = vadd.xlane.f32.xlu0 %v2102
      %v2104 = vpop.xlane.xlu0 %2103
      %v2105 = vsel %vm778, %v2070, 0.0
      %2106 = vadd.xlane.f32.xlu0 %v2105
      %v2107 = vpop.xlane.xlu0 %2106
      %v2108 = vsel %vm778, %v2072, 0.0
      %2109 = vadd.xlane.f32.xlu0 %v2108
      %v2110 = vpop.xlane.xlu0 %2109
      %v2111 = vsel %vm778, %v2074, 0.0
      %2112 = vadd.xlane.f32.xlu0 %v2111
      %v2113 = vpop.xlane.xlu0 %2112
      %v2114 = vsel %vm778, %v2076, 0.0
      %2115 = vadd.xlane.f32.xlu0 %v2114
      %v2116 = vpop.xlane.xlu0 %2115
      %v2117 = vsel %vm778, %v2078, 0.0
      %2118 = vadd.xlane.f32.xlu0 %v2117
      %v2119 = vpop.xlane.xlu0 %2118
      %v2120 = vsel %vm778, %v2080, 0.0
      %2121 = vadd.xlane.f32.xlu0 %v2120
      %v2122 = vpop.xlane.xlu0 %2121
      %v2123 = vsel %vm778, %v2082, 0.0
      %2124 = vadd.xlane.f32.xlu0 %v2123
      %v2125 = vpop.xlane.xlu0 %2124
      %v2126 = vsel %vm778, %v2084, 0.0
      %2127 = vadd.xlane.f32.xlu0 %v2126
      %v2128 = vpop.xlane.xlu0 %2127
      %v2129 = vsel %vm778, %v2086, 0.0
      %2130 = vadd.xlane.f32.xlu0 %v2129
      %v2131 = vpop.xlane.xlu0 %2130
      %v2132 = vsel %vm778, %v2088, 0.0
      %2133 = vadd.xlane.f32.xlu0 %v2132
      %v2134 = vpop.xlane.xlu0 %2133
      %v2135 = vsel %vm778, %v2090, 0.0
      %2136 = vadd.xlane.f32.xlu0 %v2135
      %v2137 = vpop.xlane.xlu0 %2136
      %v2138 = vsel %vm778, %v2092, 0.0
      %2139 = vadd.xlane.f32.xlu0 %v2138
      %v2140 = vpop.xlane.xlu0 %2139
      %v2141 = vrcp.pop %v2095
      %v2142 = vmul.f32 %v2095, %v2141
      %v2143 = vsub.f32 1.0, %v2142
      %v2144 = vmul.f32 %v2141, %v2143
      %v2145 = vadd.f32 %v2141, %v2144
      %vm2146 = vweird.f32 %v2095
      %vm2147 = vweird.f32 %v2141
      %vm2148 = vmor %vm2146, %vm2147
      %v2149 = vsel %vm2148, %v2141, %v2145
      %v2150 = vand.u32 2147483647, %v2095
      %vm2151 = vcmp.eq.f32.partialorder %v2150, 8.507059e+37
      %v2152 = vand.u32 %v2095, 2147483648
      %v2153 = vor.u32 1.1754944e-38, %v2152
      %v2154 = vsel %vm2151, %v2153, %v2149
      %v2155 = vmul.f32 %v2062, %v2154
      %v2156 = vrcp.pop %v2098
      %v2157 = vmul.f32 %v2098, %v2156
      %v2158 = vsub.f32 1.0, %v2157
      %v2159 = vmul.f32 %v2156, %v2158
      %v2160 = vadd.f32 %v2156, %v2159
      %vm2161 = vweird.f32 %v2098
      %vm2162 = vweird.f32 %v2156
      %vm2163 = vmor %vm2161, %vm2162
      %v2164 = vsel %vm2163, %v2156, %v2160
      %v2165 = vand.u32 2147483647, %v2098
      %vm2166 = vcmp.eq.f32.partialorder %v2165, 8.507059e+37
      %v2167 = vand.u32 %v2098, 2147483648
      %v2168 = vor.u32 1.1754944e-38, %v2167
      %v2169 = vsel %vm2166, %v2168, %v2164
      %v2170 = vmul.f32 %v2064, %v2169
      %v2171 = vrcp.pop %v2101
      %v2172 = vmul.f32 %v2101, %v2171
      %v2173 = vsub.f32 1.0, %v2172
      %v2174 = vmul.f32 %v2171, %v2173
      %v2175 = vadd.f32 %v2171, %v2174
      %vm2176 = vweird.f32 %v2101
      %vm2177 = vweird.f32 %v2171
      %vm2178 = vmor %vm2176, %vm2177
      %v2179 = vsel %vm2178, %v2171, %v2175
      %v2180 = vand.u32 2147483647, %v2101
      %vm2181 = vcmp.eq.f32.partialorder %v2180, 8.507059e+37
      %v2182 = vand.u32 %v2101, 2147483648
      %v2183 = vor.u32 1.1754944e-38, %v2182
      %v2184 = vsel %vm2181, %v2183, %v2179
      %v2185 = vmul.f32 %v2066, %v2184
      %v2186 = vrcp.pop %v2104
      %v2187 = vmul.f32 %v2104, %v2186
      %v2188 = vsub.f32 1.0, %v2187
      %v2189 = vmul.f32 %v2186, %v2188
      %v2190 = vadd.f32 %v2186, %v2189
      %vm2191 = vweird.f32 %v2104
      %vm2192 = vweird.f32 %v2186
      %vm2193 = vmor %vm2191, %vm2192
      %v2194 = vsel %vm2193, %v2186, %v2190
      %v2195 = vand.u32 2147483647, %v2104
      %vm2196 = vcmp.eq.f32.partialorder %v2195, 8.507059e+37
      %v2197 = vand.u32 %v2104, 2147483648
      %v2198 = vor.u32 1.1754944e-38, %v2197
      %v2199 = vsel %vm2196, %v2198, %v2194
      %v2200 = vmul.f32 %v2068, %v2199
      %v2201 = vrcp.pop %v2107
      %v2202 = vmul.f32 %v2107, %v2201
      %v2203 = vsub.f32 1.0, %v2202
      %v2204 = vmul.f32 %v2201, %v2203
      %v2205 = vadd.f32 %v2201, %v2204
      %vm2206 = vweird.f32 %v2107
      %vm2207 = vweird.f32 %v2201
      %vm2208 = vmor %vm2206, %vm2207
      %v2209 = vsel %vm2208, %v2201, %v2205
      %v2210 = vand.u32 2147483647, %v2107
      %vm2211 = vcmp.eq.f32.partialorder %v2210, 8.507059e+37
      %v2212 = vand.u32 %v2107, 2147483648
      %v2213 = vor.u32 1.1754944e-38, %v2212
      %v2214 = vsel %vm2211, %v2213, %v2209
      %v2215 = vmul.f32 %v2070, %v2214
      %v2216 = vrcp.pop %v2110
      %v2217 = vmul.f32 %v2110, %v2216
      %v2218 = vsub.f32 1.0, %v2217
      %v2219 = vmul.f32 %v2216, %v2218
      %v2220 = vadd.f32 %v2216, %v2219
      %vm2221 = vweird.f32 %v2110
      %vm2222 = vweird.f32 %v2216
      %vm2223 = vmor %vm2221, %vm2222
      %v2224 = vsel %vm2223, %v2216, %v2220
      %v2225 = vand.u32 2147483647, %v2110
      %vm2226 = vcmp.eq.f32.partialorder %v2225, 8.507059e+37
      %v2227 = vand.u32 %v2110, 2147483648
      %v2228 = vor.u32 1.1754944e-38, %v2227
      %v2229 = vsel %vm2226, %v2228, %v2224
      %v2230 = vmul.f32 %v2072, %v2229
      %v2231 = vrcp.pop %v2113
      %v2232 = vmul.f32 %v2113, %v2231
      %v2233 = vsub.f32 1.0, %v2232
      %v2234 = vmul.f32 %v2231, %v2233
      %v2235 = vadd.f32 %v2231, %v2234
      %vm2236 = vweird.f32 %v2113
      %vm2237 = vweird.f32 %v2231
      %vm2238 = vmor %vm2236, %vm2237
      %v2239 = vsel %vm2238, %v2231, %v2235
      %v2240 = vand.u32 2147483647, %v2113
      %vm2241 = vcmp.eq.f32.partialorder %v2240, 8.507059e+37
      %v2242 = vand.u32 %v2113, 2147483648
      %v2243 = vor.u32 1.1754944e-38, %v2242
      %v2244 = vsel %vm2241, %v2243, %v2239
      %v2245 = vmul.f32 %v2074, %v2244
      %v2246 = vrcp.pop %v2116
      %v2247 = vmul.f32 %v2116, %v2246
      %v2248 = vsub.f32 1.0, %v2247
      %v2249 = vmul.f32 %v2246, %v2248
      %v2250 = vadd.f32 %v2246, %v2249
      %vm2251 = vweird.f32 %v2116
      %vm2252 = vweird.f32 %v2246
      %vm2253 = vmor %vm2251, %vm2252
      %v2254 = vsel %vm2253, %v2246, %v2250
      %v2255 = vand.u32 2147483647, %v2116
      %vm2256 = vcmp.eq.f32.partialorder %v2255, 8.507059e+37
      %v2257 = vand.u32 %v2116, 2147483648
      %v2258 = vor.u32 1.1754944e-38, %v2257
      %v2259 = vsel %vm2256, %v2258, %v2254
      %v2260 = vmul.f32 %v2076, %v2259
      %v2261 = vrcp.pop %v2119
      %v2262 = vmul.f32 %v2119, %v2261
      %v2263 = vsub.f32 1.0, %v2262
      %v2264 = vmul.f32 %v2261, %v2263
      %v2265 = vadd.f32 %v2261, %v2264
      %vm2266 = vweird.f32 %v2119
      %vm2267 = vweird.f32 %v2261
      %vm2268 = vmor %vm2266, %vm2267
      %v2269 = vsel %vm2268, %v2261, %v2265
      %v2270 = vand.u32 2147483647, %v2119
      %vm2271 = vcmp.eq.f32.partialorder %v2270, 8.507059e+37
      %v2272 = vand.u32 %v2119, 2147483648
      %v2273 = vor.u32 1.1754944e-38, %v2272
      %v2274 = vsel %vm2271, %v2273, %v2269
      %v2275 = vmul.f32 %v2078, %v2274
      %v2276 = vrcp.pop %v2122
      %v2277 = vmul.f32 %v2122, %v2276
      %v2278 = vsub.f32 1.0, %v2277
      %v2279 = vmul.f32 %v2276, %v2278
      %v2280 = vadd.f32 %v2276, %v2279
      %vm2281 = vweird.f32 %v2122
      %vm2282 = vweird.f32 %v2276
      %vm2283 = vmor %vm2281, %vm2282
      %v2284 = vsel %vm2283, %v2276, %v2280
      %v2285 = vand.u32 2147483647, %v2122
      %vm2286 = vcmp.eq.f32.partialorder %v2285, 8.507059e+37
      %v2287 = vand.u32 %v2122, 2147483648
      %v2288 = vor.u32 1.1754944e-38, %v2287
      %v2289 = vsel %vm2286, %v2288, %v2284
      %v2290 = vmul.f32 %v2080, %v2289
      %v2291 = vrcp.pop %v2125
      %v2292 = vmul.f32 %v2125, %v2291
      %v2293 = vsub.f32 1.0, %v2292
      %v2294 = vmul.f32 %v2291, %v2293
      %v2295 = vadd.f32 %v2291, %v2294
      %vm2296 = vweird.f32 %v2125
      %vm2297 = vweird.f32 %v2291
      %vm2298 = vmor %vm2296, %vm2297
      %v2299 = vsel %vm2298, %v2291, %v2295
      %v2300 = vand.u32 2147483647, %v2125
      %vm2301 = vcmp.eq.f32.partialorder %v2300, 8.507059e+37
      %v2302 = vand.u32 %v2125, 2147483648
      %v2303 = vor.u32 1.1754944e-38, %v2302
      %v2304 = vsel %vm2301, %v2303, %v2299
      %v2305 = vmul.f32 %v2082, %v2304
      %v2306 = vrcp.pop %v2128
      %v2307 = vmul.f32 %v2128, %v2306
      %v2308 = vsub.f32 1.0, %v2307
      %v2309 = vmul.f32 %v2306, %v2308
      %v2310 = vadd.f32 %v2306, %v2309
      %vm2311 = vweird.f32 %v2128
      %vm2312 = vweird.f32 %v2306
      %vm2313 = vmor %vm2311, %vm2312
      %v2314 = vsel %vm2313, %v2306, %v2310
      %v2315 = vand.u32 2147483647, %v2128
      %vm2316 = vcmp.eq.f32.partialorder %v2315, 8.507059e+37
      %v2317 = vand.u32 %v2128, 2147483648
      %v2318 = vor.u32 1.1754944e-38, %v2317
      %v2319 = vsel %vm2316, %v2318, %v2314
      %v2320 = vmul.f32 %v2084, %v2319
      %v2321 = vrcp.pop %v2131
      %v2322 = vmul.f32 %v2131, %v2321
      %v2323 = vsub.f32 1.0, %v2322
      %v2324 = vmul.f32 %v2321, %v2323
      %v2325 = vadd.f32 %v2321, %v2324
      %vm2326 = vweird.f32 %v2131
      %vm2327 = vweird.f32 %v2321
      %vm2328 = vmor %vm2326, %vm2327
      %v2329 = vsel %vm2328, %v2321, %v2325
      %v2330 = vand.u32 2147483647, %v2131
      %vm2331 = vcmp.eq.f32.partialorder %v2330, 8.507059e+37
      %v2332 = vand.u32 %v2131, 2147483648
      %v2333 = vor.u32 1.1754944e-38, %v2332
      %v2334 = vsel %vm2331, %v2333, %v2329
      %v2335 = vmul.f32 %v2086, %v2334
      %v2336 = vrcp.pop %v2134
      %v2337 = vmul.f32 %v2134, %v2336
      %v2338 = vsub.f32 1.0, %v2337
      %v2339 = vmul.f32 %v2336, %v2338
      %v2340 = vadd.f32 %v2336, %v2339
      %vm2341 = vweird.f32 %v2134
      %vm2342 = vweird.f32 %v2336
      %vm2343 = vmor %vm2341, %vm2342
      %v2344 = vsel %vm2343, %v2336, %v2340
      %v2345 = vand.u32 2147483647, %v2134
      %vm2346 = vcmp.eq.f32.partialorder %v2345, 8.507059e+37
      %v2347 = vand.u32 %v2134, 2147483648
      %v2348 = vor.u32 1.1754944e-38, %v2347
      %v2349 = vsel %vm2346, %v2348, %v2344
      %v2350 = vmul.f32 %v2088, %v2349
      %v2351 = vrcp.pop %v2137
      %v2352 = vmul.f32 %v2137, %v2351
      %v2353 = vsub.f32 1.0, %v2352
      %v2354 = vmul.f32 %v2351, %v2353
      %v2355 = vadd.f32 %v2351, %v2354
      %vm2356 = vweird.f32 %v2137
      %vm2357 = vweird.f32 %v2351
      %vm2358 = vmor %vm2356, %vm2357
      %v2359 = vsel %vm2358, %v2351, %v2355
      %v2360 = vand.u32 2147483647, %v2137
      %vm2361 = vcmp.eq.f32.partialorder %v2360, 8.507059e+37
      %v2362 = vand.u32 %v2137, 2147483648
      %v2363 = vor.u32 1.1754944e-38, %v2362
      %v2364 = vsel %vm2361, %v2363, %v2359
      %v2365 = vmul.f32 %v2090, %v2364
      %v2366 = vrcp.pop %v2140
      %v2367 = vmul.f32 %v2140, %v2366
      %v2368 = vsub.f32 1.0, %v2367
      %v2369 = vmul.f32 %v2366, %v2368
      %v2370 = vadd.f32 %v2366, %v2369
      %vm2371 = vweird.f32 %v2140
      %vm2372 = vweird.f32 %v2366
      %vm2373 = vmor %vm2371, %vm2372
      %v2374 = vsel %vm2373, %v2366, %v2370
      %v2375 = vand.u32 2147483647, %v2140
      %vm2376 = vcmp.eq.f32.partialorder %v2375, 8.507059e+37
      %v2377 = vand.u32 %v2140, 2147483648
      %v2378 = vor.u32 1.1754944e-38, %v2377
      %v2379 = vsel %vm2376, %v2378, %v2374
      %v2380 = vmul.f32 %v2092, %v2379
      %v2381 = vpack.c.bf16 %v2155, %v2155
      %v2382 = vpack.c.bf16 %v2170, %v2170
      %v2383 = vpack.c.bf16 %v2185, %v2185
      %v2384 = vpack.c.bf16 %v2200, %v2200
      %v2385 = vpack.c.bf16 %v2215, %v2215
      %v2386 = vpack.c.bf16 %v2230, %v2230
      %v2387 = vpack.c.bf16 %v2245, %v2245
      %v2388 = vpack.c.bf16 %v2260, %v2260
      %v2389 = vpack.c.bf16 %v2275, %v2275
      %v2390 = vpack.c.bf16 %v2290, %v2290
      %v2391 = vpack.c.bf16 %v2305, %v2305
      %v2392 = vpack.c.bf16 %v2320, %v2320
      %v2393 = vpack.c.bf16 %v2335, %v2335
      %v2394 = vpack.c.bf16 %v2350, %v2350
      %v2395 = vpack.c.bf16 %v2365, %v2365
      %v2396 = vpack.c.bf16 %v2380, %v2380
      %v2398 = vunpack.c.l.b16 %v1179
      %v2399 = vpack.c.b16 %v2398, %v2398
      %2400 = vrot.lane.b32.xlu0 %v2399, 120
      %v2401 = vpop.permute.xlu0 %2400
      %v2403 = vsel %vm1195, %v2381, 0
      %v2406 = vsel %vm1199, %v2401, 0
      %2408 = vmatpush.bf16.msra.mxu0 0
      %2409 = vmatpush.bf16.msra.mxu0 0
      %2410 = vmatpush.bf16.msra.mxu0 0
      %2411 = vmatpush.bf16.msra.mxu0 0
      %2412 = vmatpush.bf16.msra.mxu0 0
      %2413 = vmatpush.bf16.msra.mxu0 0
      %2414 = vmatpush.bf16.msra.mxu0 0
      %2415 = vmatpush.bf16.msra.mxu0 %v2406
      %2416 = vmatmul.bf16.gmra.mxu0 %v2403
      %v2417 = vpop.f32.mrf.mxu0
      %v2418 = vadd.f32 0.0, %v2417
      %v2419 = vpop.f32.mrf.mxu0
      %2420 = vdwg.mxu0
      %v2422 = vunpack.c.l.b16 %v1180
      %v2423 = vpack.c.b16 %v2422, %v2422
      %2424 = vrot.lane.b32.xlu0 %v2423, 120
      %v2425 = vpop.permute.xlu0 %2424
      %v2427 = vsel %vm1195, %v2382, 0
      %v2430 = vsel %vm1199, %v2425, 0
      %2432 = vmatpush.bf16.msra.mxu0 0
      %2433 = vmatpush.bf16.msra.mxu0 0
      %2434 = vmatpush.bf16.msra.mxu0 0
      %2435 = vmatpush.bf16.msra.mxu0 0
      %2436 = vmatpush.bf16.msra.mxu0 0
      %2437 = vmatpush.bf16.msra.mxu0 0
      %2438 = vmatpush.bf16.msra.mxu0 0
      %2439 = vmatpush.bf16.msra.mxu0 %v2430
      %2440 = vmatmul.bf16.gmra.mxu0 %v2427
      %v2441 = vpop.f32.mrf.mxu0
      %v2442 = vadd.f32 0.0, %v2441
      %v2443 = vpop.f32.mrf.mxu0
      %2444 = vdwg.mxu0
      %v2446 = vunpack.c.l.b16 %v1181
      %v2447 = vpack.c.b16 %v2446, %v2446
      %2448 = vrot.lane.b32.xlu0 %v2447, 120
      %v2449 = vpop.permute.xlu0 %2448
      %v2451 = vsel %vm1195, %v2383, 0
      %v2454 = vsel %vm1199, %v2449, 0
      %2456 = vmatpush.bf16.msra.mxu0 0
      %2457 = vmatpush.bf16.msra.mxu0 0
      %2458 = vmatpush.bf16.msra.mxu0 0
      %2459 = vmatpush.bf16.msra.mxu0 0
      %2460 = vmatpush.bf16.msra.mxu0 0
      %2461 = vmatpush.bf16.msra.mxu0 0
      %2462 = vmatpush.bf16.msra.mxu0 0
      %2463 = vmatpush.bf16.msra.mxu0 %v2454
      %2464 = vmatmul.bf16.gmra.mxu0 %v2451
      %v2465 = vpop.f32.mrf.mxu0
      %v2466 = vadd.f32 0.0, %v2465
      %v2467 = vpop.f32.mrf.mxu0
      %2468 = vdwg.mxu0
      %v2470 = vunpack.c.l.b16 %v1182
      %v2471 = vpack.c.b16 %v2470, %v2470
      %2472 = vrot.lane.b32.xlu0 %v2471, 120
      %v2473 = vpop.permute.xlu0 %2472
      %v2475 = vsel %vm1195, %v2384, 0
      %v2478 = vsel %vm1199, %v2473, 0
      %2480 = vmatpush.bf16.msra.mxu0 0
      %2481 = vmatpush.bf16.msra.mxu0 0
      %2482 = vmatpush.bf16.msra.mxu0 0
      %2483 = vmatpush.bf16.msra.mxu0 0
      %2484 = vmatpush.bf16.msra.mxu0 0
      %2485 = vmatpush.bf16.msra.mxu0 0
      %2486 = vmatpush.bf16.msra.mxu0 0
      %2487 = vmatpush.bf16.msra.mxu0 %v2478
      %2488 = vmatmul.bf16.gmra.mxu0 %v2475
      %v2489 = vpop.f32.mrf.mxu0
      %v2490 = vadd.f32 0.0, %v2489
      %v2491 = vpop.f32.mrf.mxu0
      %2492 = vdwg.mxu0
      %v2494 = vunpack.c.l.b16 %v1183
      %v2495 = vpack.c.b16 %v2494, %v2494
      %2496 = vrot.lane.b32.xlu0 %v2495, 120
      %v2497 = vpop.permute.xlu0 %2496
      %v2499 = vsel %vm1195, %v2385, 0
      %v2502 = vsel %vm1199, %v2497, 0
      %2504 = vmatpush.bf16.msra.mxu0 0
      %2505 = vmatpush.bf16.msra.mxu0 0
      %2506 = vmatpush.bf16.msra.mxu0 0
      %2507 = vmatpush.bf16.msra.mxu0 0
      %2508 = vmatpush.bf16.msra.mxu0 0
      %2509 = vmatpush.bf16.msra.mxu0 0
      %2510 = vmatpush.bf16.msra.mxu0 0
      %2511 = vmatpush.bf16.msra.mxu0 %v2502
      %2512 = vmatmul.bf16.gmra.mxu0 %v2499
      %v2513 = vpop.f32.mrf.mxu0
      %v2514 = vadd.f32 0.0, %v2513
      %v2515 = vpop.f32.mrf.mxu0
      %2516 = vdwg.mxu0
      %v2518 = vunpack.c.l.b16 %v1184
      %v2519 = vpack.c.b16 %v2518, %v2518
      %2520 = vrot.lane.b32.xlu0 %v2519, 120
      %v2521 = vpop.permute.xlu0 %2520
      %v2523 = vsel %vm1195, %v2386, 0
      %v2526 = vsel %vm1199, %v2521, 0
      %2528 = vmatpush.bf16.msra.mxu0 0
      %2529 = vmatpush.bf16.msra.mxu0 0
      %2530 = vmatpush.bf16.msra.mxu0 0
      %2531 = vmatpush.bf16.msra.mxu0 0
      %2532 = vmatpush.bf16.msra.mxu0 0
      %2533 = vmatpush.bf16.msra.mxu0 0
      %2534 = vmatpush.bf16.msra.mxu0 0
      %2535 = vmatpush.bf16.msra.mxu0 %v2526
      %2536 = vmatmul.bf16.gmra.mxu0 %v2523
      %v2537 = vpop.f32.mrf.mxu0
      %v2538 = vadd.f32 0.0, %v2537
      %v2539 = vpop.f32.mrf.mxu0
      %2540 = vdwg.mxu0
      %v2542 = vunpack.c.l.b16 %v1185
      %v2543 = vpack.c.b16 %v2542, %v2542
      %2544 = vrot.lane.b32.xlu0 %v2543, 120
      %v2545 = vpop.permute.xlu0 %2544
      %v2547 = vsel %vm1195, %v2387, 0
      %v2550 = vsel %vm1199, %v2545, 0
      %2552 = vmatpush.bf16.msra.mxu0 0
      %2553 = vmatpush.bf16.msra.mxu0 0
      %2554 = vmatpush.bf16.msra.mxu0 0
      %2555 = vmatpush.bf16.msra.mxu0 0
      %2556 = vmatpush.bf16.msra.mxu0 0
      %2557 = vmatpush.bf16.msra.mxu0 0
      %2558 = vmatpush.bf16.msra.mxu0 0
      %2559 = vmatpush.bf16.msra.mxu0 %v2550
      %2560 = vmatmul.bf16.gmra.mxu0 %v2547
      %v2561 = vpop.f32.mrf.mxu0
      %v2562 = vadd.f32 0.0, %v2561
      %v2563 = vpop.f32.mrf.mxu0
      %2564 = vdwg.mxu0
      %v2566 = vunpack.c.l.b16 %v1186
      %v2567 = vpack.c.b16 %v2566, %v2566
      %2568 = vrot.lane.b32.xlu0 %v2567, 120
      %v2569 = vpop.permute.xlu0 %2568
      %v2571 = vsel %vm1195, %v2388, 0
      %v2574 = vsel %vm1199, %v2569, 0
      %2576 = vmatpush.bf16.msra.mxu0 0
      %2577 = vmatpush.bf16.msra.mxu0 0
      %2578 = vmatpush.bf16.msra.mxu0 0
      %2579 = vmatpush.bf16.msra.mxu0 0
      %2580 = vmatpush.bf16.msra.mxu0 0
      %2581 = vmatpush.bf16.msra.mxu0 0
      %2582 = vmatpush.bf16.msra.mxu0 0
      %2583 = vmatpush.bf16.msra.mxu0 %v2574
      %2584 = vmatmul.bf16.gmra.mxu0 %v2571
      %v2585 = vpop.f32.mrf.mxu0
      %v2586 = vadd.f32 0.0, %v2585
      %v2587 = vpop.f32.mrf.mxu0
      %2588 = vdwg.mxu0
      %v2590 = vunpack.c.l.b16 %v1187
      %v2591 = vpack.c.b16 %v2590, %v2590
      %2592 = vrot.lane.b32.xlu0 %v2591, 120
      %v2593 = vpop.permute.xlu0 %2592
      %v2595 = vsel %vm1195, %v2389, 0
      %v2598 = vsel %vm1199, %v2593, 0
      %2600 = vmatpush.bf16.msra.mxu0 0
      %2601 = vmatpush.bf16.msra.mxu0 0
      %2602 = vmatpush.bf16.msra.mxu0 0
      %2603 = vmatpush.bf16.msra.mxu0 0
      %2604 = vmatpush.bf16.msra.mxu0 0
      %2605 = vmatpush.bf16.msra.mxu0 0
      %2606 = vmatpush.bf16.msra.mxu0 0
      %2607 = vmatpush.bf16.msra.mxu0 %v2598
      %2608 = vmatmul.bf16.gmra.mxu0 %v2595
      %v2609 = vpop.f32.mrf.mxu0
      %v2610 = vadd.f32 0.0, %v2609
      %v2611 = vpop.f32.mrf.mxu0
      %2612 = vdwg.mxu0
      %v2614 = vunpack.c.l.b16 %v1188
      %v2615 = vpack.c.b16 %v2614, %v2614
      %2616 = vrot.lane.b32.xlu0 %v2615, 120
      %v2617 = vpop.permute.xlu0 %2616
      %v2619 = vsel %vm1195, %v2390, 0
      %v2622 = vsel %vm1199, %v2617, 0
      %2624 = vmatpush.bf16.msra.mxu0 0
      %2625 = vmatpush.bf16.msra.mxu0 0
      %2626 = vmatpush.bf16.msra.mxu0 0
      %2627 = vmatpush.bf16.msra.mxu0 0
      %2628 = vmatpush.bf16.msra.mxu0 0
      %2629 = vmatpush.bf16.msra.mxu0 0
      %2630 = vmatpush.bf16.msra.mxu0 0
      %2631 = vmatpush.bf16.msra.mxu0 %v2622
      %2632 = vmatmul.bf16.gmra.mxu0 %v2619
      %v2633 = vpop.f32.mrf.mxu0
      %v2634 = vadd.f32 0.0, %v2633
      %v2635 = vpop.f32.mrf.mxu0
      %2636 = vdwg.mxu0
      %v2638 = vunpack.c.l.b16 %v1189
      %v2639 = vpack.c.b16 %v2638, %v2638
      %2640 = vrot.lane.b32.xlu0 %v2639, 120
      %v2641 = vpop.permute.xlu0 %2640
      %v2643 = vsel %vm1195, %v2391, 0
      %v2646 = vsel %vm1199, %v2641, 0
      %2648 = vmatpush.bf16.msra.mxu0 0
      %2649 = vmatpush.bf16.msra.mxu0 0
      %2650 = vmatpush.bf16.msra.mxu0 0
      %2651 = vmatpush.bf16.msra.mxu0 0
      %2652 = vmatpush.bf16.msra.mxu0 0
      %2653 = vmatpush.bf16.msra.mxu0 0
      %2654 = vmatpush.bf16.msra.mxu0 0
      %2655 = vmatpush.bf16.msra.mxu0 %v2646
      %2656 = vmatmul.bf16.gmra.mxu0 %v2643
      %v2657 = vpop.f32.mrf.mxu0
      %v2658 = vadd.f32 0.0, %v2657
      %v2659 = vpop.f32.mrf.mxu0
      %2660 = vdwg.mxu0
      %v2662 = vunpack.c.l.b16 %v1190
      %v2663 = vpack.c.b16 %v2662, %v2662
      %2664 = vrot.lane.b32.xlu0 %v2663, 120
      %v2665 = vpop.permute.xlu0 %2664
      %v2667 = vsel %vm1195, %v2392, 0
      %v2670 = vsel %vm1199, %v2665, 0
      %2672 = vmatpush.bf16.msra.mxu0 0
      %2673 = vmatpush.bf16.msra.mxu0 0
      %2674 = vmatpush.bf16.msra.mxu0 0
      %2675 = vmatpush.bf16.msra.mxu0 0
      %2676 = vmatpush.bf16.msra.mxu0 0
      %2677 = vmatpush.bf16.msra.mxu0 0
      %2678 = vmatpush.bf16.msra.mxu0 0
      %2679 = vmatpush.bf16.msra.mxu0 %v2670
      %2680 = vmatmul.bf16.gmra.mxu0 %v2667
      %v2681 = vpop.f32.mrf.mxu0
      %v2682 = vadd.f32 0.0, %v2681
      %v2683 = vpop.f32.mrf.mxu0
      %2684 = vdwg.mxu0
      %v2686 = vunpack.c.l.b16 %v1191
      %v2687 = vpack.c.b16 %v2686, %v2686
      %2688 = vrot.lane.b32.xlu0 %v2687, 120
      %v2689 = vpop.permute.xlu0 %2688
      %v2691 = vsel %vm1195, %v2393, 0
      %v2694 = vsel %vm1199, %v2689, 0
      %2696 = vmatpush.bf16.msra.mxu0 0
      %2697 = vmatpush.bf16.msra.mxu0 0
      %2698 = vmatpush.bf16.msra.mxu0 0
      %2699 = vmatpush.bf16.msra.mxu0 0
      %2700 = vmatpush.bf16.msra.mxu0 0
      %2701 = vmatpush.bf16.msra.mxu0 0
      %2702 = vmatpush.bf16.msra.mxu0 0
      %2703 = vmatpush.bf16.msra.mxu0 %v2694
      %2704 = vmatmul.bf16.gmra.mxu0 %v2691
      %v2705 = vpop.f32.mrf.mxu0
      %v2706 = vadd.f32 0.0, %v2705
      %v2707 = vpop.f32.mrf.mxu0
      %2708 = vdwg.mxu0
      %v2710 = vunpack.c.l.b16 %v1192
      %v2711 = vpack.c.b16 %v2710, %v2710
      %2712 = vrot.lane.b32.xlu0 %v2711, 120
      %v2713 = vpop.permute.xlu0 %2712
      %v2715 = vsel %vm1195, %v2394, 0
      %v2718 = vsel %vm1199, %v2713, 0
      %2720 = vmatpush.bf16.msra.mxu0 0
      %2721 = vmatpush.bf16.msra.mxu0 0
      %2722 = vmatpush.bf16.msra.mxu0 0
      %2723 = vmatpush.bf16.msra.mxu0 0
      %2724 = vmatpush.bf16.msra.mxu0 0
      %2725 = vmatpush.bf16.msra.mxu0 0
      %2726 = vmatpush.bf16.msra.mxu0 0
      %2727 = vmatpush.bf16.msra.mxu0 %v2718
      %2728 = vmatmul.bf16.gmra.mxu0 %v2715
      %v2729 = vpop.f32.mrf.mxu0
      %v2730 = vadd.f32 0.0, %v2729
      %v2731 = vpop.f32.mrf.mxu0
      %2732 = vdwg.mxu0
      %v2734 = vunpack.c.l.b16 %v1193
      %v2735 = vpack.c.b16 %v2734, %v2734
      %2736 = vrot.lane.b32.xlu0 %v2735, 120
      %v2737 = vpop.permute.xlu0 %2736
      %v2739 = vsel %vm1195, %v2395, 0
      %v2742 = vsel %vm1199, %v2737, 0
      %2744 = vmatpush.bf16.msra.mxu0 0
      %2745 = vmatpush.bf16.msra.mxu0 0
      %2746 = vmatpush.bf16.msra.mxu0 0
      %2747 = vmatpush.bf16.msra.mxu0 0
      %2748 = vmatpush.bf16.msra.mxu0 0
      %2749 = vmatpush.bf16.msra.mxu0 0
      %2750 = vmatpush.bf16.msra.mxu0 0
      %2751 = vmatpush.bf16.msra.mxu0 %v2742
      %2752 = vmatmul.bf16.gmra.mxu0 %v2739
      %v2753 = vpop.f32.mrf.mxu0
      %v2754 = vadd.f32 0.0, %v2753
      %v2755 = vpop.f32.mrf.mxu0
      %2756 = vdwg.mxu0
      %v2758 = vunpack.c.l.b16 %v1194
      %v2759 = vpack.c.b16 %v2758, %v2758
      %2760 = vrot.lane.b32.xlu0 %v2759, 120
      %v2761 = vpop.permute.xlu0 %2760
      %v2763 = vsel %vm1195, %v2396, 0
      %v2766 = vsel %vm1199, %v2761, 0
      %2768 = vmatpush.bf16.msra.mxu0 0
      %2769 = vmatpush.bf16.msra.mxu0 0
      %2770 = vmatpush.bf16.msra.mxu0 0
      %2771 = vmatpush.bf16.msra.mxu0 0
      %2772 = vmatpush.bf16.msra.mxu0 0
      %2773 = vmatpush.bf16.msra.mxu0 0
      %2774 = vmatpush.bf16.msra.mxu0 0
      %2775 = vmatpush.bf16.msra.mxu0 %v2766
      %2776 = vmatmul.bf16.gmra.mxu0 %v2763
      %v2777 = vpop.f32.mrf.mxu0
      %v2778 = vadd.f32 0.0, %v2777
      %v2779 = vpop.f32.mrf.mxu0
      %2780 = vdwg.mxu0
      %2781 = vrot.lane.b32.xlu0 %v1503, 112
      %v2782 = vpop.permute.xlu0 %2781
      %2783 = vrot.lane.b32.xlu0 %v1508, 112
      %v2784 = vpop.permute.xlu0 %2783
      %v2786 = vsel %vm393, %v2782, 0
      %v2789 = vsel %vm393, %v2784, 0
      %2791 = vmatpush.bf16.xpose.msra.mxu0 0
      %2792 = vmatpush.bf16.xpose.msra.mxu0 0
      %2793 = vmatpush.bf16.xpose.msra.mxu0 0
      %2794 = vmatpush.bf16.xpose.msra.mxu0 0
      %2795 = vmatpush.bf16.xpose.msra.mxu0 0
      %2796 = vmatpush.bf16.xpose.msra.mxu0 0
      %2797 = vmatpush.bf16.xpose.msra.mxu0 0
      %2798 = vmatpush.bf16.xpose.msra.mxu0 %v2789
      %2799 = vmatmul.bf16.gmra.mxu0 %v2786
      %v2800 = vpop.f32.mrf.mxu0
      %v2801 = vadd.f32 0.0, %v2800
      %v2802 = vpop.f32.mrf.mxu0
      %2803 = vdwg.mxu0
      %2804 = vrot.lane.b32.xlu0 %v1532, 112
      %v2805 = vpop.permute.xlu0 %2804
      %2806 = vrot.lane.b32.xlu0 %v1537, 112
      %v2807 = vpop.permute.xlu0 %2806
      %v2809 = vsel %vm393, %v2805, 0
      %v2812 = vsel %vm393, %v2807, 0
      %2814 = vmatpush.bf16.xpose.msra.mxu0 0
      %2815 = vmatpush.bf16.xpose.msra.mxu0 0
      %2816 = vmatpush.bf16.xpose.msra.mxu0 0
      %2817 = vmatpush.bf16.xpose.msra.mxu0 0
      %2818 = vmatpush.bf16.xpose.msra.mxu0 0
      %2819 = vmatpush.bf16.xpose.msra.mxu0 0
      %2820 = vmatpush.bf16.xpose.msra.mxu0 0
      %2821 = vmatpush.bf16.xpose.msra.mxu0 %v2812
      %2822 = vmatmul.bf16.gmra.mxu0 %v2809
      %v2823 = vpop.f32.mrf.mxu0
      %v2824 = vadd.f32 0.0, %v2823
      %v2825 = vpop.f32.mrf.mxu0
      %2826 = vdwg.mxu0
      %2827 = vrot.lane.b32.xlu0 %v1561, 112
      %v2828 = vpop.permute.xlu0 %2827
      %2829 = vrot.lane.b32.xlu0 %v1566, 112
      %v2830 = vpop.permute.xlu0 %2829
      %v2832 = vsel %vm393, %v2828, 0
      %v2835 = vsel %vm393, %v2830, 0
      %2837 = vmatpush.bf16.xpose.msra.mxu0 0
      %2838 = vmatpush.bf16.xpose.msra.mxu0 0
      %2839 = vmatpush.bf16.xpose.msra.mxu0 0
      %2840 = vmatpush.bf16.xpose.msra.mxu0 0
      %2841 = vmatpush.bf16.xpose.msra.mxu0 0
      %2842 = vmatpush.bf16.xpose.msra.mxu0 0
      %2843 = vmatpush.bf16.xpose.msra.mxu0 0
      %2844 = vmatpush.bf16.xpose.msra.mxu0 %v2835
      %2845 = vmatmul.bf16.gmra.mxu0 %v2832
      %v2846 = vpop.f32.mrf.mxu0
      %v2847 = vadd.f32 0.0, %v2846
      %v2848 = vpop.f32.mrf.mxu0
      %2849 = vdwg.mxu0
      %2850 = vrot.lane.b32.xlu0 %v1590, 112
      %v2851 = vpop.permute.xlu0 %2850
      %2852 = vrot.lane.b32.xlu0 %v1595, 112
      %v2853 = vpop.permute.xlu0 %2852
      %v2855 = vsel %vm393, %v2851, 0
      %v2858 = vsel %vm393, %v2853, 0
      %2860 = vmatpush.bf16.xpose.msra.mxu0 0
      %2861 = vmatpush.bf16.xpose.msra.mxu0 0
      %2862 = vmatpush.bf16.xpose.msra.mxu0 0
      %2863 = vmatpush.bf16.xpose.msra.mxu0 0
      %2864 = vmatpush.bf16.xpose.msra.mxu0 0
      %2865 = vmatpush.bf16.xpose.msra.mxu0 0
      %2866 = vmatpush.bf16.xpose.msra.mxu0 0
      %2867 = vmatpush.bf16.xpose.msra.mxu0 %v2858
      %2868 = vmatmul.bf16.gmra.mxu0 %v2855
      %v2869 = vpop.f32.mrf.mxu0
      %v2870 = vadd.f32 0.0, %v2869
      %v2871 = vpop.f32.mrf.mxu0
      %2872 = vdwg.mxu0
      %2873 = vrot.lane.b32.xlu0 %v1619, 112
      %v2874 = vpop.permute.xlu0 %2873
      %2875 = vrot.lane.b32.xlu0 %v1624, 112
      %v2876 = vpop.permute.xlu0 %2875
      %v2878 = vsel %vm393, %v2874, 0
      %v2881 = vsel %vm393, %v2876, 0
      %2883 = vmatpush.bf16.xpose.msra.mxu0 0
      %2884 = vmatpush.bf16.xpose.msra.mxu0 0
      %2885 = vmatpush.bf16.xpose.msra.mxu0 0
      %2886 = vmatpush.bf16.xpose.msra.mxu0 0
      %2887 = vmatpush.bf16.xpose.msra.mxu0 0
      %2888 = vmatpush.bf16.xpose.msra.mxu0 0
      %2889 = vmatpush.bf16.xpose.msra.mxu0 0
      %2890 = vmatpush.bf16.xpose.msra.mxu0 %v2881
      %2891 = vmatmul.bf16.gmra.mxu0 %v2878
      %v2892 = vpop.f32.mrf.mxu0
      %v2893 = vadd.f32 0.0, %v2892
      %v2894 = vpop.f32.mrf.mxu0
      %2895 = vdwg.mxu0
      %2896 = vrot.lane.b32.xlu0 %v1648, 112
      %v2897 = vpop.permute.xlu0 %2896
      %2898 = vrot.lane.b32.xlu0 %v1653, 112
      %v2899 = vpop.permute.xlu0 %2898
      %v2901 = vsel %vm393, %v2897, 0
      %v2904 = vsel %vm393, %v2899, 0
      %2906 = vmatpush.bf16.xpose.msra.mxu0 0
      %2907 = vmatpush.bf16.xpose.msra.mxu0 0
      %2908 = vmatpush.bf16.xpose.msra.mxu0 0
      %2909 = vmatpush.bf16.xpose.msra.mxu0 0
      %2910 = vmatpush.bf16.xpose.msra.mxu0 0
      %2911 = vmatpush.bf16.xpose.msra.mxu0 0
      %2912 = vmatpush.bf16.xpose.msra.mxu0 0
      %2913 = vmatpush.bf16.xpose.msra.mxu0 %v2904
      %2914 = vmatmul.bf16.gmra.mxu0 %v2901
      %v2915 = vpop.f32.mrf.mxu0
      %v2916 = vadd.f32 0.0, %v2915
      %v2917 = vpop.f32.mrf.mxu0
      %2918 = vdwg.mxu0
      %2919 = vrot.lane.b32.xlu0 %v1677, 112
      %v2920 = vpop.permute.xlu0 %2919
      %2921 = vrot.lane.b32.xlu0 %v1682, 112
      %v2922 = vpop.permute.xlu0 %2921
      %v2924 = vsel %vm393, %v2920, 0
      %v2927 = vsel %vm393, %v2922, 0
      %2929 = vmatpush.bf16.xpose.msra.mxu0 0
      %2930 = vmatpush.bf16.xpose.msra.mxu0 0
      %2931 = vmatpush.bf16.xpose.msra.mxu0 0
      %2932 = vmatpush.bf16.xpose.msra.mxu0 0
      %2933 = vmatpush.bf16.xpose.msra.mxu0 0
      %2934 = vmatpush.bf16.xpose.msra.mxu0 0
      %2935 = vmatpush.bf16.xpose.msra.mxu0 0
      %2936 = vmatpush.bf16.xpose.msra.mxu0 %v2927
      %2937 = vmatmul.bf16.gmra.mxu0 %v2924
      %v2938 = vpop.f32.mrf.mxu0
      %v2939 = vadd.f32 0.0, %v2938
      %v2940 = vpop.f32.mrf.mxu0
      %2941 = vdwg.mxu0
      %2942 = vrot.lane.b32.xlu0 %v1706, 112
      %v2943 = vpop.permute.xlu0 %2942
      %2944 = vrot.lane.b32.xlu0 %v1711, 112
      %v2945 = vpop.permute.xlu0 %2944
      %v2947 = vsel %vm393, %v2943, 0
      %v2950 = vsel %vm393, %v2945, 0
      %2952 = vmatpush.bf16.xpose.msra.mxu0 0
      %2953 = vmatpush.bf16.xpose.msra.mxu0 0
      %2954 = vmatpush.bf16.xpose.msra.mxu0 0
      %2955 = vmatpush.bf16.xpose.msra.mxu0 0
      %2956 = vmatpush.bf16.xpose.msra.mxu0 0
      %2957 = vmatpush.bf16.xpose.msra.mxu0 0
      %2958 = vmatpush.bf16.xpose.msra.mxu0 0
      %2959 = vmatpush.bf16.xpose.msra.mxu0 %v2950
      %2960 = vmatmul.bf16.gmra.mxu0 %v2947
      %v2961 = vpop.f32.mrf.mxu0
      %v2962 = vadd.f32 0.0, %v2961
      %v2963 = vpop.f32.mrf.mxu0
      %2964 = vdwg.mxu0
      %2965 = vrot.lane.b32.xlu0 %v1735, 112
      %v2966 = vpop.permute.xlu0 %2965
      %2967 = vrot.lane.b32.xlu0 %v1740, 112
      %v2968 = vpop.permute.xlu0 %2967
      %v2970 = vsel %vm393, %v2966, 0
      %v2973 = vsel %vm393, %v2968, 0
      %2975 = vmatpush.bf16.xpose.msra.mxu0 0
      %2976 = vmatpush.bf16.xpose.msra.mxu0 0
      %2977 = vmatpush.bf16.xpose.msra.mxu0 0
      %2978 = vmatpush.bf16.xpose.msra.mxu0 0
      %2979 = vmatpush.bf16.xpose.msra.mxu0 0
      %2980 = vmatpush.bf16.xpose.msra.mxu0 0
      %2981 = vmatpush.bf16.xpose.msra.mxu0 0
      %2982 = vmatpush.bf16.xpose.msra.mxu0 %v2973
      %2983 = vmatmul.bf16.gmra.mxu0 %v2970
      %v2984 = vpop.f32.mrf.mxu0
      %v2985 = vadd.f32 0.0, %v2984
      %v2986 = vpop.f32.mrf.mxu0
      %2987 = vdwg.mxu0
      %2988 = vrot.lane.b32.xlu0 %v1764, 112
      %v2989 = vpop.permute.xlu0 %2988
      %2990 = vrot.lane.b32.xlu0 %v1769, 112
      %v2991 = vpop.permute.xlu0 %2990
      %v2993 = vsel %vm393, %v2989, 0
      %v2996 = vsel %vm393, %v2991, 0
      %2998 = vmatpush.bf16.xpose.msra.mxu0 0
      %2999 = vmatpush.bf16.xpose.msra.mxu0 0
      %3000 = vmatpush.bf16.xpose.msra.mxu0 0
      %3001 = vmatpush.bf16.xpose.msra.mxu0 0
      %3002 = vmatpush.bf16.xpose.msra.mxu0 0
      %3003 = vmatpush.bf16.xpose.msra.mxu0 0
      %3004 = vmatpush.bf16.xpose.msra.mxu0 0
      %3005 = vmatpush.bf16.xpose.msra.mxu0 %v2996
      %3006 = vmatmul.bf16.gmra.mxu0 %v2993
      %v3007 = vpop.f32.mrf.mxu0
      %v3008 = vadd.f32 0.0, %v3007
      %v3009 = vpop.f32.mrf.mxu0
      %3010 = vdwg.mxu0
      %3011 = vrot.lane.b32.xlu0 %v1793, 112
      %v3012 = vpop.permute.xlu0 %3011
      %3013 = vrot.lane.b32.xlu0 %v1798, 112
      %v3014 = vpop.permute.xlu0 %3013
      %v3016 = vsel %vm393, %v3012, 0
      %v3019 = vsel %vm393, %v3014, 0
      %3021 = vmatpush.bf16.xpose.msra.mxu0 0
      %3022 = vmatpush.bf16.xpose.msra.mxu0 0
      %3023 = vmatpush.bf16.xpose.msra.mxu0 0
      %3024 = vmatpush.bf16.xpose.msra.mxu0 0
      %3025 = vmatpush.bf16.xpose.msra.mxu0 0
      %3026 = vmatpush.bf16.xpose.msra.mxu0 0
      %3027 = vmatpush.bf16.xpose.msra.mxu0 0
      %3028 = vmatpush.bf16.xpose.msra.mxu0 %v3019
      %3029 = vmatmul.bf16.gmra.mxu0 %v3016
      %v3030 = vpop.f32.mrf.mxu0
      %v3031 = vadd.f32 0.0, %v3030
      %v3032 = vpop.f32.mrf.mxu0
      %3033 = vdwg.mxu0
      %3034 = vrot.lane.b32.xlu0 %v1822, 112
      %v3035 = vpop.permute.xlu0 %3034
      %3036 = vrot.lane.b32.xlu0 %v1827, 112
      %v3037 = vpop.permute.xlu0 %3036
      %v3039 = vsel %vm393, %v3035, 0
      %v3042 = vsel %vm393, %v3037, 0
      %3044 = vmatpush.bf16.xpose.msra.mxu0 0
      %3045 = vmatpush.bf16.xpose.msra.mxu0 0
      %3046 = vmatpush.bf16.xpose.msra.mxu0 0
      %3047 = vmatpush.bf16.xpose.msra.mxu0 0
      %3048 = vmatpush.bf16.xpose.msra.mxu0 0
      %3049 = vmatpush.bf16.xpose.msra.mxu0 0
      %3050 = vmatpush.bf16.xpose.msra.mxu0 0
      %3051 = vmatpush.bf16.xpose.msra.mxu0 %v3042
      %3052 = vmatmul.bf16.gmra.mxu0 %v3039
      %v3053 = vpop.f32.mrf.mxu0
      %v3054 = vadd.f32 0.0, %v3053
      %v3055 = vpop.f32.mrf.mxu0
      %3056 = vdwg.mxu0
      %3057 = vrot.lane.b32.xlu0 %v1851, 112
      %v3058 = vpop.permute.xlu0 %3057
      %3059 = vrot.lane.b32.xlu0 %v1856, 112
      %v3060 = vpop.permute.xlu0 %3059
      %v3062 = vsel %vm393, %v3058, 0
      %v3065 = vsel %vm393, %v3060, 0
      %3067 = vmatpush.bf16.xpose.msra.mxu0 0
      %3068 = vmatpush.bf16.xpose.msra.mxu0 0
      %3069 = vmatpush.bf16.xpose.msra.mxu0 0
      %3070 = vmatpush.bf16.xpose.msra.mxu0 0
      %3071 = vmatpush.bf16.xpose.msra.mxu0 0
      %3072 = vmatpush.bf16.xpose.msra.mxu0 0
      %3073 = vmatpush.bf16.xpose.msra.mxu0 0
      %3074 = vmatpush.bf16.xpose.msra.mxu0 %v3065
      %3075 = vmatmul.bf16.gmra.mxu0 %v3062
      %v3076 = vpop.f32.mrf.mxu0
      %v3077 = vadd.f32 0.0, %v3076
      %v3078 = vpop.f32.mrf.mxu0
      %3079 = vdwg.mxu0
      %3080 = vrot.lane.b32.xlu0 %v1880, 112
      %v3081 = vpop.permute.xlu0 %3080
      %3082 = vrot.lane.b32.xlu0 %v1885, 112
      %v3083 = vpop.permute.xlu0 %3082
      %v3085 = vsel %vm393, %v3081, 0
      %v3088 = vsel %vm393, %v3083, 0
      %3090 = vmatpush.bf16.xpose.msra.mxu0 0
      %3091 = vmatpush.bf16.xpose.msra.mxu0 0
      %3092 = vmatpush.bf16.xpose.msra.mxu0 0
      %3093 = vmatpush.bf16.xpose.msra.mxu0 0
      %3094 = vmatpush.bf16.xpose.msra.mxu0 0
      %3095 = vmatpush.bf16.xpose.msra.mxu0 0
      %3096 = vmatpush.bf16.xpose.msra.mxu0 0
      %3097 = vmatpush.bf16.xpose.msra.mxu0 %v3088
      %3098 = vmatmul.bf16.gmra.mxu0 %v3085
      %v3099 = vpop.f32.mrf.mxu0
      %v3100 = vadd.f32 0.0, %v3099
      %v3101 = vpop.f32.mrf.mxu0
      %3102 = vdwg.mxu0
      %3103 = vrot.lane.b32.xlu0 %v1909, 112
      %v3104 = vpop.permute.xlu0 %3103
      %3105 = vrot.lane.b32.xlu0 %v1914, 112
      %v3106 = vpop.permute.xlu0 %3105
      %v3108 = vsel %vm393, %v3104, 0
      %v3111 = vsel %vm393, %v3106, 0
      %3113 = vmatpush.bf16.xpose.msra.mxu0 0
      %3114 = vmatpush.bf16.xpose.msra.mxu0 0
      %3115 = vmatpush.bf16.xpose.msra.mxu0 0
      %3116 = vmatpush.bf16.xpose.msra.mxu0 0
      %3117 = vmatpush.bf16.xpose.msra.mxu0 0
      %3118 = vmatpush.bf16.xpose.msra.mxu0 0
      %3119 = vmatpush.bf16.xpose.msra.mxu0 0
      %3120 = vmatpush.bf16.xpose.msra.mxu0 %v3111
      %3121 = vmatmul.bf16.gmra.mxu0 %v3108
      %v3122 = vpop.f32.mrf.mxu0
      %v3123 = vadd.f32 0.0, %v3122
      %v3124 = vpop.f32.mrf.mxu0
      %3125 = vdwg.mxu0
      %3126 = vrot.lane.b32.xlu0 %v1938, 112
      %v3127 = vpop.permute.xlu0 %3126
      %3128 = vrot.lane.b32.xlu0 %v1943, 112
      %v3129 = vpop.permute.xlu0 %3128
      %v3131 = vsel %vm393, %v3127, 0
      %v3134 = vsel %vm393, %v3129, 0
      %3136 = vmatpush.bf16.xpose.msra.mxu0 0
      %3137 = vmatpush.bf16.xpose.msra.mxu0 0
      %3138 = vmatpush.bf16.xpose.msra.mxu0 0
      %3139 = vmatpush.bf16.xpose.msra.mxu0 0
      %3140 = vmatpush.bf16.xpose.msra.mxu0 0
      %3141 = vmatpush.bf16.xpose.msra.mxu0 0
      %3142 = vmatpush.bf16.xpose.msra.mxu0 0
      %3143 = vmatpush.bf16.xpose.msra.mxu0 %v3134
      %3144 = vmatmul.bf16.gmra.mxu0 %v3131
      %v3145 = vpop.f32.mrf.mxu0
      %v3146 = vadd.f32 0.0, %v3145
      %v3147 = vpop.f32.mrf.mxu0
      %3148 = vdwg.mxu0
      %v3149 = vmul.f32 %v2801, 0.35355338
      %v3150 = vmul.f32 %v2824, 0.35355338
      %v3151 = vmul.f32 %v2847, 0.35355338
      %v3152 = vmul.f32 %v2870, 0.35355338
      %v3153 = vmul.f32 %v2893, 0.35355338
      %v3154 = vmul.f32 %v2916, 0.35355338
      %v3155 = vmul.f32 %v2939, 0.35355338
      %v3156 = vmul.f32 %v2962, 0.35355338
      %v3157 = vmul.f32 %v2985, 0.35355338
      %v3158 = vmul.f32 %v3008, 0.35355338
      %v3159 = vmul.f32 %v3031, 0.35355338
      %v3160 = vmul.f32 %v3054, 0.35355338
      %v3161 = vmul.f32 %v3077, 0.35355338
      %v3162 = vmul.f32 %v3100, 0.35355338
      %v3163 = vmul.f32 %v3123, 0.35355338
      %v3164 = vmul.f32 %v3146, 0.35355338
      %v3165 = vadd.f32 %v3149, %v730
      %v3166 = vadd.f32 %v3150, %v731
      %v3167 = vadd.f32 %v3151, %v732
      %v3168 = vadd.f32 %v3152, %v733
      %v3169 = vadd.f32 %v3153, %v734
      %v3170 = vadd.f32 %v3154, %v735
      %v3171 = vadd.f32 %v3155, %v736
      %v3172 = vadd.f32 %v3156, %v737
      %v3173 = vadd.f32 %v3157, %v738
      %v3174 = vadd.f32 %v3158, %v739
      %v3175 = vadd.f32 %v3159, %v740
      %v3176 = vadd.f32 %v3160, %v741
      %v3177 = vadd.f32 %v3161, %v742
      %v3178 = vadd.f32 %v3162, %v743
      %v3179 = vadd.f32 %v3163, %v744
      %v3180 = vadd.f32 %v3164, %v745
      %v3181 = vsel %vm778, %v3165, -inf
      %3182 = vmax.xlane.f32.xlu0 %v3181
      %v3183 = vpop.xlane.xlu0 %3182
      %v3184 = vsel %vm778, %v3166, -inf
      %3185 = vmax.xlane.f32.xlu0 %v3184
      %v3186 = vpop.xlane.xlu0 %3185
      %v3187 = vsel %vm778, %v3167, -inf
      %3188 = vmax.xlane.f32.xlu0 %v3187
      %v3189 = vpop.xlane.xlu0 %3188
      %v3190 = vsel %vm778, %v3168, -inf
      %3191 = vmax.xlane.f32.xlu0 %v3190
      %v3192 = vpop.xlane.xlu0 %3191
      %v3193 = vsel %vm778, %v3169, -inf
      %3194 = vmax.xlane.f32.xlu0 %v3193
      %v3195 = vpop.xlane.xlu0 %3194
      %v3196 = vsel %vm778, %v3170, -inf
      %3197 = vmax.xlane.f32.xlu0 %v3196
      %v3198 = vpop.xlane.xlu0 %3197
      %v3199 = vsel %vm778, %v3171, -inf
      %3200 = vmax.xlane.f32.xlu0 %v3199
      %v3201 = vpop.xlane.xlu0 %3200
      %v3202 = vsel %vm778, %v3172, -inf
      %3203 = vmax.xlane.f32.xlu0 %v3202
      %v3204 = vpop.xlane.xlu0 %3203
      %v3205 = vsel %vm778, %v3173, -inf
      %3206 = vmax.xlane.f32.xlu0 %v3205
      %v3207 = vpop.xlane.xlu0 %3206
      %v3208 = vsel %vm778, %v3174, -inf
      %3209 = vmax.xlane.f32.xlu0 %v3208
      %v3210 = vpop.xlane.xlu0 %3209
      %v3211 = vsel %vm778, %v3175, -inf
      %3212 = vmax.xlane.f32.xlu0 %v3211
      %v3213 = vpop.xlane.xlu0 %3212
      %v3214 = vsel %vm778, %v3176, -inf
      %3215 = vmax.xlane.f32.xlu0 %v3214
      %v3216 = vpop.xlane.xlu0 %3215
      %v3217 = vsel %vm778, %v3177, -inf
      %3218 = vmax.xlane.f32.xlu0 %v3217
      %v3219 = vpop.xlane.xlu0 %3218
      %v3220 = vsel %vm778, %v3178, -inf
      %3221 = vmax.xlane.f32.xlu0 %v3220
      %v3222 = vpop.xlane.xlu0 %3221
      %v3223 = vsel %vm778, %v3179, -inf
      %3224 = vmax.xlane.f32.xlu0 %v3223
      %v3225 = vpop.xlane.xlu0 %3224
      %v3226 = vsel %vm778, %v3180, -inf
      %3227 = vmax.xlane.f32.xlu0 %v3226
      %v3228 = vpop.xlane.xlu0 %3227
      %v3229 = vsub.f32 %v3165, %v3183
      %v3230 = vsub.f32 %v3166, %v3186
      %v3231 = vsub.f32 %v3167, %v3189
      %v3232 = vsub.f32 %v3168, %v3192
      %v3233 = vsub.f32 %v3169, %v3195
      %v3234 = vsub.f32 %v3170, %v3198
      %v3235 = vsub.f32 %v3171, %v3201
      %v3236 = vsub.f32 %v3172, %v3204
      %v3237 = vsub.f32 %v3173, %v3207
      %v3238 = vsub.f32 %v3174, %v3210
      %v3239 = vsub.f32 %v3175, %v3213
      %v3240 = vsub.f32 %v3176, %v3216
      %v3241 = vsub.f32 %v3177, %v3219
      %v3242 = vsub.f32 %v3178, %v3222
      %v3243 = vsub.f32 %v3179, %v3225
      %v3244 = vsub.f32 %v3180, %v3228
      %v3245 = vmul.f32 %v3229, 1.442695
      %v3246 = vpow.pop %v3245
      %v3247 = vmul.f32 %v3230, 1.442695
      %v3248 = vpow.pop %v3247
      %v3249 = vmul.f32 %v3231, 1.442695
      %v3250 = vpow.pop %v3249
      %v3251 = vmul.f32 %v3232, 1.442695
      %v3252 = vpow.pop %v3251
      %v3253 = vmul.f32 %v3233, 1.442695
      %v3254 = vpow.pop %v3253
      %v3255 = vmul.f32 %v3234, 1.442695
      %v3256 = vpow.pop %v3255
      %v3257 = vmul.f32 %v3235, 1.442695
      %v3258 = vpow.pop %v3257
      %v3259 = vmul.f32 %v3236, 1.442695
      %v3260 = vpow.pop %v3259
      %v3261 = vmul.f32 %v3237, 1.442695
      %v3262 = vpow.pop %v3261
      %v3263 = vmul.f32 %v3238, 1.442695
      %v3264 = vpow.pop %v3263
      %v3265 = vmul.f32 %v3239, 1.442695
      %v3266 = vpow.pop %v3265
      %v3267 = vmul.f32 %v3240, 1.442695
      %v3268 = vpow.pop %v3267
      %v3269 = vmul.f32 %v3241, 1.442695
      %v3270 = vpow.pop %v3269
      %v3271 = vmul.f32 %v3242, 1.442695
      %v3272 = vpow.pop %v3271
      %v3273 = vmul.f32 %v3243, 1.442695
      %v3274 = vpow.pop %v3273
      %v3275 = vmul.f32 %v3244, 1.442695
      %v3276 = vpow.pop %v3275
      %v3277 = vsel %vm778, %v3246, 0.0
      %3278 = vadd.xlane.f32.xlu0 %v3277
      %v3279 = vpop.xlane.xlu0 %3278
      %v3280 = vsel %vm778, %v3248, 0.0
      %3281 = vadd.xlane.f32.xlu0 %v3280
      %v3282 = vpop.xlane.xlu0 %3281
      %v3283 = vsel %vm778, %v3250, 0.0
      %3284 = vadd.xlane.f32.xlu0 %v3283
      %v3285 = vpop.xlane.xlu0 %3284
      %v3286 = vsel %vm778, %v3252, 0.0
      %3287 = vadd.xlane.f32.xlu0 %v3286
      %v3288 = vpop.xlane.xlu0 %3287
      %v3289 = vsel %vm778, %v3254, 0.0
      %3290 = vadd.xlane.f32.xlu0 %v3289
      %v3291 = vpop.xlane.xlu0 %3290
      %v3292 = vsel %vm778, %v3256, 0.0
      %3293 = vadd.xlane.f32.xlu0 %v3292
      %v3294 = vpop.xlane.xlu0 %3293
      %v3295 = vsel %vm778, %v3258, 0.0
      %3296 = vadd.xlane.f32.xlu0 %v3295
      %v3297 = vpop.xlane.xlu0 %3296
      %v3298 = vsel %vm778, %v3260, 0.0
      %3299 = vadd.xlane.f32.xlu0 %v3298
      %v3300 = vpop.xlane.xlu0 %3299
      %v3301 = vsel %vm778, %v3262, 0.0
      %3302 = vadd.xlane.f32.xlu0 %v3301
      %v3303 = vpop.xlane.xlu0 %3302
      %v3304 = vsel %vm778, %v3264, 0.0
      %3305 = vadd.xlane.f32.xlu0 %v3304
      %v3306 = vpop.xlane.xlu0 %3305
      %v3307 = vsel %vm778, %v3266, 0.0
      %3308 = vadd.xlane.f32.xlu0 %v3307
      %v3309 = vpop.xlane.xlu0 %3308
      %v3310 = vsel %vm778, %v3268, 0.0
      %3311 = vadd.xlane.f32.xlu0 %v3310
      %v3312 = vpop.xlane.xlu0 %3311
      %v3313 = vsel %vm778, %v3270, 0.0
      %3314 = vadd.xlane.f32.xlu0 %v3313
      %v3315 = vpop.xlane.xlu0 %3314
      %v3316 = vsel %vm778, %v3272, 0.0
      %3317 = vadd.xlane.f32.xlu0 %v3316
      %v3318 = vpop.xlane.xlu0 %3317
      %v3319 = vsel %vm778, %v3274, 0.0
      %3320 = vadd.xlane.f32.xlu0 %v3319
      %v3321 = vpop.xlane.xlu0 %3320
      %v3322 = vsel %vm778, %v3276, 0.0
      %3323 = vadd.xlane.f32.xlu0 %v3322
      %v3324 = vpop.xlane.xlu0 %3323
      %v3325 = vrcp.pop %v3279
      %v3326 = vmul.f32 %v3279, %v3325
      %v3327 = vsub.f32 1.0, %v3326
      %v3328 = vmul.f32 %v3325, %v3327
      %v3329 = vadd.f32 %v3325, %v3328
      %vm3330 = vweird.f32 %v3279
      %vm3331 = vweird.f32 %v3325
      %vm3332 = vmor %vm3330, %vm3331
      %v3333 = vsel %vm3332, %v3325, %v3329
      %v3334 = vand.u32 2147483647, %v3279
      %vm3335 = vcmp.eq.f32.partialorder %v3334, 8.507059e+37
      %v3336 = vand.u32 %v3279, 2147483648
      %v3337 = vor.u32 1.1754944e-38, %v3336
      %v3338 = vsel %vm3335, %v3337, %v3333
      %v3339 = vmul.f32 %v3246, %v3338
      %v3340 = vrcp.pop %v3282
      %v3341 = vmul.f32 %v3282, %v3340
      %v3342 = vsub.f32 1.0, %v3341
      %v3343 = vmul.f32 %v3340, %v3342
      %v3344 = vadd.f32 %v3340, %v3343
      %vm3345 = vweird.f32 %v3282
      %vm3346 = vweird.f32 %v3340
      %vm3347 = vmor %vm3345, %vm3346
      %v3348 = vsel %vm3347, %v3340, %v3344
      %v3349 = vand.u32 2147483647, %v3282
      %vm3350 = vcmp.eq.f32.partialorder %v3349, 8.507059e+37
      %v3351 = vand.u32 %v3282, 2147483648
      %v3352 = vor.u32 1.1754944e-38, %v3351
      %v3353 = vsel %vm3350, %v3352, %v3348
      %v3354 = vmul.f32 %v3248, %v3353
      %v3355 = vrcp.pop %v3285
      %v3356 = vmul.f32 %v3285, %v3355
      %v3357 = vsub.f32 1.0, %v3356
      %v3358 = vmul.f32 %v3355, %v3357
      %v3359 = vadd.f32 %v3355, %v3358
      %vm3360 = vweird.f32 %v3285
      %vm3361 = vweird.f32 %v3355
      %vm3362 = vmor %vm3360, %vm3361
      %v3363 = vsel %vm3362, %v3355, %v3359
      %v3364 = vand.u32 2147483647, %v3285
      %vm3365 = vcmp.eq.f32.partialorder %v3364, 8.507059e+37
      %v3366 = vand.u32 %v3285, 2147483648
      %v3367 = vor.u32 1.1754944e-38, %v3366
      %v3368 = vsel %vm3365, %v3367, %v3363
      %v3369 = vmul.f32 %v3250, %v3368
      %v3370 = vrcp.pop %v3288
      %v3371 = vmul.f32 %v3288, %v3370
      %v3372 = vsub.f32 1.0, %v3371
      %v3373 = vmul.f32 %v3370, %v3372
      %v3374 = vadd.f32 %v3370, %v3373
      %vm3375 = vweird.f32 %v3288
      %vm3376 = vweird.f32 %v3370
      %vm3377 = vmor %vm3375, %vm3376
      %v3378 = vsel %vm3377, %v3370, %v3374
      %v3379 = vand.u32 2147483647, %v3288
      %vm3380 = vcmp.eq.f32.partialorder %v3379, 8.507059e+37
      %v3381 = vand.u32 %v3288, 2147483648
      %v3382 = vor.u32 1.1754944e-38, %v3381
      %v3383 = vsel %vm3380, %v3382, %v3378
      %v3384 = vmul.f32 %v3252, %v3383
      %v3385 = vrcp.pop %v3291
      %v3386 = vmul.f32 %v3291, %v3385
      %v3387 = vsub.f32 1.0, %v3386
      %v3388 = vmul.f32 %v3385, %v3387
      %v3389 = vadd.f32 %v3385, %v3388
      %vm3390 = vweird.f32 %v3291
      %vm3391 = vweird.f32 %v3385
      %vm3392 = vmor %vm3390, %vm3391
      %v3393 = vsel %vm3392, %v3385, %v3389
      %v3394 = vand.u32 2147483647, %v3291
      %vm3395 = vcmp.eq.f32.partialorder %v3394, 8.507059e+37
      %v3396 = vand.u32 %v3291, 2147483648
      %v3397 = vor.u32 1.1754944e-38, %v3396
      %v3398 = vsel %vm3395, %v3397, %v3393
      %v3399 = vmul.f32 %v3254, %v3398
      %v3400 = vrcp.pop %v3294
      %v3401 = vmul.f32 %v3294, %v3400
      %v3402 = vsub.f32 1.0, %v3401
      %v3403 = vmul.f32 %v3400, %v3402
      %v3404 = vadd.f32 %v3400, %v3403
      %vm3405 = vweird.f32 %v3294
      %vm3406 = vweird.f32 %v3400
      %vm3407 = vmor %vm3405, %vm3406
      %v3408 = vsel %vm3407, %v3400, %v3404
      %v3409 = vand.u32 2147483647, %v3294
      %vm3410 = vcmp.eq.f32.partialorder %v3409, 8.507059e+37
      %v3411 = vand.u32 %v3294, 2147483648
      %v3412 = vor.u32 1.1754944e-38, %v3411
      %v3413 = vsel %vm3410, %v3412, %v3408
      %v3414 = vmul.f32 %v3256, %v3413
      %v3415 = vrcp.pop %v3297
      %v3416 = vmul.f32 %v3297, %v3415
      %v3417 = vsub.f32 1.0, %v3416
      %v3418 = vmul.f32 %v3415, %v3417
      %v3419 = vadd.f32 %v3415, %v3418
      %vm3420 = vweird.f32 %v3297
      %vm3421 = vweird.f32 %v3415
      %vm3422 = vmor %vm3420, %vm3421
      %v3423 = vsel %vm3422, %v3415, %v3419
      %v3424 = vand.u32 2147483647, %v3297
      %vm3425 = vcmp.eq.f32.partialorder %v3424, 8.507059e+37
      %v3426 = vand.u32 %v3297, 2147483648
      %v3427 = vor.u32 1.1754944e-38, %v3426
      %v3428 = vsel %vm3425, %v3427, %v3423
      %v3429 = vmul.f32 %v3258, %v3428
      %v3430 = vrcp.pop %v3300
      %v3431 = vmul.f32 %v3300, %v3430
      %v3432 = vsub.f32 1.0, %v3431
      %v3433 = vmul.f32 %v3430, %v3432
      %v3434 = vadd.f32 %v3430, %v3433
      %vm3435 = vweird.f32 %v3300
      %vm3436 = vweird.f32 %v3430
      %vm3437 = vmor %vm3435, %vm3436
      %v3438 = vsel %vm3437, %v3430, %v3434
      %v3439 = vand.u32 2147483647, %v3300
      %vm3440 = vcmp.eq.f32.partialorder %v3439, 8.507059e+37
      %v3441 = vand.u32 %v3300, 2147483648
      %v3442 = vor.u32 1.1754944e-38, %v3441
      %v3443 = vsel %vm3440, %v3442, %v3438
      %v3444 = vmul.f32 %v3260, %v3443
      %v3445 = vrcp.pop %v3303
      %v3446 = vmul.f32 %v3303, %v3445
      %v3447 = vsub.f32 1.0, %v3446
      %v3448 = vmul.f32 %v3445, %v3447
      %v3449 = vadd.f32 %v3445, %v3448
      %vm3450 = vweird.f32 %v3303
      %vm3451 = vweird.f32 %v3445
      %vm3452 = vmor %vm3450, %vm3451
      %v3453 = vsel %vm3452, %v3445, %v3449
      %v3454 = vand.u32 2147483647, %v3303
      %vm3455 = vcmp.eq.f32.partialorder %v3454, 8.507059e+37
      %v3456 = vand.u32 %v3303, 2147483648
      %v3457 = vor.u32 1.1754944e-38, %v3456
      %v3458 = vsel %vm3455, %v3457, %v3453
      %v3459 = vmul.f32 %v3262, %v3458
      %v3460 = vrcp.pop %v3306
      %v3461 = vmul.f32 %v3306, %v3460
      %v3462 = vsub.f32 1.0, %v3461
      %v3463 = vmul.f32 %v3460, %v3462
      %v3464 = vadd.f32 %v3460, %v3463
      %vm3465 = vweird.f32 %v3306
      %vm3466 = vweird.f32 %v3460
      %vm3467 = vmor %vm3465, %vm3466
      %v3468 = vsel %vm3467, %v3460, %v3464
      %v3469 = vand.u32 2147483647, %v3306
      %vm3470 = vcmp.eq.f32.partialorder %v3469, 8.507059e+37
      %v3471 = vand.u32 %v3306, 2147483648
      %v3472 = vor.u32 1.1754944e-38, %v3471
      %v3473 = vsel %vm3470, %v3472, %v3468
      %v3474 = vmul.f32 %v3264, %v3473
      %v3475 = vrcp.pop %v3309
      %v3476 = vmul.f32 %v3309, %v3475
      %v3477 = vsub.f32 1.0, %v3476
      %v3478 = vmul.f32 %v3475, %v3477
      %v3479 = vadd.f32 %v3475, %v3478
      %vm3480 = vweird.f32 %v3309
      %vm3481 = vweird.f32 %v3475
      %vm3482 = vmor %vm3480, %vm3481
      %v3483 = vsel %vm3482, %v3475, %v3479
      %v3484 = vand.u32 2147483647, %v3309
      %vm3485 = vcmp.eq.f32.partialorder %v3484, 8.507059e+37
      %v3486 = vand.u32 %v3309, 2147483648
      %v3487 = vor.u32 1.1754944e-38, %v3486
      %v3488 = vsel %vm3485, %v3487, %v3483
      %v3489 = vmul.f32 %v3266, %v3488
      %v3490 = vrcp.pop %v3312
      %v3491 = vmul.f32 %v3312, %v3490
      %v3492 = vsub.f32 1.0, %v3491
      %v3493 = vmul.f32 %v3490, %v3492
      %v3494 = vadd.f32 %v3490, %v3493
      %vm3495 = vweird.f32 %v3312
      %vm3496 = vweird.f32 %v3490
      %vm3497 = vmor %vm3495, %vm3496
      %v3498 = vsel %vm3497, %v3490, %v3494
      %v3499 = vand.u32 2147483647, %v3312
      %vm3500 = vcmp.eq.f32.partialorder %v3499, 8.507059e+37
      %v3501 = vand.u32 %v3312, 2147483648
      %v3502 = vor.u32 1.1754944e-38, %v3501
      %v3503 = vsel %vm3500, %v3502, %v3498
      %v3504 = vmul.f32 %v3268, %v3503
      %v3505 = vrcp.pop %v3315
      %v3506 = vmul.f32 %v3315, %v3505
      %v3507 = vsub.f32 1.0, %v3506
      %v3508 = vmul.f32 %v3505, %v3507
      %v3509 = vadd.f32 %v3505, %v3508
      %vm3510 = vweird.f32 %v3315
      %vm3511 = vweird.f32 %v3505
      %vm3512 = vmor %vm3510, %vm3511
      %v3513 = vsel %vm3512, %v3505, %v3509
      %v3514 = vand.u32 2147483647, %v3315
      %vm3515 = vcmp.eq.f32.partialorder %v3514, 8.507059e+37
      %v3516 = vand.u32 %v3315, 2147483648
      %v3517 = vor.u32 1.1754944e-38, %v3516
      %v3518 = vsel %vm3515, %v3517, %v3513
      %v3519 = vmul.f32 %v3270, %v3518
      %v3520 = vrcp.pop %v3318
      %v3521 = vmul.f32 %v3318, %v3520
      %v3522 = vsub.f32 1.0, %v3521
      %v3523 = vmul.f32 %v3520, %v3522
      %v3524 = vadd.f32 %v3520, %v3523
      %vm3525 = vweird.f32 %v3318
      %vm3526 = vweird.f32 %v3520
      %vm3527 = vmor %vm3525, %vm3526
      %v3528 = vsel %vm3527, %v3520, %v3524
      %v3529 = vand.u32 2147483647, %v3318
      %vm3530 = vcmp.eq.f32.partialorder %v3529, 8.507059e+37
      %v3531 = vand.u32 %v3318, 2147483648
      %v3532 = vor.u32 1.1754944e-38, %v3531
      %v3533 = vsel %vm3530, %v3532, %v3528
      %v3534 = vmul.f32 %v3272, %v3533
      %v3535 = vrcp.pop %v3321
      %v3536 = vmul.f32 %v3321, %v3535
      %v3537 = vsub.f32 1.0, %v3536
      %v3538 = vmul.f32 %v3535, %v3537
      %v3539 = vadd.f32 %v3535, %v3538
      %vm3540 = vweird.f32 %v3321
      %vm3541 = vweird.f32 %v3535
      %vm3542 = vmor %vm3540, %vm3541
      %v3543 = vsel %vm3542, %v3535, %v3539
      %v3544 = vand.u32 2147483647, %v3321
      %vm3545 = vcmp.eq.f32.partialorder %v3544, 8.507059e+37
      %v3546 = vand.u32 %v3321, 2147483648
      %v3547 = vor.u32 1.1754944e-38, %v3546
      %v3548 = vsel %vm3545, %v3547, %v3543
      %v3549 = vmul.f32 %v3274, %v3548
      %v3550 = vrcp.pop %v3324
      %v3551 = vmul.f32 %v3324, %v3550
      %v3552 = vsub.f32 1.0, %v3551
      %v3553 = vmul.f32 %v3550, %v3552
      %v3554 = vadd.f32 %v3550, %v3553
      %vm3555 = vweird.f32 %v3324
      %vm3556 = vweird.f32 %v3550
      %vm3557 = vmor %vm3555, %vm3556
      %v3558 = vsel %vm3557, %v3550, %v3554
      %v3559 = vand.u32 2147483647, %v3324
      %vm3560 = vcmp.eq.f32.partialorder %v3559, 8.507059e+37
      %v3561 = vand.u32 %v3324, 2147483648
      %v3562 = vor.u32 1.1754944e-38, %v3561
      %v3563 = vsel %vm3560, %v3562, %v3558
      %v3564 = vmul.f32 %v3276, %v3563
      %v3565 = vpack.c.bf16 %v3339, %v3339
      %v3566 = vpack.c.bf16 %v3354, %v3354
      %v3567 = vpack.c.bf16 %v3369, %v3369
      %v3568 = vpack.c.bf16 %v3384, %v3384
      %v3569 = vpack.c.bf16 %v3399, %v3399
      %v3570 = vpack.c.bf16 %v3414, %v3414
      %v3571 = vpack.c.bf16 %v3429, %v3429
      %v3572 = vpack.c.bf16 %v3444, %v3444
      %v3573 = vpack.c.bf16 %v3459, %v3459
      %v3574 = vpack.c.bf16 %v3474, %v3474
      %v3575 = vpack.c.bf16 %v3489, %v3489
      %v3576 = vpack.c.bf16 %v3504, %v3504
      %v3577 = vpack.c.bf16 %v3519, %v3519
      %v3578 = vpack.c.bf16 %v3534, %v3534
      %v3579 = vpack.c.bf16 %v3549, %v3549
      %v3580 = vpack.c.bf16 %v3564, %v3564
      %3581 = vrot.lane.b32.xlu0 %v2399, 112
      %v3582 = vpop.permute.xlu0 %3581
      %v3584 = vsel %vm1195, %v3565, 0
      %v3587 = vsel %vm1199, %v3582, 0
      %3589 = vmatpush.bf16.msra.mxu0 0
      %3590 = vmatpush.bf16.msra.mxu0 0
      %3591 = vmatpush.bf16.msra.mxu0 0
      %3592 = vmatpush.bf16.msra.mxu0 0
      %3593 = vmatpush.bf16.msra.mxu0 0
      %3594 = vmatpush.bf16.msra.mxu0 0
      %3595 = vmatpush.bf16.msra.mxu0 0
      %3596 = vmatpush.bf16.msra.mxu0 %v3587
      %3597 = vmatmul.bf16.gmra.mxu0 %v3584
      %v3598 = vpop.f32.mrf.mxu0
      %v3599 = vadd.f32 0.0, %v3598
      %v3600 = vpop.f32.mrf.mxu0
      %3601 = vdwg.mxu0
      %3602 = vrot.lane.b32.xlu0 %v2423, 112
      %v3603 = vpop.permute.xlu0 %3602
      %v3605 = vsel %vm1195, %v3566, 0
      %v3608 = vsel %vm1199, %v3603, 0
      %3610 = vmatpush.bf16.msra.mxu0 0
      %3611 = vmatpush.bf16.msra.mxu0 0
      %3612 = vmatpush.bf16.msra.mxu0 0
      %3613 = vmatpush.bf16.msra.mxu0 0
      %3614 = vmatpush.bf16.msra.mxu0 0
      %3615 = vmatpush.bf16.msra.mxu0 0
      %3616 = vmatpush.bf16.msra.mxu0 0
      %3617 = vmatpush.bf16.msra.mxu0 %v3608
      %3618 = vmatmul.bf16.gmra.mxu0 %v3605
      %v3619 = vpop.f32.mrf.mxu0
      %v3620 = vadd.f32 0.0, %v3619
      %v3621 = vpop.f32.mrf.mxu0
      %3622 = vdwg.mxu0
      %3623 = vrot.lane.b32.xlu0 %v2447, 112
      %v3624 = vpop.permute.xlu0 %3623
      %v3626 = vsel %vm1195, %v3567, 0
      %v3629 = vsel %vm1199, %v3624, 0
      %3631 = vmatpush.bf16.msra.mxu0 0
      %3632 = vmatpush.bf16.msra.mxu0 0
      %3633 = vmatpush.bf16.msra.mxu0 0
      %3634 = vmatpush.bf16.msra.mxu0 0
      %3635 = vmatpush.bf16.msra.mxu0 0
      %3636 = vmatpush.bf16.msra.mxu0 0
      %3637 = vmatpush.bf16.msra.mxu0 0
      %3638 = vmatpush.bf16.msra.mxu0 %v3629
      %3639 = vmatmul.bf16.gmra.mxu0 %v3626
      %v3640 = vpop.f32.mrf.mxu0
      %v3641 = vadd.f32 0.0, %v3640
      %v3642 = vpop.f32.mrf.mxu0
      %3643 = vdwg.mxu0
      %3644 = vrot.lane.b32.xlu0 %v2471, 112
      %v3645 = vpop.permute.xlu0 %3644
      %v3647 = vsel %vm1195, %v3568, 0
      %v3650 = vsel %vm1199, %v3645, 0
      %3652 = vmatpush.bf16.msra.mxu0 0
      %3653 = vmatpush.bf16.msra.mxu0 0
      %3654 = vmatpush.bf16.msra.mxu0 0
      %3655 = vmatpush.bf16.msra.mxu0 0
      %3656 = vmatpush.bf16.msra.mxu0 0
      %3657 = vmatpush.bf16.msra.mxu0 0
      %3658 = vmatpush.bf16.msra.mxu0 0
      %3659 = vmatpush.bf16.msra.mxu0 %v3650
      %3660 = vmatmul.bf16.gmra.mxu0 %v3647
      %v3661 = vpop.f32.mrf.mxu0
      %v3662 = vadd.f32 0.0, %v3661
      %v3663 = vpop.f32.mrf.mxu0
      %3664 = vdwg.mxu0
      %3665 = vrot.lane.b32.xlu0 %v2495, 112
      %v3666 = vpop.permute.xlu0 %3665
      %v3668 = vsel %vm1195, %v3569, 0
      %v3671 = vsel %vm1199, %v3666, 0
      %3673 = vmatpush.bf16.msra.mxu0 0
      %3674 = vmatpush.bf16.msra.mxu0 0
      %3675 = vmatpush.bf16.msra.mxu0 0
      %3676 = vmatpush.bf16.msra.mxu0 0
      %3677 = vmatpush.bf16.msra.mxu0 0
      %3678 = vmatpush.bf16.msra.mxu0 0
      %3679 = vmatpush.bf16.msra.mxu0 0
      %3680 = vmatpush.bf16.msra.mxu0 %v3671
      %3681 = vmatmul.bf16.gmra.mxu0 %v3668
      %v3682 = vpop.f32.mrf.mxu0
      %v3683 = vadd.f32 0.0, %v3682
      %v3684 = vpop.f32.mrf.mxu0
      %3685 = vdwg.mxu0
      %3686 = vrot.lane.b32.xlu0 %v2519, 112
      %v3687 = vpop.permute.xlu0 %3686
      %v3689 = vsel %vm1195, %v3570, 0
      %v3692 = vsel %vm1199, %v3687, 0
      %3694 = vmatpush.bf16.msra.mxu0 0
      %3695 = vmatpush.bf16.msra.mxu0 0
      %3696 = vmatpush.bf16.msra.mxu0 0
      %3697 = vmatpush.bf16.msra.mxu0 0
      %3698 = vmatpush.bf16.msra.mxu0 0
      %3699 = vmatpush.bf16.msra.mxu0 0
      %3700 = vmatpush.bf16.msra.mxu0 0
      %3701 = vmatpush.bf16.msra.mxu0 %v3692
      %3702 = vmatmul.bf16.gmra.mxu0 %v3689
      %v3703 = vpop.f32.mrf.mxu0
      %v3704 = vadd.f32 0.0, %v3703
      %v3705 = vpop.f32.mrf.mxu0
      %3706 = vdwg.mxu0
      %3707 = vrot.lane.b32.xlu0 %v2543, 112
      %v3708 = vpop.permute.xlu0 %3707
      %v3710 = vsel %vm1195, %v3571, 0
      %v3713 = vsel %vm1199, %v3708, 0
      %3715 = vmatpush.bf16.msra.mxu0 0
      %3716 = vmatpush.bf16.msra.mxu0 0
      %3717 = vmatpush.bf16.msra.mxu0 0
      %3718 = vmatpush.bf16.msra.mxu0 0
      %3719 = vmatpush.bf16.msra.mxu0 0
      %3720 = vmatpush.bf16.msra.mxu0 0
      %3721 = vmatpush.bf16.msra.mxu0 0
      %3722 = vmatpush.bf16.msra.mxu0 %v3713
      %3723 = vmatmul.bf16.gmra.mxu0 %v3710
      %v3724 = vpop.f32.mrf.mxu0
      %v3725 = vadd.f32 0.0, %v3724
      %v3726 = vpop.f32.mrf.mxu0
      %3727 = vdwg.mxu0
      %3728 = vrot.lane.b32.xlu0 %v2567, 112
      %v3729 = vpop.permute.xlu0 %3728
      %v3731 = vsel %vm1195, %v3572, 0
      %v3734 = vsel %vm1199, %v3729, 0
      %3736 = vmatpush.bf16.msra.mxu0 0
      %3737 = vmatpush.bf16.msra.mxu0 0
      %3738 = vmatpush.bf16.msra.mxu0 0
      %3739 = vmatpush.bf16.msra.mxu0 0
      %3740 = vmatpush.bf16.msra.mxu0 0
      %3741 = vmatpush.bf16.msra.mxu0 0
      %3742 = vmatpush.bf16.msra.mxu0 0
      %3743 = vmatpush.bf16.msra.mxu0 %v3734
      %3744 = vmatmul.bf16.gmra.mxu0 %v3731
      %v3745 = vpop.f32.mrf.mxu0
      %v3746 = vadd.f32 0.0, %v3745
      %v3747 = vpop.f32.mrf.mxu0
      %3748 = vdwg.mxu0
      %3749 = vrot.lane.b32.xlu0 %v2591, 112
      %v3750 = vpop.permute.xlu0 %3749
      %v3752 = vsel %vm1195, %v3573, 0
      %v3755 = vsel %vm1199, %v3750, 0
      %3757 = vmatpush.bf16.msra.mxu0 0
      %3758 = vmatpush.bf16.msra.mxu0 0
      %3759 = vmatpush.bf16.msra.mxu0 0
      %3760 = vmatpush.bf16.msra.mxu0 0
      %3761 = vmatpush.bf16.msra.mxu0 0
      %3762 = vmatpush.bf16.msra.mxu0 0
      %3763 = vmatpush.bf16.msra.mxu0 0
      %3764 = vmatpush.bf16.msra.mxu0 %v3755
      %3765 = vmatmul.bf16.gmra.mxu0 %v3752
      %v3766 = vpop.f32.mrf.mxu0
      %v3767 = vadd.f32 0.0, %v3766
      %v3768 = vpop.f32.mrf.mxu0
      %3769 = vdwg.mxu0
      %3770 = vrot.lane.b32.xlu0 %v2615, 112
      %v3771 = vpop.permute.xlu0 %3770
      %v3773 = vsel %vm1195, %v3574, 0
      %v3776 = vsel %vm1199, %v3771, 0
      %3778 = vmatpush.bf16.msra.mxu0 0
      %3779 = vmatpush.bf16.msra.mxu0 0
      %3780 = vmatpush.bf16.msra.mxu0 0
      %3781 = vmatpush.bf16.msra.mxu0 0
      %3782 = vmatpush.bf16.msra.mxu0 0
      %3783 = vmatpush.bf16.msra.mxu0 0
      %3784 = vmatpush.bf16.msra.mxu0 0
      %3785 = vmatpush.bf16.msra.mxu0 %v3776
      %3786 = vmatmul.bf16.gmra.mxu0 %v3773
      %v3787 = vpop.f32.mrf.mxu0
      %v3788 = vadd.f32 0.0, %v3787
      %v3789 = vpop.f32.mrf.mxu0
      %3790 = vdwg.mxu0
      %3791 = vrot.lane.b32.xlu0 %v2639, 112
      %v3792 = vpop.permute.xlu0 %3791
      %v3794 = vsel %vm1195, %v3575, 0
      %v3797 = vsel %vm1199, %v3792, 0
      %3799 = vmatpush.bf16.msra.mxu0 0
      %3800 = vmatpush.bf16.msra.mxu0 0
      %3801 = vmatpush.bf16.msra.mxu0 0
      %3802 = vmatpush.bf16.msra.mxu0 0
      %3803 = vmatpush.bf16.msra.mxu0 0
      %3804 = vmatpush.bf16.msra.mxu0 0
      %3805 = vmatpush.bf16.msra.mxu0 0
      %3806 = vmatpush.bf16.msra.mxu0 %v3797
      %3807 = vmatmul.bf16.gmra.mxu0 %v3794
      %v3808 = vpop.f32.mrf.mxu0
      %v3809 = vadd.f32 0.0, %v3808
      %v3810 = vpop.f32.mrf.mxu0
      %3811 = vdwg.mxu0
      %3812 = vrot.lane.b32.xlu0 %v2663, 112
      %v3813 = vpop.permute.xlu0 %3812
      %v3815 = vsel %vm1195, %v3576, 0
      %v3818 = vsel %vm1199, %v3813, 0
      %3820 = vmatpush.bf16.msra.mxu0 0
      %3821 = vmatpush.bf16.msra.mxu0 0
      %3822 = vmatpush.bf16.msra.mxu0 0
      %3823 = vmatpush.bf16.msra.mxu0 0
      %3824 = vmatpush.bf16.msra.mxu0 0
      %3825 = vmatpush.bf16.msra.mxu0 0
      %3826 = vmatpush.bf16.msra.mxu0 0
      %3827 = vmatpush.bf16.msra.mxu0 %v3818
      %3828 = vmatmul.bf16.gmra.mxu0 %v3815
      %v3829 = vpop.f32.mrf.mxu0
      %v3830 = vadd.f32 0.0, %v3829
      %v3831 = vpop.f32.mrf.mxu0
      %3832 = vdwg.mxu0
      %3833 = vrot.lane.b32.xlu0 %v2687, 112
      %v3834 = vpop.permute.xlu0 %3833
      %v3836 = vsel %vm1195, %v3577, 0
      %v3839 = vsel %vm1199, %v3834, 0
      %3841 = vmatpush.bf16.msra.mxu0 0
      %3842 = vmatpush.bf16.msra.mxu0 0
      %3843 = vmatpush.bf16.msra.mxu0 0
      %3844 = vmatpush.bf16.msra.mxu0 0
      %3845 = vmatpush.bf16.msra.mxu0 0
      %3846 = vmatpush.bf16.msra.mxu0 0
      %3847 = vmatpush.bf16.msra.mxu0 0
      %3848 = vmatpush.bf16.msra.mxu0 %v3839
      %3849 = vmatmul.bf16.gmra.mxu0 %v3836
      %v3850 = vpop.f32.mrf.mxu0
      %v3851 = vadd.f32 0.0, %v3850
      %v3852 = vpop.f32.mrf.mxu0
      %3853 = vdwg.mxu0
      %3854 = vrot.lane.b32.xlu0 %v2711, 112
      %v3855 = vpop.permute.xlu0 %3854
      %v3857 = vsel %vm1195, %v3578, 0
      %v3860 = vsel %vm1199, %v3855, 0
      %3862 = vmatpush.bf16.msra.mxu0 0
      %3863 = vmatpush.bf16.msra.mxu0 0
      %3864 = vmatpush.bf16.msra.mxu0 0
      %3865 = vmatpush.bf16.msra.mxu0 0
      %3866 = vmatpush.bf16.msra.mxu0 0
      %3867 = vmatpush.bf16.msra.mxu0 0
      %3868 = vmatpush.bf16.msra.mxu0 0
      %3869 = vmatpush.bf16.msra.mxu0 %v3860
      %3870 = vmatmul.bf16.gmra.mxu0 %v3857
      %v3871 = vpop.f32.mrf.mxu0
      %v3872 = vadd.f32 0.0, %v3871
      %v3873 = vpop.f32.mrf.mxu0
      %3874 = vdwg.mxu0
      %3875 = vrot.lane.b32.xlu0 %v2735, 112
      %v3876 = vpop.permute.xlu0 %3875
      %v3878 = vsel %vm1195, %v3579, 0
      %v3881 = vsel %vm1199, %v3876, 0
      %3883 = vmatpush.bf16.msra.mxu0 0
      %3884 = vmatpush.bf16.msra.mxu0 0
      %3885 = vmatpush.bf16.msra.mxu0 0
      %3886 = vmatpush.bf16.msra.mxu0 0
      %3887 = vmatpush.bf16.msra.mxu0 0
      %3888 = vmatpush.bf16.msra.mxu0 0
      %3889 = vmatpush.bf16.msra.mxu0 0
      %3890 = vmatpush.bf16.msra.mxu0 %v3881
      %3891 = vmatmul.bf16.gmra.mxu0 %v3878
      %v3892 = vpop.f32.mrf.mxu0
      %v3893 = vadd.f32 0.0, %v3892
      %v3894 = vpop.f32.mrf.mxu0
      %3895 = vdwg.mxu0
      %3896 = vrot.lane.b32.xlu0 %v2759, 112
      %v3897 = vpop.permute.xlu0 %3896
      %v3899 = vsel %vm1195, %v3580, 0
      %v3902 = vsel %vm1199, %v3897, 0
      %3904 = vmatpush.bf16.msra.mxu0 0
      %3905 = vmatpush.bf16.msra.mxu0 0
      %3906 = vmatpush.bf16.msra.mxu0 0
      %3907 = vmatpush.bf16.msra.mxu0 0
      %3908 = vmatpush.bf16.msra.mxu0 0
      %3909 = vmatpush.bf16.msra.mxu0 0
      %3910 = vmatpush.bf16.msra.mxu0 0
      %3911 = vmatpush.bf16.msra.mxu0 %v3902
      %3912 = vmatmul.bf16.gmra.mxu0 %v3899
      %v3913 = vpop.f32.mrf.mxu0
      %v3914 = vadd.f32 0.0, %v3913
      %v3915 = vpop.f32.mrf.mxu0
      %3916 = vdwg.mxu0
      %3917 = vrot.lane.b32.xlu0 %v1503, 104
      %v3918 = vpop.permute.xlu0 %3917
      %3919 = vrot.lane.b32.xlu0 %v1508, 104
      %v3920 = vpop.permute.xlu0 %3919
      %v3922 = vsel %vm393, %v3918, 0
      %v3925 = vsel %vm393, %v3920, 0
      %3927 = vmatpush.bf16.xpose.msra.mxu0 0
      %3928 = vmatpush.bf16.xpose.msra.mxu0 0
      %3929 = vmatpush.bf16.xpose.msra.mxu0 0
      %3930 = vmatpush.bf16.xpose.msra.mxu0 0
      %3931 = vmatpush.bf16.xpose.msra.mxu0 0
      %3932 = vmatpush.bf16.xpose.msra.mxu0 0
      %3933 = vmatpush.bf16.xpose.msra.mxu0 0
      %3934 = vmatpush.bf16.xpose.msra.mxu0 %v3925
      %3935 = vmatmul.bf16.gmra.mxu0 %v3922
      %v3936 = vpop.f32.mrf.mxu0
      %v3937 = vadd.f32 0.0, %v3936
      %v3938 = vpop.f32.mrf.mxu0
      %3939 = vdwg.mxu0
      %3940 = vrot.lane.b32.xlu0 %v1532, 104
      %v3941 = vpop.permute.xlu0 %3940
      %3942 = vrot.lane.b32.xlu0 %v1537, 104
      %v3943 = vpop.permute.xlu0 %3942
      %v3945 = vsel %vm393, %v3941, 0
      %v3948 = vsel %vm393, %v3943, 0
      %3950 = vmatpush.bf16.xpose.msra.mxu0 0
      %3951 = vmatpush.bf16.xpose.msra.mxu0 0
      %3952 = vmatpush.bf16.xpose.msra.mxu0 0
      %3953 = vmatpush.bf16.xpose.msra.mxu0 0
      %3954 = vmatpush.bf16.xpose.msra.mxu0 0
      %3955 = vmatpush.bf16.xpose.msra.mxu0 0
      %3956 = vmatpush.bf16.xpose.msra.mxu0 0
      %3957 = vmatpush.bf16.xpose.msra.mxu0 %v3948
      %3958 = vmatmul.bf16.gmra.mxu0 %v3945
      %v3959 = vpop.f32.mrf.mxu0
      %v3960 = vadd.f32 0.0, %v3959
      %v3961 = vpop.f32.mrf.mxu0
      %3962 = vdwg.mxu0
      %3963 = vrot.lane.b32.xlu0 %v1561, 104
      %v3964 = vpop.permute.xlu0 %3963
      %3965 = vrot.lane.b32.xlu0 %v1566, 104
      %v3966 = vpop.permute.xlu0 %3965
      %v3968 = vsel %vm393, %v3964, 0
      %v3971 = vsel %vm393, %v3966, 0
      %3973 = vmatpush.bf16.xpose.msra.mxu0 0
      %3974 = vmatpush.bf16.xpose.msra.mxu0 0
      %3975 = vmatpush.bf16.xpose.msra.mxu0 0
      %3976 = vmatpush.bf16.xpose.msra.mxu0 0
      %3977 = vmatpush.bf16.xpose.msra.mxu0 0
      %3978 = vmatpush.bf16.xpose.msra.mxu0 0
      %3979 = vmatpush.bf16.xpose.msra.mxu0 0
      %3980 = vmatpush.bf16.xpose.msra.mxu0 %v3971
      %3981 = vmatmul.bf16.gmra.mxu0 %v3968
      %v3982 = vpop.f32.mrf.mxu0
      %v3983 = vadd.f32 0.0, %v3982
      %v3984 = vpop.f32.mrf.mxu0
      %3985 = vdwg.mxu0
      %3986 = vrot.lane.b32.xlu0 %v1590, 104
      %v3987 = vpop.permute.xlu0 %3986
      %3988 = vrot.lane.b32.xlu0 %v1595, 104
      %v3989 = vpop.permute.xlu0 %3988
      %v3991 = vsel %vm393, %v3987, 0
      %v3994 = vsel %vm393, %v3989, 0
      %3996 = vmatpush.bf16.xpose.msra.mxu0 0
      %3997 = vmatpush.bf16.xpose.msra.mxu0 0
      %3998 = vmatpush.bf16.xpose.msra.mxu0 0
      %3999 = vmatpush.bf16.xpose.msra.mxu0 0
      %4000 = vmatpush.bf16.xpose.msra.mxu0 0
      %4001 = vmatpush.bf16.xpose.msra.mxu0 0
      %4002 = vmatpush.bf16.xpose.msra.mxu0 0
      %4003 = vmatpush.bf16.xpose.msra.mxu0 %v3994
      %4004 = vmatmul.bf16.gmra.mxu0 %v3991
      %v4005 = vpop.f32.mrf.mxu0
      %v4006 = vadd.f32 0.0, %v4005
      %v4007 = vpop.f32.mrf.mxu0
      %4008 = vdwg.mxu0
      %4009 = vrot.lane.b32.xlu0 %v1619, 104
      %v4010 = vpop.permute.xlu0 %4009
      %4011 = vrot.lane.b32.xlu0 %v1624, 104
      %v4012 = vpop.permute.xlu0 %4011
      %v4014 = vsel %vm393, %v4010, 0
      %v4017 = vsel %vm393, %v4012, 0
      %4019 = vmatpush.bf16.xpose.msra.mxu0 0
      %4020 = vmatpush.bf16.xpose.msra.mxu0 0
      %4021 = vmatpush.bf16.xpose.msra.mxu0 0
      %4022 = vmatpush.bf16.xpose.msra.mxu0 0
      %4023 = vmatpush.bf16.xpose.msra.mxu0 0
      %4024 = vmatpush.bf16.xpose.msra.mxu0 0
      %4025 = vmatpush.bf16.xpose.msra.mxu0 0
      %4026 = vmatpush.bf16.xpose.msra.mxu0 %v4017
      %4027 = vmatmul.bf16.gmra.mxu0 %v4014
      %v4028 = vpop.f32.mrf.mxu0
      %v4029 = vadd.f32 0.0, %v4028
      %v4030 = vpop.f32.mrf.mxu0
      %4031 = vdwg.mxu0
      %4032 = vrot.lane.b32.xlu0 %v1648, 104
      %v4033 = vpop.permute.xlu0 %4032
      %4034 = vrot.lane.b32.xlu0 %v1653, 104
      %v4035 = vpop.permute.xlu0 %4034
      %v4037 = vsel %vm393, %v4033, 0
      %v4040 = vsel %vm393, %v4035, 0
      %4042 = vmatpush.bf16.xpose.msra.mxu0 0
      %4043 = vmatpush.bf16.xpose.msra.mxu0 0
      %4044 = vmatpush.bf16.xpose.msra.mxu0 0
      %4045 = vmatpush.bf16.xpose.msra.mxu0 0
      %4046 = vmatpush.bf16.xpose.msra.mxu0 0
      %4047 = vmatpush.bf16.xpose.msra.mxu0 0
      %4048 = vmatpush.bf16.xpose.msra.mxu0 0
      %4049 = vmatpush.bf16.xpose.msra.mxu0 %v4040
      %4050 = vmatmul.bf16.gmra.mxu0 %v4037
      %v4051 = vpop.f32.mrf.mxu0
      %v4052 = vadd.f32 0.0, %v4051
      %v4053 = vpop.f32.mrf.mxu0
      %4054 = vdwg.mxu0
      %4055 = vrot.lane.b32.xlu0 %v1677, 104
      %v4056 = vpop.permute.xlu0 %4055
      %4057 = vrot.lane.b32.xlu0 %v1682, 104
      %v4058 = vpop.permute.xlu0 %4057
      %v4060 = vsel %vm393, %v4056, 0
      %v4063 = vsel %vm393, %v4058, 0
      %4065 = vmatpush.bf16.xpose.msra.mxu0 0
      %4066 = vmatpush.bf16.xpose.msra.mxu0 0
      %4067 = vmatpush.bf16.xpose.msra.mxu0 0
      %4068 = vmatpush.bf16.xpose.msra.mxu0 0
      %4069 = vmatpush.bf16.xpose.msra.mxu0 0
      %4070 = vmatpush.bf16.xpose.msra.mxu0 0
      %4071 = vmatpush.bf16.xpose.msra.mxu0 0
      %4072 = vmatpush.bf16.xpose.msra.mxu0 %v4063
      %4073 = vmatmul.bf16.gmra.mxu0 %v4060
      %v4074 = vpop.f32.mrf.mxu0
      %v4075 = vadd.f32 0.0, %v4074
      %v4076 = vpop.f32.mrf.mxu0
      %4077 = vdwg.mxu0
      %4078 = vrot.lane.b32.xlu0 %v1706, 104
      %v4079 = vpop.permute.xlu0 %4078
      %4080 = vrot.lane.b32.xlu0 %v1711, 104
      %v4081 = vpop.permute.xlu0 %4080
      %v4083 = vsel %vm393, %v4079, 0
      %v4086 = vsel %vm393, %v4081, 0
      %4088 = vmatpush.bf16.xpose.msra.mxu0 0
      %4089 = vmatpush.bf16.xpose.msra.mxu0 0
      %4090 = vmatpush.bf16.xpose.msra.mxu0 0
      %4091 = vmatpush.bf16.xpose.msra.mxu0 0
      %4092 = vmatpush.bf16.xpose.msra.mxu0 0
      %4093 = vmatpush.bf16.xpose.msra.mxu0 0
      %4094 = vmatpush.bf16.xpose.msra.mxu0 0
      %4095 = vmatpush.bf16.xpose.msra.mxu0 %v4086
      %4096 = vmatmul.bf16.gmra.mxu0 %v4083
      %v4097 = vpop.f32.mrf.mxu0
      %v4098 = vadd.f32 0.0, %v4097
      %v4099 = vpop.f32.mrf.mxu0
      %4100 = vdwg.mxu0
      %4101 = vrot.lane.b32.xlu0 %v1735, 104
      %v4102 = vpop.permute.xlu0 %4101
      %4103 = vrot.lane.b32.xlu0 %v1740, 104
      %v4104 = vpop.permute.xlu0 %4103
      %v4106 = vsel %vm393, %v4102, 0
      %v4109 = vsel %vm393, %v4104, 0
      %4111 = vmatpush.bf16.xpose.msra.mxu0 0
      %4112 = vmatpush.bf16.xpose.msra.mxu0 0
      %4113 = vmatpush.bf16.xpose.msra.mxu0 0
      %4114 = vmatpush.bf16.xpose.msra.mxu0 0
      %4115 = vmatpush.bf16.xpose.msra.mxu0 0
      %4116 = vmatpush.bf16.xpose.msra.mxu0 0
      %4117 = vmatpush.bf16.xpose.msra.mxu0 0
      %4118 = vmatpush.bf16.xpose.msra.mxu0 %v4109
      %4119 = vmatmul.bf16.gmra.mxu0 %v4106
      %v4120 = vpop.f32.mrf.mxu0
      %v4121 = vadd.f32 0.0, %v4120
      %v4122 = vpop.f32.mrf.mxu0
      %4123 = vdwg.mxu0
      %4124 = vrot.lane.b32.xlu0 %v1764, 104
      %v4125 = vpop.permute.xlu0 %4124
      %4126 = vrot.lane.b32.xlu0 %v1769, 104
      %v4127 = vpop.permute.xlu0 %4126
      %v4129 = vsel %vm393, %v4125, 0
      %v4132 = vsel %vm393, %v4127, 0
      %4134 = vmatpush.bf16.xpose.msra.mxu0 0
      %4135 = vmatpush.bf16.xpose.msra.mxu0 0
      %4136 = vmatpush.bf16.xpose.msra.mxu0 0
      %4137 = vmatpush.bf16.xpose.msra.mxu0 0
      %4138 = vmatpush.bf16.xpose.msra.mxu0 0
      %4139 = vmatpush.bf16.xpose.msra.mxu0 0
      %4140 = vmatpush.bf16.xpose.msra.mxu0 0
      %4141 = vmatpush.bf16.xpose.msra.mxu0 %v4132
      %4142 = vmatmul.bf16.gmra.mxu0 %v4129
      %v4143 = vpop.f32.mrf.mxu0
      %v4144 = vadd.f32 0.0, %v4143
      %v4145 = vpop.f32.mrf.mxu0
      %4146 = vdwg.mxu0
      %4147 = vrot.lane.b32.xlu0 %v1793, 104
      %v4148 = vpop.permute.xlu0 %4147
      %4149 = vrot.lane.b32.xlu0 %v1798, 104
      %v4150 = vpop.permute.xlu0 %4149
      %v4152 = vsel %vm393, %v4148, 0
      %v4155 = vsel %vm393, %v4150, 0
      %4157 = vmatpush.bf16.xpose.msra.mxu0 0
      %4158 = vmatpush.bf16.xpose.msra.mxu0 0
      %4159 = vmatpush.bf16.xpose.msra.mxu0 0
      %4160 = vmatpush.bf16.xpose.msra.mxu0 0
      %4161 = vmatpush.bf16.xpose.msra.mxu0 0
      %4162 = vmatpush.bf16.xpose.msra.mxu0 0
      %4163 = vmatpush.bf16.xpose.msra.mxu0 0
      %4164 = vmatpush.bf16.xpose.msra.mxu0 %v4155
      %4165 = vmatmul.bf16.gmra.mxu0 %v4152
      %v4166 = vpop.f32.mrf.mxu0
      %v4167 = vadd.f32 0.0, %v4166
      %v4168 = vpop.f32.mrf.mxu0
      %4169 = vdwg.mxu0
      %4170 = vrot.lane.b32.xlu0 %v1822, 104
      %v4171 = vpop.permute.xlu0 %4170
      %4172 = vrot.lane.b32.xlu0 %v1827, 104
      %v4173 = vpop.permute.xlu0 %4172
      %v4175 = vsel %vm393, %v4171, 0
      %v4178 = vsel %vm393, %v4173, 0
      %4180 = vmatpush.bf16.xpose.msra.mxu0 0
      %4181 = vmatpush.bf16.xpose.msra.mxu0 0
      %4182 = vmatpush.bf16.xpose.msra.mxu0 0
      %4183 = vmatpush.bf16.xpose.msra.mxu0 0
      %4184 = vmatpush.bf16.xpose.msra.mxu0 0
      %4185 = vmatpush.bf16.xpose.msra.mxu0 0
      %4186 = vmatpush.bf16.xpose.msra.mxu0 0
      %4187 = vmatpush.bf16.xpose.msra.mxu0 %v4178
      %4188 = vmatmul.bf16.gmra.mxu0 %v4175
      %v4189 = vpop.f32.mrf.mxu0
      %v4190 = vadd.f32 0.0, %v4189
      %v4191 = vpop.f32.mrf.mxu0
      %4192 = vdwg.mxu0
      %4193 = vrot.lane.b32.xlu0 %v1851, 104
      %v4194 = vpop.permute.xlu0 %4193
      %4195 = vrot.lane.b32.xlu0 %v1856, 104
      %v4196 = vpop.permute.xlu0 %4195
      %v4198 = vsel %vm393, %v4194, 0
      %v4201 = vsel %vm393, %v4196, 0
      %4203 = vmatpush.bf16.xpose.msra.mxu0 0
      %4204 = vmatpush.bf16.xpose.msra.mxu0 0
      %4205 = vmatpush.bf16.xpose.msra.mxu0 0
      %4206 = vmatpush.bf16.xpose.msra.mxu0 0
      %4207 = vmatpush.bf16.xpose.msra.mxu0 0
      %4208 = vmatpush.bf16.xpose.msra.mxu0 0
      %4209 = vmatpush.bf16.xpose.msra.mxu0 0
      %4210 = vmatpush.bf16.xpose.msra.mxu0 %v4201
      %4211 = vmatmul.bf16.gmra.mxu0 %v4198
      %v4212 = vpop.f32.mrf.mxu0
      %v4213 = vadd.f32 0.0, %v4212
      %v4214 = vpop.f32.mrf.mxu0
      %4215 = vdwg.mxu0
      %4216 = vrot.lane.b32.xlu0 %v1880, 104
      %v4217 = vpop.permute.xlu0 %4216
      %4218 = vrot.lane.b32.xlu0 %v1885, 104
      %v4219 = vpop.permute.xlu0 %4218
      %v4221 = vsel %vm393, %v4217, 0
      %v4224 = vsel %vm393, %v4219, 0
      %4226 = vmatpush.bf16.xpose.msra.mxu0 0
      %4227 = vmatpush.bf16.xpose.msra.mxu0 0
      %4228 = vmatpush.bf16.xpose.msra.mxu0 0
      %4229 = vmatpush.bf16.xpose.msra.mxu0 0
      %4230 = vmatpush.bf16.xpose.msra.mxu0 0
      %4231 = vmatpush.bf16.xpose.msra.mxu0 0
      %4232 = vmatpush.bf16.xpose.msra.mxu0 0
      %4233 = vmatpush.bf16.xpose.msra.mxu0 %v4224
      %4234 = vmatmul.bf16.gmra.mxu0 %v4221
      %v4235 = vpop.f32.mrf.mxu0
      %v4236 = vadd.f32 0.0, %v4235
      %v4237 = vpop.f32.mrf.mxu0
      %4238 = vdwg.mxu0
      %4239 = vrot.lane.b32.xlu0 %v1909, 104
      %v4240 = vpop.permute.xlu0 %4239
      %4241 = vrot.lane.b32.xlu0 %v1914, 104
      %v4242 = vpop.permute.xlu0 %4241
      %v4244 = vsel %vm393, %v4240, 0
      %v4247 = vsel %vm393, %v4242, 0
      %4249 = vmatpush.bf16.xpose.msra.mxu0 0
      %4250 = vmatpush.bf16.xpose.msra.mxu0 0
      %4251 = vmatpush.bf16.xpose.msra.mxu0 0
      %4252 = vmatpush.bf16.xpose.msra.mxu0 0
      %4253 = vmatpush.bf16.xpose.msra.mxu0 0
      %4254 = vmatpush.bf16.xpose.msra.mxu0 0
      %4255 = vmatpush.bf16.xpose.msra.mxu0 0
      %4256 = vmatpush.bf16.xpose.msra.mxu0 %v4247
      %4257 = vmatmul.bf16.gmra.mxu0 %v4244
      %v4258 = vpop.f32.mrf.mxu0
      %v4259 = vadd.f32 0.0, %v4258
      %v4260 = vpop.f32.mrf.mxu0
      %4261 = vdwg.mxu0
      %4262 = vrot.lane.b32.xlu0 %v1938, 104
      %v4263 = vpop.permute.xlu0 %4262
      %4264 = vrot.lane.b32.xlu0 %v1943, 104
      %v4265 = vpop.permute.xlu0 %4264
      %v4267 = vsel %vm393, %v4263, 0
      %v4270 = vsel %vm393, %v4265, 0
      %4272 = vmatpush.bf16.xpose.msra.mxu0 0
      %4273 = vmatpush.bf16.xpose.msra.mxu0 0
      %4274 = vmatpush.bf16.xpose.msra.mxu0 0
      %4275 = vmatpush.bf16.xpose.msra.mxu0 0
      %4276 = vmatpush.bf16.xpose.msra.mxu0 0
      %4277 = vmatpush.bf16.xpose.msra.mxu0 0
      %4278 = vmatpush.bf16.xpose.msra.mxu0 0
      %4279 = vmatpush.bf16.xpose.msra.mxu0 %v4270
      %4280 = vmatmul.bf16.gmra.mxu0 %v4267
      %v4281 = vpop.f32.mrf.mxu0
      %v4282 = vadd.f32 0.0, %v4281
      %v4283 = vpop.f32.mrf.mxu0
      %4284 = vdwg.mxu0
      %v4285 = vmul.f32 %v3937, 0.35355338
      %v4286 = vmul.f32 %v3960, 0.35355338
      %v4287 = vmul.f32 %v3983, 0.35355338
      %v4288 = vmul.f32 %v4006, 0.35355338
      %v4289 = vmul.f32 %v4029, 0.35355338
      %v4290 = vmul.f32 %v4052, 0.35355338
      %v4291 = vmul.f32 %v4075, 0.35355338
      %v4292 = vmul.f32 %v4098, 0.35355338
      %v4293 = vmul.f32 %v4121, 0.35355338
      %v4294 = vmul.f32 %v4144, 0.35355338
      %v4295 = vmul.f32 %v4167, 0.35355338
      %v4296 = vmul.f32 %v4190, 0.35355338
      %v4297 = vmul.f32 %v4213, 0.35355338
      %v4298 = vmul.f32 %v4236, 0.35355338
      %v4299 = vmul.f32 %v4259, 0.35355338
      %v4300 = vmul.f32 %v4282, 0.35355338
      %v4301 = vadd.f32 %v4285, %v730
      %v4302 = vadd.f32 %v4286, %v731
      %v4303 = vadd.f32 %v4287, %v732
      %v4304 = vadd.f32 %v4288, %v733
      %v4305 = vadd.f32 %v4289, %v734
      %v4306 = vadd.f32 %v4290, %v735
      %v4307 = vadd.f32 %v4291, %v736
      %v4308 = vadd.f32 %v4292, %v737
      %v4309 = vadd.f32 %v4293, %v738
      %v4310 = vadd.f32 %v4294, %v739
      %v4311 = vadd.f32 %v4295, %v740
      %v4312 = vadd.f32 %v4296, %v741
      %v4313 = vadd.f32 %v4297, %v742
      %v4314 = vadd.f32 %v4298, %v743
      %v4315 = vadd.f32 %v4299, %v744
      %v4316 = vadd.f32 %v4300, %v745
      %v4317 = vsel %vm778, %v4301, -inf
      %4318 = vmax.xlane.f32.xlu0 %v4317
      %v4319 = vpop.xlane.xlu0 %4318
      %v4320 = vsel %vm778, %v4302, -inf
      %4321 = vmax.xlane.f32.xlu0 %v4320
      %v4322 = vpop.xlane.xlu0 %4321
      %v4323 = vsel %vm778, %v4303, -inf
      %4324 = vmax.xlane.f32.xlu0 %v4323
      %v4325 = vpop.xlane.xlu0 %4324
      %v4326 = vsel %vm778, %v4304, -inf
      %4327 = vmax.xlane.f32.xlu0 %v4326
      %v4328 = vpop.xlane.xlu0 %4327
      %v4329 = vsel %vm778, %v4305, -inf
      %4330 = vmax.xlane.f32.xlu0 %v4329
      %v4331 = vpop.xlane.xlu0 %4330
      %v4332 = vsel %vm778, %v4306, -inf
      %4333 = vmax.xlane.f32.xlu0 %v4332
      %v4334 = vpop.xlane.xlu0 %4333
      %v4335 = vsel %vm778, %v4307, -inf
      %4336 = vmax.xlane.f32.xlu0 %v4335
      %v4337 = vpop.xlane.xlu0 %4336
      %v4338 = vsel %vm778, %v4308, -inf
      %4339 = vmax.xlane.f32.xlu0 %v4338
      %v4340 = vpop.xlane.xlu0 %4339
      %v4341 = vsel %vm778, %v4309, -inf
      %4342 = vmax.xlane.f32.xlu0 %v4341
      %v4343 = vpop.xlane.xlu0 %4342
      %v4344 = vsel %vm778, %v4310, -inf
      %4345 = vmax.xlane.f32.xlu0 %v4344
      %v4346 = vpop.xlane.xlu0 %4345
      %v4347 = vsel %vm778, %v4311, -inf
      %4348 = vmax.xlane.f32.xlu0 %v4347
      %v4349 = vpop.xlane.xlu0 %4348
      %v4350 = vsel %vm778, %v4312, -inf
      %4351 = vmax.xlane.f32.xlu0 %v4350
      %v4352 = vpop.xlane.xlu0 %4351
      %v4353 = vsel %vm778, %v4313, -inf
      %4354 = vmax.xlane.f32.xlu0 %v4353
      %v4355 = vpop.xlane.xlu0 %4354
      %v4356 = vsel %vm778, %v4314, -inf
      %4357 = vmax.xlane.f32.xlu0 %v4356
      %v4358 = vpop.xlane.xlu0 %4357
      %v4359 = vsel %vm778, %v4315, -inf
      %4360 = vmax.xlane.f32.xlu0 %v4359
      %v4361 = vpop.xlane.xlu0 %4360
      %v4362 = vsel %vm778, %v4316, -inf
      %4363 = vmax.xlane.f32.xlu0 %v4362
      %v4364 = vpop.xlane.xlu0 %4363
      %v4365 = vsub.f32 %v4301, %v4319
      %v4366 = vsub.f32 %v4302, %v4322
      %v4367 = vsub.f32 %v4303, %v4325
      %v4368 = vsub.f32 %v4304, %v4328
      %v4369 = vsub.f32 %v4305, %v4331
      %v4370 = vsub.f32 %v4306, %v4334
      %v4371 = vsub.f32 %v4307, %v4337
      %v4372 = vsub.f32 %v4308, %v4340
      %v4373 = vsub.f32 %v4309, %v4343
      %v4374 = vsub.f32 %v4310, %v4346
      %v4375 = vsub.f32 %v4311, %v4349
      %v4376 = vsub.f32 %v4312, %v4352
      %v4377 = vsub.f32 %v4313, %v4355
      %v4378 = vsub.f32 %v4314, %v4358
      %v4379 = vsub.f32 %v4315, %v4361
      %v4380 = vsub.f32 %v4316, %v4364
      %v4381 = vmul.f32 %v4365, 1.442695
      %v4382 = vpow.pop %v4381
      %v4383 = vmul.f32 %v4366, 1.442695
      %v4384 = vpow.pop %v4383
      %v4385 = vmul.f32 %v4367, 1.442695
      %v4386 = vpow.pop %v4385
      %v4387 = vmul.f32 %v4368, 1.442695
      %v4388 = vpow.pop %v4387
      %v4389 = vmul.f32 %v4369, 1.442695
      %v4390 = vpow.pop %v4389
      %v4391 = vmul.f32 %v4370, 1.442695
      %v4392 = vpow.pop %v4391
      %v4393 = vmul.f32 %v4371, 1.442695
      %v4394 = vpow.pop %v4393
      %v4395 = vmul.f32 %v4372, 1.442695
      %v4396 = vpow.pop %v4395
      %v4397 = vmul.f32 %v4373, 1.442695
      %v4398 = vpow.pop %v4397
      %v4399 = vmul.f32 %v4374, 1.442695
      %v4400 = vpow.pop %v4399
      %v4401 = vmul.f32 %v4375, 1.442695
      %v4402 = vpow.pop %v4401
      %v4403 = vmul.f32 %v4376, 1.442695
      %v4404 = vpow.pop %v4403
      %v4405 = vmul.f32 %v4377, 1.442695
      %v4406 = vpow.pop %v4405
      %v4407 = vmul.f32 %v4378, 1.442695
      %v4408 = vpow.pop %v4407
      %v4409 = vmul.f32 %v4379, 1.442695
      %v4410 = vpow.pop %v4409
      %v4411 = vmul.f32 %v4380, 1.442695
      %v4412 = vpow.pop %v4411
      %v4413 = vsel %vm778, %v4382, 0.0
      %4414 = vadd.xlane.f32.xlu0 %v4413
      %v4415 = vpop.xlane.xlu0 %4414
      %v4416 = vsel %vm778, %v4384, 0.0
      %4417 = vadd.xlane.f32.xlu0 %v4416
      %v4418 = vpop.xlane.xlu0 %4417
      %v4419 = vsel %vm778, %v4386, 0.0
      %4420 = vadd.xlane.f32.xlu0 %v4419
      %v4421 = vpop.xlane.xlu0 %4420
      %v4422 = vsel %vm778, %v4388, 0.0
      %4423 = vadd.xlane.f32.xlu0 %v4422
      %v4424 = vpop.xlane.xlu0 %4423
      %v4425 = vsel %vm778, %v4390, 0.0
      %4426 = vadd.xlane.f32.xlu0 %v4425
      %v4427 = vpop.xlane.xlu0 %4426
      %v4428 = vsel %vm778, %v4392, 0.0
      %4429 = vadd.xlane.f32.xlu0 %v4428
      %v4430 = vpop.xlane.xlu0 %4429
      %v4431 = vsel %vm778, %v4394, 0.0
      %4432 = vadd.xlane.f32.xlu0 %v4431
      %v4433 = vpop.xlane.xlu0 %4432
      %v4434 = vsel %vm778, %v4396, 0.0
      %4435 = vadd.xlane.f32.xlu0 %v4434
      %v4436 = vpop.xlane.xlu0 %4435
      %v4437 = vsel %vm778, %v4398, 0.0
      %4438 = vadd.xlane.f32.xlu0 %v4437
      %v4439 = vpop.xlane.xlu0 %4438
      %v4440 = vsel %vm778, %v4400, 0.0
      %4441 = vadd.xlane.f32.xlu0 %v4440
      %v4442 = vpop.xlane.xlu0 %4441
      %v4443 = vsel %vm778, %v4402, 0.0
      %4444 = vadd.xlane.f32.xlu0 %v4443
      %v4445 = vpop.xlane.xlu0 %4444
      %v4446 = vsel %vm778, %v4404, 0.0
      %4447 = vadd.xlane.f32.xlu0 %v4446
      %v4448 = vpop.xlane.xlu0 %4447
      %v4449 = vsel %vm778, %v4406, 0.0
      %4450 = vadd.xlane.f32.xlu0 %v4449
      %v4451 = vpop.xlane.xlu0 %4450
      %v4452 = vsel %vm778, %v4408, 0.0
      %4453 = vadd.xlane.f32.xlu0 %v4452
      %v4454 = vpop.xlane.xlu0 %4453
      %v4455 = vsel %vm778, %v4410, 0.0
      %4456 = vadd.xlane.f32.xlu0 %v4455
      %v4457 = vpop.xlane.xlu0 %4456
      %v4458 = vsel %vm778, %v4412, 0.0
      %4459 = vadd.xlane.f32.xlu0 %v4458
      %v4460 = vpop.xlane.xlu0 %4459
      %v4461 = vrcp.pop %v4415
      %v4462 = vmul.f32 %v4415, %v4461
      %v4463 = vsub.f32 1.0, %v4462
      %v4464 = vmul.f32 %v4461, %v4463
      %v4465 = vadd.f32 %v4461, %v4464
      %vm4466 = vweird.f32 %v4415
      %vm4467 = vweird.f32 %v4461
      %vm4468 = vmor %vm4466, %vm4467
      %v4469 = vsel %vm4468, %v4461, %v4465
      %v4470 = vand.u32 2147483647, %v4415
      %vm4471 = vcmp.eq.f32.partialorder %v4470, 8.507059e+37
      %v4472 = vand.u32 %v4415, 2147483648
      %v4473 = vor.u32 1.1754944e-38, %v4472
      %v4474 = vsel %vm4471, %v4473, %v4469
      %v4475 = vmul.f32 %v4382, %v4474
      %v4476 = vrcp.pop %v4418
      %v4477 = vmul.f32 %v4418, %v4476
      %v4478 = vsub.f32 1.0, %v4477
      %v4479 = vmul.f32 %v4476, %v4478
      %v4480 = vadd.f32 %v4476, %v4479
      %vm4481 = vweird.f32 %v4418
      %vm4482 = vweird.f32 %v4476
      %vm4483 = vmor %vm4481, %vm4482
      %v4484 = vsel %vm4483, %v4476, %v4480
      %v4485 = vand.u32 2147483647, %v4418
      %vm4486 = vcmp.eq.f32.partialorder %v4485, 8.507059e+37
      %v4487 = vand.u32 %v4418, 2147483648
      %v4488 = vor.u32 1.1754944e-38, %v4487
      %v4489 = vsel %vm4486, %v4488, %v4484
      %v4490 = vmul.f32 %v4384, %v4489
      %v4491 = vrcp.pop %v4421
      %v4492 = vmul.f32 %v4421, %v4491
      %v4493 = vsub.f32 1.0, %v4492
      %v4494 = vmul.f32 %v4491, %v4493
      %v4495 = vadd.f32 %v4491, %v4494
      %vm4496 = vweird.f32 %v4421
      %vm4497 = vweird.f32 %v4491
      %vm4498 = vmor %vm4496, %vm4497
      %v4499 = vsel %vm4498, %v4491, %v4495
      %v4500 = vand.u32 2147483647, %v4421
      %vm4501 = vcmp.eq.f32.partialorder %v4500, 8.507059e+37
      %v4502 = vand.u32 %v4421, 2147483648
      %v4503 = vor.u32 1.1754944e-38, %v4502
      %v4504 = vsel %vm4501, %v4503, %v4499
      %v4505 = vmul.f32 %v4386, %v4504
      %v4506 = vrcp.pop %v4424
      %v4507 = vmul.f32 %v4424, %v4506
      %v4508 = vsub.f32 1.0, %v4507
      %v4509 = vmul.f32 %v4506, %v4508
      %v4510 = vadd.f32 %v4506, %v4509
      %vm4511 = vweird.f32 %v4424
      %vm4512 = vweird.f32 %v4506
      %vm4513 = vmor %vm4511, %vm4512
      %v4514 = vsel %vm4513, %v4506, %v4510
      %v4515 = vand.u32 2147483647, %v4424
      %vm4516 = vcmp.eq.f32.partialorder %v4515, 8.507059e+37
      %v4517 = vand.u32 %v4424, 2147483648
      %v4518 = vor.u32 1.1754944e-38, %v4517
      %v4519 = vsel %vm4516, %v4518, %v4514
      %v4520 = vmul.f32 %v4388, %v4519
      %v4521 = vrcp.pop %v4427
      %v4522 = vmul.f32 %v4427, %v4521
      %v4523 = vsub.f32 1.0, %v4522
      %v4524 = vmul.f32 %v4521, %v4523
      %v4525 = vadd.f32 %v4521, %v4524
      %vm4526 = vweird.f32 %v4427
      %vm4527 = vweird.f32 %v4521
      %vm4528 = vmor %vm4526, %vm4527
      %v4529 = vsel %vm4528, %v4521, %v4525
      %v4530 = vand.u32 2147483647, %v4427
      %vm4531 = vcmp.eq.f32.partialorder %v4530, 8.507059e+37
      %v4532 = vand.u32 %v4427, 2147483648
      %v4533 = vor.u32 1.1754944e-38, %v4532
      %v4534 = vsel %vm4531, %v4533, %v4529
      %v4535 = vmul.f32 %v4390, %v4534
      %v4536 = vrcp.pop %v4430
      %v4537 = vmul.f32 %v4430, %v4536
      %v4538 = vsub.f32 1.0, %v4537
      %v4539 = vmul.f32 %v4536, %v4538
      %v4540 = vadd.f32 %v4536, %v4539
      %vm4541 = vweird.f32 %v4430
      %vm4542 = vweird.f32 %v4536
      %vm4543 = vmor %vm4541, %vm4542
      %v4544 = vsel %vm4543, %v4536, %v4540
      %v4545 = vand.u32 2147483647, %v4430
      %vm4546 = vcmp.eq.f32.partialorder %v4545, 8.507059e+37
      %v4547 = vand.u32 %v4430, 2147483648
      %v4548 = vor.u32 1.1754944e-38, %v4547
      %v4549 = vsel %vm4546, %v4548, %v4544
      %v4550 = vmul.f32 %v4392, %v4549
      %v4551 = vrcp.pop %v4433
      %v4552 = vmul.f32 %v4433, %v4551
      %v4553 = vsub.f32 1.0, %v4552
      %v4554 = vmul.f32 %v4551, %v4553
      %v4555 = vadd.f32 %v4551, %v4554
      %vm4556 = vweird.f32 %v4433
      %vm4557 = vweird.f32 %v4551
      %vm4558 = vmor %vm4556, %vm4557
      %v4559 = vsel %vm4558, %v4551, %v4555
      %v4560 = vand.u32 2147483647, %v4433
      %vm4561 = vcmp.eq.f32.partialorder %v4560, 8.507059e+37
      %v4562 = vand.u32 %v4433, 2147483648
      %v4563 = vor.u32 1.1754944e-38, %v4562
      %v4564 = vsel %vm4561, %v4563, %v4559
      %v4565 = vmul.f32 %v4394, %v4564
      %v4566 = vrcp.pop %v4436
      %v4567 = vmul.f32 %v4436, %v4566
      %v4568 = vsub.f32 1.0, %v4567
      %v4569 = vmul.f32 %v4566, %v4568
      %v4570 = vadd.f32 %v4566, %v4569
      %vm4571 = vweird.f32 %v4436
      %vm4572 = vweird.f32 %v4566
      %vm4573 = vmor %vm4571, %vm4572
      %v4574 = vsel %vm4573, %v4566, %v4570
      %v4575 = vand.u32 2147483647, %v4436
      %vm4576 = vcmp.eq.f32.partialorder %v4575, 8.507059e+37
      %v4577 = vand.u32 %v4436, 2147483648
      %v4578 = vor.u32 1.1754944e-38, %v4577
      %v4579 = vsel %vm4576, %v4578, %v4574
      %v4580 = vmul.f32 %v4396, %v4579
      %v4581 = vrcp.pop %v4439
      %v4582 = vmul.f32 %v4439, %v4581
      %v4583 = vsub.f32 1.0, %v4582
      %v4584 = vmul.f32 %v4581, %v4583
      %v4585 = vadd.f32 %v4581, %v4584
      %vm4586 = vweird.f32 %v4439
      %vm4587 = vweird.f32 %v4581
      %vm4588 = vmor %vm4586, %vm4587
      %v4589 = vsel %vm4588, %v4581, %v4585
      %v4590 = vand.u32 2147483647, %v4439
      %vm4591 = vcmp.eq.f32.partialorder %v4590, 8.507059e+37
      %v4592 = vand.u32 %v4439, 2147483648
      %v4593 = vor.u32 1.1754944e-38, %v4592
      %v4594 = vsel %vm4591, %v4593, %v4589
      %v4595 = vmul.f32 %v4398, %v4594
      %v4596 = vrcp.pop %v4442
      %v4597 = vmul.f32 %v4442, %v4596
      %v4598 = vsub.f32 1.0, %v4597
      %v4599 = vmul.f32 %v4596, %v4598
      %v4600 = vadd.f32 %v4596, %v4599
      %vm4601 = vweird.f32 %v4442
      %vm4602 = vweird.f32 %v4596
      %vm4603 = vmor %vm4601, %vm4602
      %v4604 = vsel %vm4603, %v4596, %v4600
      %v4605 = vand.u32 2147483647, %v4442
      %vm4606 = vcmp.eq.f32.partialorder %v4605, 8.507059e+37
      %v4607 = vand.u32 %v4442, 2147483648
      %v4608 = vor.u32 1.1754944e-38, %v4607
      %v4609 = vsel %vm4606, %v4608, %v4604
      %v4610 = vmul.f32 %v4400, %v4609
      %v4611 = vrcp.pop %v4445
      %v4612 = vmul.f32 %v4445, %v4611
      %v4613 = vsub.f32 1.0, %v4612
      %v4614 = vmul.f32 %v4611, %v4613
      %v4615 = vadd.f32 %v4611, %v4614
      %vm4616 = vweird.f32 %v4445
      %vm4617 = vweird.f32 %v4611
      %vm4618 = vmor %vm4616, %vm4617
      %v4619 = vsel %vm4618, %v4611, %v4615
      %v4620 = vand.u32 2147483647, %v4445
      %vm4621 = vcmp.eq.f32.partialorder %v4620, 8.507059e+37
      %v4622 = vand.u32 %v4445, 2147483648
      %v4623 = vor.u32 1.1754944e-38, %v4622
      %v4624 = vsel %vm4621, %v4623, %v4619
      %v4625 = vmul.f32 %v4402, %v4624
      %v4626 = vrcp.pop %v4448
      %v4627 = vmul.f32 %v4448, %v4626
      %v4628 = vsub.f32 1.0, %v4627
      %v4629 = vmul.f32 %v4626, %v4628
      %v4630 = vadd.f32 %v4626, %v4629
      %vm4631 = vweird.f32 %v4448
      %vm4632 = vweird.f32 %v4626
      %vm4633 = vmor %vm4631, %vm4632
      %v4634 = vsel %vm4633, %v4626, %v4630
      %v4635 = vand.u32 2147483647, %v4448
      %vm4636 = vcmp.eq.f32.partialorder %v4635, 8.507059e+37
      %v4637 = vand.u32 %v4448, 2147483648
      %v4638 = vor.u32 1.1754944e-38, %v4637
      %v4639 = vsel %vm4636, %v4638, %v4634
      %v4640 = vmul.f32 %v4404, %v4639
      %v4641 = vrcp.pop %v4451
      %v4642 = vmul.f32 %v4451, %v4641
      %v4643 = vsub.f32 1.0, %v4642
      %v4644 = vmul.f32 %v4641, %v4643
      %v4645 = vadd.f32 %v4641, %v4644
      %vm4646 = vweird.f32 %v4451
      %vm4647 = vweird.f32 %v4641
      %vm4648 = vmor %vm4646, %vm4647
      %v4649 = vsel %vm4648, %v4641, %v4645
      %v4650 = vand.u32 2147483647, %v4451
      %vm4651 = vcmp.eq.f32.partialorder %v4650, 8.507059e+37
      %v4652 = vand.u32 %v4451, 2147483648
      %v4653 = vor.u32 1.1754944e-38, %v4652
      %v4654 = vsel %vm4651, %v4653, %v4649
      %v4655 = vmul.f32 %v4406, %v4654
      %v4656 = vrcp.pop %v4454
      %v4657 = vmul.f32 %v4454, %v4656
      %v4658 = vsub.f32 1.0, %v4657
      %v4659 = vmul.f32 %v4656, %v4658
      %v4660 = vadd.f32 %v4656, %v4659
      %vm4661 = vweird.f32 %v4454
      %vm4662 = vweird.f32 %v4656
      %vm4663 = vmor %vm4661, %vm4662
      %v4664 = vsel %vm4663, %v4656, %v4660
      %v4665 = vand.u32 2147483647, %v4454
      %vm4666 = vcmp.eq.f32.partialorder %v4665, 8.507059e+37
      %v4667 = vand.u32 %v4454, 2147483648
      %v4668 = vor.u32 1.1754944e-38, %v4667
      %v4669 = vsel %vm4666, %v4668, %v4664
      %v4670 = vmul.f32 %v4408, %v4669
      %v4671 = vrcp.pop %v4457
      %v4672 = vmul.f32 %v4457, %v4671
      %v4673 = vsub.f32 1.0, %v4672
      %v4674 = vmul.f32 %v4671, %v4673
      %v4675 = vadd.f32 %v4671, %v4674
      %vm4676 = vweird.f32 %v4457
      %vm4677 = vweird.f32 %v4671
      %vm4678 = vmor %vm4676, %vm4677
      %v4679 = vsel %vm4678, %v4671, %v4675
      %v4680 = vand.u32 2147483647, %v4457
      %vm4681 = vcmp.eq.f32.partialorder %v4680, 8.507059e+37
      %v4682 = vand.u32 %v4457, 2147483648
      %v4683 = vor.u32 1.1754944e-38, %v4682
      %v4684 = vsel %vm4681, %v4683, %v4679
      %v4685 = vmul.f32 %v4410, %v4684
      %v4686 = vrcp.pop %v4460
      %v4687 = vmul.f32 %v4460, %v4686
      %v4688 = vsub.f32 1.0, %v4687
      %v4689 = vmul.f32 %v4686, %v4688
      %v4690 = vadd.f32 %v4686, %v4689
      %vm4691 = vweird.f32 %v4460
      %vm4692 = vweird.f32 %v4686
      %vm4693 = vmor %vm4691, %vm4692
      %v4694 = vsel %vm4693, %v4686, %v4690
      %v4695 = vand.u32 2147483647, %v4460
      %vm4696 = vcmp.eq.f32.partialorder %v4695, 8.507059e+37
      %v4697 = vand.u32 %v4460, 2147483648
      %v4698 = vor.u32 1.1754944e-38, %v4697
      %v4699 = vsel %vm4696, %v4698, %v4694
      %v4700 = vmul.f32 %v4412, %v4699
      %v4701 = vpack.c.bf16 %v4475, %v4475
      %v4702 = vpack.c.bf16 %v4490, %v4490
      %v4703 = vpack.c.bf16 %v4505, %v4505
      %v4704 = vpack.c.bf16 %v4520, %v4520
      %v4705 = vpack.c.bf16 %v4535, %v4535
      %v4706 = vpack.c.bf16 %v4550, %v4550
      %v4707 = vpack.c.bf16 %v4565, %v4565
      %v4708 = vpack.c.bf16 %v4580, %v4580
      %v4709 = vpack.c.bf16 %v4595, %v4595
      %v4710 = vpack.c.bf16 %v4610, %v4610
      %v4711 = vpack.c.bf16 %v4625, %v4625
      %v4712 = vpack.c.bf16 %v4640, %v4640
      %v4713 = vpack.c.bf16 %v4655, %v4655
      %v4714 = vpack.c.bf16 %v4670, %v4670
      %v4715 = vpack.c.bf16 %v4685, %v4685
      %v4716 = vpack.c.bf16 %v4700, %v4700
      %4717 = vrot.lane.b32.xlu0 %v2399, 104
      %v4718 = vpop.permute.xlu0 %4717
      %v4720 = vsel %vm1195, %v4701, 0
      %v4723 = vsel %vm1199, %v4718, 0
      %4725 = vmatpush.bf16.msra.mxu0 0
      %4726 = vmatpush.bf16.msra.mxu0 0
      %4727 = vmatpush.bf16.msra.mxu0 0
      %4728 = vmatpush.bf16.msra.mxu0 0
      %4729 = vmatpush.bf16.msra.mxu0 0
      %4730 = vmatpush.bf16.msra.mxu0 0
      %4731 = vmatpush.bf16.msra.mxu0 0
      %4732 = vmatpush.bf16.msra.mxu0 %v4723
      %4733 = vmatmul.bf16.gmra.mxu0 %v4720
      %v4734 = vpop.f32.mrf.mxu0
      %v4735 = vadd.f32 0.0, %v4734
      %v4736 = vpop.f32.mrf.mxu0
      %4737 = vdwg.mxu0
      %4738 = vrot.lane.b32.xlu0 %v2423, 104
      %v4739 = vpop.permute.xlu0 %4738
      %v4741 = vsel %vm1195, %v4702, 0
      %v4744 = vsel %vm1199, %v4739, 0
      %4746 = vmatpush.bf16.msra.mxu0 0
      %4747 = vmatpush.bf16.msra.mxu0 0
      %4748 = vmatpush.bf16.msra.mxu0 0
      %4749 = vmatpush.bf16.msra.mxu0 0
      %4750 = vmatpush.bf16.msra.mxu0 0
      %4751 = vmatpush.bf16.msra.mxu0 0
      %4752 = vmatpush.bf16.msra.mxu0 0
      %4753 = vmatpush.bf16.msra.mxu0 %v4744
      %4754 = vmatmul.bf16.gmra.mxu0 %v4741
      %v4755 = vpop.f32.mrf.mxu0
      %v4756 = vadd.f32 0.0, %v4755
      %v4757 = vpop.f32.mrf.mxu0
      %4758 = vdwg.mxu0
      %4759 = vrot.lane.b32.xlu0 %v2447, 104
      %v4760 = vpop.permute.xlu0 %4759
      %v4762 = vsel %vm1195, %v4703, 0
      %v4765 = vsel %vm1199, %v4760, 0
      %4767 = vmatpush.bf16.msra.mxu0 0
      %4768 = vmatpush.bf16.msra.mxu0 0
      %4769 = vmatpush.bf16.msra.mxu0 0
      %4770 = vmatpush.bf16.msra.mxu0 0
      %4771 = vmatpush.bf16.msra.mxu0 0
      %4772 = vmatpush.bf16.msra.mxu0 0
      %4773 = vmatpush.bf16.msra.mxu0 0
      %4774 = vmatpush.bf16.msra.mxu0 %v4765
      %4775 = vmatmul.bf16.gmra.mxu0 %v4762
      %v4776 = vpop.f32.mrf.mxu0
      %v4777 = vadd.f32 0.0, %v4776
      %v4778 = vpop.f32.mrf.mxu0
      %4779 = vdwg.mxu0
      %4780 = vrot.lane.b32.xlu0 %v2471, 104
      %v4781 = vpop.permute.xlu0 %4780
      %v4783 = vsel %vm1195, %v4704, 0
      %v4786 = vsel %vm1199, %v4781, 0
      %4788 = vmatpush.bf16.msra.mxu0 0
      %4789 = vmatpush.bf16.msra.mxu0 0
      %4790 = vmatpush.bf16.msra.mxu0 0
      %4791 = vmatpush.bf16.msra.mxu0 0
      %4792 = vmatpush.bf16.msra.mxu0 0
      %4793 = vmatpush.bf16.msra.mxu0 0
      %4794 = vmatpush.bf16.msra.mxu0 0
      %4795 = vmatpush.bf16.msra.mxu0 %v4786
      %4796 = vmatmul.bf16.gmra.mxu0 %v4783
      %v4797 = vpop.f32.mrf.mxu0
      %v4798 = vadd.f32 0.0, %v4797
      %v4799 = vpop.f32.mrf.mxu0
      %4800 = vdwg.mxu0
      %4801 = vrot.lane.b32.xlu0 %v2495, 104
      %v4802 = vpop.permute.xlu0 %4801
      %v4804 = vsel %vm1195, %v4705, 0
      %v4807 = vsel %vm1199, %v4802, 0
      %4809 = vmatpush.bf16.msra.mxu0 0
      %4810 = vmatpush.bf16.msra.mxu0 0
      %4811 = vmatpush.bf16.msra.mxu0 0
      %4812 = vmatpush.bf16.msra.mxu0 0
      %4813 = vmatpush.bf16.msra.mxu0 0
      %4814 = vmatpush.bf16.msra.mxu0 0
      %4815 = vmatpush.bf16.msra.mxu0 0
      %4816 = vmatpush.bf16.msra.mxu0 %v4807
      %4817 = vmatmul.bf16.gmra.mxu0 %v4804
      %v4818 = vpop.f32.mrf.mxu0
      %v4819 = vadd.f32 0.0, %v4818
      %v4820 = vpop.f32.mrf.mxu0
      %4821 = vdwg.mxu0
      %4822 = vrot.lane.b32.xlu0 %v2519, 104
      %v4823 = vpop.permute.xlu0 %4822
      %v4825 = vsel %vm1195, %v4706, 0
      %v4828 = vsel %vm1199, %v4823, 0
      %4830 = vmatpush.bf16.msra.mxu0 0
      %4831 = vmatpush.bf16.msra.mxu0 0
      %4832 = vmatpush.bf16.msra.mxu0 0
      %4833 = vmatpush.bf16.msra.mxu0 0
      %4834 = vmatpush.bf16.msra.mxu0 0
      %4835 = vmatpush.bf16.msra.mxu0 0
      %4836 = vmatpush.bf16.msra.mxu0 0
      %4837 = vmatpush.bf16.msra.mxu0 %v4828
      %4838 = vmatmul.bf16.gmra.mxu0 %v4825
      %v4839 = vpop.f32.mrf.mxu0
      %v4840 = vadd.f32 0.0, %v4839
      %v4841 = vpop.f32.mrf.mxu0
      %4842 = vdwg.mxu0
      %4843 = vrot.lane.b32.xlu0 %v2543, 104
      %v4844 = vpop.permute.xlu0 %4843
      %v4846 = vsel %vm1195, %v4707, 0
      %v4849 = vsel %vm1199, %v4844, 0
      %4851 = vmatpush.bf16.msra.mxu0 0
      %4852 = vmatpush.bf16.msra.mxu0 0
      %4853 = vmatpush.bf16.msra.mxu0 0
      %4854 = vmatpush.bf16.msra.mxu0 0
      %4855 = vmatpush.bf16.msra.mxu0 0
      %4856 = vmatpush.bf16.msra.mxu0 0
      %4857 = vmatpush.bf16.msra.mxu0 0
      %4858 = vmatpush.bf16.msra.mxu0 %v4849
      %4859 = vmatmul.bf16.gmra.mxu0 %v4846
      %v4860 = vpop.f32.mrf.mxu0
      %v4861 = vadd.f32 0.0, %v4860
      %v4862 = vpop.f32.mrf.mxu0
      %4863 = vdwg.mxu0
      %4864 = vrot.lane.b32.xlu0 %v2567, 104
      %v4865 = vpop.permute.xlu0 %4864
      %v4867 = vsel %vm1195, %v4708, 0
      %v4870 = vsel %vm1199, %v4865, 0
      %4872 = vmatpush.bf16.msra.mxu0 0
      %4873 = vmatpush.bf16.msra.mxu0 0
      %4874 = vmatpush.bf16.msra.mxu0 0
      %4875 = vmatpush.bf16.msra.mxu0 0
      %4876 = vmatpush.bf16.msra.mxu0 0
      %4877 = vmatpush.bf16.msra.mxu0 0
      %4878 = vmatpush.bf16.msra.mxu0 0
      %4879 = vmatpush.bf16.msra.mxu0 %v4870
      %4880 = vmatmul.bf16.gmra.mxu0 %v4867
      %v4881 = vpop.f32.mrf.mxu0
      %v4882 = vadd.f32 0.0, %v4881
      %v4883 = vpop.f32.mrf.mxu0
      %4884 = vdwg.mxu0
      %4885 = vrot.lane.b32.xlu0 %v2591, 104
      %v4886 = vpop.permute.xlu0 %4885
      %v4888 = vsel %vm1195, %v4709, 0
      %v4891 = vsel %vm1199, %v4886, 0
      %4893 = vmatpush.bf16.msra.mxu0 0
      %4894 = vmatpush.bf16.msra.mxu0 0
      %4895 = vmatpush.bf16.msra.mxu0 0
      %4896 = vmatpush.bf16.msra.mxu0 0
      %4897 = vmatpush.bf16.msra.mxu0 0
      %4898 = vmatpush.bf16.msra.mxu0 0
      %4899 = vmatpush.bf16.msra.mxu0 0
      %4900 = vmatpush.bf16.msra.mxu0 %v4891
      %4901 = vmatmul.bf16.gmra.mxu0 %v4888
      %v4902 = vpop.f32.mrf.mxu0
      %v4903 = vadd.f32 0.0, %v4902
      %v4904 = vpop.f32.mrf.mxu0
      %4905 = vdwg.mxu0
      %4906 = vrot.lane.b32.xlu0 %v2615, 104
      %v4907 = vpop.permute.xlu0 %4906
      %v4909 = vsel %vm1195, %v4710, 0
      %v4912 = vsel %vm1199, %v4907, 0
      %4914 = vmatpush.bf16.msra.mxu0 0
      %4915 = vmatpush.bf16.msra.mxu0 0
      %4916 = vmatpush.bf16.msra.mxu0 0
      %4917 = vmatpush.bf16.msra.mxu0 0
      %4918 = vmatpush.bf16.msra.mxu0 0
      %4919 = vmatpush.bf16.msra.mxu0 0
      %4920 = vmatpush.bf16.msra.mxu0 0
      %4921 = vmatpush.bf16.msra.mxu0 %v4912
      %4922 = vmatmul.bf16.gmra.mxu0 %v4909
      %v4923 = vpop.f32.mrf.mxu0
      %v4924 = vadd.f32 0.0, %v4923
      %v4925 = vpop.f32.mrf.mxu0
      %4926 = vdwg.mxu0
      %4927 = vrot.lane.b32.xlu0 %v2639, 104
      %v4928 = vpop.permute.xlu0 %4927
      %v4930 = vsel %vm1195, %v4711, 0
      %v4933 = vsel %vm1199, %v4928, 0
      %4935 = vmatpush.bf16.msra.mxu0 0
      %4936 = vmatpush.bf16.msra.mxu0 0
      %4937 = vmatpush.bf16.msra.mxu0 0
      %4938 = vmatpush.bf16.msra.mxu0 0
      %4939 = vmatpush.bf16.msra.mxu0 0
      %4940 = vmatpush.bf16.msra.mxu0 0
      %4941 = vmatpush.bf16.msra.mxu0 0
      %4942 = vmatpush.bf16.msra.mxu0 %v4933
      %4943 = vmatmul.bf16.gmra.mxu0 %v4930
      %v4944 = vpop.f32.mrf.mxu0
      %v4945 = vadd.f32 0.0, %v4944
      %v4946 = vpop.f32.mrf.mxu0
      %4947 = vdwg.mxu0
      %4948 = vrot.lane.b32.xlu0 %v2663, 104
      %v4949 = vpop.permute.xlu0 %4948
      %v4951 = vsel %vm1195, %v4712, 0
      %v4954 = vsel %vm1199, %v4949, 0
      %4956 = vmatpush.bf16.msra.mxu0 0
      %4957 = vmatpush.bf16.msra.mxu0 0
      %4958 = vmatpush.bf16.msra.mxu0 0
      %4959 = vmatpush.bf16.msra.mxu0 0
      %4960 = vmatpush.bf16.msra.mxu0 0
      %4961 = vmatpush.bf16.msra.mxu0 0
      %4962 = vmatpush.bf16.msra.mxu0 0
      %4963 = vmatpush.bf16.msra.mxu0 %v4954
      %4964 = vmatmul.bf16.gmra.mxu0 %v4951
      %v4965 = vpop.f32.mrf.mxu0
      %v4966 = vadd.f32 0.0, %v4965
      %v4967 = vpop.f32.mrf.mxu0
      %4968 = vdwg.mxu0
      %4969 = vrot.lane.b32.xlu0 %v2687, 104
      %v4970 = vpop.permute.xlu0 %4969
      %v4972 = vsel %vm1195, %v4713, 0
      %v4975 = vsel %vm1199, %v4970, 0
      %4977 = vmatpush.bf16.msra.mxu0 0
      %4978 = vmatpush.bf16.msra.mxu0 0
      %4979 = vmatpush.bf16.msra.mxu0 0
      %4980 = vmatpush.bf16.msra.mxu0 0
      %4981 = vmatpush.bf16.msra.mxu0 0
      %4982 = vmatpush.bf16.msra.mxu0 0
      %4983 = vmatpush.bf16.msra.mxu0 0
      %4984 = vmatpush.bf16.msra.mxu0 %v4975
      %4985 = vmatmul.bf16.gmra.mxu0 %v4972
      %v4986 = vpop.f32.mrf.mxu0
      %v4987 = vadd.f32 0.0, %v4986
      %v4988 = vpop.f32.mrf.mxu0
      %4989 = vdwg.mxu0
      %4990 = vrot.lane.b32.xlu0 %v2711, 104
      %v4991 = vpop.permute.xlu0 %4990
      %v4993 = vsel %vm1195, %v4714, 0
      %v4996 = vsel %vm1199, %v4991, 0
      %4998 = vmatpush.bf16.msra.mxu0 0
      %4999 = vmatpush.bf16.msra.mxu0 0
      %5000 = vmatpush.bf16.msra.mxu0 0
      %5001 = vmatpush.bf16.msra.mxu0 0
      %5002 = vmatpush.bf16.msra.mxu0 0
      %5003 = vmatpush.bf16.msra.mxu0 0
      %5004 = vmatpush.bf16.msra.mxu0 0
      %5005 = vmatpush.bf16.msra.mxu0 %v4996
      %5006 = vmatmul.bf16.gmra.mxu0 %v4993
      %v5007 = vpop.f32.mrf.mxu0
      %v5008 = vadd.f32 0.0, %v5007
      %v5009 = vpop.f32.mrf.mxu0
      %5010 = vdwg.mxu0
      %5011 = vrot.lane.b32.xlu0 %v2735, 104
      %v5012 = vpop.permute.xlu0 %5011
      %v5014 = vsel %vm1195, %v4715, 0
      %v5017 = vsel %vm1199, %v5012, 0
      %5019 = vmatpush.bf16.msra.mxu0 0
      %5020 = vmatpush.bf16.msra.mxu0 0
      %5021 = vmatpush.bf16.msra.mxu0 0
      %5022 = vmatpush.bf16.msra.mxu0 0
      %5023 = vmatpush.bf16.msra.mxu0 0
      %5024 = vmatpush.bf16.msra.mxu0 0
      %5025 = vmatpush.bf16.msra.mxu0 0
      %5026 = vmatpush.bf16.msra.mxu0 %v5017
      %5027 = vmatmul.bf16.gmra.mxu0 %v5014
      %v5028 = vpop.f32.mrf.mxu0
      %v5029 = vadd.f32 0.0, %v5028
      %v5030 = vpop.f32.mrf.mxu0
      %5031 = vdwg.mxu0
      %5032 = vrot.lane.b32.xlu0 %v2759, 104
      %v5033 = vpop.permute.xlu0 %5032
      %v5035 = vsel %vm1195, %v4716, 0
      %v5038 = vsel %vm1199, %v5033, 0
      %5040 = vmatpush.bf16.msra.mxu0 0
      %5041 = vmatpush.bf16.msra.mxu0 0
      %5042 = vmatpush.bf16.msra.mxu0 0
      %5043 = vmatpush.bf16.msra.mxu0 0
      %5044 = vmatpush.bf16.msra.mxu0 0
      %5045 = vmatpush.bf16.msra.mxu0 0
      %5046 = vmatpush.bf16.msra.mxu0 0
      %5047 = vmatpush.bf16.msra.mxu0 %v5038
      %5048 = vmatmul.bf16.gmra.mxu0 %v5035
      %v5049 = vpop.f32.mrf.mxu0
      %v5050 = vadd.f32 0.0, %v5049
      %v5051 = vpop.f32.mrf.mxu0
      %5052 = vdwg.mxu0
      %5069 = vrot.lane.b32.xlu0 %v2418, 8
      %v5070 = vpop.permute.xlu0 %5069
      %5071 = vrot.lane.b32.xlu0 %v2442, 8
      %v5072 = vpop.permute.xlu0 %5071
      %5073 = vrot.lane.b32.xlu0 %v2466, 8
      %v5074 = vpop.permute.xlu0 %5073
      %5075 = vrot.lane.b32.xlu0 %v2490, 8
      %v5076 = vpop.permute.xlu0 %5075
      %5077 = vrot.lane.b32.xlu0 %v2514, 8
      %v5078 = vpop.permute.xlu0 %5077
      %5079 = vrot.lane.b32.xlu0 %v2538, 8
      %v5080 = vpop.permute.xlu0 %5079
      %5081 = vrot.lane.b32.xlu0 %v2562, 8
      %v5082 = vpop.permute.xlu0 %5081
      %5083 = vrot.lane.b32.xlu0 %v2586, 8
      %v5084 = vpop.permute.xlu0 %5083
      %5085 = vrot.lane.b32.xlu0 %v2610, 8
      %v5086 = vpop.permute.xlu0 %5085
      %5087 = vrot.lane.b32.xlu0 %v2634, 8
      %v5088 = vpop.permute.xlu0 %5087
      %5089 = vrot.lane.b32.xlu0 %v2658, 8
      %v5090 = vpop.permute.xlu0 %5089
      %5091 = vrot.lane.b32.xlu0 %v2682, 8
      %v5092 = vpop.permute.xlu0 %5091
      %5093 = vrot.lane.b32.xlu0 %v2706, 8
      %v5094 = vpop.permute.xlu0 %5093
      %5095 = vrot.lane.b32.xlu0 %v2730, 8
      %v5096 = vpop.permute.xlu0 %5095
      %5097 = vrot.lane.b32.xlu0 %v2754, 8
      %v5098 = vpop.permute.xlu0 %5097
      %5099 = vrot.lane.b32.xlu0 %v2778, 8
      %v5100 = vpop.permute.xlu0 %5099
      %5133 = vrot.lane.b32.xlu0 %v3599, 16
      %v5134 = vpop.permute.xlu0 %5133
      %5135 = vrot.lane.b32.xlu0 %v3620, 16
      %v5136 = vpop.permute.xlu0 %5135
      %5137 = vrot.lane.b32.xlu0 %v3641, 16
      %v5138 = vpop.permute.xlu0 %5137
      %5139 = vrot.lane.b32.xlu0 %v3662, 16
      %v5140 = vpop.permute.xlu0 %5139
      %5141 = vrot.lane.b32.xlu0 %v3683, 16
      %v5142 = vpop.permute.xlu0 %5141
      %5143 = vrot.lane.b32.xlu0 %v3704, 16
      %v5144 = vpop.permute.xlu0 %5143
      %5145 = vrot.lane.b32.xlu0 %v3725, 16
      %v5146 = vpop.permute.xlu0 %5145
      %5147 = vrot.lane.b32.xlu0 %v3746, 16
      %v5148 = vpop.permute.xlu0 %5147
      %5149 = vrot.lane.b32.xlu0 %v3767, 16
      %v5150 = vpop.permute.xlu0 %5149
      %5151 = vrot.lane.b32.xlu0 %v3788, 16
      %v5152 = vpop.permute.xlu0 %5151
      %5153 = vrot.lane.b32.xlu0 %v3809, 16
      %v5154 = vpop.permute.xlu0 %5153
      %5155 = vrot.lane.b32.xlu0 %v3830, 16
      %v5156 = vpop.permute.xlu0 %5155
      %5157 = vrot.lane.b32.xlu0 %v3851, 16
      %v5158 = vpop.permute.xlu0 %5157
      %5159 = vrot.lane.b32.xlu0 %v3872, 16
      %v5160 = vpop.permute.xlu0 %5159
      %5161 = vrot.lane.b32.xlu0 %v3893, 16
      %v5162 = vpop.permute.xlu0 %5161
      %5163 = vrot.lane.b32.xlu0 %v3914, 16
      %v5164 = vpop.permute.xlu0 %5163
      %5197 = vrot.lane.b32.xlu0 %v4735, 24
      %v5198 = vpop.permute.xlu0 %5197
      %5199 = vrot.lane.b32.xlu0 %v4756, 24
      %v5200 = vpop.permute.xlu0 %5199
      %5201 = vrot.lane.b32.xlu0 %v4777, 24
      %v5202 = vpop.permute.xlu0 %5201
      %5203 = vrot.lane.b32.xlu0 %v4798, 24
      %v5204 = vpop.permute.xlu0 %5203
      %5205 = vrot.lane.b32.xlu0 %v4819, 24
      %v5206 = vpop.permute.xlu0 %5205
      %5207 = vrot.lane.b32.xlu0 %v4840, 24
      %v5208 = vpop.permute.xlu0 %5207
      %5209 = vrot.lane.b32.xlu0 %v4861, 24
      %v5210 = vpop.permute.xlu0 %5209
      %5211 = vrot.lane.b32.xlu0 %v4882, 24
      %v5212 = vpop.permute.xlu0 %5211
      %5213 = vrot.lane.b32.xlu0 %v4903, 24
      %v5214 = vpop.permute.xlu0 %5213
      %5215 = vrot.lane.b32.xlu0 %v4924, 24
      %v5216 = vpop.permute.xlu0 %5215
      %5217 = vrot.lane.b32.xlu0 %v4945, 24
      %v5218 = vpop.permute.xlu0 %5217
      %5219 = vrot.lane.b32.xlu0 %v4966, 24
      %v5220 = vpop.permute.xlu0 %5219
      %5221 = vrot.lane.b32.xlu0 %v4987, 24
      %v5222 = vpop.permute.xlu0 %5221
      %5223 = vrot.lane.b32.xlu0 %v5008, 24
      %v5224 = vpop.permute.xlu0 %5223
      %5225 = vrot.lane.b32.xlu0 %v5029, 24
      %v5226 = vpop.permute.xlu0 %5225
      %5227 = vrot.lane.b32.xlu0 %v5050, 24
      %v5228 = vpop.permute.xlu0 %5227
      %v5245 = vsel %vm393, %v1213, %v5070
      %v5246 = vsel %vm393, %v1232, %v5072
      %v5247 = vsel %vm393, %v1251, %v5074
      %v5248 = vsel %vm393, %v1270, %v5076
      %v5249 = vsel %vm393, %v1289, %v5078
      %v5250 = vsel %vm393, %v1308, %v5080
      %v5251 = vsel %vm393, %v1327, %v5082
      %v5252 = vsel %vm393, %v1346, %v5084
      %v5253 = vsel %vm393, %v1365, %v5086
      %v5254 = vsel %vm393, %v1384, %v5088
      %v5255 = vsel %vm393, %v1403, %v5090
      %v5256 = vsel %vm393, %v1422, %v5092
      %v5257 = vsel %vm393, %v1441, %v5094
      %v5258 = vsel %vm393, %v1460, %v5096
      %v5259 = vsel %vm393, %v1479, %v5098
      %v5260 = vsel %vm393, %v1498, %v5100
      %vm5261 = vcmask 130048
      %v5262 = vsel %vm5261, %v5245, %v5134
      %v5263 = vsel %vm5261, %v5246, %v5136
      %v5264 = vsel %vm5261, %v5247, %v5138
      %v5265 = vsel %vm5261, %v5248, %v5140
      %v5266 = vsel %vm5261, %v5249, %v5142
      %v5267 = vsel %vm5261, %v5250, %v5144
      %v5268 = vsel %vm5261, %v5251, %v5146
      %v5269 = vsel %vm5261, %v5252, %v5148
      %v5270 = vsel %vm5261, %v5253, %v5150
      %v5271 = vsel %vm5261, %v5254, %v5152
      %v5272 = vsel %vm5261, %v5255, %v5154
      %v5273 = vsel %vm5261, %v5256, %v5156
      %v5274 = vsel %vm5261, %v5257, %v5158
      %v5275 = vsel %vm5261, %v5258, %v5160
      %v5276 = vsel %vm5261, %v5259, %v5162
      %v5277 = vsel %vm5261, %v5260, %v5164
      %vm5278 = vcmask 195584
      %v5279 = vsel %vm5278, %v5262, %v5198
      %v5280 = vsel %vm5278, %v5263, %v5200
      %v5281 = vsel %vm5278, %v5264, %v5202
      %v5282 = vsel %vm5278, %v5265, %v5204
      %v5283 = vsel %vm5278, %v5266, %v5206
      %v5284 = vsel %vm5278, %v5267, %v5208
      %v5285 = vsel %vm5278, %v5268, %v5210
      %v5286 = vsel %vm5278, %v5269, %v5212
      %v5287 = vsel %vm5278, %v5270, %v5214
      %v5288 = vsel %vm5278, %v5271, %v5216
      %v5289 = vsel %vm5278, %v5272, %v5218
      %v5290 = vsel %vm5278, %v5273, %v5220
      %v5291 = vsel %vm5278, %v5274, %v5222
      %v5292 = vsel %vm5278, %v5275, %v5224
      %v5293 = vsel %vm5278, %v5276, %v5226
      %v5294 = vsel %vm5278, %v5277, %v5228
      %vm5295 = vcmask 257024
      %5296 = vst.msk [vmem:[%s262] sm:$0xf] %vm5295, %v5279
      %5297 = vst.msk [vmem:[%s262 + $0x4] sm:$0xf] %vm5295, %v5280
      %5298 = vst.msk [vmem:[%s262 + $0x8] sm:$0xf] %vm5295, %v5281
      %5299 = vst.msk [vmem:[%s262 + $0xc] sm:$0xf] %vm5295, %v5282
      %5300 = vst.msk [vmem:[%s262 + $0x10] sm:$0xf] %vm5295, %v5283
      %5301 = vst.msk [vmem:[%s262 + $0x14] sm:$0xf] %vm5295, %v5284
      %5302 = vst.msk [vmem:[%s262 + $0x18] sm:$0xf] %vm5295, %v5285
      %5303 = vst.msk [vmem:[%s262 + $0x1c] sm:$0xf] %vm5295, %v5286
      %5304 = vst.msk [vmem:[%s262 + $0x20] sm:$0xf] %vm5295, %v5287
      %5305 = vst.msk [vmem:[%s262 + $0x24] sm:$0xf] %vm5295, %v5288
      %5306 = vst.msk [vmem:[%s262 + $0x28] sm:$0xf] %vm5295, %v5289
      %5307 = vst.msk [vmem:[%s262 + $0x2c] sm:$0xf] %vm5295, %v5290
      %5308 = vst.msk [vmem:[%s262 + $0x30] sm:$0xf] %vm5295, %v5291
      %5309 = vst.msk [vmem:[%s262 + $0x34] sm:$0xf] %vm5295, %v5292
      %5310 = vst.msk [vmem:[%s262 + $0x38] sm:$0xf] %vm5295, %v5293
      %5311 = vst.msk [vmem:[%s262 + $0x3c] sm:$0xf] %vm5295, %v5294
      %s5312 = smul.u32 16, %s15
      %p5313 = scmp.lt.s32.totalorder %s5312, 31
      %s5314 = scalar_select %p5313, %s5312, 31
      %s5315 = smul.addr %s5314, 4
      %s5316 = scalar_lea.vmem %s4, %s5315
      // Predicated region
      $region37: #{msa_embedder_forward.23} parent=35 // pred_check
        %p5317 = pneg %p137
      $region38: #{msa_embedder_forward.23} parent=35 // pred_check_branch
        %5319 = sbr.rel (%p5317) target = $region40
      $region39: #{msa_embedder_forward.23} parent=35 // pred_region
        %s5320 = smul.u32 16, %s15
      $region40: #{msa_embedder_forward.23} parent=35 // pred_fallthru
        _
    $region36: #{msa_embedder_forward.23} parent=5 // pred_fallthru
      _
    %p5321 = scmp.le.s32.totalorder 2, %s10
    // Predicated region
    $region41: #{msa_embedder_forward.23} parent=5 // pred_check
      %p5322 = pneg %p5321
    $region42: #{msa_embedder_forward.23} parent=5 // pred_check_branch
      %5324 = sbr.rel (%p5322) target = $region44
    $region43: #{msa_embedder_forward.23} parent=5 // pred_region
      %s5325 = ssub.s32 %s10, 2
      // Predicated region
      $region45: #{msa_embedder_forward.23} parent=43 // pred_check
        %p5326 = pneg %p143
      $region46: #{msa_embedder_forward.23} parent=43 // pred_check_branch
        %5328 = sbr.rel (%p5326) target = $region48
      $region47: #{msa_embedder_forward.23} parent=43 // pred_region
        %s5329 = smul.u32 16, %s16
        %p5330 = scmp.lt.s32.totalorder %s5329, 31
        %s5331 = scalar_select %p5330, %s5329, 31
        %s5332 = smul.addr %s5331, 4
        %s5333 = scalar_lea.vmem %s4, %s5332
      $region48: #{msa_embedder_forward.23} parent=43 // pred_fallthru
        _
    $region44: #{msa_embedder_forward.23} parent=5 // pred_fallthru
      _
  $region6: #{msa_embedder_forward.23} parent=0 // loop_footer
    %s14 = sadd.s32 1, %s10
  $region7: #{msa_embedder_forward.23} parent=0 // loop_footer_branch
    %9 = sbr.rel target = $region3
  $region8: #{msa_embedder_forward.23} parent=0 // loop_exit
    _

</llo_original>
